<compile_context>
chip_gen: v7x
topology: tpu7x:2x2x1
jax: 0.10.0
libtpu: 0.0.40
codegen_flags: <defaults>
</compile_context>

<pallas_src>
import functools

import jax
import jax.numpy as jnp
from jax import lax
from jax.experimental import pallas as pl
from jax.experimental.pallas import tpu as pltpu


# ------------------------------ Pallas kernel ------------------------------

def _deconv_bn_kernel(x_ref, w_ref, b_ref, g_ref, beta_ref, o_ref, *, use_bn, eps):
    """Fused ConvTranspose2d(4, 2, 1) + bias + train-mode BatchNorm2d.

    x_ref    : (N, H+2, W+2, Cin) f32   zero-padded NHWC input (full block)
    w_ref    : (1, 4, 4*Cin, tn)  bf16  sub-pixel weight mats for this channel group
    b_ref    : (1, 1, tn)         f32   conv bias
    g_ref    : (1, 1, tn)         f32   BN gamma
    beta_ref : (1, 1, tn)         f32   BN beta
    o_ref    : (M, 4*tn)          f32   output stripe, M = N*H*W,
                                        column = (2*r + s)*tn + channel_in_group
    """
    N, Hp, Wp, Cin = x_ref.shape
    H, W = Hp - 2, Wp - 2
    M = N * H * W
    tn = b_ref.shape[-1]

    bias = b_ref[0]                                   # (1, tn)

    accs = []
    sum_c = jnp.zeros((1, tn), jnp.float32)
    sumsq_c = jnp.zeros((1, tn), jnp.float32)

    # Unrolled loop over the 4 output parities (r, s).  Each parity is a 2x2
    # stride-1 conv over the padded input == one (M, 4*Cin) x (4*Cin, tn) matmul.
    for r in range(2):
        for s in range(2):
            taps = [x_ref[:, r + dr:r + dr + H, s + ds:s + ds + W, :]
                    for dr in range(2) for ds in range(2)]        # (N,H,W,Cin) each
            patches = (jnp.concatenate(taps, axis=3)              # (N,H,W,4*Cin)
                       .reshape(M, 4 * Cin)
                       .astype(jnp.bfloat16))
            acc = jnp.dot(patches, w_ref[0, 2 * r + s],
                          preferred_element_type=jnp.float32) + bias   # (M, tn) f32
            accs.append(acc)
            if use_bn:
                sum_c = sum_c + jnp.sum(acc, axis=0, keepdims=True)
                sumsq_c = sumsq_c + jnp.sum(acc * acc, axis=0, keepdims=True)

    y = jnp.concatenate(accs, axis=1)                 # (M, 4*tn), parity-major cols

    if use_bn:
        inv_m = 1.0 / float(4 * M)                    # multiply, don't divide
        mean = sum_c * inv_m
        var = sumsq_c * inv_m - mean * mean           # biased var (train-mode BN)
        scale = g_ref[0] * lax.rsqrt(var + eps)       # (1, tn)
        shift = beta_ref[0] - mean * scale            # (1, tn)
        y = y * jnp.tile(scale, (1, 4)) + jnp.tile(shift, (1, 4))

    o_ref[...] = y.astype(o_ref.dtype)


# ------------------------------ JAX wrapper ---------------------------------

def _pick_channel_tile(cout):
    # Largest per-step channel tile that keeps each output stripe (4*tn) a
    # multiple of 128 lanes while still giving >= 2 grid steps (so both v7x
    # TensorCores get work).  Falls back to a single full-Cout step.
    for tn in (128, 64, 32):
        if cout % tn == 0 and cout // tn >= 2:
            return tn
    return cout


def _subpixel_weights(w):
    """(Cin, Cout, 4, 4) ConvTranspose2d weight -> (4, 4*Cin, Cout) sub-kernels.

    Output parity (r, s) of the stride-2 transposed conv combines padded-input
    taps (dr, ds) in {0,1}^2 with original kernel taps (3-r-2*dr, 3-s-2*ds).
    """
    w_k = jnp.transpose(w, (2, 3, 0, 1))              # (kh, kw, Cin, Cout)
    mats = []
    for r in range(2):
        for s in range(2):
            taps = [w_k[3 - r - 2 * dr, 3 - s - 2 * ds]
                    for dr in range(2) for ds in range(2)]   # (Cin, Cout) each
            mats.append(jnp.concatenate(taps, axis=0))       # (4*Cin, Cout)
    return jnp.stack(mats, axis=0)                    # (4, 4*Cin, Cout)


@functools.partial(jax.jit, static_argnames=("batchnorm", "activation", "dropout"))
def upsample_conv_forward(params, x_nchw, *, batchnorm=True, activation=True,
                          dropout=False):
    """UpSampleConv.forward: NCHW in, NCHW out (spatial upsampled 2x)."""
    del activation  # self.act is constructed but never applied in forward()
    # TODO(synk): dropout=True (nn.Dropout2d(0.5), training-time RNG) not implemented.
    del dropout

    w, b = params["w"], params["b"]
    gamma, beta = params["gamma"], params["beta"]
    N, Cin, H, W = x_nchw.shape
    Cout = w.shape[1]
    M = N * H * W
    tn = _pick_channel_tile(Cout)
    G = Cout // tn

    # NCHW -> NHWC, zero-pad by one ring (what the sub-pixel formulation of the
    # k=4 / s=2 / p=1 transposed conv needs).
    x = jnp.transpose(x_nchw, (0, 2, 3, 1))
    xp = jnp.pad(x, ((0, 0), (1, 1), (1, 1), (0, 0)))

    # Group the channel dimension so every BlockSpec's last two dims equal the
    # full array dims (keeps Mosaic's (8,128) block constraints trivially met).
    w_sub = (_subpixel_weights(w).astype(jnp.bfloat16)
             .reshape(4, 4 * Cin, G, tn).transpose(2, 0, 1, 3))   # (G, 4, 4Cin, tn)
    b_g = b.reshape(G, 1, tn).astype(jnp.float32)
    gamma_g = gamma.reshape(G, 1, tn).astype(jnp.float32)
    beta_g = beta.reshape(G, 1, tn).astype(jnp.float32)

    kernel = functools.partial(_deconv_bn_kernel, use_bn=batchnorm, eps=1e-5)
    out = pl.pallas_call(
        kernel,
        out_shape=jax.ShapeDtypeStruct((M, 4 * Cout), jnp.float32),
        grid=(G,),
        in_specs=[
            pl.BlockSpec((N, H + 2, W + 2, Cin), lambda j: (0, 0, 0, 0)),
            pl.BlockSpec((1, 4, 4 * Cin, tn), lambda j: (j, 0, 0, 0)),
            pl.BlockSpec((1, 1, tn), lambda j: (j, 0, 0)),
            pl.BlockSpec((1, 1, tn), lambda j: (j, 0, 0)),
            pl.BlockSpec((1, 1, tn), lambda j: (j, 0, 0)),
        ],
        out_specs=pl.BlockSpec((M, 4 * tn), lambda j: (0, j)),
        compiler_params=pltpu.CompilerParams(
            dimension_semantics=("parallel",)),
    )(xp, w_sub, b_g, gamma_g, beta_g)

    # Columns of `out` are (group, parity_r, parity_s, channel_in_group);
    # pixel-shuffle back to (N, 2H, 2W, Cout), then NHWC -> NCHW.
    y = out.reshape(N, H, W, G, 2, 2, tn)
    y = jnp.transpose(y, (0, 1, 4, 2, 5, 3, 6)).reshape(N, 2 * H, 2 * W, Cout)
    return jnp.transpose(y, (0, 3, 1, 2))


# ------------------------------ init + reference ----------------------------

def init_upsample_conv_params(key, in_channels, out_channels, kernel=4):
    """Fresh nn.ConvTranspose2d + nn.BatchNorm2d parameters (PyTorch-style init)."""
    k1, k2 = jax.random.split(key)
    bound = 1.0 / float(out_channels * kernel * kernel) ** 0.5
    return {
        "w": jax.random.uniform(k1, (in_channels, out_channels, kernel, kernel),
                                jnp.float32, -bound, bound),
        "b": jax.random.uniform(k2, (out_channels,), jnp.float32, -bound, bound),
        "gamma": jnp.ones((out_channels,), jnp.float32),
        "beta": jnp.zeros((out_channels,), jnp.float32),
    }


@jax.jit
def _reference_forward(params, x_nchw):
    """Pure-XLA reference: ConvTranspose2d(4,2,1) + train-mode BatchNorm2d."""
    w, b = params["w"], params["b"]
    rhs = jnp.transpose(w, (1, 0, 2, 3))[:, :, ::-1, ::-1]   # (Cout, Cin, 4, 4) flipped
    y = lax.conv_general_dilated(
        x_nchw, rhs, window_strides=(1, 1), padding=((2, 2), (2, 2)),
        lhs_dilation=(2, 2), dimension_numbers=("NCHW", "OIHW", "NCHW"))
    y = y + b.reshape(1, -1, 1, 1)
    mean = jnp.mean(y, axis=(0, 2, 3), keepdims=True)
    var = jnp.mean(jnp.square(y - mean), axis=(0, 2, 3), keepdims=True)
    y = (y - mean) * lax.rsqrt(var + 1e-5)
    return (y * params["gamma"].reshape(1, -1, 1, 1)
            + params["beta"].reshape(1, -1, 1, 1))


if __name__ == "__main__":
    key = jax.random.PRNGKey(0)
    kx, kp = jax.random.split(key)
    N, Cin, H, W = 2, 4, 16, 16
    Cout = 64
    x = jax.random.normal(kx, (N, Cin, H, W), jnp.float32)
    params = init_upsample_conv_params(kp, Cin, Cout)

    out = jax.block_until_ready(upsample_conv_forward(params, x))
    assert out.shape == (N, Cout, 2 * H, 2 * W), out.shape

    ref = jax.block_until_ready(_reference_forward(params, x))
    err = float(jnp.max(jnp.abs(out - ref)))
    assert err < 1e-1, f"max |pallas - reference| = {err}"

    print("KERNEL_OK")
</pallas_src>

<mosaic_0001>
module attributes {stable_mosaic.version = 11 : i64} {
  func.func @_deconv_bn_kernel(%arg0: i32, %arg1: memref<2x18x18x4xf32, #tpu.memory_space<vmem>>, %arg2: memref<1x4x16x32xbf16, #tpu.memory_space<vmem>>, %arg3: memref<1x1x32xf32, #tpu.memory_space<vmem>>, %arg4: memref<1x1x32xf32, #tpu.memory_space<vmem>>, %arg5: memref<1x1x32xf32, #tpu.memory_space<vmem>>, %arg6: memref<512x128xf32, #tpu.memory_space<vmem>>) attributes {dimension_semantics = [#tpu.dimension_semantics<parallel>], iteration_bounds = array<i64: 2>, scalar_prefetch = 0 : i64, scratch_operands = 0 : i64, tpu.core_type = #tpu.core_type<tc>, window_params = [{pipeline_mode = #tpu.pipeline_mode<synchronous>, transform_indices = @transform_0, window_bounds = array<i64: 2, 18, 18, 4>}, {transform_indices = @transform_1, window_bounds = array<i64: 1, 4, 16, 32>}, {transform_indices = @transform_2, window_bounds = array<i64: 1, 1, 32>}, {transform_indices = @transform_3, window_bounds = array<i64: 1, 1, 32>}, {transform_indices = @transform_4, window_bounds = array<i64: 1, 1, 32>}, {transform_indices = @transform_5, window_bounds = array<i64: 512, 128>}]} {
    %c0 = arith.constant 0 : index
    %c0_0 = arith.constant 0 : index
    %c0_1 = arith.constant 0 : index
    %0 = vector.load %arg3[%c0, %c0_0, %c0_1] : memref<1x1x32xf32, #tpu.memory_space<vmem>>, vector<1x1x32xf32>
    %1 = vector.shape_cast %0 : vector<1x1x32xf32> to vector<1x32xf32>
    %cst = arith.constant 0.000000e+00 : f32
    %2 = vector.broadcast %cst : f32 to vector<1x32xf32>
    %cst_2 = arith.constant 0.000000e+00 : f32
    %3 = vector.broadcast %cst_2 : f32 to vector<1x32xf32>
    %c0_3 = arith.constant 0 : index
    %c0_4 = arith.constant 0 : index
    %c0_5 = arith.constant 0 : index
    %c0_6 = arith.constant 0 : index
    %4 = vector.load %arg1[%c0_3, %c0_4, %c0_5, %c0_6] : memref<2x18x18x4xf32, #tpu.memory_space<vmem>>, vector<2x16x16x4xf32>
    %c0_7 = arith.constant 0 : index
    %c0_8 = arith.constant 0 : index
    %c1 = arith.constant 1 : index
    %c0_9 = arith.constant 0 : index
    %5 = vector.load %arg1[%c0_7, %c0_8, %c1, %c0_9] : memref<2x18x18x4xf32, #tpu.memory_space<vmem>>, vector<2x16x16x4xf32>
    %c0_10 = arith.constant 0 : index
    %c1_11 = arith.constant 1 : index
    %c0_12 = arith.constant 0 : index
    %c0_13 = arith.constant 0 : index
    %6 = vector.load %arg1[%c0_10, %c1_11, %c0_12, %c0_13] : memref<2x18x18x4xf32, #tpu.memory_space<vmem>>, vector<2x16x16x4xf32>
    %c0_14 = arith.constant 0 : index
    %c1_15 = arith.constant 1 : index
    %c1_16 = arith.constant 1 : index
    %c0_17 = arith.constant 0 : index
    %7 = vector.load %arg1[%c0_14, %c1_15, %c1_16, %c0_17] : memref<2x18x18x4xf32, #tpu.memory_space<vmem>>, vector<2x16x16x4xf32>
    %8 = tpu.concatenate %4, %5, %6, %7 in 3 : vector<2x16x16x4xf32>, vector<2x16x16x4xf32>, vector<2x16x16x4xf32>, vector<2x16x16x4xf32> -> vector<2x16x16x16xf32>
    %9 = vector.shape_cast %8 : vector<2x16x16x16xf32> to vector<512x16xf32>
    %10 = arith.truncf %9 : vector<512x16xf32> to vector<512x16xbf16>
    %c0_18 = arith.constant 0 : index
    %c0_19 = arith.constant 0 : index
    %c0_20 = arith.constant 0 : index
    %c0_21 = arith.constant 0 : index
    %11 = vector.load %arg2[%c0_18, %c0_19, %c0_20, %c0_21] : memref<1x4x16x32xbf16, #tpu.memory_space<vmem>>, vector<1x1x16x32xbf16>
    %12 = vector.shape_cast %11 : vector<1x1x16x32xbf16> to vector<16x32xbf16>
    %cst_22 = arith.constant dense<0.000000e+00> : vector<512x32xf32>
    %13 = tpu.matmul %10, %12, %cst_22 {dimension_numbers = #tpu.dot_dimension_numbers<[1], [0], [0], [1], [0, 0, 1, 1], [], []>} : vector<512x16xbf16>, vector<16x32xbf16>, vector<512x32xf32> -> vector<512x32xf32>
    %14 = vector.broadcast %1 : vector<1x32xf32> to vector<512x32xf32>
    %15 = arith.addf %13, %14 : vector<512x32xf32>
    %cst_23 = arith.constant dense<0.000000e+00> : vector<32xf32>
    %16 = vector.multi_reduction <add>, %15, %cst_23 [0] : vector<512x32xf32> to vector<32xf32>
    %17 = vector.shape_cast %16 : vector<32xf32> to vector<1x32xf32>
    %18 = arith.addf %2, %17 : vector<1x32xf32>
    %19 = arith.mulf %15, %15 : vector<512x32xf32>
    %cst_24 = arith.constant dense<0.000000e+00> : vector<32xf32>
    %20 = vector.multi_reduction <add>, %19, %cst_24 [0] : vector<512x32xf32> to vector<32xf32>
    %21 = vector.shape_cast %20 : vector<32xf32> to vector<1x32xf32>
    %22 = arith.addf %3, %21 : vector<1x32xf32>
    %c0_25 = arith.constant 0 : index
    %c0_26 = arith.constant 0 : index
    %c1_27 = arith.constant 1 : index
    %c0_28 = arith.constant 0 : index
    %23 = vector.load %arg1[%c0_25, %c0_26, %c1_27, %c0_28] : memref<2x18x18x4xf32, #tpu.memory_space<vmem>>, vector<2x16x16x4xf32>
    %c0_29 = arith.constant 0 : index
    %c0_30 = arith.constant 0 : index
    %c2 = arith.constant 2 : index
    %c0_31 = arith.constant 0 : index
    %24 = vector.load %arg1[%c0_29, %c0_30, %c2, %c0_31] : memref<2x18x18x4xf32, #tpu.memory_space<vmem>>, vector<2x16x16x4xf32>
    %c0_32 = arith.constant 0 : index
    %c1_33 = arith.constant 1 : index
    %c1_34 = arith.constant 1 : index
    %c0_35 = arith.constant 0 : index
    %25 = vector.load %arg1[%c0_32, %c1_33, %c1_34, %c0_35] : memref<2x18x18x4xf32, #tpu.memory_space<vmem>>, vector<2x16x16x4xf32>
    %c0_36 = arith.constant 0 : index
    %c1_37 = arith.constant 1 : index
    %c2_38 = arith.constant 2 : index
    %c0_39 = arith.constant 0 : index
    %26 = vector.load %arg1[%c0_36, %c1_37, %c2_38, %c0_39] : memref<2x18x18x4xf32, #tpu.memory_space<vmem>>, vector<2x16x16x4xf32>
    %27 = tpu.concatenate %23, %24, %25, %26 in 3 : vector<2x16x16x4xf32>, vector<2x16x16x4xf32>, vector<2x16x16x4xf32>, vector<2x16x16x4xf32> -> vector<2x16x16x16xf32>
    %28 = vector.shape_cast %27 : vector<2x16x16x16xf32> to vector<512x16xf32>
    %29 = arith.truncf %28 : vector<512x16xf32> to vector<512x16xbf16>
    %c0_40 = arith.constant 0 : index
    %c1_41 = arith.constant 1 : index
    %c0_42 = arith.constant 0 : index
    %c0_43 = arith.constant 0 : index
    %30 = vector.load %arg2[%c0_40, %c1_41, %c0_42, %c0_43] : memref<1x4x16x32xbf16, #tpu.memory_space<vmem>>, vector<1x1x16x32xbf16>
    %31 = vector.shape_cast %30 : vector<1x1x16x32xbf16> to vector<16x32xbf16>
    %cst_44 = arith.constant dense<0.000000e+00> : vector<512x32xf32>
    %32 = tpu.matmul %29, %31, %cst_44 {dimension_numbers = #tpu.dot_dimension_numbers<[1], [0], [0], [1], [0, 0, 1, 1], [], []>} : vector<512x16xbf16>, vector<16x32xbf16>, vector<512x32xf32> -> vector<512x32xf32>
    %33 = vector.broadcast %1 : vector<1x32xf32> to vector<512x32xf32>
    %34 = arith.addf %32, %33 : vector<512x32xf32>
    %cst_45 = arith.constant dense<0.000000e+00> : vector<32xf32>
    %35 = vector.multi_reduction <add>, %34, %cst_45 [0] : vector<512x32xf32> to vector<32xf32>
    %36 = vector.shape_cast %35 : vector<32xf32> to vector<1x32xf32>
    %37 = arith.addf %18, %36 : vector<1x32xf32>
    %38 = arith.mulf %34, %34 : vector<512x32xf32>
    %cst_46 = arith.constant dense<0.000000e+00> : vector<32xf32>
    %39 = vector.multi_reduction <add>, %38, %cst_46 [0] : vector<512x32xf32> to vector<32xf32>
    %40 = vector.shape_cast %39 : vector<32xf32> to vector<1x32xf32>
    %41 = arith.addf %22, %40 : vector<1x32xf32>
    %c0_47 = arith.constant 0 : index
    %c1_48 = arith.constant 1 : index
    %c0_49 = arith.constant 0 : index
    %c0_50 = arith.constant 0 : index
    %42 = vector.load %arg1[%c0_47, %c1_48, %c0_49, %c0_50] : memref<2x18x18x4xf32, #tpu.memory_space<vmem>>, vector<2x16x16x4xf32>
    %c0_51 = arith.constant 0 : index
    %c1_52 = arith.constant 1 : index
    %c1_53 = arith.constant 1 : index
    %c0_54 = arith.constant 0 : index
    %43 = vector.load %arg1[%c0_51, %c1_52, %c1_53, %c0_54] : memref<2x18x18x4xf32, #tpu.memory_space<vmem>>, vector<2x16x16x4xf32>
    %c0_55 = arith.constant 0 : index
    %c2_56 = arith.constant 2 : index
    %c0_57 = arith.constant 0 : index
    %c0_58 = arith.constant 0 : index
    %44 = vector.load %arg1[%c0_55, %c2_56, %c0_57, %c0_58] : memref<2x18x18x4xf32, #tpu.memory_space<vmem>>, vector<2x16x16x4xf32>
    %c0_59 = arith.constant 0 : index
    %c2_60 = arith.constant 2 : index
    %c1_61 = arith.constant 1 : index
    %c0_62 = arith.constant 0 : index
    %45 = vector.load %arg1[%c0_59, %c2_60, %c1_61, %c0_62] : memref<2x18x18x4xf32, #tpu.memory_space<vmem>>, vector<2x16x16x4xf32>
    %46 = tpu.concatenate %42, %43, %44, %45 in 3 : vector<2x16x16x4xf32>, vector<2x16x16x4xf32>, vector<2x16x16x4xf32>, vector<2x16x16x4xf32> -> vector<2x16x16x16xf32>
    %47 = vector.shape_cast %46 : vector<2x16x16x16xf32> to vector<512x16xf32>
    %48 = arith.truncf %47 : vector<512x16xf32> to vector<512x16xbf16>
    %c0_63 = arith.constant 0 : index
    %c2_64 = arith.constant 2 : index
    %c0_65 = arith.constant 0 : index
    %c0_66 = arith.constant 0 : index
    %49 = vector.load %arg2[%c0_63, %c2_64, %c0_65, %c0_66] : memref<1x4x16x32xbf16, #tpu.memory_space<vmem>>, vector<1x1x16x32xbf16>
    %50 = vector.shape_cast %49 : vector<1x1x16x32xbf16> to vector<16x32xbf16>
    %cst_67 = arith.constant dense<0.000000e+00> : vector<512x32xf32>
    %51 = tpu.matmul %48, %50, %cst_67 {dimension_numbers = #tpu.dot_dimension_numbers<[1], [0], [0], [1], [0, 0, 1, 1], [], []>} : vector<512x16xbf16>, vector<16x32xbf16>, vector<512x32xf32> -> vector<512x32xf32>
    %52 = vector.broadcast %1 : vector<1x32xf32> to vector<512x32xf32>
    %53 = arith.addf %51, %52 : vector<512x32xf32>
    %cst_68 = arith.constant dense<0.000000e+00> : vector<32xf32>
    %54 = vector.multi_reduction <add>, %53, %cst_68 [0] : vector<512x32xf32> to vector<32xf32>
    %55 = vector.shape_cast %54 : vector<32xf32> to vector<1x32xf32>
    %56 = arith.addf %37, %55 : vector<1x32xf32>
    %57 = arith.mulf %53, %53 : vector<512x32xf32>
    %cst_69 = arith.constant dense<0.000000e+00> : vector<32xf32>
    %58 = vector.multi_reduction <add>, %57, %cst_69 [0] : vector<512x32xf32> to vector<32xf32>
    %59 = vector.shape_cast %58 : vector<32xf32> to vector<1x32xf32>
    %60 = arith.addf %41, %59 : vector<1x32xf32>
    %c0_70 = arith.constant 0 : index
    %c1_71 = arith.constant 1 : index
    %c1_72 = arith.constant 1 : index
    %c0_73 = arith.constant 0 : index
    %61 = vector.load %arg1[%c0_70, %c1_71, %c1_72, %c0_73] : memref<2x18x18x4xf32, #tpu.memory_space<vmem>>, vector<2x16x16x4xf32>
    %c0_74 = arith.constant 0 : index
    %c1_75 = arith.constant 1 : index
    %c2_76 = arith.constant 2 : index
    %c0_77 = arith.constant 0 : index
    %62 = vector.load %arg1[%c0_74, %c1_75, %c2_76, %c0_77] : memref<2x18x18x4xf32, #tpu.memory_space<vmem>>, vector<2x16x16x4xf32>
    %c0_78 = arith.constant 0 : index
    %c2_79 = arith.constant 2 : index
    %c1_80 = arith.constant 1 : index
    %c0_81 = arith.constant 0 : index
    %63 = vector.load %arg1[%c0_78, %c2_79, %c1_80, %c0_81] : memref<2x18x18x4xf32, #tpu.memory_space<vmem>>, vector<2x16x16x4xf32>
    %c0_82 = arith.constant 0 : index
    %c2_83 = arith.constant 2 : index
    %c2_84 = arith.constant 2 : index
    %c0_85 = arith.constant 0 : index
    %64 = vector.load %arg1[%c0_82, %c2_83, %c2_84, %c0_85] : memref<2x18x18x4xf32, #tpu.memory_space<vmem>>, vector<2x16x16x4xf32>
    %65 = tpu.concatenate %61, %62, %63, %64 in 3 : vector<2x16x16x4xf32>, vector<2x16x16x4xf32>, vector<2x16x16x4xf32>, vector<2x16x16x4xf32> -> vector<2x16x16x16xf32>
    %66 = vector.shape_cast %65 : vector<2x16x16x16xf32> to vector<512x16xf32>
    %67 = arith.truncf %66 : vector<512x16xf32> to vector<512x16xbf16>
    %c0_86 = arith.constant 0 : index
    %c3 = arith.constant 3 : index
    %c0_87 = arith.constant 0 : index
    %c0_88 = arith.constant 0 : index
    %68 = vector.load %arg2[%c0_86, %c3, %c0_87, %c0_88] : memref<1x4x16x32xbf16, #tpu.memory_space<vmem>>, vector<1x1x16x32xbf16>
    %69 = vector.shape_cast %68 : vector<1x1x16x32xbf16> to vector<16x32xbf16>
    %cst_89 = arith.constant dense<0.000000e+00> : vector<512x32xf32>
    %70 = tpu.matmul %67, %69, %cst_89 {dimension_numbers = #tpu.dot_dimension_numbers<[1], [0], [0], [1], [0, 0, 1, 1], [], []>} : vector<512x16xbf16>, vector<16x32xbf16>, vector<512x32xf32> -> vector<512x32xf32>
    %71 = vector.broadcast %1 : vector<1x32xf32> to vector<512x32xf32>
    %72 = arith.addf %70, %71 : vector<512x32xf32>
    %cst_90 = arith.constant dense<0.000000e+00> : vector<32xf32>
    %73 = vector.multi_reduction <add>, %72, %cst_90 [0] : vector<512x32xf32> to vector<32xf32>
    %74 = vector.shape_cast %73 : vector<32xf32> to vector<1x32xf32>
    %75 = arith.addf %56, %74 : vector<1x32xf32>
    %76 = arith.mulf %72, %72 : vector<512x32xf32>
    %cst_91 = arith.constant dense<0.000000e+00> : vector<32xf32>
    %77 = vector.multi_reduction <add>, %76, %cst_91 [0] : vector<512x32xf32> to vector<32xf32>
    %78 = vector.shape_cast %77 : vector<32xf32> to vector<1x32xf32>
    %79 = arith.addf %60, %78 : vector<1x32xf32>
    %80 = tpu.concatenate %15, %34, %53, %72 in 1 : vector<512x32xf32>, vector<512x32xf32>, vector<512x32xf32>, vector<512x32xf32> -> vector<512x128xf32>
    %cst_92 = arith.constant 4.8828125E-4 : f32
    %81 = vector.broadcast %cst_92 : f32 to vector<1x32xf32>
    %82 = arith.mulf %75, %81 : vector<1x32xf32>
    %cst_93 = arith.constant 4.8828125E-4 : f32
    %83 = vector.broadcast %cst_93 : f32 to vector<1x32xf32>
    %84 = arith.mulf %79, %83 : vector<1x32xf32>
    %85 = arith.mulf %82, %82 : vector<1x32xf32>
    %86 = arith.subf %84, %85 : vector<1x32xf32>
    %c0_94 = arith.constant 0 : index
    %c0_95 = arith.constant 0 : index
    %c0_96 = arith.constant 0 : index
    %87 = vector.load %arg4[%c0_94, %c0_95, %c0_96] : memref<1x1x32xf32, #tpu.memory_space<vmem>>, vector<1x1x32xf32>
    %88 = vector.shape_cast %87 : vector<1x1x32xf32> to vector<1x32xf32>
    %cst_97 = arith.constant 9.99999974E-6 : f32
    %89 = vector.broadcast %cst_97 : f32 to vector<1x32xf32>
    %90 = arith.addf %86, %89 : vector<1x32xf32>
    %91 = math.rsqrt %90 : vector<1x32xf32>
    %92 = arith.mulf %88, %91 : vector<1x32xf32>
    %c0_98 = arith.constant 0 : index
    %c0_99 = arith.constant 0 : index
    %c0_100 = arith.constant 0 : index
    %93 = vector.load %arg5[%c0_98, %c0_99, %c0_100] : memref<1x1x32xf32, #tpu.memory_space<vmem>>, vector<1x1x32xf32>
    %94 = vector.shape_cast %93 : vector<1x1x32xf32> to vector<1x32xf32>
    %95 = arith.mulf %82, %92 : vector<1x32xf32>
    %96 = arith.subf %94, %95 : vector<1x32xf32>
    %97 = tpu.concatenate %92, %92, %92, %92 in 1 : vector<1x32xf32>, vector<1x32xf32>, vector<1x32xf32>, vector<1x32xf32> -> vector<1x128xf32>
    %98 = vector.broadcast %97 : vector<1x128xf32> to vector<512x128xf32>
    %99 = arith.mulf %80, %98 : vector<512x128xf32>
    %100 = tpu.concatenate %96, %96, %96, %96 in 1 : vector<1x32xf32>, vector<1x32xf32>, vector<1x32xf32>, vector<1x32xf32> -> vector<1x128xf32>
    %101 = vector.broadcast %100 : vector<1x128xf32> to vector<512x128xf32>
    %102 = arith.addf %99, %101 : vector<512x128xf32>
    %c0_101 = arith.constant 0 : index
    %c0_102 = arith.constant 0 : index
    %103 = vector.load %arg6[%c0_101, %c0_102] : memref<512x128xf32, #tpu.memory_space<vmem>>, vector<512x128xf32>
    tpu.vector_store %arg6[%c0_101, %c0_102], %102 {strides = array<i32>} : memref<512x128xf32, #tpu.memory_space<vmem>>, vector<512x128xf32>,
    return
  }
  func.func @transform_0(%arg0: i32) -> (i32, i32, i32, i32) {
    %c0_i32 = arith.constant 0 : i32
    %c0_i32_0 = arith.constant 0 : i32
    %c0_i32_1 = arith.constant 0 : i32
    %c0_i32_2 = arith.constant 0 : i32
    %c0_i32_3 = arith.constant 0 : i32
    return %c0_i32, %c0_i32_0, %c0_i32_1, %c0_i32_2 : i32, i32, i32, i32
  }
  func.func @transform_1(%arg0: i32) -> (i32, i32, i32, i32) {
    %c0_i32 = arith.constant 0 : i32
    %c0_i32_0 = arith.constant 0 : i32
    %c0_i32_1 = arith.constant 0 : i32
    %c0_i32_2 = arith.constant 0 : i32
    return %arg0, %c0_i32, %c0_i32_0, %c0_i32_1 : i32, i32, i32, i32
  }
  func.func @transform_2(%arg0: i32) -> (i32, i32, i32) {
    %c0_i32 = arith.constant 0 : i32
    %c0_i32_0 = arith.constant 0 : i32
    %c0_i32_1 = arith.constant 0 : i32
    return %arg0, %c0_i32, %c0_i32_0 : i32, i32, i32
  }
  func.func @transform_3(%arg0: i32) -> (i32, i32, i32) {
    %c0_i32 = arith.constant 0 : i32
    %c0_i32_0 = arith.constant 0 : i32
    %c0_i32_1 = arith.constant 0 : i32
    return %arg0, %c0_i32, %c0_i32_0 : i32, i32, i32
  }
  func.func @transform_4(%arg0: i32) -> (i32, i32, i32) {
    %c0_i32 = arith.constant 0 : i32
    %c0_i32_0 = arith.constant 0 : i32
    %c0_i32_1 = arith.constant 0 : i32
    return %arg0, %c0_i32, %c0_i32_0 : i32, i32, i32
  }
  func.func @transform_5(%arg0: i32) -> (i32, i32) {
    %c0_i32 = arith.constant 0 : i32
    %c0_i32_0 = arith.constant 0 : i32
    return %c0_i32, %arg0 : i32, i32
  }
}

</mosaic_0001>

<llo_original>
// kernel: upsample_conv_forward.1
$region0: #{upsample_conv_forward.1}
  #allocation0 [shape = 'u32[]', space=smem, size = 0x4, offset = 0x4, fixed_abs, tag = 'smem constant byte address 0x4 - core index']
  #allocation1 [shape = 'u32[144,128]{1,0:T(1,128)}', space=vmem, size = 0x12000, scoped, tag = 'internal scratch']
  %s0 = inlined_call_operand.vmem [shape: f32[2,18,18,4], index: 0, kind: input, shape index: {}]
  %s1 = inlined_call_operand.vmem [shape: bf16[2,4,16,32], index: 1, kind: input, shape index: {}]
  %s2 = inlined_call_operand.vmem [shape: f32[2,1,32], index: 2, kind: input, shape index: {}]
  %s3 = inlined_call_operand.vmem [shape: f32[2,1,32], index: 3, kind: input, shape index: {}]
  %s4 = inlined_call_operand.vmem [shape: f32[2,1,32], index: 4, kind: input, shape index: {}]
  %s5 = inlined_call_operand.vmem [shape: f32[512,256], index: 5, kind: output, shape index: {}]
  %s6 = sld [smem:[#allocation0]]
  $region87: #{upsample_conv_forward.1} parent=0
    _
  %s8 = ssub.s32 1, %s6
  %s9 = scalar_select 0, %s8, %s6
  $region1: #{upsample_conv_forward.1} parent=0
    #allocation2 [shape = 'u8[524288]{0}', space=vmem, size = 0x80000, scoped, tag = 'output window, operand 0']
    loop: start=0, step=1, limit=4
    $region2: #{upsample_conv_forward.1} parent=1 // loop_pre_header
      _
    $region3: #{upsample_conv_forward.1} parent=1 // loop_header
      %s11 = sphi 0, %s15
      %p12 = scmp.ge.s32.totalorder %s11, 4
      %s19 = sphi 0, %s19
      %s21 = sphi 0, %s19
      %s22 = sphi 0, %s21
      %s36 = sphi 0, %s22
      %s42 = sphi 0, %s44
      %s45 = sphi 0, %s42
      %s46 = sphi 0, %s45
      %s62 = sphi 0, %s46
      %s68 = sphi 0, %s70
      %s71 = sphi 0, %s68
      %s72 = sphi 0, %s71
      %s88 = sphi 0, %s72
      %s94 = sphi 0, %s96
      %s97 = sphi 0, %s94
      %s98 = sphi 0, %s97
      %s114 = sphi 0, %s98
      %s120 = sphi 0, %s122
      %s123 = sphi 0, %s120
      %s124 = sphi 0, %s123
      %s140 = sphi 0, %s124
      %s146 = sphi 0, %s148
      %s149 = sphi 0, %s146
      %s150 = sphi 0, %s149
      %s166 = sphi 0, %s150
    $region4: #{upsample_conv_forward.1} parent=1 // loop_header_branch
      %14 = sbr.rel (%p12) target = $region8
    $region5: #{upsample_conv_forward.1} parent=1 // loop_body
      %s16 = ssub.s32 %s11, 1
      %s17 = ssub.s32 %s11, 2
      %s18 = sadd.s32 %s11, 1
      %s20 = sadd.s32 %s19, 1
      %p23 = scmp.eq.s32.totalorder %s11, 1
      %p24 = scmp.ne.s32.totalorder %s19, %s21
      %p25 = scmp.eq.s32.totalorder %s11, 0
      %p26 = por %p24, %p25
      %p27 = scmp.ne.s32.totalorder %s19, %s21
      %p28 = scmp.eq.s32.totalorder %s16, 1
      %p29 = por %p27, %p28
      %p30 = scmp.ne.s32.totalorder %s21, %s22
      %p31 = scmp.eq.s32.totalorder %s16, 0
      %p32 = por %p30, %p31
      %p33 = scmp.ne.s32.totalorder %s21, %s22
      %p34 = scmp.eq.s32.totalorder %s17, 1
      %p35 = por %p33, %p34
      %p37 = scmp.ne.s32.totalorder %s22, %s36
      %p38 = scmp.eq.s32.totalorder %s17, 0
      %p39 = por %p37, %p38
      %s40 = ssub.s32 %s11, %s18
      %p41 = scmp.eq.s32.totalorder %s40, 0
      %s43 = sadd.s32 %s42, 1
      %s44 = scalar_select %p41, %s42, %s43
      %p47 = pneg %p41
      %p48 = scmp.eq.s32.totalorder %s11, 1
      %p49 = por %p47, %p48
      %p50 = scmp.ne.s32.totalorder %s42, %s45
      %p51 = scmp.eq.s32.totalorder %s11, 0
      %p52 = por %p50, %p51
      %p53 = scmp.ne.s32.totalorder %s42, %s45
      %p54 = scmp.eq.s32.totalorder %s16, 1
      %p55 = por %p53, %p54
      %p56 = scmp.ne.s32.totalorder %s45, %s46
      %p57 = scmp.eq.s32.totalorder %s16, 0
      %p58 = por %p56, %p57
      %p59 = scmp.ne.s32.totalorder %s45, %s46
      %p60 = scmp.eq.s32.totalorder %s17, 1
      %p61 = por %p59, %p60
      %p63 = scmp.ne.s32.totalorder %s46, %s62
      %p64 = scmp.eq.s32.totalorder %s17, 0
      %p65 = por %p63, %p64
      %s66 = ssub.s32 %s11, %s18
      %p67 = scmp.eq.s32.totalorder %s66, 0
      %s69 = sadd.s32 %s68, 1
      %s70 = scalar_select %p67, %s68, %s69
      %p73 = pneg %p67
      %p74 = scmp.eq.s32.totalorder %s11, 1
      %p75 = por %p73, %p74
      %p76 = scmp.ne.s32.totalorder %s68, %s71
      %p77 = scmp.eq.s32.totalorder %s11, 0
      %p78 = por %p76, %p77
      %p79 = scmp.ne.s32.totalorder %s68, %s71
      %p80 = scmp.eq.s32.totalorder %s16, 1
      %p81 = por %p79, %p80
      %p82 = scmp.ne.s32.totalorder %s71, %s72
      %p83 = scmp.eq.s32.totalorder %s16, 0
      %p84 = por %p82, %p83
      %p85 = scmp.ne.s32.totalorder %s71, %s72
      %p86 = scmp.eq.s32.totalorder %s17, 1
      %p87 = por %p85, %p86
      %p89 = scmp.ne.s32.totalorder %s72, %s88
      %p90 = scmp.eq.s32.totalorder %s17, 0
      %p91 = por %p89, %p90
      %s92 = ssub.s32 %s11, %s18
      %p93 = scmp.eq.s32.totalorder %s92, 0
      %s95 = sadd.s32 %s94, 1
      %s96 = scalar_select %p93, %s94, %s95
      %p99 = pneg %p93
      %p100 = scmp.eq.s32.totalorder %s11, 1
      %p101 = por %p99, %p100
      %p102 = scmp.ne.s32.totalorder %s94, %s97
      %p103 = scmp.eq.s32.totalorder %s11, 0
      %p104 = por %p102, %p103
      %p105 = scmp.ne.s32.totalorder %s94, %s97
      %p106 = scmp.eq.s32.totalorder %s16, 1
      %p107 = por %p105, %p106
      %p108 = scmp.ne.s32.totalorder %s97, %s98
      %p109 = scmp.eq.s32.totalorder %s16, 0
      %p110 = por %p108, %p109
      %p111 = scmp.ne.s32.totalorder %s97, %s98
      %p112 = scmp.eq.s32.totalorder %s17, 1
      %p113 = por %p111, %p112
      %p115 = scmp.ne.s32.totalorder %s98, %s114
      %p116 = scmp.eq.s32.totalorder %s17, 0
      %p117 = por %p115, %p116
      %s118 = ssub.s32 %s11, %s18
      %p119 = scmp.eq.s32.totalorder %s118, 0
      %s121 = sadd.s32 %s120, 1
      %s122 = scalar_select %p119, %s120, %s121
      %p125 = pneg %p119
      %p126 = scmp.eq.s32.totalorder %s11, 1
      %p127 = por %p125, %p126
      %p128 = scmp.ne.s32.totalorder %s120, %s123
      %p129 = scmp.eq.s32.totalorder %s11, 0
      %p130 = por %p128, %p129
      %p131 = scmp.ne.s32.totalorder %s120, %s123
      %p132 = scmp.eq.s32.totalorder %s16, 1
      %p133 = por %p131, %p132
      %p134 = scmp.ne.s32.totalorder %s123, %s124
      %p135 = scmp.eq.s32.totalorder %s16, 0
      %p136 = por %p134, %p135
      %p137 = scmp.ne.s32.totalorder %s123, %s124
      %p138 = scmp.eq.s32.totalorder %s17, 1
      %p139 = por %p137, %p138
      %p141 = scmp.ne.s32.totalorder %s124, %s140
      %p142 = scmp.eq.s32.totalorder %s17, 0
      %p143 = por %p141, %p142
      %s144 = ssub.s32 %s11, %s18
      %p145 = scmp.eq.s32.totalorder %s144, 0
      %s147 = sadd.s32 %s146, 1
      %s148 = scalar_select %p145, %s146, %s147
      %p151 = pneg %p145
      %p152 = scmp.eq.s32.totalorder %s11, 1
      %p153 = por %p151, %p152
      %p154 = scmp.ne.s32.totalorder %s146, %s149
      %p155 = scmp.eq.s32.totalorder %s11, 0
      %p156 = por %p154, %p155
      %p157 = scmp.ne.s32.totalorder %s146, %s149
      %p158 = scmp.eq.s32.totalorder %s16, 1
      %p159 = por %p157, %p158
      %p160 = scmp.ne.s32.totalorder %s149, %s150
      %p161 = scmp.eq.s32.totalorder %s16, 0
      %p162 = por %p160, %p161
      %p163 = scmp.ne.s32.totalorder %s149, %s150
      %p164 = scmp.eq.s32.totalorder %s17, 1
      %p165 = por %p163, %p164
      %p167 = scmp.ne.s32.totalorder %s150, %s166
      %p168 = scmp.eq.s32.totalorder %s17, 0
      %p169 = por %p167, %p168
      %p170 = scmp.le.s32.totalorder 1, %s11
      %p171 = scmp.lt.s32.totalorder %s11, 3
      %p172 = pnand %p170, %p171
      %p173 = pneg %p172
      // Predicated region
      $region9: #{upsample_conv_forward.1} parent=5 // pred_check
        _
      $region10: #{upsample_conv_forward.1} parent=5 // pred_check_branch
        %175 = sbr.rel (%p172) target = $region12
      $region11: #{upsample_conv_forward.1} parent=5 // pred_region
        %s176 = ssub.s32 %s11, 1
        // Predicated region
        $region13: #{upsample_conv_forward.1} parent=11 // pred_check
          %p177 = pneg %p32
        $region14: #{upsample_conv_forward.1} parent=11 // pred_check_branch
          %179 = sbr.rel (%p177) target = $region16
        $region15: #{upsample_conv_forward.1} parent=11 // pred_region
          _
        $region16: #{upsample_conv_forward.1} parent=11 // pred_fallthru
          _
      $region12: #{upsample_conv_forward.1} parent=5 // pred_fallthru
        _
      %p180 = scmp.lt.s32.totalorder %s11, 2
      // Predicated region
      $region17: #{upsample_conv_forward.1} parent=5 // pred_check
        %p181 = pneg %p180
      $region18: #{upsample_conv_forward.1} parent=5 // pred_check_branch
        %183 = sbr.rel (%p181) target = $region20
      $region19: #{upsample_conv_forward.1} parent=5 // pred_region
        // Predicated region
        $region21: #{upsample_conv_forward.1} parent=19 // pred_check
          %p184 = pneg %p52
        $region22: #{upsample_conv_forward.1} parent=19 // pred_check_branch
          %186 = sbr.rel (%p184) target = $region24
        $region23: #{upsample_conv_forward.1} parent=19 // pred_region
          %p187 = scmp.lt.s32.totalorder %s11, 1
          %s188 = scalar_select %p187, %s11, 1
          %s189 = smul.addr %s188, 8
          %s190 = smul.addr %s189, 4
          %s191 = scalar_lea.vmem %s1, %s190
        $region24: #{upsample_conv_forward.1} parent=19 // pred_fallthru
          _
        // Predicated region
        $region25: #{upsample_conv_forward.1} parent=19 // pred_check
          %p192 = pneg %p78
        $region26: #{upsample_conv_forward.1} parent=19 // pred_check_branch
          %194 = sbr.rel (%p192) target = $region28
        $region27: #{upsample_conv_forward.1} parent=19 // pred_region
          %p195 = scmp.lt.s32.totalorder %s11, 1
          %s196 = scalar_select %p195, %s11, 1
          %s197 = scalar_lea.vmem %s2, %s196
        $region28: #{upsample_conv_forward.1} parent=19 // pred_fallthru
          _
        // Predicated region
        $region29: #{upsample_conv_forward.1} parent=19 // pred_check
          %p198 = pneg %p104
        $region30: #{upsample_conv_forward.1} parent=19 // pred_check_branch
          %200 = sbr.rel (%p198) target = $region32
        $region31: #{upsample_conv_forward.1} parent=19 // pred_region
          %p201 = scmp.lt.s32.totalorder %s11, 1
          %s202 = scalar_select %p201, %s11, 1
          %s203 = scalar_lea.vmem %s3, %s202
        $region32: #{upsample_conv_forward.1} parent=19 // pred_fallthru
          _
        // Predicated region
        $region33: #{upsample_conv_forward.1} parent=19 // pred_check
          %p204 = pneg %p130
        $region34: #{upsample_conv_forward.1} parent=19 // pred_check_branch
          %206 = sbr.rel (%p204) target = $region36
        $region35: #{upsample_conv_forward.1} parent=19 // pred_region
          %p207 = scmp.lt.s32.totalorder %s11, 1
          %s208 = scalar_select %p207, %s11, 1
          %s209 = scalar_lea.vmem %s4, %s208
        $region36: #{upsample_conv_forward.1} parent=19 // pred_fallthru
          _
      $region20: #{upsample_conv_forward.1} parent=5 // pred_fallthru
        _
      %p210 = scmp.le.s32.totalorder 1, %s11
      %p211 = scmp.lt.s32.totalorder %s11, 3
      %p212 = pnand %p210, %p211
      %p213 = pneg %p212
      // Predicated region
      $region37: #{upsample_conv_forward.1} parent=5 // pred_check
        _
      $region38: #{upsample_conv_forward.1} parent=5 // pred_check_branch
        %215 = sbr.rel (%p212) target = $region40
      $region39: #{upsample_conv_forward.1} parent=5 // pred_region
        %s216 = ssub.s32 %s11, 1
        %p217 = pneg %p32
        %p218 = pneg %p29
        %p219 = scmp.lt.s32.totalorder %s16, 1
        %s220 = scalar_select %p219, %s16, 1
        %s221 = smul.addr %s220, 8
        %s222 = smul.addr %s221, 4
        %s223 = scalar_lea.vmem %s1, %s222
        %p224 = pneg %p58
        %p225 = pneg %p55
        %p226 = scmp.lt.s32.totalorder %s16, 1
        %s227 = scalar_select %p226, %s16, 1
        %s228 = scalar_lea.vmem %s2, %s227
        %p229 = pneg %p84
        %p230 = pneg %p81
        %p231 = scmp.lt.s32.totalorder %s16, 1
        %s232 = scalar_select %p231, %s16, 1
        %s233 = scalar_lea.vmem %s3, %s232
        %p234 = pneg %p110
        %p235 = pneg %p107
        %p236 = scmp.lt.s32.totalorder %s16, 1
        %s237 = scalar_select %p236, %s16, 1
        %s238 = scalar_lea.vmem %s4, %s237
        %p239 = pneg %p136
        %p240 = pneg %p133
        %p241 = pneg %p162
        %p242 = pneg %p159
        %s243 = sand.u32 %s149, 1
        %s244 = sand.u32 %s149, 1
        %s245 = smul.addr %s244, 512
        %s246 = scalar_lea.vmem [#allocation2], %s245
        %p247 = scmp.lt.s32.totalorder %s16, 1
        %s248 = scalar_select %p247, %s16, 1
        %s249 = smul.addr %s248, 8
        %s250 = smul.addr %s249, 4
        %s251 = scalar_lea.vmem %s1, %s250
        %p252 = scmp.lt.s32.totalorder %s16, 1
        %s253 = scalar_select %p252, %s16, 1
        %s254 = scalar_lea.vmem %s2, %s253
        %p255 = scmp.lt.s32.totalorder %s16, 1
        %s256 = scalar_select %p255, %s16, 1
        %s257 = scalar_lea.vmem %s3, %s256
        %p258 = scmp.lt.s32.totalorder %s16, 1
        %s259 = scalar_select %p258, %s16, 1
        %s260 = scalar_lea.vmem %s4, %s259
        %v262 = vld [vmem:[%s254] sm:$0x1]
        %v263 = vld [vmem:[%s0] sm:$0xff]
        %v264 = vld [vmem:[%s0 + $0x8] sm:$0xff]
        %v265 = vld [vmem:[%s0 + $0x18] sm:$0xff]
        %v266 = vld [vmem:[%s0 + $0x20] sm:$0xff]
        %v267 = vld [vmem:[%s0 + $0x30] sm:$0xff]
        %v268 = vld [vmem:[%s0 + $0x38] sm:$0xff]
        %v269 = vld [vmem:[%s0 + $0x48] sm:$0xff]
        %v270 = vld [vmem:[%s0 + $0x50] sm:$0xff]
        %v271 = vld [vmem:[%s0 + $0x60] sm:$0xff]
        %v272 = vld [vmem:[%s0 + $0x68] sm:$0xff]
        %v273 = vld [vmem:[%s0 + $0x78] sm:$0xff]
        %v274 = vld [vmem:[%s0 + $0x80] sm:$0xff]
        %v275 = vld [vmem:[%s0 + $0x90] sm:$0xff]
        %v276 = vld [vmem:[%s0 + $0x98] sm:$0xff]
        %v277 = vld [vmem:[%s0 + $0xa8] sm:$0xff]
        %v278 = vld [vmem:[%s0 + $0xb0] sm:$0xff]
        %v279 = vld [vmem:[%s0 + $0xc0] sm:$0xff]
        %v280 = vld [vmem:[%s0 + $0xc8] sm:$0xff]
        %v281 = vld [vmem:[%s0 + $0xd8] sm:$0xff]
        %v282 = vld [vmem:[%s0 + $0xe0] sm:$0xff]
        %v283 = vld [vmem:[%s0 + $0xf0] sm:$0xff]
        %v284 = vld [vmem:[%s0 + $0xf8] sm:$0xff]
        %v285 = vld [vmem:[%s0 + $0x108] sm:$0xff]
        %v286 = vld [vmem:[%s0 + $0x110] sm:$0xff]
        %v287 = vld [vmem:[%s0 + $0x120] sm:$0xff]
        %v288 = vld [vmem:[%s0 + $0x128] sm:$0xff]
        %v289 = vld [vmem:[%s0 + $0x138] sm:$0xff]
        %v290 = vld [vmem:[%s0 + $0x140] sm:$0xff]
        %v291 = vld [vmem:[%s0 + $0x150] sm:$0xff]
        %v292 = vld [vmem:[%s0 + $0x158] sm:$0xff]
        %v293 = vld [vmem:[%s0 + $0x168] sm:$0xff]
        %v294 = vld [vmem:[%s0 + $0x170] sm:$0xff]
        %v295 = vld [vmem:[%s0 + $0x1b0] sm:$0xff]
        %v296 = vld [vmem:[%s0 + $0x1b8] sm:$0xff]
        %v297 = vld [vmem:[%s0 + $0x1c8] sm:$0xff]
        %v298 = vld [vmem:[%s0 + $0x1d0] sm:$0xff]
        %v299 = vld [vmem:[%s0 + $0x1e0] sm:$0xff]
        %v300 = vld [vmem:[%s0 + $0x1e8] sm:$0xff]
        %v301 = vld [vmem:[%s0 + $0x1f8] sm:$0xff]
        %v302 = vld [vmem:[%s0 + $0x200] sm:$0xff]
        %v303 = vld [vmem:[%s0 + $0x210] sm:$0xff]
        %v304 = vld [vmem:[%s0 + $0x218] sm:$0xff]
        %v305 = vld [vmem:[%s0 + $0x228] sm:$0xff]
        %v306 = vld [vmem:[%s0 + $0x230] sm:$0xff]
        %v307 = vld [vmem:[%s0 + $0x240] sm:$0xff]
        %v308 = vld [vmem:[%s0 + $0x248] sm:$0xff]
        %v309 = vld [vmem:[%s0 + $0x258] sm:$0xff]
        %v310 = vld [vmem:[%s0 + $0x260] sm:$0xff]
        %v311 = vld [vmem:[%s0 + $0x270] sm:$0xff]
        %v312 = vld [vmem:[%s0 + $0x278] sm:$0xff]
        %v313 = vld [vmem:[%s0 + $0x288] sm:$0xff]
        %v314 = vld [vmem:[%s0 + $0x290] sm:$0xff]
        %v315 = vld [vmem:[%s0 + $0x2a0] sm:$0xff]
        %v316 = vld [vmem:[%s0 + $0x2a8] sm:$0xff]
        %v317 = vld [vmem:[%s0 + $0x2b8] sm:$0xff]
        %v318 = vld [vmem:[%s0 + $0x2c0] sm:$0xff]
        %v319 = vld [vmem:[%s0 + $0x2d0] sm:$0xff]
        %v320 = vld [vmem:[%s0 + $0x2d8] sm:$0xff]
        %v321 = vld [vmem:[%s0 + $0x2e8] sm:$0xff]
        %v322 = vld [vmem:[%s0 + $0x2f0] sm:$0xff]
        %v323 = vld [vmem:[%s0 + $0x300] sm:$0xff]
        %v324 = vld [vmem:[%s0 + $0x308] sm:$0xff]
        %v325 = vld [vmem:[%s0 + $0x318] sm:$0xff]
        %v326 = vld [vmem:[%s0 + $0x320] sm:$0xff]
        %v327 = vld [vmem:[%s0 + $0x1] sm:$0xff]
        %v328 = vld [vmem:[%s0 + $0x9] sm:$0xff]
        %v329 = vld [vmem:[%s0 + $0x19] sm:$0xff]
        %v330 = vld [vmem:[%s0 + $0x21] sm:$0xff]
        %v331 = vld [vmem:[%s0 + $0x31] sm:$0xff]
        %v332 = vld [vmem:[%s0 + $0x39] sm:$0xff]
        %v333 = vld [vmem:[%s0 + $0x49] sm:$0xff]
        %v334 = vld [vmem:[%s0 + $0x51] sm:$0xff]
        %v335 = vld [vmem:[%s0 + $0x61] sm:$0xff]
        %v336 = vld [vmem:[%s0 + $0x69] sm:$0xff]
        %v337 = vld [vmem:[%s0 + $0x79] sm:$0xff]
        %v338 = vld [vmem:[%s0 + $0x81] sm:$0xff]
        %v339 = vld [vmem:[%s0 + $0x91] sm:$0xff]
        %v340 = vld [vmem:[%s0 + $0x99] sm:$0xff]
        %v341 = vld [vmem:[%s0 + $0xa9] sm:$0xff]
        %v342 = vld [vmem:[%s0 + $0xb1] sm:$0xff]
        %v343 = vld [vmem:[%s0 + $0xc1] sm:$0xff]
        %v344 = vld [vmem:[%s0 + $0xc9] sm:$0xff]
        %v345 = vld [vmem:[%s0 + $0xd9] sm:$0xff]
        %v346 = vld [vmem:[%s0 + $0xe1] sm:$0xff]
        %v347 = vld [vmem:[%s0 + $0xf1] sm:$0xff]
        %v348 = vld [vmem:[%s0 + $0xf9] sm:$0xff]
        %v349 = vld [vmem:[%s0 + $0x109] sm:$0xff]
        %v350 = vld [vmem:[%s0 + $0x111] sm:$0xff]
        %v351 = vld [vmem:[%s0 + $0x121] sm:$0xff]
        %v352 = vld [vmem:[%s0 + $0x129] sm:$0xff]
        %v353 = vld [vmem:[%s0 + $0x139] sm:$0xff]
        %v354 = vld [vmem:[%s0 + $0x141] sm:$0xff]
        %v355 = vld [vmem:[%s0 + $0x151] sm:$0xff]
        %v356 = vld [vmem:[%s0 + $0x159] sm:$0xff]
        %v357 = vld [vmem:[%s0 + $0x169] sm:$0xff]
        %v358 = vld [vmem:[%s0 + $0x171] sm:$0xff]
        %v359 = vld [vmem:[%s0 + $0x1b1] sm:$0xff]
        %v360 = vld [vmem:[%s0 + $0x1b9] sm:$0xff]
        %v361 = vld [vmem:[%s0 + $0x1c9] sm:$0xff]
        %v362 = vld [vmem:[%s0 + $0x1d1] sm:$0xff]
        %v363 = vld [vmem:[%s0 + $0x1e1] sm:$0xff]
        %v364 = vld [vmem:[%s0 + $0x1e9] sm:$0xff]
        %v365 = vld [vmem:[%s0 + $0x1f9] sm:$0xff]
        %v366 = vld [vmem:[%s0 + $0x201] sm:$0xff]
        %v367 = vld [vmem:[%s0 + $0x211] sm:$0xff]
        %v368 = vld [vmem:[%s0 + $0x219] sm:$0xff]
        %v369 = vld [vmem:[%s0 + $0x229] sm:$0xff]
        %v370 = vld [vmem:[%s0 + $0x231] sm:$0xff]
        %v371 = vld [vmem:[%s0 + $0x241] sm:$0xff]
        %v372 = vld [vmem:[%s0 + $0x249] sm:$0xff]
        %v373 = vld [vmem:[%s0 + $0x259] sm:$0xff]
        %v374 = vld [vmem:[%s0 + $0x261] sm:$0xff]
        %v375 = vld [vmem:[%s0 + $0x271] sm:$0xff]
        %v376 = vld [vmem:[%s0 + $0x279] sm:$0xff]
        %v377 = vld [vmem:[%s0 + $0x289] sm:$0xff]
        %v378 = vld [vmem:[%s0 + $0x291] sm:$0xff]
        %v379 = vld [vmem:[%s0 + $0x2a1] sm:$0xff]
        %v380 = vld [vmem:[%s0 + $0x2a9] sm:$0xff]
        %v381 = vld [vmem:[%s0 + $0x2b9] sm:$0xff]
        %v382 = vld [vmem:[%s0 + $0x2c1] sm:$0xff]
        %v383 = vld [vmem:[%s0 + $0x2d1] sm:$0xff]
        %v384 = vld [vmem:[%s0 + $0x2d9] sm:$0xff]
        %v385 = vld [vmem:[%s0 + $0x2e9] sm:$0xff]
        %v386 = vld [vmem:[%s0 + $0x2f1] sm:$0xff]
        %v387 = vld [vmem:[%s0 + $0x301] sm:$0xff]
        %v388 = vld [vmem:[%s0 + $0x309] sm:$0xff]
        %v389 = vld [vmem:[%s0 + $0x319] sm:$0xff]
        %v390 = vld [vmem:[%s0 + $0x321] sm:$0xff]
        %s391 = scalar_lea.vmem %s0, 24
        %v392 = vld [vmem:[%s391] sm:$0xff]
        %v393 = vld [vmem:[%s391 + $0x8] sm:$0xff]
        %v394 = vld [vmem:[%s391 + $0x18] sm:$0xff]
        %v395 = vld [vmem:[%s391 + $0x20] sm:$0xff]
        %v396 = vld [vmem:[%s391 + $0x30] sm:$0xff]
        %v397 = vld [vmem:[%s391 + $0x38] sm:$0xff]
        %v398 = vld [vmem:[%s391 + $0x48] sm:$0xff]
        %v399 = vld [vmem:[%s391 + $0x50] sm:$0xff]
        %v400 = vld [vmem:[%s391 + $0x60] sm:$0xff]
        %v401 = vld [vmem:[%s391 + $0x68] sm:$0xff]
        %v402 = vld [vmem:[%s391 + $0x78] sm:$0xff]
        %v403 = vld [vmem:[%s391 + $0x80] sm:$0xff]
        %v404 = vld [vmem:[%s391 + $0x90] sm:$0xff]
        %v405 = vld [vmem:[%s391 + $0x98] sm:$0xff]
        %v406 = vld [vmem:[%s391 + $0xa8] sm:$0xff]
        %v407 = vld [vmem:[%s391 + $0xb0] sm:$0xff]
        %v408 = vld [vmem:[%s391 + $0xc0] sm:$0xff]
        %v409 = vld [vmem:[%s391 + $0xc8] sm:$0xff]
        %v410 = vld [vmem:[%s391 + $0xd8] sm:$0xff]
        %v411 = vld [vmem:[%s391 + $0xe0] sm:$0xff]
        %v412 = vld [vmem:[%s391 + $0xf0] sm:$0xff]
        %v413 = vld [vmem:[%s391 + $0xf8] sm:$0xff]
        %v414 = vld [vmem:[%s391 + $0x108] sm:$0xff]
        %v415 = vld [vmem:[%s391 + $0x110] sm:$0xff]
        %v416 = vld [vmem:[%s391 + $0x120] sm:$0xff]
        %v417 = vld [vmem:[%s391 + $0x128] sm:$0xff]
        %v418 = vld [vmem:[%s391 + $0x138] sm:$0xff]
        %v419 = vld [vmem:[%s391 + $0x140] sm:$0xff]
        %v420 = vld [vmem:[%s391 + $0x150] sm:$0xff]
        %v421 = vld [vmem:[%s391 + $0x158] sm:$0xff]
        %v422 = vld [vmem:[%s391 + $0x168] sm:$0xff]
        %v423 = vld [vmem:[%s391 + $0x170] sm:$0xff]
        %v424 = vld [vmem:[%s391 + $0x1b0] sm:$0xff]
        %v425 = vld [vmem:[%s391 + $0x1b8] sm:$0xff]
        %v426 = vld [vmem:[%s391 + $0x1c8] sm:$0xff]
        %v427 = vld [vmem:[%s391 + $0x1d0] sm:$0xff]
        %v428 = vld [vmem:[%s391 + $0x1e0] sm:$0xff]
        %v429 = vld [vmem:[%s391 + $0x1e8] sm:$0xff]
        %v430 = vld [vmem:[%s391 + $0x1f8] sm:$0xff]
        %v431 = vld [vmem:[%s391 + $0x200] sm:$0xff]
        %v432 = vld [vmem:[%s391 + $0x210] sm:$0xff]
        %v433 = vld [vmem:[%s391 + $0x218] sm:$0xff]
        %v434 = vld [vmem:[%s391 + $0x228] sm:$0xff]
        %v435 = vld [vmem:[%s391 + $0x230] sm:$0xff]
        %v436 = vld [vmem:[%s391 + $0x240] sm:$0xff]
        %v437 = vld [vmem:[%s391 + $0x248] sm:$0xff]
        %v438 = vld [vmem:[%s391 + $0x258] sm:$0xff]
        %v439 = vld [vmem:[%s391 + $0x260] sm:$0xff]
        %v440 = vld [vmem:[%s391 + $0x270] sm:$0xff]
        %v441 = vld [vmem:[%s391 + $0x278] sm:$0xff]
        %v442 = vld [vmem:[%s391 + $0x288] sm:$0xff]
        %v443 = vld [vmem:[%s391 + $0x290] sm:$0xff]
        %v444 = vld [vmem:[%s391 + $0x2a0] sm:$0xff]
        %v445 = vld [vmem:[%s391 + $0x2a8] sm:$0xff]
        %v446 = vld [vmem:[%s391 + $0x2b8] sm:$0xff]
        %v447 = vld [vmem:[%s391 + $0x2c0] sm:$0xff]
        %v448 = vld [vmem:[%s391 + $0x2d0] sm:$0xff]
        %v449 = vld [vmem:[%s391 + $0x2d8] sm:$0xff]
        %v450 = vld [vmem:[%s391 + $0x2e8] sm:$0xff]
        %v451 = vld [vmem:[%s391 + $0x2f0] sm:$0xff]
        %v452 = vld [vmem:[%s391 + $0x300] sm:$0xff]
        %v453 = vld [vmem:[%s391 + $0x308] sm:$0xff]
        %v454 = vld [vmem:[%s391 + $0x318] sm:$0xff]
        %v455 = vld [vmem:[%s391 + $0x320] sm:$0xff]
        %v456 = vld [vmem:[%s391 + $0x1] sm:$0xff]
        %v457 = vld [vmem:[%s391 + $0x9] sm:$0xff]
        %v458 = vld [vmem:[%s391 + $0x19] sm:$0xff]
        %v459 = vld [vmem:[%s391 + $0x21] sm:$0xff]
        %v460 = vld [vmem:[%s391 + $0x31] sm:$0xff]
        %v461 = vld [vmem:[%s391 + $0x39] sm:$0xff]
        %v462 = vld [vmem:[%s391 + $0x49] sm:$0xff]
        %v463 = vld [vmem:[%s391 + $0x51] sm:$0xff]
        %v464 = vld [vmem:[%s391 + $0x61] sm:$0xff]
        %v465 = vld [vmem:[%s391 + $0x69] sm:$0xff]
        %v466 = vld [vmem:[%s391 + $0x79] sm:$0xff]
        %v467 = vld [vmem:[%s391 + $0x81] sm:$0xff]
        %v468 = vld [vmem:[%s391 + $0x91] sm:$0xff]
        %v469 = vld [vmem:[%s391 + $0x99] sm:$0xff]
        %v470 = vld [vmem:[%s391 + $0xa9] sm:$0xff]
        %v471 = vld [vmem:[%s391 + $0xb1] sm:$0xff]
        %v472 = vld [vmem:[%s391 + $0xc1] sm:$0xff]
        %v473 = vld [vmem:[%s391 + $0xc9] sm:$0xff]
        %v474 = vld [vmem:[%s391 + $0xd9] sm:$0xff]
        %v475 = vld [vmem:[%s391 + $0xe1] sm:$0xff]
        %v476 = vld [vmem:[%s391 + $0xf1] sm:$0xff]
        %v477 = vld [vmem:[%s391 + $0xf9] sm:$0xff]
        %v478 = vld [vmem:[%s391 + $0x109] sm:$0xff]
        %v479 = vld [vmem:[%s391 + $0x111] sm:$0xff]
        %v480 = vld [vmem:[%s391 + $0x121] sm:$0xff]
        %v481 = vld [vmem:[%s391 + $0x129] sm:$0xff]
        %v482 = vld [vmem:[%s391 + $0x139] sm:$0xff]
        %v483 = vld [vmem:[%s391 + $0x141] sm:$0xff]
        %v484 = vld [vmem:[%s391 + $0x151] sm:$0xff]
        %v485 = vld [vmem:[%s391 + $0x159] sm:$0xff]
        %v486 = vld [vmem:[%s391 + $0x169] sm:$0xff]
        %v487 = vld [vmem:[%s391 + $0x171] sm:$0xff]
        %v488 = vld [vmem:[%s391 + $0x1b1] sm:$0xff]
        %v489 = vld [vmem:[%s391 + $0x1b9] sm:$0xff]
        %v490 = vld [vmem:[%s391 + $0x1c9] sm:$0xff]
        %v491 = vld [vmem:[%s391 + $0x1d1] sm:$0xff]
        %v492 = vld [vmem:[%s391 + $0x1e1] sm:$0xff]
        %v493 = vld [vmem:[%s391 + $0x1e9] sm:$0xff]
        %v494 = vld [vmem:[%s391 + $0x1f9] sm:$0xff]
        %v495 = vld [vmem:[%s391 + $0x201] sm:$0xff]
        %v496 = vld [vmem:[%s391 + $0x211] sm:$0xff]
        %v497 = vld [vmem:[%s391 + $0x219] sm:$0xff]
        %v498 = vld [vmem:[%s391 + $0x229] sm:$0xff]
        %v499 = vld [vmem:[%s391 + $0x231] sm:$0xff]
        %v500 = vld [vmem:[%s391 + $0x241] sm:$0xff]
        %v501 = vld [vmem:[%s391 + $0x249] sm:$0xff]
        %v502 = vld [vmem:[%s391 + $0x259] sm:$0xff]
        %v503 = vld [vmem:[%s391 + $0x261] sm:$0xff]
        %v504 = vld [vmem:[%s391 + $0x271] sm:$0xff]
        %v505 = vld [vmem:[%s391 + $0x279] sm:$0xff]
        %v506 = vld [vmem:[%s391 + $0x289] sm:$0xff]
        %v507 = vld [vmem:[%s391 + $0x291] sm:$0xff]
        %v508 = vld [vmem:[%s391 + $0x2a1] sm:$0xff]
        %v509 = vld [vmem:[%s391 + $0x2a9] sm:$0xff]
        %v510 = vld [vmem:[%s391 + $0x2b9] sm:$0xff]
        %v511 = vld [vmem:[%s391 + $0x2c1] sm:$0xff]
        %v512 = vld [vmem:[%s391 + $0x2d1] sm:$0xff]
        %v513 = vld [vmem:[%s391 + $0x2d9] sm:$0xff]
        %v514 = vld [vmem:[%s391 + $0x2e9] sm:$0xff]
        %v515 = vld [vmem:[%s391 + $0x2f1] sm:$0xff]
        %v516 = vld [vmem:[%s391 + $0x301] sm:$0xff]
        %v517 = vld [vmem:[%s391 + $0x309] sm:$0xff]
        %v518 = vld [vmem:[%s391 + $0x319] sm:$0xff]
        %v519 = vld [vmem:[%s391 + $0x321] sm:$0xff]
        %584 = vrot.lane.b32.xlu0 %v327, 4
        %v585 = vpop.permute.xlu0 %584
        %586 = vrot.lane.b32.xlu0 %v328, 4
        %v587 = vpop.permute.xlu0 %586
        %588 = vrot.lane.b32.xlu0 %v329, 4
        %v589 = vpop.permute.xlu0 %588
        %590 = vrot.lane.b32.xlu0 %v330, 4
        %v591 = vpop.permute.xlu0 %590
        %592 = vrot.lane.b32.xlu0 %v331, 4
        %v593 = vpop.permute.xlu0 %592
        %594 = vrot.lane.b32.xlu0 %v332, 4
        %v595 = vpop.permute.xlu0 %594
        %596 = vrot.lane.b32.xlu0 %v333, 4
        %v597 = vpop.permute.xlu0 %596
        %598 = vrot.lane.b32.xlu0 %v334, 4
        %v599 = vpop.permute.xlu0 %598
        %600 = vrot.lane.b32.xlu0 %v335, 4
        %v601 = vpop.permute.xlu0 %600
        %602 = vrot.lane.b32.xlu0 %v336, 4
        %v603 = vpop.permute.xlu0 %602
        %604 = vrot.lane.b32.xlu0 %v337, 4
        %v605 = vpop.permute.xlu0 %604
        %606 = vrot.lane.b32.xlu0 %v338, 4
        %v607 = vpop.permute.xlu0 %606
        %608 = vrot.lane.b32.xlu0 %v339, 4
        %v609 = vpop.permute.xlu0 %608
        %610 = vrot.lane.b32.xlu0 %v340, 4
        %v611 = vpop.permute.xlu0 %610
        %612 = vrot.lane.b32.xlu0 %v341, 4
        %v613 = vpop.permute.xlu0 %612
        %614 = vrot.lane.b32.xlu0 %v342, 4
        %v615 = vpop.permute.xlu0 %614
        %616 = vrot.lane.b32.xlu0 %v343, 4
        %v617 = vpop.permute.xlu0 %616
        %618 = vrot.lane.b32.xlu0 %v344, 4
        %v619 = vpop.permute.xlu0 %618
        %620 = vrot.lane.b32.xlu0 %v345, 4
        %v621 = vpop.permute.xlu0 %620
        %622 = vrot.lane.b32.xlu0 %v346, 4
        %v623 = vpop.permute.xlu0 %622
        %624 = vrot.lane.b32.xlu0 %v347, 4
        %v625 = vpop.permute.xlu0 %624
        %626 = vrot.lane.b32.xlu0 %v348, 4
        %v627 = vpop.permute.xlu0 %626
        %628 = vrot.lane.b32.xlu0 %v349, 4
        %v629 = vpop.permute.xlu0 %628
        %630 = vrot.lane.b32.xlu0 %v350, 4
        %v631 = vpop.permute.xlu0 %630
        %632 = vrot.lane.b32.xlu0 %v351, 4
        %v633 = vpop.permute.xlu0 %632
        %634 = vrot.lane.b32.xlu0 %v352, 4
        %v635 = vpop.permute.xlu0 %634
        %636 = vrot.lane.b32.xlu0 %v353, 4
        %v637 = vpop.permute.xlu0 %636
        %638 = vrot.lane.b32.xlu0 %v354, 4
        %v639 = vpop.permute.xlu0 %638
        %640 = vrot.lane.b32.xlu0 %v355, 4
        %v641 = vpop.permute.xlu0 %640
        %642 = vrot.lane.b32.xlu0 %v356, 4
        %v643 = vpop.permute.xlu0 %642
        %644 = vrot.lane.b32.xlu0 %v357, 4
        %v645 = vpop.permute.xlu0 %644
        %646 = vrot.lane.b32.xlu0 %v358, 4
        %v647 = vpop.permute.xlu0 %646
        %648 = vrot.lane.b32.xlu0 %v359, 4
        %v649 = vpop.permute.xlu0 %648
        %650 = vrot.lane.b32.xlu0 %v360, 4
        %v651 = vpop.permute.xlu0 %650
        %652 = vrot.lane.b32.xlu0 %v361, 4
        %v653 = vpop.permute.xlu0 %652
        %654 = vrot.lane.b32.xlu0 %v362, 4
        %v655 = vpop.permute.xlu0 %654
        %656 = vrot.lane.b32.xlu0 %v363, 4
        %v657 = vpop.permute.xlu0 %656
        %658 = vrot.lane.b32.xlu0 %v364, 4
        %v659 = vpop.permute.xlu0 %658
        %660 = vrot.lane.b32.xlu0 %v365, 4
        %v661 = vpop.permute.xlu0 %660
        %662 = vrot.lane.b32.xlu0 %v366, 4
        %v663 = vpop.permute.xlu0 %662
        %664 = vrot.lane.b32.xlu0 %v367, 4
        %v665 = vpop.permute.xlu0 %664
        %666 = vrot.lane.b32.xlu0 %v368, 4
        %v667 = vpop.permute.xlu0 %666
        %668 = vrot.lane.b32.xlu0 %v369, 4
        %v669 = vpop.permute.xlu0 %668
        %670 = vrot.lane.b32.xlu0 %v370, 4
        %v671 = vpop.permute.xlu0 %670
        %672 = vrot.lane.b32.xlu0 %v371, 4
        %v673 = vpop.permute.xlu0 %672
        %674 = vrot.lane.b32.xlu0 %v372, 4
        %v675 = vpop.permute.xlu0 %674
        %676 = vrot.lane.b32.xlu0 %v373, 4
        %v677 = vpop.permute.xlu0 %676
        %678 = vrot.lane.b32.xlu0 %v374, 4
        %v679 = vpop.permute.xlu0 %678
        %680 = vrot.lane.b32.xlu0 %v375, 4
        %v681 = vpop.permute.xlu0 %680
        %682 = vrot.lane.b32.xlu0 %v376, 4
        %v683 = vpop.permute.xlu0 %682
        %684 = vrot.lane.b32.xlu0 %v377, 4
        %v685 = vpop.permute.xlu0 %684
        %686 = vrot.lane.b32.xlu0 %v378, 4
        %v687 = vpop.permute.xlu0 %686
        %688 = vrot.lane.b32.xlu0 %v379, 4
        %v689 = vpop.permute.xlu0 %688
        %690 = vrot.lane.b32.xlu0 %v380, 4
        %v691 = vpop.permute.xlu0 %690
        %692 = vrot.lane.b32.xlu0 %v381, 4
        %v693 = vpop.permute.xlu0 %692
        %694 = vrot.lane.b32.xlu0 %v382, 4
        %v695 = vpop.permute.xlu0 %694
        %696 = vrot.lane.b32.xlu0 %v383, 4
        %v697 = vpop.permute.xlu0 %696
        %698 = vrot.lane.b32.xlu0 %v384, 4
        %v699 = vpop.permute.xlu0 %698
        %700 = vrot.lane.b32.xlu0 %v385, 4
        %v701 = vpop.permute.xlu0 %700
        %702 = vrot.lane.b32.xlu0 %v386, 4
        %v703 = vpop.permute.xlu0 %702
        %704 = vrot.lane.b32.xlu0 %v387, 4
        %v705 = vpop.permute.xlu0 %704
        %706 = vrot.lane.b32.xlu0 %v388, 4
        %v707 = vpop.permute.xlu0 %706
        %708 = vrot.lane.b32.xlu0 %v389, 4
        %v709 = vpop.permute.xlu0 %708
        %710 = vrot.lane.b32.xlu0 %v390, 4
        %v711 = vpop.permute.xlu0 %710
        %840 = vrot.lane.b32.xlu0 %v392, 8
        %v841 = vpop.permute.xlu0 %840
        %842 = vrot.lane.b32.xlu0 %v393, 8
        %v843 = vpop.permute.xlu0 %842
        %844 = vrot.lane.b32.xlu0 %v394, 8
        %v845 = vpop.permute.xlu0 %844
        %846 = vrot.lane.b32.xlu0 %v395, 8
        %v847 = vpop.permute.xlu0 %846
        %848 = vrot.lane.b32.xlu0 %v396, 8
        %v849 = vpop.permute.xlu0 %848
        %850 = vrot.lane.b32.xlu0 %v397, 8
        %v851 = vpop.permute.xlu0 %850
        %852 = vrot.lane.b32.xlu0 %v398, 8
        %v853 = vpop.permute.xlu0 %852
        %854 = vrot.lane.b32.xlu0 %v399, 8
        %v855 = vpop.permute.xlu0 %854
        %856 = vrot.lane.b32.xlu0 %v400, 8
        %v857 = vpop.permute.xlu0 %856
        %858 = vrot.lane.b32.xlu0 %v401, 8
        %v859 = vpop.permute.xlu0 %858
        %860 = vrot.lane.b32.xlu0 %v402, 8
        %v861 = vpop.permute.xlu0 %860
        %862 = vrot.lane.b32.xlu0 %v403, 8
        %v863 = vpop.permute.xlu0 %862
        %864 = vrot.lane.b32.xlu0 %v404, 8
        %v865 = vpop.permute.xlu0 %864
        %866 = vrot.lane.b32.xlu0 %v405, 8
        %v867 = vpop.permute.xlu0 %866
        %868 = vrot.lane.b32.xlu0 %v406, 8
        %v869 = vpop.permute.xlu0 %868
        %870 = vrot.lane.b32.xlu0 %v407, 8
        %v871 = vpop.permute.xlu0 %870
        %872 = vrot.lane.b32.xlu0 %v408, 8
        %v873 = vpop.permute.xlu0 %872
        %874 = vrot.lane.b32.xlu0 %v409, 8
        %v875 = vpop.permute.xlu0 %874
        %876 = vrot.lane.b32.xlu0 %v410, 8
        %v877 = vpop.permute.xlu0 %876
        %878 = vrot.lane.b32.xlu0 %v411, 8
        %v879 = vpop.permute.xlu0 %878
        %880 = vrot.lane.b32.xlu0 %v412, 8
        %v881 = vpop.permute.xlu0 %880
        %882 = vrot.lane.b32.xlu0 %v413, 8
        %v883 = vpop.permute.xlu0 %882
        %884 = vrot.lane.b32.xlu0 %v414, 8
        %v885 = vpop.permute.xlu0 %884
        %886 = vrot.lane.b32.xlu0 %v415, 8
        %v887 = vpop.permute.xlu0 %886
        %888 = vrot.lane.b32.xlu0 %v416, 8
        %v889 = vpop.permute.xlu0 %888
        %890 = vrot.lane.b32.xlu0 %v417, 8
        %v891 = vpop.permute.xlu0 %890
        %892 = vrot.lane.b32.xlu0 %v418, 8
        %v893 = vpop.permute.xlu0 %892
        %894 = vrot.lane.b32.xlu0 %v419, 8
        %v895 = vpop.permute.xlu0 %894
        %896 = vrot.lane.b32.xlu0 %v420, 8
        %v897 = vpop.permute.xlu0 %896
        %898 = vrot.lane.b32.xlu0 %v421, 8
        %v899 = vpop.permute.xlu0 %898
        %900 = vrot.lane.b32.xlu0 %v422, 8
        %v901 = vpop.permute.xlu0 %900
        %902 = vrot.lane.b32.xlu0 %v423, 8
        %v903 = vpop.permute.xlu0 %902
        %904 = vrot.lane.b32.xlu0 %v424, 8
        %v905 = vpop.permute.xlu0 %904
        %906 = vrot.lane.b32.xlu0 %v425, 8
        %v907 = vpop.permute.xlu0 %906
        %908 = vrot.lane.b32.xlu0 %v426, 8
        %v909 = vpop.permute.xlu0 %908
        %910 = vrot.lane.b32.xlu0 %v427, 8
        %v911 = vpop.permute.xlu0 %910
        %912 = vrot.lane.b32.xlu0 %v428, 8
        %v913 = vpop.permute.xlu0 %912
        %914 = vrot.lane.b32.xlu0 %v429, 8
        %v915 = vpop.permute.xlu0 %914
        %916 = vrot.lane.b32.xlu0 %v430, 8
        %v917 = vpop.permute.xlu0 %916
        %918 = vrot.lane.b32.xlu0 %v431, 8
        %v919 = vpop.permute.xlu0 %918
        %920 = vrot.lane.b32.xlu0 %v432, 8
        %v921 = vpop.permute.xlu0 %920
        %922 = vrot.lane.b32.xlu0 %v433, 8
        %v923 = vpop.permute.xlu0 %922
        %924 = vrot.lane.b32.xlu0 %v434, 8
        %v925 = vpop.permute.xlu0 %924
        %926 = vrot.lane.b32.xlu0 %v435, 8
        %v927 = vpop.permute.xlu0 %926
        %928 = vrot.lane.b32.xlu0 %v436, 8
        %v929 = vpop.permute.xlu0 %928
        %930 = vrot.lane.b32.xlu0 %v437, 8
        %v931 = vpop.permute.xlu0 %930
        %932 = vrot.lane.b32.xlu0 %v438, 8
        %v933 = vpop.permute.xlu0 %932
        %934 = vrot.lane.b32.xlu0 %v439, 8
        %v935 = vpop.permute.xlu0 %934
        %936 = vrot.lane.b32.xlu0 %v440, 8
        %v937 = vpop.permute.xlu0 %936
        %938 = vrot.lane.b32.xlu0 %v441, 8
        %v939 = vpop.permute.xlu0 %938
        %940 = vrot.lane.b32.xlu0 %v442, 8
        %v941 = vpop.permute.xlu0 %940
        %942 = vrot.lane.b32.xlu0 %v443, 8
        %v943 = vpop.permute.xlu0 %942
        %944 = vrot.lane.b32.xlu0 %v444, 8
        %v945 = vpop.permute.xlu0 %944
        %946 = vrot.lane.b32.xlu0 %v445, 8
        %v947 = vpop.permute.xlu0 %946
        %948 = vrot.lane.b32.xlu0 %v446, 8
        %v949 = vpop.permute.xlu0 %948
        %950 = vrot.lane.b32.xlu0 %v447, 8
        %v951 = vpop.permute.xlu0 %950
        %952 = vrot.lane.b32.xlu0 %v448, 8
        %v953 = vpop.permute.xlu0 %952
        %954 = vrot.lane.b32.xlu0 %v449, 8
        %v955 = vpop.permute.xlu0 %954
        %956 = vrot.lane.b32.xlu0 %v450, 8
        %v957 = vpop.permute.xlu0 %956
        %958 = vrot.lane.b32.xlu0 %v451, 8
        %v959 = vpop.permute.xlu0 %958
        %960 = vrot.lane.b32.xlu0 %v452, 8
        %v961 = vpop.permute.xlu0 %960
        %962 = vrot.lane.b32.xlu0 %v453, 8
        %v963 = vpop.permute.xlu0 %962
        %964 = vrot.lane.b32.xlu0 %v454, 8
        %v965 = vpop.permute.xlu0 %964
        %966 = vrot.lane.b32.xlu0 %v455, 8
        %v967 = vpop.permute.xlu0 %966
        %1096 = vrot.lane.b32.xlu0 %v456, 12
        %v1097 = vpop.permute.xlu0 %1096
        %1098 = vrot.lane.b32.xlu0 %v457, 12
        %v1099 = vpop.permute.xlu0 %1098
        %1100 = vrot.lane.b32.xlu0 %v458, 12
        %v1101 = vpop.permute.xlu0 %1100
        %1102 = vrot.lane.b32.xlu0 %v459, 12
        %v1103 = vpop.permute.xlu0 %1102
        %1104 = vrot.lane.b32.xlu0 %v460, 12
        %v1105 = vpop.permute.xlu0 %1104
        %1106 = vrot.lane.b32.xlu0 %v461, 12
        %v1107 = vpop.permute.xlu0 %1106
        %1108 = vrot.lane.b32.xlu0 %v462, 12
        %v1109 = vpop.permute.xlu0 %1108
        %1110 = vrot.lane.b32.xlu0 %v463, 12
        %v1111 = vpop.permute.xlu0 %1110
        %1112 = vrot.lane.b32.xlu0 %v464, 12
        %v1113 = vpop.permute.xlu0 %1112
        %1114 = vrot.lane.b32.xlu0 %v465, 12
        %v1115 = vpop.permute.xlu0 %1114
        %1116 = vrot.lane.b32.xlu0 %v466, 12
        %v1117 = vpop.permute.xlu0 %1116
        %1118 = vrot.lane.b32.xlu0 %v467, 12
        %v1119 = vpop.permute.xlu0 %1118
        %1120 = vrot.lane.b32.xlu0 %v468, 12
        %v1121 = vpop.permute.xlu0 %1120
        %1122 = vrot.lane.b32.xlu0 %v469, 12
        %v1123 = vpop.permute.xlu0 %1122
        %1124 = vrot.lane.b32.xlu0 %v470, 12
        %v1125 = vpop.permute.xlu0 %1124
        %1126 = vrot.lane.b32.xlu0 %v471, 12
        %v1127 = vpop.permute.xlu0 %1126
        %1128 = vrot.lane.b32.xlu0 %v472, 12
        %v1129 = vpop.permute.xlu0 %1128
        %1130 = vrot.lane.b32.xlu0 %v473, 12
        %v1131 = vpop.permute.xlu0 %1130
        %1132 = vrot.lane.b32.xlu0 %v474, 12
        %v1133 = vpop.permute.xlu0 %1132
        %1134 = vrot.lane.b32.xlu0 %v475, 12
        %v1135 = vpop.permute.xlu0 %1134
        %1136 = vrot.lane.b32.xlu0 %v476, 12
        %v1137 = vpop.permute.xlu0 %1136
        %1138 = vrot.lane.b32.xlu0 %v477, 12
        %v1139 = vpop.permute.xlu0 %1138
        %1140 = vrot.lane.b32.xlu0 %v478, 12
        %v1141 = vpop.permute.xlu0 %1140
        %1142 = vrot.lane.b32.xlu0 %v479, 12
        %v1143 = vpop.permute.xlu0 %1142
        %1144 = vrot.lane.b32.xlu0 %v480, 12
        %v1145 = vpop.permute.xlu0 %1144
        %1146 = vrot.lane.b32.xlu0 %v481, 12
        %v1147 = vpop.permute.xlu0 %1146
        %1148 = vrot.lane.b32.xlu0 %v482, 12
        %v1149 = vpop.permute.xlu0 %1148
        %1150 = vrot.lane.b32.xlu0 %v483, 12
        %v1151 = vpop.permute.xlu0 %1150
        %1152 = vrot.lane.b32.xlu0 %v484, 12
        %v1153 = vpop.permute.xlu0 %1152
        %1154 = vrot.lane.b32.xlu0 %v485, 12
        %v1155 = vpop.permute.xlu0 %1154
        %1156 = vrot.lane.b32.xlu0 %v486, 12
        %v1157 = vpop.permute.xlu0 %1156
        %1158 = vrot.lane.b32.xlu0 %v487, 12
        %v1159 = vpop.permute.xlu0 %1158
        %1160 = vrot.lane.b32.xlu0 %v488, 12
        %v1161 = vpop.permute.xlu0 %1160
        %1162 = vrot.lane.b32.xlu0 %v489, 12
        %v1163 = vpop.permute.xlu0 %1162
        %1164 = vrot.lane.b32.xlu0 %v490, 12
        %v1165 = vpop.permute.xlu0 %1164
        %1166 = vrot.lane.b32.xlu0 %v491, 12
        %v1167 = vpop.permute.xlu0 %1166
        %1168 = vrot.lane.b32.xlu0 %v492, 12
        %v1169 = vpop.permute.xlu0 %1168
        %1170 = vrot.lane.b32.xlu0 %v493, 12
        %v1171 = vpop.permute.xlu0 %1170
        %1172 = vrot.lane.b32.xlu0 %v494, 12
        %v1173 = vpop.permute.xlu0 %1172
        %1174 = vrot.lane.b32.xlu0 %v495, 12
        %v1175 = vpop.permute.xlu0 %1174
        %1176 = vrot.lane.b32.xlu0 %v496, 12
        %v1177 = vpop.permute.xlu0 %1176
        %1178 = vrot.lane.b32.xlu0 %v497, 12
        %v1179 = vpop.permute.xlu0 %1178
        %1180 = vrot.lane.b32.xlu0 %v498, 12
        %v1181 = vpop.permute.xlu0 %1180
        %1182 = vrot.lane.b32.xlu0 %v499, 12
        %v1183 = vpop.permute.xlu0 %1182
        %1184 = vrot.lane.b32.xlu0 %v500, 12
        %v1185 = vpop.permute.xlu0 %1184
        %1186 = vrot.lane.b32.xlu0 %v501, 12
        %v1187 = vpop.permute.xlu0 %1186
        %1188 = vrot.lane.b32.xlu0 %v502, 12
        %v1189 = vpop.permute.xlu0 %1188
        %1190 = vrot.lane.b32.xlu0 %v503, 12
        %v1191 = vpop.permute.xlu0 %1190
        %1192 = vrot.lane.b32.xlu0 %v504, 12
        %v1193 = vpop.permute.xlu0 %1192
        %1194 = vrot.lane.b32.xlu0 %v505, 12
        %v1195 = vpop.permute.xlu0 %1194
        %1196 = vrot.lane.b32.xlu0 %v506, 12
        %v1197 = vpop.permute.xlu0 %1196
        %1198 = vrot.lane.b32.xlu0 %v507, 12
        %v1199 = vpop.permute.xlu0 %1198
        %1200 = vrot.lane.b32.xlu0 %v508, 12
        %v1201 = vpop.permute.xlu0 %1200
        %1202 = vrot.lane.b32.xlu0 %v509, 12
        %v1203 = vpop.permute.xlu0 %1202
        %1204 = vrot.lane.b32.xlu0 %v510, 12
        %v1205 = vpop.permute.xlu0 %1204
        %1206 = vrot.lane.b32.xlu0 %v511, 12
        %v1207 = vpop.permute.xlu0 %1206
        %1208 = vrot.lane.b32.xlu0 %v512, 12
        %v1209 = vpop.permute.xlu0 %1208
        %1210 = vrot.lane.b32.xlu0 %v513, 12
        %v1211 = vpop.permute.xlu0 %1210
        %1212 = vrot.lane.b32.xlu0 %v514, 12
        %v1213 = vpop.permute.xlu0 %1212
        %1214 = vrot.lane.b32.xlu0 %v515, 12
        %v1215 = vpop.permute.xlu0 %1214
        %1216 = vrot.lane.b32.xlu0 %v516, 12
        %v1217 = vpop.permute.xlu0 %1216
        %1218 = vrot.lane.b32.xlu0 %v517, 12
        %v1219 = vpop.permute.xlu0 %1218
        %1220 = vrot.lane.b32.xlu0 %v518, 12
        %v1221 = vpop.permute.xlu0 %1220
        %1222 = vrot.lane.b32.xlu0 %v519, 12
        %v1223 = vpop.permute.xlu0 %1222
        %vm1288 = vcmask 31744
        %v1289 = vsel %vm1288, %v263, %v585
        %v1290 = vsel %vm1288, %v264, %v587
        %v1291 = vsel %vm1288, %v265, %v589
        %v1292 = vsel %vm1288, %v266, %v591
        %v1293 = vsel %vm1288, %v267, %v593
        %v1294 = vsel %vm1288, %v268, %v595
        %v1295 = vsel %vm1288, %v269, %v597
        %v1296 = vsel %vm1288, %v270, %v599
        %v1297 = vsel %vm1288, %v271, %v601
        %v1298 = vsel %vm1288, %v272, %v603
        %v1299 = vsel %vm1288, %v273, %v605
        %v1300 = vsel %vm1288, %v274, %v607
        %v1301 = vsel %vm1288, %v275, %v609
        %v1302 = vsel %vm1288, %v276, %v611
        %v1303 = vsel %vm1288, %v277, %v613
        %v1304 = vsel %vm1288, %v278, %v615
        %v1305 = vsel %vm1288, %v279, %v617
        %v1306 = vsel %vm1288, %v280, %v619
        %v1307 = vsel %vm1288, %v281, %v621
        %v1308 = vsel %vm1288, %v282, %v623
        %v1309 = vsel %vm1288, %v283, %v625
        %v1310 = vsel %vm1288, %v284, %v627
        %v1311 = vsel %vm1288, %v285, %v629
        %v1312 = vsel %vm1288, %v286, %v631
        %v1313 = vsel %vm1288, %v287, %v633
        %v1314 = vsel %vm1288, %v288, %v635
        %v1315 = vsel %vm1288, %v289, %v637
        %v1316 = vsel %vm1288, %v290, %v639
        %v1317 = vsel %vm1288, %v291, %v641
        %v1318 = vsel %vm1288, %v292, %v643
        %v1319 = vsel %vm1288, %v293, %v645
        %v1320 = vsel %vm1288, %v294, %v647
        %v1321 = vsel %vm1288, %v295, %v649
        %v1322 = vsel %vm1288, %v296, %v651
        %v1323 = vsel %vm1288, %v297, %v653
        %v1324 = vsel %vm1288, %v298, %v655
        %v1325 = vsel %vm1288, %v299, %v657
        %v1326 = vsel %vm1288, %v300, %v659
        %v1327 = vsel %vm1288, %v301, %v661
        %v1328 = vsel %vm1288, %v302, %v663
        %v1329 = vsel %vm1288, %v303, %v665
        %v1330 = vsel %vm1288, %v304, %v667
        %v1331 = vsel %vm1288, %v305, %v669
        %v1332 = vsel %vm1288, %v306, %v671
        %v1333 = vsel %vm1288, %v307, %v673
        %v1334 = vsel %vm1288, %v308, %v675
        %v1335 = vsel %vm1288, %v309, %v677
        %v1336 = vsel %vm1288, %v310, %v679
        %v1337 = vsel %vm1288, %v311, %v681
        %v1338 = vsel %vm1288, %v312, %v683
        %v1339 = vsel %vm1288, %v313, %v685
        %v1340 = vsel %vm1288, %v314, %v687
        %v1341 = vsel %vm1288, %v315, %v689
        %v1342 = vsel %vm1288, %v316, %v691
        %v1343 = vsel %vm1288, %v317, %v693
        %v1344 = vsel %vm1288, %v318, %v695
        %v1345 = vsel %vm1288, %v319, %v697
        %v1346 = vsel %vm1288, %v320, %v699
        %v1347 = vsel %vm1288, %v321, %v701
        %v1348 = vsel %vm1288, %v322, %v703
        %v1349 = vsel %vm1288, %v323, %v705
        %v1350 = vsel %vm1288, %v324, %v707
        %v1351 = vsel %vm1288, %v325, %v709
        %v1352 = vsel %vm1288, %v326, %v711
        %vm1353 = vcmask 64512
        %v1354 = vsel %vm1353, %v1289, %v841
        %v1355 = vsel %vm1353, %v1290, %v843
        %v1356 = vsel %vm1353, %v1291, %v845
        %v1357 = vsel %vm1353, %v1292, %v847
        %v1358 = vsel %vm1353, %v1293, %v849
        %v1359 = vsel %vm1353, %v1294, %v851
        %v1360 = vsel %vm1353, %v1295, %v853
        %v1361 = vsel %vm1353, %v1296, %v855
        %v1362 = vsel %vm1353, %v1297, %v857
        %v1363 = vsel %vm1353, %v1298, %v859
        %v1364 = vsel %vm1353, %v1299, %v861
        %v1365 = vsel %vm1353, %v1300, %v863
        %v1366 = vsel %vm1353, %v1301, %v865
        %v1367 = vsel %vm1353, %v1302, %v867
        %v1368 = vsel %vm1353, %v1303, %v869
        %v1369 = vsel %vm1353, %v1304, %v871
        %v1370 = vsel %vm1353, %v1305, %v873
        %v1371 = vsel %vm1353, %v1306, %v875
        %v1372 = vsel %vm1353, %v1307, %v877
        %v1373 = vsel %vm1353, %v1308, %v879
        %v1374 = vsel %vm1353, %v1309, %v881
        %v1375 = vsel %vm1353, %v1310, %v883
        %v1376 = vsel %vm1353, %v1311, %v885
        %v1377 = vsel %vm1353, %v1312, %v887
        %v1378 = vsel %vm1353, %v1313, %v889
        %v1379 = vsel %vm1353, %v1314, %v891
        %v1380 = vsel %vm1353, %v1315, %v893
        %v1381 = vsel %vm1353, %v1316, %v895
        %v1382 = vsel %vm1353, %v1317, %v897
        %v1383 = vsel %vm1353, %v1318, %v899
        %v1384 = vsel %vm1353, %v1319, %v901
        %v1385 = vsel %vm1353, %v1320, %v903
        %v1386 = vsel %vm1353, %v1321, %v905
        %v1387 = vsel %vm1353, %v1322, %v907
        %v1388 = vsel %vm1353, %v1323, %v909
        %v1389 = vsel %vm1353, %v1324, %v911
        %v1390 = vsel %vm1353, %v1325, %v913
        %v1391 = vsel %vm1353, %v1326, %v915
        %v1392 = vsel %vm1353, %v1327, %v917
        %v1393 = vsel %vm1353, %v1328, %v919
        %v1394 = vsel %vm1353, %v1329, %v921
        %v1395 = vsel %vm1353, %v1330, %v923
        %v1396 = vsel %vm1353, %v1331, %v925
        %v1397 = vsel %vm1353, %v1332, %v927
        %v1398 = vsel %vm1353, %v1333, %v929
        %v1399 = vsel %vm1353, %v1334, %v931
        %v1400 = vsel %vm1353, %v1335, %v933
        %v1401 = vsel %vm1353, %v1336, %v935
        %v1402 = vsel %vm1353, %v1337, %v937
        %v1403 = vsel %vm1353, %v1338, %v939
        %v1404 = vsel %vm1353, %v1339, %v941
        %v1405 = vsel %vm1353, %v1340, %v943
        %v1406 = vsel %vm1353, %v1341, %v945
        %v1407 = vsel %vm1353, %v1342, %v947
        %v1408 = vsel %vm1353, %v1343, %v949
        %v1409 = vsel %vm1353, %v1344, %v951
        %v1410 = vsel %vm1353, %v1345, %v953
        %v1411 = vsel %vm1353, %v1346, %v955
        %v1412 = vsel %vm1353, %v1347, %v957
        %v1413 = vsel %vm1353, %v1348, %v959
        %v1414 = vsel %vm1353, %v1349, %v961
        %v1415 = vsel %vm1353, %v1350, %v963
        %v1416 = vsel %vm1353, %v1351, %v965
        %v1417 = vsel %vm1353, %v1352, %v967
        %vm1418 = vcmask 97280
        %v1419 = vsel %vm1418, %v1354, %v1097
        %v1420 = vsel %vm1418, %v1355, %v1099
        %v1421 = vsel %vm1418, %v1356, %v1101
        %v1422 = vsel %vm1418, %v1357, %v1103
        %v1423 = vsel %vm1418, %v1358, %v1105
        %v1424 = vsel %vm1418, %v1359, %v1107
        %v1425 = vsel %vm1418, %v1360, %v1109
        %v1426 = vsel %vm1418, %v1361, %v1111
        %v1427 = vsel %vm1418, %v1362, %v1113
        %v1428 = vsel %vm1418, %v1363, %v1115
        %v1429 = vsel %vm1418, %v1364, %v1117
        %v1430 = vsel %vm1418, %v1365, %v1119
        %v1431 = vsel %vm1418, %v1366, %v1121
        %v1432 = vsel %vm1418, %v1367, %v1123
        %v1433 = vsel %vm1418, %v1368, %v1125
        %v1434 = vsel %vm1418, %v1369, %v1127
        %v1435 = vsel %vm1418, %v1370, %v1129
        %v1436 = vsel %vm1418, %v1371, %v1131
        %v1437 = vsel %vm1418, %v1372, %v1133
        %v1438 = vsel %vm1418, %v1373, %v1135
        %v1439 = vsel %vm1418, %v1374, %v1137
        %v1440 = vsel %vm1418, %v1375, %v1139
        %v1441 = vsel %vm1418, %v1376, %v1141
        %v1442 = vsel %vm1418, %v1377, %v1143
        %v1443 = vsel %vm1418, %v1378, %v1145
        %v1444 = vsel %vm1418, %v1379, %v1147
        %v1445 = vsel %vm1418, %v1380, %v1149
        %v1446 = vsel %vm1418, %v1381, %v1151
        %v1447 = vsel %vm1418, %v1382, %v1153
        %v1448 = vsel %vm1418, %v1383, %v1155
        %v1449 = vsel %vm1418, %v1384, %v1157
        %v1450 = vsel %vm1418, %v1385, %v1159
        %v1451 = vsel %vm1418, %v1386, %v1161
        %v1452 = vsel %vm1418, %v1387, %v1163
        %v1453 = vsel %vm1418, %v1388, %v1165
        %v1454 = vsel %vm1418, %v1389, %v1167
        %v1455 = vsel %vm1418, %v1390, %v1169
        %v1456 = vsel %vm1418, %v1391, %v1171
        %v1457 = vsel %vm1418, %v1392, %v1173
        %v1458 = vsel %vm1418, %v1393, %v1175
        %v1459 = vsel %vm1418, %v1394, %v1177
        %v1460 = vsel %vm1418, %v1395, %v1179
        %v1461 = vsel %vm1418, %v1396, %v1181
        %v1462 = vsel %vm1418, %v1397, %v1183
        %v1463 = vsel %vm1418, %v1398, %v1185
        %v1464 = vsel %vm1418, %v1399, %v1187
        %v1465 = vsel %vm1418, %v1400, %v1189
        %v1466 = vsel %vm1418, %v1401, %v1191
        %v1467 = vsel %vm1418, %v1402, %v1193
        %v1468 = vsel %vm1418, %v1403, %v1195
        %v1469 = vsel %vm1418, %v1404, %v1197
        %v1470 = vsel %vm1418, %v1405, %v1199
        %v1471 = vsel %vm1418, %v1406, %v1201
        %v1472 = vsel %vm1418, %v1407, %v1203
        %v1473 = vsel %vm1418, %v1408, %v1205
        %v1474 = vsel %vm1418, %v1409, %v1207
        %v1475 = vsel %vm1418, %v1410, %v1209
        %v1476 = vsel %vm1418, %v1411, %v1211
        %v1477 = vsel %vm1418, %v1412, %v1213
        %v1478 = vsel %vm1418, %v1413, %v1215
        %v1479 = vsel %vm1418, %v1414, %v1217
        %v1480 = vsel %vm1418, %v1415, %v1219
        %v1481 = vsel %vm1418, %v1416, %v1221
        %v1482 = vsel %vm1418, %v1417, %v1223
        %v1483 = vpack.c.bf16 %v1420, %v1419
        %v1484 = vpack.c.bf16 %v1422, %v1421
        %v1485 = vpack.c.bf16 %v1424, %v1423
        %v1486 = vpack.c.bf16 %v1426, %v1425
        %v1487 = vpack.c.bf16 %v1428, %v1427
        %v1488 = vpack.c.bf16 %v1430, %v1429
        %v1489 = vpack.c.bf16 %v1432, %v1431
        %v1490 = vpack.c.bf16 %v1434, %v1433
        %v1491 = vpack.c.bf16 %v1436, %v1435
        %v1492 = vpack.c.bf16 %v1438, %v1437
        %v1493 = vpack.c.bf16 %v1440, %v1439
        %v1494 = vpack.c.bf16 %v1442, %v1441
        %v1495 = vpack.c.bf16 %v1444, %v1443
        %v1496 = vpack.c.bf16 %v1446, %v1445
        %v1497 = vpack.c.bf16 %v1448, %v1447
        %v1498 = vpack.c.bf16 %v1450, %v1449
        %v1499 = vpack.c.bf16 %v1452, %v1451
        %v1500 = vpack.c.bf16 %v1454, %v1453
        %v1501 = vpack.c.bf16 %v1456, %v1455
        %v1502 = vpack.c.bf16 %v1458, %v1457
        %v1503 = vpack.c.bf16 %v1460, %v1459
        %v1504 = vpack.c.bf16 %v1462, %v1461
        %v1505 = vpack.c.bf16 %v1464, %v1463
        %v1506 = vpack.c.bf16 %v1466, %v1465
        %v1507 = vpack.c.bf16 %v1468, %v1467
        %v1508 = vpack.c.bf16 %v1470, %v1469
        %v1509 = vpack.c.bf16 %v1472, %v1471
        %v1510 = vpack.c.bf16 %v1474, %v1473
        %v1511 = vpack.c.bf16 %v1476, %v1475
        %v1512 = vpack.c.bf16 %v1478, %v1477
        %v1513 = vpack.c.bf16 %v1480, %v1479
        %v1514 = vpack.c.bf16 %v1482, %v1481
        %v1515 = vld [vmem:[%s251] sm:$0xf]
        %v1516 = vld [vmem:[%s251 + $0x4] sm:$0xf]
        %v1518 = vlaneseq
        %v1519 = vshrl.u32 %v1518, 7
        %v1520 = vsub.s32 0, %v1519
        %v1521 = vrot.slane %v262, %v1520
        %v1525 = vunpack.c.l.b16 %v1515
        %v1526 = vunpack.c.l.b16 %v1516
        %v1527 = vpack.c.b16 %v1526, %v1525
        %vm1529 = vcmask 130048
        %v1531 = vsel %vm1529, %v1483, 0
        %v1534 = vsel %vm1529, %v1484, 0
        %v1537 = vsel %vm1529, %v1485, 0
        %v1540 = vsel %vm1529, %v1486, 0
        %v1543 = vsel %vm1529, %v1487, 0
        %v1546 = vsel %vm1529, %v1488, 0
        %v1549 = vsel %vm1529, %v1489, 0
        %v1552 = vsel %vm1529, %v1490, 0
        %v1555 = vsel %vm1529, %v1491, 0
        %v1558 = vsel %vm1529, %v1492, 0
        %v1561 = vsel %vm1529, %v1493, 0
        %v1564 = vsel %vm1529, %v1494, 0
        %v1567 = vsel %vm1529, %v1495, 0
        %v1570 = vsel %vm1529, %v1496, 0
        %v1573 = vsel %vm1529, %v1497, 0
        %v1576 = vsel %vm1529, %v1498, 0
        %v1579 = vsel %vm1529, %v1499, 0
        %v1582 = vsel %vm1529, %v1500, 0
        %v1585 = vsel %vm1529, %v1501, 0
        %v1588 = vsel %vm1529, %v1502, 0
        %v1591 = vsel %vm1529, %v1503, 0
        %v1594 = vsel %vm1529, %v1504, 0
        %v1597 = vsel %vm1529, %v1505, 0
        %v1600 = vsel %vm1529, %v1506, 0
        %v1603 = vsel %vm1529, %v1507, 0
        %v1606 = vsel %vm1529, %v1508, 0
        %v1609 = vsel %vm1529, %v1509, 0
        %v1612 = vsel %vm1529, %v1510, 0
        %v1615 = vsel %vm1529, %v1511, 0
        %v1618 = vsel %vm1529, %v1512, 0
        %v1621 = vsel %vm1529, %v1513, 0
        %v1624 = vsel %vm1529, %v1514, 0
        %1626 = vmatprep.subr.bf16.mxu0 0
        %1627 = vmatpush1.bf16.msra.mxu0 %v1527
        %1628 = vmatprep.subr.bf16.mxu0 0
        %1629 = vmatpush1.bf16.msra.mxu0 0
        %1630 = vmatprep.subr.bf16.mxu0 0
        %1631 = vmatpush1.bf16.msra.mxu0 0
        %1632 = vmatprep.subr.bf16.mxu0 0
        %1633 = vmatpush1.bf16.msra.mxu0 0
        %1634 = vmatprep.subr.bf16.mxu0 0
        %1635 = vmatpush1.bf16.msra.mxu0 0
        %1636 = vmatprep.subr.bf16.mxu0 0
        %1637 = vmatpush1.bf16.msra.mxu0 0
        %1638 = vmatprep.subr.bf16.mxu0 0
        %1639 = vmatpush1.bf16.msra.mxu0 0
        %1640 = vmatprep.subr.bf16.mxu0 0
        %1641 = vmatpush1.bf16.msra.mxu0 0
        %1642 = vmatprep.subr.bf16.mxu0 0
        %1643 = vmatpush1.bf16.msra.mxu0 0
        %1644 = vmatprep.subr.bf16.mxu0 0
        %1645 = vmatpush1.bf16.msra.mxu0 0
        %1646 = vmatprep.subr.bf16.mxu0 0
        %1647 = vmatpush1.bf16.msra.mxu0 0
        %1648 = vmatprep.subr.bf16.mxu0 0
        %1649 = vmatpush1.bf16.msra.mxu0 0
        %1650 = vmatprep.subr.bf16.mxu0 0
        %1651 = vmatpush1.bf16.msra.mxu0 0
        %1652 = vmatprep.subr.bf16.mxu0 0
        %1653 = vmatpush1.bf16.msra.mxu0 0
        %1654 = vmatprep.subr.bf16.mxu0 0
        %1655 = vmatpush1.bf16.msra.mxu0 0
        %1656 = vmatprep.subr.bf16.mxu0 0
        %1657 = vmatpush1.bf16.msra.mxu0 0
        %1658 = vmatprep.mubr.bf16.mxu0 0
        %1659 = vmatmul.mubr.bf16.gmra.mrb[0].mxu0 %v1531
        %v1660 = vpop.f32.mrb[0].mxu0
        %v1661 = vadd.f32 %v1521, %v1660
        %v1662 = vpop.f32.mrb[0].mxu0
        %v1663 = vpop.f32.mrb[0].mxu0
        %v1664 = vadd.f32 %v1521, %v1663
        %v1665 = vpop.f32.mrb[0].mxu0
        %1666 = vmatprep.mubr.bf16.mxu0 0
        %1667 = vmatmul.mubr.bf16.gmra.mrb[0].mxu0 %v1534
        %v1668 = vpop.f32.mrb[0].mxu0
        %v1669 = vadd.f32 %v1521, %v1668
        %v1670 = vpop.f32.mrb[0].mxu0
        %v1671 = vpop.f32.mrb[0].mxu0
        %v1672 = vadd.f32 %v1521, %v1671
        %v1673 = vpop.f32.mrb[0].mxu0
        %1674 = vmatprep.mubr.bf16.mxu0 0
        %1675 = vmatmul.mubr.bf16.gmra.mrb[0].mxu0 %v1537
        %v1676 = vpop.f32.mrb[0].mxu0
        %v1677 = vadd.f32 %v1521, %v1676
        %v1678 = vpop.f32.mrb[0].mxu0
        %v1679 = vpop.f32.mrb[0].mxu0
        %v1680 = vadd.f32 %v1521, %v1679
        %v1681 = vpop.f32.mrb[0].mxu0
        %1682 = vmatprep.mubr.bf16.mxu0 0
        %1683 = vmatmul.mubr.bf16.gmra.mrb[0].mxu0 %v1540
        %v1684 = vpop.f32.mrb[0].mxu0
        %v1685 = vadd.f32 %v1521, %v1684
        %v1686 = vpop.f32.mrb[0].mxu0
        %v1687 = vpop.f32.mrb[0].mxu0
        %v1688 = vadd.f32 %v1521, %v1687
        %v1689 = vpop.f32.mrb[0].mxu0
        %1690 = vmatprep.mubr.bf16.mxu0 0
        %1691 = vmatmul.mubr.bf16.gmra.mrb[0].mxu0 %v1543
        %v1692 = vpop.f32.mrb[0].mxu0
        %v1693 = vadd.f32 %v1521, %v1692
        %v1694 = vpop.f32.mrb[0].mxu0
        %v1695 = vpop.f32.mrb[0].mxu0
        %v1696 = vadd.f32 %v1521, %v1695
        %v1697 = vpop.f32.mrb[0].mxu0
        %1698 = vmatprep.mubr.bf16.mxu0 0
        %1699 = vmatmul.mubr.bf16.gmra.mrb[0].mxu0 %v1546
        %v1700 = vpop.f32.mrb[0].mxu0
        %v1701 = vadd.f32 %v1521, %v1700
        %v1702 = vpop.f32.mrb[0].mxu0
        %v1703 = vpop.f32.mrb[0].mxu0
        %v1704 = vadd.f32 %v1521, %v1703
        %v1705 = vpop.f32.mrb[0].mxu0
        %1706 = vmatprep.mubr.bf16.mxu0 0
        %1707 = vmatmul.mubr.bf16.gmra.mrb[0].mxu0 %v1549
        %v1708 = vpop.f32.mrb[0].mxu0
        %v1709 = vadd.f32 %v1521, %v1708
        %v1710 = vpop.f32.mrb[0].mxu0
        %v1711 = vpop.f32.mrb[0].mxu0
        %v1712 = vadd.f32 %v1521, %v1711
        %v1713 = vpop.f32.mrb[0].mxu0
        %1714 = vmatprep.mubr.bf16.mxu0 0
        %1715 = vmatmul.mubr.bf16.gmra.mrb[0].mxu0 %v1552
        %v1716 = vpop.f32.mrb[0].mxu0
        %v1717 = vadd.f32 %v1521, %v1716
        %v1718 = vpop.f32.mrb[0].mxu0
        %v1719 = vpop.f32.mrb[0].mxu0
        %v1720 = vadd.f32 %v1521, %v1719
        %v1721 = vpop.f32.mrb[0].mxu0
        %1722 = vmatprep.mubr.bf16.mxu0 0
        %1723 = vmatmul.mubr.bf16.gmra.mrb[0].mxu0 %v1555
        %v1724 = vpop.f32.mrb[0].mxu0
        %v1725 = vadd.f32 %v1521, %v1724
        %v1726 = vpop.f32.mrb[0].mxu0
        %v1727 = vpop.f32.mrb[0].mxu0
        %v1728 = vadd.f32 %v1521, %v1727
        %v1729 = vpop.f32.mrb[0].mxu0
        %1730 = vmatprep.mubr.bf16.mxu0 0
        %1731 = vmatmul.mubr.bf16.gmra.mrb[0].mxu0 %v1558
        %v1732 = vpop.f32.mrb[0].mxu0
        %v1733 = vadd.f32 %v1521, %v1732
        %v1734 = vpop.f32.mrb[0].mxu0
        %v1735 = vpop.f32.mrb[0].mxu0
        %v1736 = vadd.f32 %v1521, %v1735
        %v1737 = vpop.f32.mrb[0].mxu0
        %1738 = vmatprep.mubr.bf16.mxu0 0
        %1739 = vmatmul.mubr.bf16.gmra.mrb[0].mxu0 %v1561
        %v1740 = vpop.f32.mrb[0].mxu0
        %v1741 = vadd.f32 %v1521, %v1740
        %v1742 = vpop.f32.mrb[0].mxu0
        %v1743 = vpop.f32.mrb[0].mxu0
        %v1744 = vadd.f32 %v1521, %v1743
        %v1745 = vpop.f32.mrb[0].mxu0
        %1746 = vmatprep.mubr.bf16.mxu0 0
        %1747 = vmatmul.mubr.bf16.gmra.mrb[0].mxu0 %v1564
        %v1748 = vpop.f32.mrb[0].mxu0
        %v1749 = vadd.f32 %v1521, %v1748
        %v1750 = vpop.f32.mrb[0].mxu0
        %v1751 = vpop.f32.mrb[0].mxu0
        %v1752 = vadd.f32 %v1521, %v1751
        %v1753 = vpop.f32.mrb[0].mxu0
        %1754 = vmatprep.mubr.bf16.mxu0 0
        %1755 = vmatmul.mubr.bf16.gmra.mrb[0].mxu0 %v1567
        %v1756 = vpop.f32.mrb[0].mxu0
        %v1757 = vadd.f32 %v1521, %v1756
        %v1758 = vpop.f32.mrb[0].mxu0
        %v1759 = vpop.f32.mrb[0].mxu0
        %v1760 = vadd.f32 %v1521, %v1759
        %v1761 = vpop.f32.mrb[0].mxu0
        %1762 = vmatprep.mubr.bf16.mxu0 0
        %1763 = vmatmul.mubr.bf16.gmra.mrb[0].mxu0 %v1570
        %v1764 = vpop.f32.mrb[0].mxu0
        %v1765 = vadd.f32 %v1521, %v1764
        %v1766 = vpop.f32.mrb[0].mxu0
        %v1767 = vpop.f32.mrb[0].mxu0
        %v1768 = vadd.f32 %v1521, %v1767
        %v1769 = vpop.f32.mrb[0].mxu0
        %1770 = vmatprep.mubr.bf16.mxu0 0
        %1771 = vmatmul.mubr.bf16.gmra.mrb[0].mxu0 %v1573
        %v1772 = vpop.f32.mrb[0].mxu0
        %v1773 = vadd.f32 %v1521, %v1772
        %v1774 = vpop.f32.mrb[0].mxu0
        %v1775 = vpop.f32.mrb[0].mxu0
        %v1776 = vadd.f32 %v1521, %v1775
        %v1777 = vpop.f32.mrb[0].mxu0
        %1778 = vmatprep.mubr.bf16.mxu0 0
        %1779 = vmatmul.mubr.bf16.gmra.mrb[0].mxu0 %v1576
        %v1780 = vpop.f32.mrb[0].mxu0
        %v1781 = vadd.f32 %v1521, %v1780
        %v1782 = vpop.f32.mrb[0].mxu0
        %v1783 = vpop.f32.mrb[0].mxu0
        %v1784 = vadd.f32 %v1521, %v1783
        %v1785 = vpop.f32.mrb[0].mxu0
        %1786 = vmatprep.mubr.bf16.mxu0 0
        %1787 = vmatmul.mubr.bf16.gmra.mrb[0].mxu0 %v1579
        %v1788 = vpop.f32.mrb[0].mxu0
        %v1789 = vadd.f32 %v1521, %v1788
        %v1790 = vpop.f32.mrb[0].mxu0
        %v1791 = vpop.f32.mrb[0].mxu0
        %v1792 = vadd.f32 %v1521, %v1791
        %v1793 = vpop.f32.mrb[0].mxu0
        %1794 = vmatprep.mubr.bf16.mxu0 0
        %1795 = vmatmul.mubr.bf16.gmra.mrb[0].mxu0 %v1582
        %v1796 = vpop.f32.mrb[0].mxu0
        %v1797 = vadd.f32 %v1521, %v1796
        %v1798 = vpop.f32.mrb[0].mxu0
        %v1799 = vpop.f32.mrb[0].mxu0
        %v1800 = vadd.f32 %v1521, %v1799
        %v1801 = vpop.f32.mrb[0].mxu0
        %1802 = vmatprep.mubr.bf16.mxu0 0
        %1803 = vmatmul.mubr.bf16.gmra.mrb[0].mxu0 %v1585
        %v1804 = vpop.f32.mrb[0].mxu0
        %v1805 = vadd.f32 %v1521, %v1804
        %v1806 = vpop.f32.mrb[0].mxu0
        %v1807 = vpop.f32.mrb[0].mxu0
        %v1808 = vadd.f32 %v1521, %v1807
        %v1809 = vpop.f32.mrb[0].mxu0
        %1810 = vmatprep.mubr.bf16.mxu0 0
        %1811 = vmatmul.mubr.bf16.gmra.mrb[0].mxu0 %v1588
        %v1812 = vpop.f32.mrb[0].mxu0
        %v1813 = vadd.f32 %v1521, %v1812
        %v1814 = vpop.f32.mrb[0].mxu0
        %v1815 = vpop.f32.mrb[0].mxu0
        %v1816 = vadd.f32 %v1521, %v1815
        %v1817 = vpop.f32.mrb[0].mxu0
        %1818 = vmatprep.mubr.bf16.mxu0 0
        %1819 = vmatmul.mubr.bf16.gmra.mrb[0].mxu0 %v1591
        %v1820 = vpop.f32.mrb[0].mxu0
        %v1821 = vadd.f32 %v1521, %v1820
        %v1822 = vpop.f32.mrb[0].mxu0
        %v1823 = vpop.f32.mrb[0].mxu0
        %v1824 = vadd.f32 %v1521, %v1823
        %v1825 = vpop.f32.mrb[0].mxu0
        %1826 = vmatprep.mubr.bf16.mxu0 0
        %1827 = vmatmul.mubr.bf16.gmra.mrb[0].mxu0 %v1594
        %v1828 = vpop.f32.mrb[0].mxu0
        %v1829 = vadd.f32 %v1521, %v1828
        %v1830 = vpop.f32.mrb[0].mxu0
        %v1831 = vpop.f32.mrb[0].mxu0
        %v1832 = vadd.f32 %v1521, %v1831
        %v1833 = vpop.f32.mrb[0].mxu0
        %1834 = vmatprep.mubr.bf16.mxu0 0
        %1835 = vmatmul.mubr.bf16.gmra.mrb[0].mxu0 %v1597
        %v1836 = vpop.f32.mrb[0].mxu0
        %v1837 = vadd.f32 %v1521, %v1836
        %v1838 = vpop.f32.mrb[0].mxu0
        %v1839 = vpop.f32.mrb[0].mxu0
        %v1840 = vadd.f32 %v1521, %v1839
        %v1841 = vpop.f32.mrb[0].mxu0
        %1842 = vmatprep.mubr.bf16.mxu0 0
        %1843 = vmatmul.mubr.bf16.gmra.mrb[0].mxu0 %v1600
        %v1844 = vpop.f32.mrb[0].mxu0
        %v1845 = vadd.f32 %v1521, %v1844
        %v1846 = vpop.f32.mrb[0].mxu0
        %v1847 = vpop.f32.mrb[0].mxu0
        %v1848 = vadd.f32 %v1521, %v1847
        %v1849 = vpop.f32.mrb[0].mxu0
        %1850 = vmatprep.mubr.bf16.mxu0 0
        %1851 = vmatmul.mubr.bf16.gmra.mrb[0].mxu0 %v1603
        %v1852 = vpop.f32.mrb[0].mxu0
        %v1853 = vadd.f32 %v1521, %v1852
        %v1854 = vpop.f32.mrb[0].mxu0
        %v1855 = vpop.f32.mrb[0].mxu0
        %v1856 = vadd.f32 %v1521, %v1855
        %v1857 = vpop.f32.mrb[0].mxu0
        %1858 = vmatprep.mubr.bf16.mxu0 0
        %1859 = vmatmul.mubr.bf16.gmra.mrb[0].mxu0 %v1606
        %v1860 = vpop.f32.mrb[0].mxu0
        %v1861 = vadd.f32 %v1521, %v1860
        %v1862 = vpop.f32.mrb[0].mxu0
        %v1863 = vpop.f32.mrb[0].mxu0
        %v1864 = vadd.f32 %v1521, %v1863
        %v1865 = vpop.f32.mrb[0].mxu0
        %1866 = vmatprep.mubr.bf16.mxu0 0
        %1867 = vmatmul.mubr.bf16.gmra.mrb[0].mxu0 %v1609
        %v1868 = vpop.f32.mrb[0].mxu0
        %v1869 = vadd.f32 %v1521, %v1868
        %v1870 = vpop.f32.mrb[0].mxu0
        %v1871 = vpop.f32.mrb[0].mxu0
        %v1872 = vadd.f32 %v1521, %v1871
        %v1873 = vpop.f32.mrb[0].mxu0
        %1874 = vmatprep.mubr.bf16.mxu0 0
        %1875 = vmatmul.mubr.bf16.gmra.mrb[0].mxu0 %v1612
        %v1876 = vpop.f32.mrb[0].mxu0
        %v1877 = vadd.f32 %v1521, %v1876
        %v1878 = vpop.f32.mrb[0].mxu0
        %v1879 = vpop.f32.mrb[0].mxu0
        %v1880 = vadd.f32 %v1521, %v1879
        %v1881 = vpop.f32.mrb[0].mxu0
        %1882 = vmatprep.mubr.bf16.mxu0 0
        %1883 = vmatmul.mubr.bf16.gmra.mrb[0].mxu0 %v1615
        %v1884 = vpop.f32.mrb[0].mxu0
        %v1885 = vadd.f32 %v1521, %v1884
        %v1886 = vpop.f32.mrb[0].mxu0
        %v1887 = vpop.f32.mrb[0].mxu0
        %v1888 = vadd.f32 %v1521, %v1887
        %v1889 = vpop.f32.mrb[0].mxu0
        %1890 = vmatprep.mubr.bf16.mxu0 0
        %1891 = vmatmul.mubr.bf16.gmra.mrb[0].mxu0 %v1618
        %v1892 = vpop.f32.mrb[0].mxu0
        %v1893 = vadd.f32 %v1521, %v1892
        %v1894 = vpop.f32.mrb[0].mxu0
        %v1895 = vpop.f32.mrb[0].mxu0
        %v1896 = vadd.f32 %v1521, %v1895
        %v1897 = vpop.f32.mrb[0].mxu0
        %1898 = vmatprep.mubr.bf16.mxu0 0
        %1899 = vmatmul.mubr.bf16.gmra.mrb[0].mxu0 %v1621
        %v1900 = vpop.f32.mrb[0].mxu0
        %v1901 = vadd.f32 %v1521, %v1900
        %v1902 = vpop.f32.mrb[0].mxu0
        %v1903 = vpop.f32.mrb[0].mxu0
        %v1904 = vadd.f32 %v1521, %v1903
        %v1905 = vpop.f32.mrb[0].mxu0
        %1906 = vmatprep.mubr.bf16.mxu0 0
        %1907 = vmatmul.mubr.bf16.gmra.mrb[0].mxu0 %v1624
        %v1908 = vpop.f32.mrb[0].mxu0
        %v1909 = vadd.f32 %v1521, %v1908
        %v1910 = vpop.f32.mrb[0].mxu0
        %v1911 = vpop.f32.mrb[0].mxu0
        %v1912 = vadd.f32 %v1521, %v1911
        %v1913 = vpop.f32.mrb[0].mxu0
        %1914 = vdwg.mxu0
        %vm1915 = vcmask 261120
        %v1916 = vsel %vm1915, %v1661, 0.0
        %v1917 = vsel %vm1915, %v1664, 0.0
        %v1918 = vadd.f32 %v1916, %v1917
        %v1919 = vsel %vm1915, %v1669, 0.0
        %v1920 = vadd.f32 %v1918, %v1919
        %v1921 = vsel %vm1915, %v1672, 0.0
        %v1922 = vadd.f32 %v1920, %v1921
        %v1923 = vsel %vm1915, %v1677, 0.0
        %v1924 = vadd.f32 %v1922, %v1923
        %v1925 = vsel %vm1915, %v1680, 0.0
        %v1926 = vadd.f32 %v1924, %v1925
        %v1927 = vsel %vm1915, %v1685, 0.0
        %v1928 = vadd.f32 %v1926, %v1927
        %v1929 = vsel %vm1915, %v1688, 0.0
        %v1930 = vadd.f32 %v1928, %v1929
        %v1931 = vsel %vm1915, %v1693, 0.0
        %v1932 = vadd.f32 %v1930, %v1931
        %v1933 = vsel %vm1915, %v1696, 0.0
        %v1934 = vadd.f32 %v1932, %v1933
        %v1935 = vsel %vm1915, %v1701, 0.0
        %v1936 = vadd.f32 %v1934, %v1935
        %v1937 = vsel %vm1915, %v1704, 0.0
        %v1938 = vadd.f32 %v1936, %v1937
        %v1939 = vsel %vm1915, %v1709, 0.0
        %v1940 = vadd.f32 %v1938, %v1939
        %v1941 = vsel %vm1915, %v1712, 0.0
        %v1942 = vadd.f32 %v1940, %v1941
        %v1943 = vsel %vm1915, %v1717, 0.0
        %v1944 = vadd.f32 %v1942, %v1943
        %v1945 = vsel %vm1915, %v1720, 0.0
        %v1946 = vadd.f32 %v1944, %v1945
        %v1947 = vsel %vm1915, %v1725, 0.0
        %v1948 = vadd.f32 %v1946, %v1947
        %v1949 = vsel %vm1915, %v1728, 0.0
        %v1950 = vadd.f32 %v1948, %v1949
        %v1951 = vsel %vm1915, %v1733, 0.0
        %v1952 = vadd.f32 %v1950, %v1951
        %v1953 = vsel %vm1915, %v1736, 0.0
        %v1954 = vadd.f32 %v1952, %v1953
        %v1955 = vsel %vm1915, %v1741, 0.0
        %v1956 = vadd.f32 %v1954, %v1955
        %v1957 = vsel %vm1915, %v1744, 0.0
        %v1958 = vadd.f32 %v1956, %v1957
        %v1959 = vsel %vm1915, %v1749, 0.0
        %v1960 = vadd.f32 %v1958, %v1959
        %v1961 = vsel %vm1915, %v1752, 0.0
        %v1962 = vadd.f32 %v1960, %v1961
        %v1963 = vsel %vm1915, %v1757, 0.0
        %v1964 = vadd.f32 %v1962, %v1963
        %v1965 = vsel %vm1915, %v1760, 0.0
        %v1966 = vadd.f32 %v1964, %v1965
        %v1967 = vsel %vm1915, %v1765, 0.0
        %v1968 = vadd.f32 %v1966, %v1967
        %v1969 = vsel %vm1915, %v1768, 0.0
        %v1970 = vadd.f32 %v1968, %v1969
        %v1971 = vsel %vm1915, %v1773, 0.0
        %v1972 = vadd.f32 %v1970, %v1971
        %v1973 = vsel %vm1915, %v1776, 0.0
        %v1974 = vadd.f32 %v1972, %v1973
        %v1975 = vsel %vm1915, %v1781, 0.0
        %v1976 = vadd.f32 %v1974, %v1975
        %v1977 = vsel %vm1915, %v1784, 0.0
        %v1978 = vadd.f32 %v1976, %v1977
        %v1979 = vsel %vm1915, %v1789, 0.0
        %v1980 = vadd.f32 %v1978, %v1979
        %v1981 = vsel %vm1915, %v1792, 0.0
        %v1982 = vadd.f32 %v1980, %v1981
        %v1983 = vsel %vm1915, %v1797, 0.0
        %v1984 = vadd.f32 %v1982, %v1983
        %v1985 = vsel %vm1915, %v1800, 0.0
        %v1986 = vadd.f32 %v1984, %v1985
        %v1987 = vsel %vm1915, %v1805, 0.0
        %v1988 = vadd.f32 %v1986, %v1987
        %v1989 = vsel %vm1915, %v1808, 0.0
        %v1990 = vadd.f32 %v1988, %v1989
        %v1991 = vsel %vm1915, %v1813, 0.0
        %v1992 = vadd.f32 %v1990, %v1991
        %v1993 = vsel %vm1915, %v1816, 0.0
        %v1994 = vadd.f32 %v1992, %v1993
        %v1995 = vsel %vm1915, %v1821, 0.0
        %v1996 = vadd.f32 %v1994, %v1995
        %v1997 = vsel %vm1915, %v1824, 0.0
        %v1998 = vadd.f32 %v1996, %v1997
        %v1999 = vsel %vm1915, %v1829, 0.0
        %v2000 = vadd.f32 %v1998, %v1999
        %v2001 = vsel %vm1915, %v1832, 0.0
        %v2002 = vadd.f32 %v2000, %v2001
        %v2003 = vsel %vm1915, %v1837, 0.0
        %v2004 = vadd.f32 %v2002, %v2003
        %v2005 = vsel %vm1915, %v1840, 0.0
        %v2006 = vadd.f32 %v2004, %v2005
        %v2007 = vsel %vm1915, %v1845, 0.0
        %v2008 = vadd.f32 %v2006, %v2007
        %v2009 = vsel %vm1915, %v1848, 0.0
        %v2010 = vadd.f32 %v2008, %v2009
        %v2011 = vsel %vm1915, %v1853, 0.0
        %v2012 = vadd.f32 %v2010, %v2011
        %v2013 = vsel %vm1915, %v1856, 0.0
        %v2014 = vadd.f32 %v2012, %v2013
        %v2015 = vsel %vm1915, %v1861, 0.0
        %v2016 = vadd.f32 %v2014, %v2015
        %v2017 = vsel %vm1915, %v1864, 0.0
        %v2018 = vadd.f32 %v2016, %v2017
        %v2019 = vsel %vm1915, %v1869, 0.0
        %v2020 = vadd.f32 %v2018, %v2019
        %v2021 = vsel %vm1915, %v1872, 0.0
        %v2022 = vadd.f32 %v2020, %v2021
        %v2023 = vsel %vm1915, %v1877, 0.0
        %v2024 = vadd.f32 %v2022, %v2023
        %v2025 = vsel %vm1915, %v1880, 0.0
        %v2026 = vadd.f32 %v2024, %v2025
        %v2027 = vsel %vm1915, %v1885, 0.0
        %v2028 = vadd.f32 %v2026, %v2027
        %v2029 = vsel %vm1915, %v1888, 0.0
        %v2030 = vadd.f32 %v2028, %v2029
        %v2031 = vsel %vm1915, %v1893, 0.0
        %v2032 = vadd.f32 %v2030, %v2031
        %v2033 = vsel %vm1915, %v1896, 0.0
        %v2034 = vadd.f32 %v2032, %v2033
        %v2035 = vsel %vm1915, %v1901, 0.0
        %v2036 = vadd.f32 %v2034, %v2035
        %v2037 = vsel %vm1915, %v1904, 0.0
        %v2038 = vadd.f32 %v2036, %v2037
        %v2039 = vsel %vm1915, %v1909, 0.0
        %v2040 = vadd.f32 %v2038, %v2039
        %v2041 = vsel %vm1915, %v1912, 0.0
        %v2042 = vadd.f32 %v2040, %v2041
        %v2043 = vrot.slane %v2042, 4
        %v2044 = vadd.f32 %v2042, %v2043
        %v2045 = vrot.slane %v2044, 2
        %v2046 = vadd.f32 %v2044, %v2045
        %v2047 = vrot.slane %v2046, 1
        %v2048 = vadd.f32 %v2046, %v2047
        %v2049 = vadd.f32 %v2048, 0.0
        %v2050 = vmul.f32 %v1661, %v1661
        %v2051 = vmul.f32 %v1664, %v1664
        %v2052 = vmul.f32 %v1669, %v1669
        %v2053 = vmul.f32 %v1672, %v1672
        %v2054 = vmul.f32 %v1677, %v1677
        %v2055 = vmul.f32 %v1680, %v1680
        %v2056 = vmul.f32 %v1685, %v1685
        %v2057 = vmul.f32 %v1688, %v1688
        %v2058 = vmul.f32 %v1693, %v1693
        %v2059 = vmul.f32 %v1696, %v1696
        %v2060 = vmul.f32 %v1701, %v1701
        %v2061 = vmul.f32 %v1704, %v1704
        %v2062 = vmul.f32 %v1709, %v1709
        %v2063 = vmul.f32 %v1712, %v1712
        %v2064 = vmul.f32 %v1717, %v1717
        %v2065 = vmul.f32 %v1720, %v1720
        %v2066 = vmul.f32 %v1725, %v1725
        %v2067 = vmul.f32 %v1728, %v1728
        %v2068 = vmul.f32 %v1733, %v1733
        %v2069 = vmul.f32 %v1736, %v1736
        %v2070 = vmul.f32 %v1741, %v1741
        %v2071 = vmul.f32 %v1744, %v1744
        %v2072 = vmul.f32 %v1749, %v1749
        %v2073 = vmul.f32 %v1752, %v1752
        %v2074 = vmul.f32 %v1757, %v1757
        %v2075 = vmul.f32 %v1760, %v1760
        %v2076 = vmul.f32 %v1765, %v1765
        %v2077 = vmul.f32 %v1768, %v1768
        %v2078 = vmul.f32 %v1773, %v1773
        %v2079 = vmul.f32 %v1776, %v1776
        %v2080 = vmul.f32 %v1781, %v1781
        %v2081 = vmul.f32 %v1784, %v1784
        %v2082 = vmul.f32 %v1789, %v1789
        %v2083 = vmul.f32 %v1792, %v1792
        %v2084 = vmul.f32 %v1797, %v1797
        %v2085 = vmul.f32 %v1800, %v1800
        %v2086 = vmul.f32 %v1805, %v1805
        %v2087 = vmul.f32 %v1808, %v1808
        %v2088 = vmul.f32 %v1813, %v1813
        %v2089 = vmul.f32 %v1816, %v1816
        %v2090 = vmul.f32 %v1821, %v1821
        %v2091 = vmul.f32 %v1824, %v1824
        %v2092 = vmul.f32 %v1829, %v1829
        %v2093 = vmul.f32 %v1832, %v1832
        %v2094 = vmul.f32 %v1837, %v1837
        %v2095 = vmul.f32 %v1840, %v1840
        %v2096 = vmul.f32 %v1845, %v1845
        %v2097 = vmul.f32 %v1848, %v1848
        %v2098 = vmul.f32 %v1853, %v1853
        %v2099 = vmul.f32 %v1856, %v1856
        %v2100 = vmul.f32 %v1861, %v1861
        %v2101 = vmul.f32 %v1864, %v1864
        %v2102 = vmul.f32 %v1869, %v1869
        %v2103 = vmul.f32 %v1872, %v1872
        %v2104 = vmul.f32 %v1877, %v1877
        %v2105 = vmul.f32 %v1880, %v1880
        %v2106 = vmul.f32 %v1885, %v1885
        %v2107 = vmul.f32 %v1888, %v1888
        %v2108 = vmul.f32 %v1893, %v1893
        %v2109 = vmul.f32 %v1896, %v1896
        %v2110 = vmul.f32 %v1901, %v1901
        %v2111 = vmul.f32 %v1904, %v1904
        %v2112 = vmul.f32 %v1909, %v1909
        %v2113 = vmul.f32 %v1912, %v1912
        %v2114 = vsel %vm1915, %v2050, 0.0
        %v2115 = vsel %vm1915, %v2051, 0.0
        %v2116 = vadd.f32 %v2114, %v2115
        %v2117 = vsel %vm1915, %v2052, 0.0
        %v2118 = vadd.f32 %v2116, %v2117
        %v2119 = vsel %vm1915, %v2053, 0.0
        %v2120 = vadd.f32 %v2118, %v2119
        %v2121 = vsel %vm1915, %v2054, 0.0
        %v2122 = vadd.f32 %v2120, %v2121
        %v2123 = vsel %vm1915, %v2055, 0.0
        %v2124 = vadd.f32 %v2122, %v2123
        %v2125 = vsel %vm1915, %v2056, 0.0
        %v2126 = vadd.f32 %v2124, %v2125
        %v2127 = vsel %vm1915, %v2057, 0.0
        %v2128 = vadd.f32 %v2126, %v2127
        %v2129 = vsel %vm1915, %v2058, 0.0
        %v2130 = vadd.f32 %v2128, %v2129
        %v2131 = vsel %vm1915, %v2059, 0.0
        %v2132 = vadd.f32 %v2130, %v2131
        %v2133 = vsel %vm1915, %v2060, 0.0
        %v2134 = vadd.f32 %v2132, %v2133
        %v2135 = vsel %vm1915, %v2061, 0.0
        %v2136 = vadd.f32 %v2134, %v2135
        %v2137 = vsel %vm1915, %v2062, 0.0
        %v2138 = vadd.f32 %v2136, %v2137
        %v2139 = vsel %vm1915, %v2063, 0.0
        %v2140 = vadd.f32 %v2138, %v2139
        %v2141 = vsel %vm1915, %v2064, 0.0
        %v2142 = vadd.f32 %v2140, %v2141
        %v2143 = vsel %vm1915, %v2065, 0.0
        %v2144 = vadd.f32 %v2142, %v2143
        %v2145 = vsel %vm1915, %v2066, 0.0
        %v2146 = vadd.f32 %v2144, %v2145
        %v2147 = vsel %vm1915, %v2067, 0.0
        %v2148 = vadd.f32 %v2146, %v2147
        %v2149 = vsel %vm1915, %v2068, 0.0
        %v2150 = vadd.f32 %v2148, %v2149
        %v2151 = vsel %vm1915, %v2069, 0.0
        %v2152 = vadd.f32 %v2150, %v2151
        %v2153 = vsel %vm1915, %v2070, 0.0
        %v2154 = vadd.f32 %v2152, %v2153
        %v2155 = vsel %vm1915, %v2071, 0.0
        %v2156 = vadd.f32 %v2154, %v2155
        %v2157 = vsel %vm1915, %v2072, 0.0
        %v2158 = vadd.f32 %v2156, %v2157
        %v2159 = vsel %vm1915, %v2073, 0.0
        %v2160 = vadd.f32 %v2158, %v2159
        %v2161 = vsel %vm1915, %v2074, 0.0
        %v2162 = vadd.f32 %v2160, %v2161
        %v2163 = vsel %vm1915, %v2075, 0.0
        %v2164 = vadd.f32 %v2162, %v2163
        %v2165 = vsel %vm1915, %v2076, 0.0
        %v2166 = vadd.f32 %v2164, %v2165
        %v2167 = vsel %vm1915, %v2077, 0.0
        %v2168 = vadd.f32 %v2166, %v2167
        %v2169 = vsel %vm1915, %v2078, 0.0
        %v2170 = vadd.f32 %v2168, %v2169
        %v2171 = vsel %vm1915, %v2079, 0.0
        %v2172 = vadd.f32 %v2170, %v2171
        %v2173 = vsel %vm1915, %v2080, 0.0
        %v2174 = vadd.f32 %v2172, %v2173
        %v2175 = vsel %vm1915, %v2081, 0.0
        %v2176 = vadd.f32 %v2174, %v2175
        %v2177 = vsel %vm1915, %v2082, 0.0
        %v2178 = vadd.f32 %v2176, %v2177
        %v2179 = vsel %vm1915, %v2083, 0.0
        %v2180 = vadd.f32 %v2178, %v2179
        %v2181 = vsel %vm1915, %v2084, 0.0
        %v2182 = vadd.f32 %v2180, %v2181
        %v2183 = vsel %vm1915, %v2085, 0.0
        %v2184 = vadd.f32 %v2182, %v2183
        %v2185 = vsel %vm1915, %v2086, 0.0
        %v2186 = vadd.f32 %v2184, %v2185
        %v2187 = vsel %vm1915, %v2087, 0.0
        %v2188 = vadd.f32 %v2186, %v2187
        %v2189 = vsel %vm1915, %v2088, 0.0
        %v2190 = vadd.f32 %v2188, %v2189
        %v2191 = vsel %vm1915, %v2089, 0.0
        %v2192 = vadd.f32 %v2190, %v2191
        %v2193 = vsel %vm1915, %v2090, 0.0
        %v2194 = vadd.f32 %v2192, %v2193
        %v2195 = vsel %vm1915, %v2091, 0.0
        %v2196 = vadd.f32 %v2194, %v2195
        %v2197 = vsel %vm1915, %v2092, 0.0
        %v2198 = vadd.f32 %v2196, %v2197
        %v2199 = vsel %vm1915, %v2093, 0.0
        %v2200 = vadd.f32 %v2198, %v2199
        %v2201 = vsel %vm1915, %v2094, 0.0
        %v2202 = vadd.f32 %v2200, %v2201
        %v2203 = vsel %vm1915, %v2095, 0.0
        %v2204 = vadd.f32 %v2202, %v2203
        %v2205 = vsel %vm1915, %v2096, 0.0
        %v2206 = vadd.f32 %v2204, %v2205
        %v2207 = vsel %vm1915, %v2097, 0.0
        %v2208 = vadd.f32 %v2206, %v2207
        %v2209 = vsel %vm1915, %v2098, 0.0
        %v2210 = vadd.f32 %v2208, %v2209
        %v2211 = vsel %vm1915, %v2099, 0.0
        %v2212 = vadd.f32 %v2210, %v2211
        %v2213 = vsel %vm1915, %v2100, 0.0
        %v2214 = vadd.f32 %v2212, %v2213
        %v2215 = vsel %vm1915, %v2101, 0.0
        %v2216 = vadd.f32 %v2214, %v2215
        %v2217 = vsel %vm1915, %v2102, 0.0
        %v2218 = vadd.f32 %v2216, %v2217
        %v2219 = vsel %vm1915, %v2103, 0.0
        %v2220 = vadd.f32 %v2218, %v2219
        %v2221 = vsel %vm1915, %v2104, 0.0
        %v2222 = vadd.f32 %v2220, %v2221
        %v2223 = vsel %vm1915, %v2105, 0.0
        %v2224 = vadd.f32 %v2222, %v2223
        %v2225 = vsel %vm1915, %v2106, 0.0
        %v2226 = vadd.f32 %v2224, %v2225
        %v2227 = vsel %vm1915, %v2107, 0.0
        %v2228 = vadd.f32 %v2226, %v2227
        %v2229 = vsel %vm1915, %v2108, 0.0
        %v2230 = vadd.f32 %v2228, %v2229
        %v2231 = vsel %vm1915, %v2109, 0.0
        %v2232 = vadd.f32 %v2230, %v2231
        %v2233 = vsel %vm1915, %v2110, 0.0
        %v2234 = vadd.f32 %v2232, %v2233
        %v2235 = vsel %vm1915, %v2111, 0.0
        %v2236 = vadd.f32 %v2234, %v2235
        %v2237 = vsel %vm1915, %v2112, 0.0
        %v2238 = vadd.f32 %v2236, %v2237
        %v2239 = vsel %vm1915, %v2113, 0.0
        %v2240 = vadd.f32 %v2238, %v2239
        %v2241 = vrot.slane %v2240, 4
        %v2242 = vadd.f32 %v2240, %v2241
        %v2243 = vrot.slane %v2242, 2
        %v2244 = vadd.f32 %v2242, %v2243
        %v2245 = vrot.slane %v2244, 1
        %v2246 = vadd.f32 %v2244, %v2245
        %v2247 = vadd.f32 %v2246, 0.0
        %v2248 = vld [vmem:[%s0 + $0x2] sm:$0xff]
        %v2249 = vld [vmem:[%s0 + $0xa] sm:$0xff]
        %v2250 = vld [vmem:[%s0 + $0x1a] sm:$0xff]
        %v2251 = vld [vmem:[%s0 + $0x22] sm:$0xff]
        %v2252 = vld [vmem:[%s0 + $0x32] sm:$0xff]
        %v2253 = vld [vmem:[%s0 + $0x3a] sm:$0xff]
        %v2254 = vld [vmem:[%s0 + $0x4a] sm:$0xff]
        %v2255 = vld [vmem:[%s0 + $0x52] sm:$0xff]
        %v2256 = vld [vmem:[%s0 + $0x62] sm:$0xff]
        %v2257 = vld [vmem:[%s0 + $0x6a] sm:$0xff]
        %v2258 = vld [vmem:[%s0 + $0x7a] sm:$0xff]
        %v2259 = vld [vmem:[%s0 + $0x82] sm:$0xff]
        %v2260 = vld [vmem:[%s0 + $0x92] sm:$0xff]
        %v2261 = vld [vmem:[%s0 + $0x9a] sm:$0xff]
        %v2262 = vld [vmem:[%s0 + $0xaa] sm:$0xff]
        %v2263 = vld [vmem:[%s0 + $0xb2] sm:$0xff]
        %v2264 = vld [vmem:[%s0 + $0xc2] sm:$0xff]
        %v2265 = vld [vmem:[%s0 + $0xca] sm:$0xff]
        %v2266 = vld [vmem:[%s0 + $0xda] sm:$0xff]
        %v2267 = vld [vmem:[%s0 + $0xe2] sm:$0xff]
        %v2268 = vld [vmem:[%s0 + $0xf2] sm:$0xff]
        %v2269 = vld [vmem:[%s0 + $0xfa] sm:$0xff]
        %v2270 = vld [vmem:[%s0 + $0x10a] sm:$0xff]
        %v2271 = vld [vmem:[%s0 + $0x112] sm:$0xff]
        %v2272 = vld [vmem:[%s0 + $0x122] sm:$0xff]
        %v2273 = vld [vmem:[%s0 + $0x12a] sm:$0xff]
        %v2274 = vld [vmem:[%s0 + $0x13a] sm:$0xff]
        %v2275 = vld [vmem:[%s0 + $0x142] sm:$0xff]
        %v2276 = vld [vmem:[%s0 + $0x152] sm:$0xff]
        %v2277 = vld [vmem:[%s0 + $0x15a] sm:$0xff]
        %v2278 = vld [vmem:[%s0 + $0x16a] sm:$0xff]
        %v2279 = vld [vmem:[%s0 + $0x172] sm:$0xff]
        %v2280 = vld [vmem:[%s0 + $0x1b2] sm:$0xff]
        %v2281 = vld [vmem:[%s0 + $0x1ba] sm:$0xff]
        %v2282 = vld [vmem:[%s0 + $0x1ca] sm:$0xff]
        %v2283 = vld [vmem:[%s0 + $0x1d2] sm:$0xff]
        %v2284 = vld [vmem:[%s0 + $0x1e2] sm:$0xff]
        %v2285 = vld [vmem:[%s0 + $0x1ea] sm:$0xff]
        %v2286 = vld [vmem:[%s0 + $0x1fa] sm:$0xff]
        %v2287 = vld [vmem:[%s0 + $0x202] sm:$0xff]
        %v2288 = vld [vmem:[%s0 + $0x212] sm:$0xff]
        %v2289 = vld [vmem:[%s0 + $0x21a] sm:$0xff]
        %v2290 = vld [vmem:[%s0 + $0x22a] sm:$0xff]
        %v2291 = vld [vmem:[%s0 + $0x232] sm:$0xff]
        %v2292 = vld [vmem:[%s0 + $0x242] sm:$0xff]
        %v2293 = vld [vmem:[%s0 + $0x24a] sm:$0xff]
        %v2294 = vld [vmem:[%s0 + $0x25a] sm:$0xff]
        %v2295 = vld [vmem:[%s0 + $0x262] sm:$0xff]
        %v2296 = vld [vmem:[%s0 + $0x272] sm:$0xff]
        %v2297 = vld [vmem:[%s0 + $0x27a] sm:$0xff]
        %v2298 = vld [vmem:[%s0 + $0x28a] sm:$0xff]
        %v2299 = vld [vmem:[%s0 + $0x292] sm:$0xff]
        %v2300 = vld [vmem:[%s0 + $0x2a2] sm:$0xff]
        %v2301 = vld [vmem:[%s0 + $0x2aa] sm:$0xff]
        %v2302 = vld [vmem:[%s0 + $0x2ba] sm:$0xff]
        %v2303 = vld [vmem:[%s0 + $0x2c2] sm:$0xff]
        %v2304 = vld [vmem:[%s0 + $0x2d2] sm:$0xff]
        %v2305 = vld [vmem:[%s0 + $0x2da] sm:$0xff]
        %v2306 = vld [vmem:[%s0 + $0x2ea] sm:$0xff]
        %v2307 = vld [vmem:[%s0 + $0x2f2] sm:$0xff]
        %v2308 = vld [vmem:[%s0 + $0x302] sm:$0xff]
        %v2309 = vld [vmem:[%s0 + $0x30a] sm:$0xff]
        %v2310 = vld [vmem:[%s0 + $0x31a] sm:$0xff]
        %v2311 = vld [vmem:[%s0 + $0x322] sm:$0xff]
        %v2312 = vld [vmem:[%s391 + $0x2] sm:$0xff]
        %v2313 = vld [vmem:[%s391 + $0xa] sm:$0xff]
        %v2314 = vld [vmem:[%s391 + $0x1a] sm:$0xff]
        %v2315 = vld [vmem:[%s391 + $0x22] sm:$0xff]
        %v2316 = vld [vmem:[%s391 + $0x32] sm:$0xff]
        %v2317 = vld [vmem:[%s391 + $0x3a] sm:$0xff]
        %v2318 = vld [vmem:[%s391 + $0x4a] sm:$0xff]
        %v2319 = vld [vmem:[%s391 + $0x52] sm:$0xff]
        %v2320 = vld [vmem:[%s391 + $0x62] sm:$0xff]
        %v2321 = vld [vmem:[%s391 + $0x6a] sm:$0xff]
        %v2322 = vld [vmem:[%s391 + $0x7a] sm:$0xff]
        %v2323 = vld [vmem:[%s391 + $0x82] sm:$0xff]
        %v2324 = vld [vmem:[%s391 + $0x92] sm:$0xff]
        %v2325 = vld [vmem:[%s391 + $0x9a] sm:$0xff]
        %v2326 = vld [vmem:[%s391 + $0xaa] sm:$0xff]
        %v2327 = vld [vmem:[%s391 + $0xb2] sm:$0xff]
        %v2328 = vld [vmem:[%s391 + $0xc2] sm:$0xff]
        %v2329 = vld [vmem:[%s391 + $0xca] sm:$0xff]
        %v2330 = vld [vmem:[%s391 + $0xda] sm:$0xff]
        %v2331 = vld [vmem:[%s391 + $0xe2] sm:$0xff]
        %v2332 = vld [vmem:[%s391 + $0xf2] sm:$0xff]
        %v2333 = vld [vmem:[%s391 + $0xfa] sm:$0xff]
        %v2334 = vld [vmem:[%s391 + $0x10a] sm:$0xff]
        %v2335 = vld [vmem:[%s391 + $0x112] sm:$0xff]
        %v2336 = vld [vmem:[%s391 + $0x122] sm:$0xff]
        %v2337 = vld [vmem:[%s391 + $0x12a] sm:$0xff]
        %v2338 = vld [vmem:[%s391 + $0x13a] sm:$0xff]
        %v2339 = vld [vmem:[%s391 + $0x142] sm:$0xff]
        %v2340 = vld [vmem:[%s391 + $0x152] sm:$0xff]
        %v2341 = vld [vmem:[%s391 + $0x15a] sm:$0xff]
        %v2342 = vld [vmem:[%s391 + $0x16a] sm:$0xff]
        %v2343 = vld [vmem:[%s391 + $0x172] sm:$0xff]
        %v2344 = vld [vmem:[%s391 + $0x1b2] sm:$0xff]
        %v2345 = vld [vmem:[%s391 + $0x1ba] sm:$0xff]
        %v2346 = vld [vmem:[%s391 + $0x1ca] sm:$0xff]
        %v2347 = vld [vmem:[%s391 + $0x1d2] sm:$0xff]
        %v2348 = vld [vmem:[%s391 + $0x1e2] sm:$0xff]
        %v2349 = vld [vmem:[%s391 + $0x1ea] sm:$0xff]
        %v2350 = vld [vmem:[%s391 + $0x1fa] sm:$0xff]
        %v2351 = vld [vmem:[%s391 + $0x202] sm:$0xff]
        %v2352 = vld [vmem:[%s391 + $0x212] sm:$0xff]
        %v2353 = vld [vmem:[%s391 + $0x21a] sm:$0xff]
        %v2354 = vld [vmem:[%s391 + $0x22a] sm:$0xff]
        %v2355 = vld [vmem:[%s391 + $0x232] sm:$0xff]
        %v2356 = vld [vmem:[%s391 + $0x242] sm:$0xff]
        %v2357 = vld [vmem:[%s391 + $0x24a] sm:$0xff]
        %v2358 = vld [vmem:[%s391 + $0x25a] sm:$0xff]
        %v2359 = vld [vmem:[%s391 + $0x262] sm:$0xff]
        %v2360 = vld [vmem:[%s391 + $0x272] sm:$0xff]
        %v2361 = vld [vmem:[%s391 + $0x27a] sm:$0xff]
        %v2362 = vld [vmem:[%s391 + $0x28a] sm:$0xff]
        %v2363 = vld [vmem:[%s391 + $0x292] sm:$0xff]
        %v2364 = vld [vmem:[%s391 + $0x2a2] sm:$0xff]
        %v2365 = vld [vmem:[%s391 + $0x2aa] sm:$0xff]
        %v2366 = vld [vmem:[%s391 + $0x2ba] sm:$0xff]
        %v2367 = vld [vmem:[%s391 + $0x2c2] sm:$0xff]
        %v2368 = vld [vmem:[%s391 + $0x2d2] sm:$0xff]
        %v2369 = vld [vmem:[%s391 + $0x2da] sm:$0xff]
        %v2370 = vld [vmem:[%s391 + $0x2ea] sm:$0xff]
        %v2371 = vld [vmem:[%s391 + $0x2f2] sm:$0xff]
        %v2372 = vld [vmem:[%s391 + $0x302] sm:$0xff]
        %v2373 = vld [vmem:[%s391 + $0x30a] sm:$0xff]
        %v2374 = vld [vmem:[%s391 + $0x31a] sm:$0xff]
        %v2375 = vld [vmem:[%s391 + $0x322] sm:$0xff]
        %2440 = vrot.lane.b32.xlu0 %v2248, 4
        %v2441 = vpop.permute.xlu0 %2440
        %2442 = vrot.lane.b32.xlu0 %v2249, 4
        %v2443 = vpop.permute.xlu0 %2442
        %2444 = vrot.lane.b32.xlu0 %v2250, 4
        %v2445 = vpop.permute.xlu0 %2444
        %2446 = vrot.lane.b32.xlu0 %v2251, 4
        %v2447 = vpop.permute.xlu0 %2446
        %2448 = vrot.lane.b32.xlu0 %v2252, 4
        %v2449 = vpop.permute.xlu0 %2448
        %2450 = vrot.lane.b32.xlu0 %v2253, 4
        %v2451 = vpop.permute.xlu0 %2450
        %2452 = vrot.lane.b32.xlu0 %v2254, 4
        %v2453 = vpop.permute.xlu0 %2452
        %2454 = vrot.lane.b32.xlu0 %v2255, 4
        %v2455 = vpop.permute.xlu0 %2454
        %2456 = vrot.lane.b32.xlu0 %v2256, 4
        %v2457 = vpop.permute.xlu0 %2456
        %2458 = vrot.lane.b32.xlu0 %v2257, 4
        %v2459 = vpop.permute.xlu0 %2458
        %2460 = vrot.lane.b32.xlu0 %v2258, 4
        %v2461 = vpop.permute.xlu0 %2460
        %2462 = vrot.lane.b32.xlu0 %v2259, 4
        %v2463 = vpop.permute.xlu0 %2462
        %2464 = vrot.lane.b32.xlu0 %v2260, 4
        %v2465 = vpop.permute.xlu0 %2464
        %2466 = vrot.lane.b32.xlu0 %v2261, 4
        %v2467 = vpop.permute.xlu0 %2466
        %2468 = vrot.lane.b32.xlu0 %v2262, 4
        %v2469 = vpop.permute.xlu0 %2468
        %2470 = vrot.lane.b32.xlu0 %v2263, 4
        %v2471 = vpop.permute.xlu0 %2470
        %2472 = vrot.lane.b32.xlu0 %v2264, 4
        %v2473 = vpop.permute.xlu0 %2472
        %2474 = vrot.lane.b32.xlu0 %v2265, 4
        %v2475 = vpop.permute.xlu0 %2474
        %2476 = vrot.lane.b32.xlu0 %v2266, 4
        %v2477 = vpop.permute.xlu0 %2476
        %2478 = vrot.lane.b32.xlu0 %v2267, 4
        %v2479 = vpop.permute.xlu0 %2478
        %2480 = vrot.lane.b32.xlu0 %v2268, 4
        %v2481 = vpop.permute.xlu0 %2480
        %2482 = vrot.lane.b32.xlu0 %v2269, 4
        %v2483 = vpop.permute.xlu0 %2482
        %2484 = vrot.lane.b32.xlu0 %v2270, 4
        %v2485 = vpop.permute.xlu0 %2484
        %2486 = vrot.lane.b32.xlu0 %v2271, 4
        %v2487 = vpop.permute.xlu0 %2486
        %2488 = vrot.lane.b32.xlu0 %v2272, 4
        %v2489 = vpop.permute.xlu0 %2488
        %2490 = vrot.lane.b32.xlu0 %v2273, 4
        %v2491 = vpop.permute.xlu0 %2490
        %2492 = vrot.lane.b32.xlu0 %v2274, 4
        %v2493 = vpop.permute.xlu0 %2492
        %2494 = vrot.lane.b32.xlu0 %v2275, 4
        %v2495 = vpop.permute.xlu0 %2494
        %2496 = vrot.lane.b32.xlu0 %v2276, 4
        %v2497 = vpop.permute.xlu0 %2496
        %2498 = vrot.lane.b32.xlu0 %v2277, 4
        %v2499 = vpop.permute.xlu0 %2498
        %2500 = vrot.lane.b32.xlu0 %v2278, 4
        %v2501 = vpop.permute.xlu0 %2500
        %2502 = vrot.lane.b32.xlu0 %v2279, 4
        %v2503 = vpop.permute.xlu0 %2502
        %2504 = vrot.lane.b32.xlu0 %v2280, 4
        %v2505 = vpop.permute.xlu0 %2504
        %2506 = vrot.lane.b32.xlu0 %v2281, 4
        %v2507 = vpop.permute.xlu0 %2506
        %2508 = vrot.lane.b32.xlu0 %v2282, 4
        %v2509 = vpop.permute.xlu0 %2508
        %2510 = vrot.lane.b32.xlu0 %v2283, 4
        %v2511 = vpop.permute.xlu0 %2510
        %2512 = vrot.lane.b32.xlu0 %v2284, 4
        %v2513 = vpop.permute.xlu0 %2512
        %2514 = vrot.lane.b32.xlu0 %v2285, 4
        %v2515 = vpop.permute.xlu0 %2514
        %2516 = vrot.lane.b32.xlu0 %v2286, 4
        %v2517 = vpop.permute.xlu0 %2516
        %2518 = vrot.lane.b32.xlu0 %v2287, 4
        %v2519 = vpop.permute.xlu0 %2518
        %2520 = vrot.lane.b32.xlu0 %v2288, 4
        %v2521 = vpop.permute.xlu0 %2520
        %2522 = vrot.lane.b32.xlu0 %v2289, 4
        %v2523 = vpop.permute.xlu0 %2522
        %2524 = vrot.lane.b32.xlu0 %v2290, 4
        %v2525 = vpop.permute.xlu0 %2524
        %2526 = vrot.lane.b32.xlu0 %v2291, 4
        %v2527 = vpop.permute.xlu0 %2526
        %2528 = vrot.lane.b32.xlu0 %v2292, 4
        %v2529 = vpop.permute.xlu0 %2528
        %2530 = vrot.lane.b32.xlu0 %v2293, 4
        %v2531 = vpop.permute.xlu0 %2530
        %2532 = vrot.lane.b32.xlu0 %v2294, 4
        %v2533 = vpop.permute.xlu0 %2532
        %2534 = vrot.lane.b32.xlu0 %v2295, 4
        %v2535 = vpop.permute.xlu0 %2534
        %2536 = vrot.lane.b32.xlu0 %v2296, 4
        %v2537 = vpop.permute.xlu0 %2536
        %2538 = vrot.lane.b32.xlu0 %v2297, 4
        %v2539 = vpop.permute.xlu0 %2538
        %2540 = vrot.lane.b32.xlu0 %v2298, 4
        %v2541 = vpop.permute.xlu0 %2540
        %2542 = vrot.lane.b32.xlu0 %v2299, 4
        %v2543 = vpop.permute.xlu0 %2542
        %2544 = vrot.lane.b32.xlu0 %v2300, 4
        %v2545 = vpop.permute.xlu0 %2544
        %2546 = vrot.lane.b32.xlu0 %v2301, 4
        %v2547 = vpop.permute.xlu0 %2546
        %2548 = vrot.lane.b32.xlu0 %v2302, 4
        %v2549 = vpop.permute.xlu0 %2548
        %2550 = vrot.lane.b32.xlu0 %v2303, 4
        %v2551 = vpop.permute.xlu0 %2550
        %2552 = vrot.lane.b32.xlu0 %v2304, 4
        %v2553 = vpop.permute.xlu0 %2552
        %2554 = vrot.lane.b32.xlu0 %v2305, 4
        %v2555 = vpop.permute.xlu0 %2554
        %2556 = vrot.lane.b32.xlu0 %v2306, 4
        %v2557 = vpop.permute.xlu0 %2556
        %2558 = vrot.lane.b32.xlu0 %v2307, 4
        %v2559 = vpop.permute.xlu0 %2558
        %2560 = vrot.lane.b32.xlu0 %v2308, 4
        %v2561 = vpop.permute.xlu0 %2560
        %2562 = vrot.lane.b32.xlu0 %v2309, 4
        %v2563 = vpop.permute.xlu0 %2562
        %2564 = vrot.lane.b32.xlu0 %v2310, 4
        %v2565 = vpop.permute.xlu0 %2564
        %2566 = vrot.lane.b32.xlu0 %v2311, 4
        %v2567 = vpop.permute.xlu0 %2566
        %2632 = vrot.lane.b32.xlu0 %v456, 8
        %v2633 = vpop.permute.xlu0 %2632
        %2634 = vrot.lane.b32.xlu0 %v457, 8
        %v2635 = vpop.permute.xlu0 %2634
        %2636 = vrot.lane.b32.xlu0 %v458, 8
        %v2637 = vpop.permute.xlu0 %2636
        %2638 = vrot.lane.b32.xlu0 %v459, 8
        %v2639 = vpop.permute.xlu0 %2638
        %2640 = vrot.lane.b32.xlu0 %v460, 8
        %v2641 = vpop.permute.xlu0 %2640
        %2642 = vrot.lane.b32.xlu0 %v461, 8
        %v2643 = vpop.permute.xlu0 %2642
        %2644 = vrot.lane.b32.xlu0 %v462, 8
        %v2645 = vpop.permute.xlu0 %2644
        %2646 = vrot.lane.b32.xlu0 %v463, 8
        %v2647 = vpop.permute.xlu0 %2646
        %2648 = vrot.lane.b32.xlu0 %v464, 8
        %v2649 = vpop.permute.xlu0 %2648
        %2650 = vrot.lane.b32.xlu0 %v465, 8
        %v2651 = vpop.permute.xlu0 %2650
        %2652 = vrot.lane.b32.xlu0 %v466, 8
        %v2653 = vpop.permute.xlu0 %2652
        %2654 = vrot.lane.b32.xlu0 %v467, 8
        %v2655 = vpop.permute.xlu0 %2654
        %2656 = vrot.lane.b32.xlu0 %v468, 8
        %v2657 = vpop.permute.xlu0 %2656
        %2658 = vrot.lane.b32.xlu0 %v469, 8
        %v2659 = vpop.permute.xlu0 %2658
        %2660 = vrot.lane.b32.xlu0 %v470, 8
        %v2661 = vpop.permute.xlu0 %2660
        %2662 = vrot.lane.b32.xlu0 %v471, 8
        %v2663 = vpop.permute.xlu0 %2662
        %2664 = vrot.lane.b32.xlu0 %v472, 8
        %v2665 = vpop.permute.xlu0 %2664
        %2666 = vrot.lane.b32.xlu0 %v473, 8
        %v2667 = vpop.permute.xlu0 %2666
        %2668 = vrot.lane.b32.xlu0 %v474, 8
        %v2669 = vpop.permute.xlu0 %2668
        %2670 = vrot.lane.b32.xlu0 %v475, 8
        %v2671 = vpop.permute.xlu0 %2670
        %2672 = vrot.lane.b32.xlu0 %v476, 8
        %v2673 = vpop.permute.xlu0 %2672
        %2674 = vrot.lane.b32.xlu0 %v477, 8
        %v2675 = vpop.permute.xlu0 %2674
        %2676 = vrot.lane.b32.xlu0 %v478, 8
        %v2677 = vpop.permute.xlu0 %2676
        %2678 = vrot.lane.b32.xlu0 %v479, 8
        %v2679 = vpop.permute.xlu0 %2678
        %2680 = vrot.lane.b32.xlu0 %v480, 8
        %v2681 = vpop.permute.xlu0 %2680
        %2682 = vrot.lane.b32.xlu0 %v481, 8
        %v2683 = vpop.permute.xlu0 %2682
        %2684 = vrot.lane.b32.xlu0 %v482, 8
        %v2685 = vpop.permute.xlu0 %2684
        %2686 = vrot.lane.b32.xlu0 %v483, 8
        %v2687 = vpop.permute.xlu0 %2686
        %2688 = vrot.lane.b32.xlu0 %v484, 8
        %v2689 = vpop.permute.xlu0 %2688
        %2690 = vrot.lane.b32.xlu0 %v485, 8
        %v2691 = vpop.permute.xlu0 %2690
        %2692 = vrot.lane.b32.xlu0 %v486, 8
        %v2693 = vpop.permute.xlu0 %2692
        %2694 = vrot.lane.b32.xlu0 %v487, 8
        %v2695 = vpop.permute.xlu0 %2694
        %2696 = vrot.lane.b32.xlu0 %v488, 8
        %v2697 = vpop.permute.xlu0 %2696
        %2698 = vrot.lane.b32.xlu0 %v489, 8
        %v2699 = vpop.permute.xlu0 %2698
        %2700 = vrot.lane.b32.xlu0 %v490, 8
        %v2701 = vpop.permute.xlu0 %2700
        %2702 = vrot.lane.b32.xlu0 %v491, 8
        %v2703 = vpop.permute.xlu0 %2702
        %2704 = vrot.lane.b32.xlu0 %v492, 8
        %v2705 = vpop.permute.xlu0 %2704
        %2706 = vrot.lane.b32.xlu0 %v493, 8
        %v2707 = vpop.permute.xlu0 %2706
        %2708 = vrot.lane.b32.xlu0 %v494, 8
        %v2709 = vpop.permute.xlu0 %2708
        %2710 = vrot.lane.b32.xlu0 %v495, 8
        %v2711 = vpop.permute.xlu0 %2710
        %2712 = vrot.lane.b32.xlu0 %v496, 8
        %v2713 = vpop.permute.xlu0 %2712
        %2714 = vrot.lane.b32.xlu0 %v497, 8
        %v2715 = vpop.permute.xlu0 %2714
        %2716 = vrot.lane.b32.xlu0 %v498, 8
        %v2717 = vpop.permute.xlu0 %2716
        %2718 = vrot.lane.b32.xlu0 %v499, 8
        %v2719 = vpop.permute.xlu0 %2718
        %2720 = vrot.lane.b32.xlu0 %v500, 8
        %v2721 = vpop.permute.xlu0 %2720
        %2722 = vrot.lane.b32.xlu0 %v501, 8
        %v2723 = vpop.permute.xlu0 %2722
        %2724 = vrot.lane.b32.xlu0 %v502, 8
        %v2725 = vpop.permute.xlu0 %2724
        %2726 = vrot.lane.b32.xlu0 %v503, 8
        %v2727 = vpop.permute.xlu0 %2726
        %2728 = vrot.lane.b32.xlu0 %v504, 8
        %v2729 = vpop.permute.xlu0 %2728
        %2730 = vrot.lane.b32.xlu0 %v505, 8
        %v2731 = vpop.permute.xlu0 %2730
        %2732 = vrot.lane.b32.xlu0 %v506, 8
        %v2733 = vpop.permute.xlu0 %2732
        %2734 = vrot.lane.b32.xlu0 %v507, 8
        %v2735 = vpop.permute.xlu0 %2734
        %2736 = vrot.lane.b32.xlu0 %v508, 8
        %v2737 = vpop.permute.xlu0 %2736
        %2738 = vrot.lane.b32.xlu0 %v509, 8
        %v2739 = vpop.permute.xlu0 %2738
        %2740 = vrot.lane.b32.xlu0 %v510, 8
        %v2741 = vpop.permute.xlu0 %2740
        %2742 = vrot.lane.b32.xlu0 %v511, 8
        %v2743 = vpop.permute.xlu0 %2742
        %2744 = vrot.lane.b32.xlu0 %v512, 8
        %v2745 = vpop.permute.xlu0 %2744
        %2746 = vrot.lane.b32.xlu0 %v513, 8
        %v2747 = vpop.permute.xlu0 %2746
        %2748 = vrot.lane.b32.xlu0 %v514, 8
        %v2749 = vpop.permute.xlu0 %2748
        %2750 = vrot.lane.b32.xlu0 %v515, 8
        %v2751 = vpop.permute.xlu0 %2750
        %2752 = vrot.lane.b32.xlu0 %v516, 8
        %v2753 = vpop.permute.xlu0 %2752
        %2754 = vrot.lane.b32.xlu0 %v517, 8
        %v2755 = vpop.permute.xlu0 %2754
        %2756 = vrot.lane.b32.xlu0 %v518, 8
        %v2757 = vpop.permute.xlu0 %2756
        %2758 = vrot.lane.b32.xlu0 %v519, 8
        %v2759 = vpop.permute.xlu0 %2758
        %2888 = vrot.lane.b32.xlu0 %v2312, 12
        %v2889 = vpop.permute.xlu0 %2888
        %2890 = vrot.lane.b32.xlu0 %v2313, 12
        %v2891 = vpop.permute.xlu0 %2890
        %2892 = vrot.lane.b32.xlu0 %v2314, 12
        %v2893 = vpop.permute.xlu0 %2892
        %2894 = vrot.lane.b32.xlu0 %v2315, 12
        %v2895 = vpop.permute.xlu0 %2894
        %2896 = vrot.lane.b32.xlu0 %v2316, 12
        %v2897 = vpop.permute.xlu0 %2896
        %2898 = vrot.lane.b32.xlu0 %v2317, 12
        %v2899 = vpop.permute.xlu0 %2898
        %2900 = vrot.lane.b32.xlu0 %v2318, 12
        %v2901 = vpop.permute.xlu0 %2900
        %2902 = vrot.lane.b32.xlu0 %v2319, 12
        %v2903 = vpop.permute.xlu0 %2902
        %2904 = vrot.lane.b32.xlu0 %v2320, 12
        %v2905 = vpop.permute.xlu0 %2904
        %2906 = vrot.lane.b32.xlu0 %v2321, 12
        %v2907 = vpop.permute.xlu0 %2906
        %2908 = vrot.lane.b32.xlu0 %v2322, 12
        %v2909 = vpop.permute.xlu0 %2908
        %2910 = vrot.lane.b32.xlu0 %v2323, 12
        %v2911 = vpop.permute.xlu0 %2910
        %2912 = vrot.lane.b32.xlu0 %v2324, 12
        %v2913 = vpop.permute.xlu0 %2912
        %2914 = vrot.lane.b32.xlu0 %v2325, 12
        %v2915 = vpop.permute.xlu0 %2914
        %2916 = vrot.lane.b32.xlu0 %v2326, 12
        %v2917 = vpop.permute.xlu0 %2916
        %2918 = vrot.lane.b32.xlu0 %v2327, 12
        %v2919 = vpop.permute.xlu0 %2918
        %2920 = vrot.lane.b32.xlu0 %v2328, 12
        %v2921 = vpop.permute.xlu0 %2920
        %2922 = vrot.lane.b32.xlu0 %v2329, 12
        %v2923 = vpop.permute.xlu0 %2922
        %2924 = vrot.lane.b32.xlu0 %v2330, 12
        %v2925 = vpop.permute.xlu0 %2924
        %2926 = vrot.lane.b32.xlu0 %v2331, 12
        %v2927 = vpop.permute.xlu0 %2926
        %2928 = vrot.lane.b32.xlu0 %v2332, 12
        %v2929 = vpop.permute.xlu0 %2928
        %2930 = vrot.lane.b32.xlu0 %v2333, 12
        %v2931 = vpop.permute.xlu0 %2930
        %2932 = vrot.lane.b32.xlu0 %v2334, 12
        %v2933 = vpop.permute.xlu0 %2932
        %2934 = vrot.lane.b32.xlu0 %v2335, 12
        %v2935 = vpop.permute.xlu0 %2934
        %2936 = vrot.lane.b32.xlu0 %v2336, 12
        %v2937 = vpop.permute.xlu0 %2936
        %2938 = vrot.lane.b32.xlu0 %v2337, 12
        %v2939 = vpop.permute.xlu0 %2938
        %2940 = vrot.lane.b32.xlu0 %v2338, 12
        %v2941 = vpop.permute.xlu0 %2940
        %2942 = vrot.lane.b32.xlu0 %v2339, 12
        %v2943 = vpop.permute.xlu0 %2942
        %2944 = vrot.lane.b32.xlu0 %v2340, 12
        %v2945 = vpop.permute.xlu0 %2944
        %2946 = vrot.lane.b32.xlu0 %v2341, 12
        %v2947 = vpop.permute.xlu0 %2946
        %2948 = vrot.lane.b32.xlu0 %v2342, 12
        %v2949 = vpop.permute.xlu0 %2948
        %2950 = vrot.lane.b32.xlu0 %v2343, 12
        %v2951 = vpop.permute.xlu0 %2950
        %2952 = vrot.lane.b32.xlu0 %v2344, 12
        %v2953 = vpop.permute.xlu0 %2952
        %2954 = vrot.lane.b32.xlu0 %v2345, 12
        %v2955 = vpop.permute.xlu0 %2954
        %2956 = vrot.lane.b32.xlu0 %v2346, 12
        %v2957 = vpop.permute.xlu0 %2956
        %2958 = vrot.lane.b32.xlu0 %v2347, 12
        %v2959 = vpop.permute.xlu0 %2958
        %2960 = vrot.lane.b32.xlu0 %v2348, 12
        %v2961 = vpop.permute.xlu0 %2960
        %2962 = vrot.lane.b32.xlu0 %v2349, 12
        %v2963 = vpop.permute.xlu0 %2962
        %2964 = vrot.lane.b32.xlu0 %v2350, 12
        %v2965 = vpop.permute.xlu0 %2964
        %2966 = vrot.lane.b32.xlu0 %v2351, 12
        %v2967 = vpop.permute.xlu0 %2966
        %2968 = vrot.lane.b32.xlu0 %v2352, 12
        %v2969 = vpop.permute.xlu0 %2968
        %2970 = vrot.lane.b32.xlu0 %v2353, 12
        %v2971 = vpop.permute.xlu0 %2970
        %2972 = vrot.lane.b32.xlu0 %v2354, 12
        %v2973 = vpop.permute.xlu0 %2972
        %2974 = vrot.lane.b32.xlu0 %v2355, 12
        %v2975 = vpop.permute.xlu0 %2974
        %2976 = vrot.lane.b32.xlu0 %v2356, 12
        %v2977 = vpop.permute.xlu0 %2976
        %2978 = vrot.lane.b32.xlu0 %v2357, 12
        %v2979 = vpop.permute.xlu0 %2978
        %2980 = vrot.lane.b32.xlu0 %v2358, 12
        %v2981 = vpop.permute.xlu0 %2980
        %2982 = vrot.lane.b32.xlu0 %v2359, 12
        %v2983 = vpop.permute.xlu0 %2982
        %2984 = vrot.lane.b32.xlu0 %v2360, 12
        %v2985 = vpop.permute.xlu0 %2984
        %2986 = vrot.lane.b32.xlu0 %v2361, 12
        %v2987 = vpop.permute.xlu0 %2986
        %2988 = vrot.lane.b32.xlu0 %v2362, 12
        %v2989 = vpop.permute.xlu0 %2988
        %2990 = vrot.lane.b32.xlu0 %v2363, 12
        %v2991 = vpop.permute.xlu0 %2990
        %2992 = vrot.lane.b32.xlu0 %v2364, 12
        %v2993 = vpop.permute.xlu0 %2992
        %2994 = vrot.lane.b32.xlu0 %v2365, 12
        %v2995 = vpop.permute.xlu0 %2994
        %2996 = vrot.lane.b32.xlu0 %v2366, 12
        %v2997 = vpop.permute.xlu0 %2996
        %2998 = vrot.lane.b32.xlu0 %v2367, 12
        %v2999 = vpop.permute.xlu0 %2998
        %3000 = vrot.lane.b32.xlu0 %v2368, 12
        %v3001 = vpop.permute.xlu0 %3000
        %3002 = vrot.lane.b32.xlu0 %v2369, 12
        %v3003 = vpop.permute.xlu0 %3002
        %3004 = vrot.lane.b32.xlu0 %v2370, 12
        %v3005 = vpop.permute.xlu0 %3004
        %3006 = vrot.lane.b32.xlu0 %v2371, 12
        %v3007 = vpop.permute.xlu0 %3006
        %3008 = vrot.lane.b32.xlu0 %v2372, 12
        %v3009 = vpop.permute.xlu0 %3008
        %3010 = vrot.lane.b32.xlu0 %v2373, 12
        %v3011 = vpop.permute.xlu0 %3010
        %3012 = vrot.lane.b32.xlu0 %v2374, 12
        %v3013 = vpop.permute.xlu0 %3012
        %3014 = vrot.lane.b32.xlu0 %v2375, 12
        %v3015 = vpop.permute.xlu0 %3014
        %v3080 = vsel %vm1288, %v327, %v2441
        %v3081 = vsel %vm1288, %v328, %v2443
        %v3082 = vsel %vm1288, %v329, %v2445
        %v3083 = vsel %vm1288, %v330, %v2447
        %v3084 = vsel %vm1288, %v331, %v2449
        %v3085 = vsel %vm1288, %v332, %v2451
        %v3086 = vsel %vm1288, %v333, %v2453
        %v3087 = vsel %vm1288, %v334, %v2455
        %v3088 = vsel %vm1288, %v335, %v2457
        %v3089 = vsel %vm1288, %v336, %v2459
        %v3090 = vsel %vm1288, %v337, %v2461
        %v3091 = vsel %vm1288, %v338, %v2463
        %v3092 = vsel %vm1288, %v339, %v2465
        %v3093 = vsel %vm1288, %v340, %v2467
        %v3094 = vsel %vm1288, %v341, %v2469
        %v3095 = vsel %vm1288, %v342, %v2471
        %v3096 = vsel %vm1288, %v343, %v2473
        %v3097 = vsel %vm1288, %v344, %v2475
        %v3098 = vsel %vm1288, %v345, %v2477
        %v3099 = vsel %vm1288, %v346, %v2479
        %v3100 = vsel %vm1288, %v347, %v2481
        %v3101 = vsel %vm1288, %v348, %v2483
        %v3102 = vsel %vm1288, %v349, %v2485
        %v3103 = vsel %vm1288, %v350, %v2487
        %v3104 = vsel %vm1288, %v351, %v2489
        %v3105 = vsel %vm1288, %v352, %v2491
        %v3106 = vsel %vm1288, %v353, %v2493
        %v3107 = vsel %vm1288, %v354, %v2495
        %v3108 = vsel %vm1288, %v355, %v2497
        %v3109 = vsel %vm1288, %v356, %v2499
        %v3110 = vsel %vm1288, %v357, %v2501
        %v3111 = vsel %vm1288, %v358, %v2503
        %v3112 = vsel %vm1288, %v359, %v2505
        %v3113 = vsel %vm1288, %v360, %v2507
        %v3114 = vsel %vm1288, %v361, %v2509
        %v3115 = vsel %vm1288, %v362, %v2511
        %v3116 = vsel %vm1288, %v363, %v2513
        %v3117 = vsel %vm1288, %v364, %v2515
        %v3118 = vsel %vm1288, %v365, %v2517
        %v3119 = vsel %vm1288, %v366, %v2519
        %v3120 = vsel %vm1288, %v367, %v2521
        %v3121 = vsel %vm1288, %v368, %v2523
        %v3122 = vsel %vm1288, %v369, %v2525
        %v3123 = vsel %vm1288, %v370, %v2527
        %v3124 = vsel %vm1288, %v371, %v2529
        %v3125 = vsel %vm1288, %v372, %v2531
        %v3126 = vsel %vm1288, %v373, %v2533
        %v3127 = vsel %vm1288, %v374, %v2535
        %v3128 = vsel %vm1288, %v375, %v2537
        %v3129 = vsel %vm1288, %v376, %v2539
        %v3130 = vsel %vm1288, %v377, %v2541
        %v3131 = vsel %vm1288, %v378, %v2543
        %v3132 = vsel %vm1288, %v379, %v2545
        %v3133 = vsel %vm1288, %v380, %v2547
        %v3134 = vsel %vm1288, %v381, %v2549
        %v3135 = vsel %vm1288, %v382, %v2551
        %v3136 = vsel %vm1288, %v383, %v2553
        %v3137 = vsel %vm1288, %v384, %v2555
        %v3138 = vsel %vm1288, %v385, %v2557
        %v3139 = vsel %vm1288, %v386, %v2559
        %v3140 = vsel %vm1288, %v387, %v2561
        %v3141 = vsel %vm1288, %v388, %v2563
        %v3142 = vsel %vm1288, %v389, %v2565
        %v3143 = vsel %vm1288, %v390, %v2567
        %v3144 = vsel %vm1353, %v3080, %v2633
        %v3145 = vsel %vm1353, %v3081, %v2635
        %v3146 = vsel %vm1353, %v3082, %v2637
        %v3147 = vsel %vm1353, %v3083, %v2639
        %v3148 = vsel %vm1353, %v3084, %v2641
        %v3149 = vsel %vm1353, %v3085, %v2643
        %v3150 = vsel %vm1353, %v3086, %v2645
        %v3151 = vsel %vm1353, %v3087, %v2647
        %v3152 = vsel %vm1353, %v3088, %v2649
        %v3153 = vsel %vm1353, %v3089, %v2651
        %v3154 = vsel %vm1353, %v3090, %v2653
        %v3155 = vsel %vm1353, %v3091, %v2655
        %v3156 = vsel %vm1353, %v3092, %v2657
        %v3157 = vsel %vm1353, %v3093, %v2659
        %v3158 = vsel %vm1353, %v3094, %v2661
        %v3159 = vsel %vm1353, %v3095, %v2663
        %v3160 = vsel %vm1353, %v3096, %v2665
        %v3161 = vsel %vm1353, %v3097, %v2667
        %v3162 = vsel %vm1353, %v3098, %v2669
        %v3163 = vsel %vm1353, %v3099, %v2671
        %v3164 = vsel %vm1353, %v3100, %v2673
        %v3165 = vsel %vm1353, %v3101, %v2675
        %v3166 = vsel %vm1353, %v3102, %v2677
        %v3167 = vsel %vm1353, %v3103, %v2679
        %v3168 = vsel %vm1353, %v3104, %v2681
        %v3169 = vsel %vm1353, %v3105, %v2683
        %v3170 = vsel %vm1353, %v3106, %v2685
        %v3171 = vsel %vm1353, %v3107, %v2687
        %v3172 = vsel %vm1353, %v3108, %v2689
        %v3173 = vsel %vm1353, %v3109, %v2691
        %v3174 = vsel %vm1353, %v3110, %v2693
        %v3175 = vsel %vm1353, %v3111, %v2695
        %v3176 = vsel %vm1353, %v3112, %v2697
        %v3177 = vsel %vm1353, %v3113, %v2699
        %v3178 = vsel %vm1353, %v3114, %v2701
        %v3179 = vsel %vm1353, %v3115, %v2703
        %v3180 = vsel %vm1353, %v3116, %v2705
        %v3181 = vsel %vm1353, %v3117, %v2707
        %v3182 = vsel %vm1353, %v3118, %v2709
        %v3183 = vsel %vm1353, %v3119, %v2711
        %v3184 = vsel %vm1353, %v3120, %v2713
        %v3185 = vsel %vm1353, %v3121, %v2715
        %v3186 = vsel %vm1353, %v3122, %v2717
        %v3187 = vsel %vm1353, %v3123, %v2719
        %v3188 = vsel %vm1353, %v3124, %v2721
        %v3189 = vsel %vm1353, %v3125, %v2723
        %v3190 = vsel %vm1353, %v3126, %v2725
        %v3191 = vsel %vm1353, %v3127, %v2727
        %v3192 = vsel %vm1353, %v3128, %v2729
        %v3193 = vsel %vm1353, %v3129, %v2731
        %v3194 = vsel %vm1353, %v3130, %v2733
        %v3195 = vsel %vm1353, %v3131, %v2735
        %v3196 = vsel %vm1353, %v3132, %v2737
        %v3197 = vsel %vm1353, %v3133, %v2739
        %v3198 = vsel %vm1353, %v3134, %v2741
        %v3199 = vsel %vm1353, %v3135, %v2743
        %v3200 = vsel %vm1353, %v3136, %v2745
        %v3201 = vsel %vm1353, %v3137, %v2747
        %v3202 = vsel %vm1353, %v3138, %v2749
        %v3203 = vsel %vm1353, %v3139, %v2751
        %v3204 = vsel %vm1353, %v3140, %v2753
        %v3205 = vsel %vm1353, %v3141, %v2755
        %v3206 = vsel %vm1353, %v3142, %v2757
        %v3207 = vsel %vm1353, %v3143, %v2759
        %v3208 = vsel %vm1418, %v3144, %v2889
        %v3209 = vsel %vm1418, %v3145, %v2891
        %v3210 = vsel %vm1418, %v3146, %v2893
        %v3211 = vsel %vm1418, %v3147, %v2895
        %v3212 = vsel %vm1418, %v3148, %v2897
        %v3213 = vsel %vm1418, %v3149, %v2899
        %v3214 = vsel %vm1418, %v3150, %v2901
        %v3215 = vsel %vm1418, %v3151, %v2903
        %v3216 = vsel %vm1418, %v3152, %v2905
        %v3217 = vsel %vm1418, %v3153, %v2907
        %v3218 = vsel %vm1418, %v3154, %v2909
        %v3219 = vsel %vm1418, %v3155, %v2911
        %v3220 = vsel %vm1418, %v3156, %v2913
        %v3221 = vsel %vm1418, %v3157, %v2915
        %v3222 = vsel %vm1418, %v3158, %v2917
        %v3223 = vsel %vm1418, %v3159, %v2919
        %v3224 = vsel %vm1418, %v3160, %v2921
        %v3225 = vsel %vm1418, %v3161, %v2923
        %v3226 = vsel %vm1418, %v3162, %v2925
        %v3227 = vsel %vm1418, %v3163, %v2927
        %v3228 = vsel %vm1418, %v3164, %v2929
        %v3229 = vsel %vm1418, %v3165, %v2931
        %v3230 = vsel %vm1418, %v3166, %v2933
        %v3231 = vsel %vm1418, %v3167, %v2935
        %v3232 = vsel %vm1418, %v3168, %v2937
        %v3233 = vsel %vm1418, %v3169, %v2939
        %v3234 = vsel %vm1418, %v3170, %v2941
        %v3235 = vsel %vm1418, %v3171, %v2943
        %v3236 = vsel %vm1418, %v3172, %v2945
        %v3237 = vsel %vm1418, %v3173, %v2947
        %v3238 = vsel %vm1418, %v3174, %v2949
        %v3239 = vsel %vm1418, %v3175, %v2951
        %v3240 = vsel %vm1418, %v3176, %v2953
        %v3241 = vsel %vm1418, %v3177, %v2955
        %v3242 = vsel %vm1418, %v3178, %v2957
        %v3243 = vsel %vm1418, %v3179, %v2959
        %v3244 = vsel %vm1418, %v3180, %v2961
        %v3245 = vsel %vm1418, %v3181, %v2963
        %v3246 = vsel %vm1418, %v3182, %v2965
        %v3247 = vsel %vm1418, %v3183, %v2967
        %v3248 = vsel %vm1418, %v3184, %v2969
        %v3249 = vsel %vm1418, %v3185, %v2971
        %v3250 = vsel %vm1418, %v3186, %v2973
        %v3251 = vsel %vm1418, %v3187, %v2975
        %v3252 = vsel %vm1418, %v3188, %v2977
        %v3253 = vsel %vm1418, %v3189, %v2979
        %v3254 = vsel %vm1418, %v3190, %v2981
        %v3255 = vsel %vm1418, %v3191, %v2983
        %v3256 = vsel %vm1418, %v3192, %v2985
        %v3257 = vsel %vm1418, %v3193, %v2987
        %v3258 = vsel %vm1418, %v3194, %v2989
        %v3259 = vsel %vm1418, %v3195, %v2991
        %v3260 = vsel %vm1418, %v3196, %v2993
        %v3261 = vsel %vm1418, %v3197, %v2995
        %v3262 = vsel %vm1418, %v3198, %v2997
        %v3263 = vsel %vm1418, %v3199, %v2999
        %v3264 = vsel %vm1418, %v3200, %v3001
        %v3265 = vsel %vm1418, %v3201, %v3003
        %v3266 = vsel %vm1418, %v3202, %v3005
        %v3267 = vsel %vm1418, %v3203, %v3007
        %v3268 = vsel %vm1418, %v3204, %v3009
        %v3269 = vsel %vm1418, %v3205, %v3011
        %v3270 = vsel %vm1418, %v3206, %v3013
        %v3271 = vsel %vm1418, %v3207, %v3015
        %v3272 = vpack.c.bf16 %v3209, %v3208
        %v3273 = vpack.c.bf16 %v3211, %v3210
        %v3274 = vpack.c.bf16 %v3213, %v3212
        %v3275 = vpack.c.bf16 %v3215, %v3214
        %v3276 = vpack.c.bf16 %v3217, %v3216
        %v3277 = vpack.c.bf16 %v3219, %v3218
        %v3278 = vpack.c.bf16 %v3221, %v3220
        %v3279 = vpack.c.bf16 %v3223, %v3222
        %v3280 = vpack.c.bf16 %v3225, %v3224
        %v3281 = vpack.c.bf16 %v3227, %v3226
        %v3282 = vpack.c.bf16 %v3229, %v3228
        %v3283 = vpack.c.bf16 %v3231, %v3230
        %v3284 = vpack.c.bf16 %v3233, %v3232
        %v3285 = vpack.c.bf16 %v3235, %v3234
        %v3286 = vpack.c.bf16 %v3237, %v3236
        %v3287 = vpack.c.bf16 %v3239, %v3238
        %v3288 = vpack.c.bf16 %v3241, %v3240
        %v3289 = vpack.c.bf16 %v3243, %v3242
        %v3290 = vpack.c.bf16 %v3245, %v3244
        %v3291 = vpack.c.bf16 %v3247, %v3246
        %v3292 = vpack.c.bf16 %v3249, %v3248
        %v3293 = vpack.c.bf16 %v3251, %v3250
        %v3294 = vpack.c.bf16 %v3253, %v3252
        %v3295 = vpack.c.bf16 %v3255, %v3254
        %v3296 = vpack.c.bf16 %v3257, %v3256
        %v3297 = vpack.c.bf16 %v3259, %v3258
        %v3298 = vpack.c.bf16 %v3261, %v3260
        %v3299 = vpack.c.bf16 %v3263, %v3262
        %v3300 = vpack.c.bf16 %v3265, %v3264
        %v3301 = vpack.c.bf16 %v3267, %v3266
        %v3302 = vpack.c.bf16 %v3269, %v3268
        %v3303 = vpack.c.bf16 %v3271, %v3270
        %s3304 = scalar_lea.vmem %s251, 8
        %v3305 = vld [vmem:[%s3304] sm:$0xf]
        %v3306 = vld [vmem:[%s3304 + $0x4] sm:$0xf]
        %v3309 = vunpack.c.l.b16 %v3305
        %v3310 = vunpack.c.l.b16 %v3306
        %v3311 = vpack.c.b16 %v3310, %v3309
        %v3314 = vsel %vm1529, %v3272, 0
        %v3317 = vsel %vm1529, %v3273, 0
        %v3320 = vsel %vm1529, %v3274, 0
        %v3323 = vsel %vm1529, %v3275, 0
        %v3326 = vsel %vm1529, %v3276, 0
        %v3329 = vsel %vm1529, %v3277, 0
        %v3332 = vsel %vm1529, %v3278, 0
        %v3335 = vsel %vm1529, %v3279, 0
        %v3338 = vsel %vm1529, %v3280, 0
        %v3341 = vsel %vm1529, %v3281, 0
        %v3344 = vsel %vm1529, %v3282, 0
        %v3347 = vsel %vm1529, %v3283, 0
        %v3350 = vsel %vm1529, %v3284, 0
        %v3353 = vsel %vm1529, %v3285, 0
        %v3356 = vsel %vm1529, %v3286, 0
        %v3359 = vsel %vm1529, %v3287, 0
        %v3362 = vsel %vm1529, %v3288, 0
        %v3365 = vsel %vm1529, %v3289, 0
        %v3368 = vsel %vm1529, %v3290, 0
        %v3371 = vsel %vm1529, %v3291, 0
        %v3374 = vsel %vm1529, %v3292, 0
        %v3377 = vsel %vm1529, %v3293, 0
        %v3380 = vsel %vm1529, %v3294, 0
        %v3383 = vsel %vm1529, %v3295, 0
        %v3386 = vsel %vm1529, %v3296, 0
        %v3389 = vsel %vm1529, %v3297, 0
        %v3392 = vsel %vm1529, %v3298, 0
        %v3395 = vsel %vm1529, %v3299, 0
        %v3398 = vsel %vm1529, %v3300, 0
        %v3401 = vsel %vm1529, %v3301, 0
        %v3404 = vsel %vm1529, %v3302, 0
        %v3407 = vsel %vm1529, %v3303, 0
        %3409 = vmatprep.subr.bf16.mxu0 0
        %3410 = vmatpush1.bf16.msra.mxu0 %v3311
        %3411 = vmatprep.subr.bf16.mxu0 0
        %3412 = vmatpush1.bf16.msra.mxu0 0
        %3413 = vmatprep.subr.bf16.mxu0 0
        %3414 = vmatpush1.bf16.msra.mxu0 0
        %3415 = vmatprep.subr.bf16.mxu0 0
        %3416 = vmatpush1.bf16.msra.mxu0 0
        %3417 = vmatprep.subr.bf16.mxu0 0
        %3418 = vmatpush1.bf16.msra.mxu0 0
        %3419 = vmatprep.subr.bf16.mxu0 0
        %3420 = vmatpush1.bf16.msra.mxu0 0
        %3421 = vmatprep.subr.bf16.mxu0 0
        %3422 = vmatpush1.bf16.msra.mxu0 0
        %3423 = vmatprep.subr.bf16.mxu0 0
        %3424 = vmatpush1.bf16.msra.mxu0 0
        %3425 = vmatprep.subr.bf16.mxu0 0
        %3426 = vmatpush1.bf16.msra.mxu0 0
        %3427 = vmatprep.subr.bf16.mxu0 0
        %3428 = vmatpush1.bf16.msra.mxu0 0
        %3429 = vmatprep.subr.bf16.mxu0 0
        %3430 = vmatpush1.bf16.msra.mxu0 0
        %3431 = vmatprep.subr.bf16.mxu0 0
        %3432 = vmatpush1.bf16.msra.mxu0 0
        %3433 = vmatprep.subr.bf16.mxu0 0
        %3434 = vmatpush1.bf16.msra.mxu0 0
        %3435 = vmatprep.subr.bf16.mxu0 0
        %3436 = vmatpush1.bf16.msra.mxu0 0
        %3437 = vmatprep.subr.bf16.mxu0 0
        %3438 = vmatpush1.bf16.msra.mxu0 0
        %3439 = vmatprep.subr.bf16.mxu0 0
        %3440 = vmatpush1.bf16.msra.mxu0 0
        %3441 = vmatprep.mubr.bf16.mxu0 0
        %3442 = vmatmul.mubr.bf16.gmra.mrb[0].mxu0 %v3314
        %v3443 = vpop.f32.mrb[0].mxu0
        %v3444 = vadd.f32 %v1521, %v3443
        %v3445 = vpop.f32.mrb[0].mxu0
        %v3446 = vpop.f32.mrb[0].mxu0
        %v3447 = vadd.f32 %v1521, %v3446
        %v3448 = vpop.f32.mrb[0].mxu0
        %3449 = vmatprep.mubr.bf16.mxu0 0
        %3450 = vmatmul.mubr.bf16.gmra.mrb[0].mxu0 %v3317
        %v3451 = vpop.f32.mrb[0].mxu0
        %v3452 = vadd.f32 %v1521, %v3451
        %v3453 = vpop.f32.mrb[0].mxu0
        %v3454 = vpop.f32.mrb[0].mxu0
        %v3455 = vadd.f32 %v1521, %v3454
        %v3456 = vpop.f32.mrb[0].mxu0
        %3457 = vmatprep.mubr.bf16.mxu0 0
        %3458 = vmatmul.mubr.bf16.gmra.mrb[0].mxu0 %v3320
        %v3459 = vpop.f32.mrb[0].mxu0
        %v3460 = vadd.f32 %v1521, %v3459
        %v3461 = vpop.f32.mrb[0].mxu0
        %v3462 = vpop.f32.mrb[0].mxu0
        %v3463 = vadd.f32 %v1521, %v3462
        %v3464 = vpop.f32.mrb[0].mxu0
        %3465 = vmatprep.mubr.bf16.mxu0 0
        %3466 = vmatmul.mubr.bf16.gmra.mrb[0].mxu0 %v3323
        %v3467 = vpop.f32.mrb[0].mxu0
        %v3468 = vadd.f32 %v1521, %v3467
        %v3469 = vpop.f32.mrb[0].mxu0
        %v3470 = vpop.f32.mrb[0].mxu0
        %v3471 = vadd.f32 %v1521, %v3470
        %v3472 = vpop.f32.mrb[0].mxu0
        %3473 = vmatprep.mubr.bf16.mxu0 0
        %3474 = vmatmul.mubr.bf16.gmra.mrb[0].mxu0 %v3326
        %v3475 = vpop.f32.mrb[0].mxu0
        %v3476 = vadd.f32 %v1521, %v3475
        %v3477 = vpop.f32.mrb[0].mxu0
        %v3478 = vpop.f32.mrb[0].mxu0
        %v3479 = vadd.f32 %v1521, %v3478
        %v3480 = vpop.f32.mrb[0].mxu0
        %3481 = vmatprep.mubr.bf16.mxu0 0
        %3482 = vmatmul.mubr.bf16.gmra.mrb[0].mxu0 %v3329
        %v3483 = vpop.f32.mrb[0].mxu0
        %v3484 = vadd.f32 %v1521, %v3483
        %v3485 = vpop.f32.mrb[0].mxu0
        %v3486 = vpop.f32.mrb[0].mxu0
        %v3487 = vadd.f32 %v1521, %v3486
        %v3488 = vpop.f32.mrb[0].mxu0
        %3489 = vmatprep.mubr.bf16.mxu0 0
        %3490 = vmatmul.mubr.bf16.gmra.mrb[0].mxu0 %v3332
        %v3491 = vpop.f32.mrb[0].mxu0
        %v3492 = vadd.f32 %v1521, %v3491
        %v3493 = vpop.f32.mrb[0].mxu0
        %v3494 = vpop.f32.mrb[0].mxu0
        %v3495 = vadd.f32 %v1521, %v3494
        %v3496 = vpop.f32.mrb[0].mxu0
        %3497 = vmatprep.mubr.bf16.mxu0 0
        %3498 = vmatmul.mubr.bf16.gmra.mrb[0].mxu0 %v3335
        %v3499 = vpop.f32.mrb[0].mxu0
        %v3500 = vadd.f32 %v1521, %v3499
        %v3501 = vpop.f32.mrb[0].mxu0
        %v3502 = vpop.f32.mrb[0].mxu0
        %v3503 = vadd.f32 %v1521, %v3502
        %v3504 = vpop.f32.mrb[0].mxu0
        %3505 = vmatprep.mubr.bf16.mxu0 0
        %3506 = vmatmul.mubr.bf16.gmra.mrb[0].mxu0 %v3338
        %v3507 = vpop.f32.mrb[0].mxu0
        %v3508 = vadd.f32 %v1521, %v3507
        %v3509 = vpop.f32.mrb[0].mxu0
        %v3510 = vpop.f32.mrb[0].mxu0
        %v3511 = vadd.f32 %v1521, %v3510
        %v3512 = vpop.f32.mrb[0].mxu0
        %3513 = vmatprep.mubr.bf16.mxu0 0
        %3514 = vmatmul.mubr.bf16.gmra.mrb[0].mxu0 %v3341
        %v3515 = vpop.f32.mrb[0].mxu0
        %v3516 = vadd.f32 %v1521, %v3515
        %v3517 = vpop.f32.mrb[0].mxu0
        %v3518 = vpop.f32.mrb[0].mxu0
        %v3519 = vadd.f32 %v1521, %v3518
        %v3520 = vpop.f32.mrb[0].mxu0
        %3521 = vmatprep.mubr.bf16.mxu0 0
        %3522 = vmatmul.mubr.bf16.gmra.mrb[0].mxu0 %v3344
        %v3523 = vpop.f32.mrb[0].mxu0
        %v3524 = vadd.f32 %v1521, %v3523
        %v3525 = vpop.f32.mrb[0].mxu0
        %v3526 = vpop.f32.mrb[0].mxu0
        %v3527 = vadd.f32 %v1521, %v3526
        %v3528 = vpop.f32.mrb[0].mxu0
        %3529 = vmatprep.mubr.bf16.mxu0 0
        %3530 = vmatmul.mubr.bf16.gmra.mrb[0].mxu0 %v3347
        %v3531 = vpop.f32.mrb[0].mxu0
        %v3532 = vadd.f32 %v1521, %v3531
        %v3533 = vpop.f32.mrb[0].mxu0
        %v3534 = vpop.f32.mrb[0].mxu0
        %v3535 = vadd.f32 %v1521, %v3534
        %v3536 = vpop.f32.mrb[0].mxu0
        %3537 = vmatprep.mubr.bf16.mxu0 0
        %3538 = vmatmul.mubr.bf16.gmra.mrb[0].mxu0 %v3350
        %v3539 = vpop.f32.mrb[0].mxu0
        %v3540 = vadd.f32 %v1521, %v3539
        %v3541 = vpop.f32.mrb[0].mxu0
        %v3542 = vpop.f32.mrb[0].mxu0
        %v3543 = vadd.f32 %v1521, %v3542
        %v3544 = vpop.f32.mrb[0].mxu0
        %3545 = vmatprep.mubr.bf16.mxu0 0
        %3546 = vmatmul.mubr.bf16.gmra.mrb[0].mxu0 %v3353
        %v3547 = vpop.f32.mrb[0].mxu0
        %v3548 = vadd.f32 %v1521, %v3547
        %v3549 = vpop.f32.mrb[0].mxu0
        %v3550 = vpop.f32.mrb[0].mxu0
        %v3551 = vadd.f32 %v1521, %v3550
        %v3552 = vpop.f32.mrb[0].mxu0
        %3553 = vmatprep.mubr.bf16.mxu0 0
        %3554 = vmatmul.mubr.bf16.gmra.mrb[0].mxu0 %v3356
        %v3555 = vpop.f32.mrb[0].mxu0
        %v3556 = vadd.f32 %v1521, %v3555
        %v3557 = vpop.f32.mrb[0].mxu0
        %v3558 = vpop.f32.mrb[0].mxu0
        %v3559 = vadd.f32 %v1521, %v3558
        %v3560 = vpop.f32.mrb[0].mxu0
        %3561 = vmatprep.mubr.bf16.mxu0 0
        %3562 = vmatmul.mubr.bf16.gmra.mrb[0].mxu0 %v3359
        %v3563 = vpop.f32.mrb[0].mxu0
        %v3564 = vadd.f32 %v1521, %v3563
        %v3565 = vpop.f32.mrb[0].mxu0
        %v3566 = vpop.f32.mrb[0].mxu0
        %v3567 = vadd.f32 %v1521, %v3566
        %v3568 = vpop.f32.mrb[0].mxu0
        %3569 = vmatprep.mubr.bf16.mxu0 0
        %3570 = vmatmul.mubr.bf16.gmra.mrb[0].mxu0 %v3362
        %v3571 = vpop.f32.mrb[0].mxu0
        %v3572 = vadd.f32 %v1521, %v3571
        %v3573 = vpop.f32.mrb[0].mxu0
        %v3574 = vpop.f32.mrb[0].mxu0
        %v3575 = vadd.f32 %v1521, %v3574
        %v3576 = vpop.f32.mrb[0].mxu0
        %3577 = vmatprep.mubr.bf16.mxu0 0
        %3578 = vmatmul.mubr.bf16.gmra.mrb[0].mxu0 %v3365
        %v3579 = vpop.f32.mrb[0].mxu0
        %v3580 = vadd.f32 %v1521, %v3579
        %v3581 = vpop.f32.mrb[0].mxu0
        %v3582 = vpop.f32.mrb[0].mxu0
        %v3583 = vadd.f32 %v1521, %v3582
        %v3584 = vpop.f32.mrb[0].mxu0
        %3585 = vmatprep.mubr.bf16.mxu0 0
        %3586 = vmatmul.mubr.bf16.gmra.mrb[0].mxu0 %v3368
        %v3587 = vpop.f32.mrb[0].mxu0
        %v3588 = vadd.f32 %v1521, %v3587
        %v3589 = vpop.f32.mrb[0].mxu0
        %v3590 = vpop.f32.mrb[0].mxu0
        %v3591 = vadd.f32 %v1521, %v3590
        %v3592 = vpop.f32.mrb[0].mxu0
        %3593 = vmatprep.mubr.bf16.mxu0 0
        %3594 = vmatmul.mubr.bf16.gmra.mrb[0].mxu0 %v3371
        %v3595 = vpop.f32.mrb[0].mxu0
        %v3596 = vadd.f32 %v1521, %v3595
        %v3597 = vpop.f32.mrb[0].mxu0
        %v3598 = vpop.f32.mrb[0].mxu0
        %v3599 = vadd.f32 %v1521, %v3598
        %v3600 = vpop.f32.mrb[0].mxu0
        %3601 = vmatprep.mubr.bf16.mxu0 0
        %3602 = vmatmul.mubr.bf16.gmra.mrb[0].mxu0 %v3374
        %v3603 = vpop.f32.mrb[0].mxu0
        %v3604 = vadd.f32 %v1521, %v3603
        %v3605 = vpop.f32.mrb[0].mxu0
        %v3606 = vpop.f32.mrb[0].mxu0
        %v3607 = vadd.f32 %v1521, %v3606
        %v3608 = vpop.f32.mrb[0].mxu0
        %3609 = vmatprep.mubr.bf16.mxu0 0
        %3610 = vmatmul.mubr.bf16.gmra.mrb[0].mxu0 %v3377
        %v3611 = vpop.f32.mrb[0].mxu0
        %v3612 = vadd.f32 %v1521, %v3611
        %v3613 = vpop.f32.mrb[0].mxu0
        %v3614 = vpop.f32.mrb[0].mxu0
        %v3615 = vadd.f32 %v1521, %v3614
        %v3616 = vpop.f32.mrb[0].mxu0
        %3617 = vmatprep.mubr.bf16.mxu0 0
        %3618 = vmatmul.mubr.bf16.gmra.mrb[0].mxu0 %v3380
        %v3619 = vpop.f32.mrb[0].mxu0
        %v3620 = vadd.f32 %v1521, %v3619
        %v3621 = vpop.f32.mrb[0].mxu0
        %v3622 = vpop.f32.mrb[0].mxu0
        %v3623 = vadd.f32 %v1521, %v3622
        %v3624 = vpop.f32.mrb[0].mxu0
        %3625 = vmatprep.mubr.bf16.mxu0 0
        %3626 = vmatmul.mubr.bf16.gmra.mrb[0].mxu0 %v3383
        %v3627 = vpop.f32.mrb[0].mxu0
        %v3628 = vadd.f32 %v1521, %v3627
        %v3629 = vpop.f32.mrb[0].mxu0
        %v3630 = vpop.f32.mrb[0].mxu0
        %v3631 = vadd.f32 %v1521, %v3630
        %v3632 = vpop.f32.mrb[0].mxu0
        %3633 = vmatprep.mubr.bf16.mxu0 0
        %3634 = vmatmul.mubr.bf16.gmra.mrb[0].mxu0 %v3386
        %v3635 = vpop.f32.mrb[0].mxu0
        %v3636 = vadd.f32 %v1521, %v3635
        %v3637 = vpop.f32.mrb[0].mxu0
        %v3638 = vpop.f32.mrb[0].mxu0
        %v3639 = vadd.f32 %v1521, %v3638
        %v3640 = vpop.f32.mrb[0].mxu0
        %3641 = vmatprep.mubr.bf16.mxu0 0
        %3642 = vmatmul.mubr.bf16.gmra.mrb[0].mxu0 %v3389
        %v3643 = vpop.f32.mrb[0].mxu0
        %v3644 = vadd.f32 %v1521, %v3643
        %v3645 = vpop.f32.mrb[0].mxu0
        %v3646 = vpop.f32.mrb[0].mxu0
        %v3647 = vadd.f32 %v1521, %v3646
        %v3648 = vpop.f32.mrb[0].mxu0
        %3649 = vmatprep.mubr.bf16.mxu0 0
        %3650 = vmatmul.mubr.bf16.gmra.mrb[0].mxu0 %v3392
        %v3651 = vpop.f32.mrb[0].mxu0
        %v3652 = vadd.f32 %v1521, %v3651
        %v3653 = vpop.f32.mrb[0].mxu0
        %v3654 = vpop.f32.mrb[0].mxu0
        %v3655 = vadd.f32 %v1521, %v3654
        %v3656 = vpop.f32.mrb[0].mxu0
        %3657 = vmatprep.mubr.bf16.mxu0 0
        %3658 = vmatmul.mubr.bf16.gmra.mrb[0].mxu0 %v3395
        %v3659 = vpop.f32.mrb[0].mxu0
        %v3660 = vadd.f32 %v1521, %v3659
        %v3661 = vpop.f32.mrb[0].mxu0
        %v3662 = vpop.f32.mrb[0].mxu0
        %v3663 = vadd.f32 %v1521, %v3662
        %v3664 = vpop.f32.mrb[0].mxu0
        %3665 = vmatprep.mubr.bf16.mxu0 0
        %3666 = vmatmul.mubr.bf16.gmra.mrb[0].mxu0 %v3398
        %v3667 = vpop.f32.mrb[0].mxu0
        %v3668 = vadd.f32 %v1521, %v3667
        %v3669 = vpop.f32.mrb[0].mxu0
        %v3670 = vpop.f32.mrb[0].mxu0
        %v3671 = vadd.f32 %v1521, %v3670
        %v3672 = vpop.f32.mrb[0].mxu0
        %3673 = vmatprep.mubr.bf16.mxu0 0
        %3674 = vmatmul.mubr.bf16.gmra.mrb[0].mxu0 %v3401
        %v3675 = vpop.f32.mrb[0].mxu0
        %v3676 = vadd.f32 %v1521, %v3675
        %v3677 = vpop.f32.mrb[0].mxu0
        %v3678 = vpop.f32.mrb[0].mxu0
        %v3679 = vadd.f32 %v1521, %v3678
        %v3680 = vpop.f32.mrb[0].mxu0
        %3681 = vmatprep.mubr.bf16.mxu0 0
        %3682 = vmatmul.mubr.bf16.gmra.mrb[0].mxu0 %v3404
        %v3683 = vpop.f32.mrb[0].mxu0
        %v3684 = vadd.f32 %v1521, %v3683
        %v3685 = vpop.f32.mrb[0].mxu0
        %v3686 = vpop.f32.mrb[0].mxu0
        %v3687 = vadd.f32 %v1521, %v3686
        %v3688 = vpop.f32.mrb[0].mxu0
        %3689 = vmatprep.mubr.bf16.mxu0 0
        %3690 = vmatmul.mubr.bf16.gmra.mrb[0].mxu0 %v3407
        %v3691 = vpop.f32.mrb[0].mxu0
        %v3692 = vadd.f32 %v1521, %v3691
        %v3693 = vpop.f32.mrb[0].mxu0
        %v3694 = vpop.f32.mrb[0].mxu0
        %v3695 = vadd.f32 %v1521, %v3694
        %v3696 = vpop.f32.mrb[0].mxu0
        %3697 = vdwg.mxu0
        %v3698 = vsel %vm1915, %v3444, 0.0
        %v3699 = vsel %vm1915, %v3447, 0.0
        %v3700 = vadd.f32 %v3698, %v3699
        %v3701 = vsel %vm1915, %v3452, 0.0
        %v3702 = vadd.f32 %v3700, %v3701
        %v3703 = vsel %vm1915, %v3455, 0.0
        %v3704 = vadd.f32 %v3702, %v3703
        %v3705 = vsel %vm1915, %v3460, 0.0
        %v3706 = vadd.f32 %v3704, %v3705
        %v3707 = vsel %vm1915, %v3463, 0.0
        %v3708 = vadd.f32 %v3706, %v3707
        %v3709 = vsel %vm1915, %v3468, 0.0
        %v3710 = vadd.f32 %v3708, %v3709
        %v3711 = vsel %vm1915, %v3471, 0.0
        %v3712 = vadd.f32 %v3710, %v3711
        %v3713 = vsel %vm1915, %v3476, 0.0
        %v3714 = vadd.f32 %v3712, %v3713
        %v3715 = vsel %vm1915, %v3479, 0.0
        %v3716 = vadd.f32 %v3714, %v3715
        %v3717 = vsel %vm1915, %v3484, 0.0
        %v3718 = vadd.f32 %v3716, %v3717
        %v3719 = vsel %vm1915, %v3487, 0.0
        %v3720 = vadd.f32 %v3718, %v3719
        %v3721 = vsel %vm1915, %v3492, 0.0
        %v3722 = vadd.f32 %v3720, %v3721
        %v3723 = vsel %vm1915, %v3495, 0.0
        %v3724 = vadd.f32 %v3722, %v3723
        %v3725 = vsel %vm1915, %v3500, 0.0
        %v3726 = vadd.f32 %v3724, %v3725
        %v3727 = vsel %vm1915, %v3503, 0.0
        %v3728 = vadd.f32 %v3726, %v3727
        %v3729 = vsel %vm1915, %v3508, 0.0
        %v3730 = vadd.f32 %v3728, %v3729
        %v3731 = vsel %vm1915, %v3511, 0.0
        %v3732 = vadd.f32 %v3730, %v3731
        %v3733 = vsel %vm1915, %v3516, 0.0
        %v3734 = vadd.f32 %v3732, %v3733
        %v3735 = vsel %vm1915, %v3519, 0.0
        %v3736 = vadd.f32 %v3734, %v3735
        %v3737 = vsel %vm1915, %v3524, 0.0
        %v3738 = vadd.f32 %v3736, %v3737
        %v3739 = vsel %vm1915, %v3527, 0.0
        %v3740 = vadd.f32 %v3738, %v3739
        %v3741 = vsel %vm1915, %v3532, 0.0
        %v3742 = vadd.f32 %v3740, %v3741
        %v3743 = vsel %vm1915, %v3535, 0.0
        %v3744 = vadd.f32 %v3742, %v3743
        %v3745 = vsel %vm1915, %v3540, 0.0
        %v3746 = vadd.f32 %v3744, %v3745
        %v3747 = vsel %vm1915, %v3543, 0.0
        %v3748 = vadd.f32 %v3746, %v3747
        %v3749 = vsel %vm1915, %v3548, 0.0
        %v3750 = vadd.f32 %v3748, %v3749
        %v3751 = vsel %vm1915, %v3551, 0.0
        %v3752 = vadd.f32 %v3750, %v3751
        %v3753 = vsel %vm1915, %v3556, 0.0
        %v3754 = vadd.f32 %v3752, %v3753
        %v3755 = vsel %vm1915, %v3559, 0.0
        %v3756 = vadd.f32 %v3754, %v3755
        %v3757 = vsel %vm1915, %v3564, 0.0
        %v3758 = vadd.f32 %v3756, %v3757
        %v3759 = vsel %vm1915, %v3567, 0.0
        %v3760 = vadd.f32 %v3758, %v3759
        %v3761 = vsel %vm1915, %v3572, 0.0
        %v3762 = vadd.f32 %v3760, %v3761
        %v3763 = vsel %vm1915, %v3575, 0.0
        %v3764 = vadd.f32 %v3762, %v3763
        %v3765 = vsel %vm1915, %v3580, 0.0
        %v3766 = vadd.f32 %v3764, %v3765
        %v3767 = vsel %vm1915, %v3583, 0.0
        %v3768 = vadd.f32 %v3766, %v3767
        %v3769 = vsel %vm1915, %v3588, 0.0
        %v3770 = vadd.f32 %v3768, %v3769
        %v3771 = vsel %vm1915, %v3591, 0.0
        %v3772 = vadd.f32 %v3770, %v3771
        %v3773 = vsel %vm1915, %v3596, 0.0
        %v3774 = vadd.f32 %v3772, %v3773
        %v3775 = vsel %vm1915, %v3599, 0.0
        %v3776 = vadd.f32 %v3774, %v3775
        %v3777 = vsel %vm1915, %v3604, 0.0
        %v3778 = vadd.f32 %v3776, %v3777
        %v3779 = vsel %vm1915, %v3607, 0.0
        %v3780 = vadd.f32 %v3778, %v3779
        %v3781 = vsel %vm1915, %v3612, 0.0
        %v3782 = vadd.f32 %v3780, %v3781
        %v3783 = vsel %vm1915, %v3615, 0.0
        %v3784 = vadd.f32 %v3782, %v3783
        %v3785 = vsel %vm1915, %v3620, 0.0
        %v3786 = vadd.f32 %v3784, %v3785
        %v3787 = vsel %vm1915, %v3623, 0.0
        %v3788 = vadd.f32 %v3786, %v3787
        %v3789 = vsel %vm1915, %v3628, 0.0
        %v3790 = vadd.f32 %v3788, %v3789
        %v3791 = vsel %vm1915, %v3631, 0.0
        %v3792 = vadd.f32 %v3790, %v3791
        %v3793 = vsel %vm1915, %v3636, 0.0
        %v3794 = vadd.f32 %v3792, %v3793
        %v3795 = vsel %vm1915, %v3639, 0.0
        %v3796 = vadd.f32 %v3794, %v3795
        %v3797 = vsel %vm1915, %v3644, 0.0
        %v3798 = vadd.f32 %v3796, %v3797
        %v3799 = vsel %vm1915, %v3647, 0.0
        %v3800 = vadd.f32 %v3798, %v3799
        %v3801 = vsel %vm1915, %v3652, 0.0
        %v3802 = vadd.f32 %v3800, %v3801
        %v3803 = vsel %vm1915, %v3655, 0.0
        %v3804 = vadd.f32 %v3802, %v3803
        %v3805 = vsel %vm1915, %v3660, 0.0
        %v3806 = vadd.f32 %v3804, %v3805
        %v3807 = vsel %vm1915, %v3663, 0.0
        %v3808 = vadd.f32 %v3806, %v3807
        %v3809 = vsel %vm1915, %v3668, 0.0
        %v3810 = vadd.f32 %v3808, %v3809
        %v3811 = vsel %vm1915, %v3671, 0.0
        %v3812 = vadd.f32 %v3810, %v3811
        %v3813 = vsel %vm1915, %v3676, 0.0
        %v3814 = vadd.f32 %v3812, %v3813
        %v3815 = vsel %vm1915, %v3679, 0.0
        %v3816 = vadd.f32 %v3814, %v3815
        %v3817 = vsel %vm1915, %v3684, 0.0
        %v3818 = vadd.f32 %v3816, %v3817
        %v3819 = vsel %vm1915, %v3687, 0.0
        %v3820 = vadd.f32 %v3818, %v3819
        %v3821 = vsel %vm1915, %v3692, 0.0
        %v3822 = vadd.f32 %v3820, %v3821
        %v3823 = vsel %vm1915, %v3695, 0.0
        %v3824 = vadd.f32 %v3822, %v3823
        %v3825 = vrot.slane %v3824, 4
        %v3826 = vadd.f32 %v3824, %v3825
        %v3827 = vrot.slane %v3826, 2
        %v3828 = vadd.f32 %v3826, %v3827
        %v3829 = vrot.slane %v3828, 1
        %v3830 = vadd.f32 %v3828, %v3829
        %v3831 = vadd.f32 %v2049, %v3830
        %v3832 = vmul.f32 %v3444, %v3444
        %v3833 = vmul.f32 %v3447, %v3447
        %v3834 = vmul.f32 %v3452, %v3452
        %v3835 = vmul.f32 %v3455, %v3455
        %v3836 = vmul.f32 %v3460, %v3460
        %v3837 = vmul.f32 %v3463, %v3463
        %v3838 = vmul.f32 %v3468, %v3468
        %v3839 = vmul.f32 %v3471, %v3471
        %v3840 = vmul.f32 %v3476, %v3476
        %v3841 = vmul.f32 %v3479, %v3479
        %v3842 = vmul.f32 %v3484, %v3484
        %v3843 = vmul.f32 %v3487, %v3487
        %v3844 = vmul.f32 %v3492, %v3492
        %v3845 = vmul.f32 %v3495, %v3495
        %v3846 = vmul.f32 %v3500, %v3500
        %v3847 = vmul.f32 %v3503, %v3503
        %v3848 = vmul.f32 %v3508, %v3508
        %v3849 = vmul.f32 %v3511, %v3511
        %v3850 = vmul.f32 %v3516, %v3516
        %v3851 = vmul.f32 %v3519, %v3519
        %v3852 = vmul.f32 %v3524, %v3524
        %v3853 = vmul.f32 %v3527, %v3527
        %v3854 = vmul.f32 %v3532, %v3532
        %v3855 = vmul.f32 %v3535, %v3535
        %v3856 = vmul.f32 %v3540, %v3540
        %v3857 = vmul.f32 %v3543, %v3543
        %v3858 = vmul.f32 %v3548, %v3548
        %v3859 = vmul.f32 %v3551, %v3551
        %v3860 = vmul.f32 %v3556, %v3556
        %v3861 = vmul.f32 %v3559, %v3559
        %v3862 = vmul.f32 %v3564, %v3564
        %v3863 = vmul.f32 %v3567, %v3567
        %v3864 = vmul.f32 %v3572, %v3572
        %v3865 = vmul.f32 %v3575, %v3575
        %v3866 = vmul.f32 %v3580, %v3580
        %v3867 = vmul.f32 %v3583, %v3583
        %v3868 = vmul.f32 %v3588, %v3588
        %v3869 = vmul.f32 %v3591, %v3591
        %v3870 = vmul.f32 %v3596, %v3596
        %v3871 = vmul.f32 %v3599, %v3599
        %v3872 = vmul.f32 %v3604, %v3604
        %v3873 = vmul.f32 %v3607, %v3607
        %v3874 = vmul.f32 %v3612, %v3612
        %v3875 = vmul.f32 %v3615, %v3615
        %v3876 = vmul.f32 %v3620, %v3620
        %v3877 = vmul.f32 %v3623, %v3623
        %v3878 = vmul.f32 %v3628, %v3628
        %v3879 = vmul.f32 %v3631, %v3631
        %v3880 = vmul.f32 %v3636, %v3636
        %v3881 = vmul.f32 %v3639, %v3639
        %v3882 = vmul.f32 %v3644, %v3644
        %v3883 = vmul.f32 %v3647, %v3647
        %v3884 = vmul.f32 %v3652, %v3652
        %v3885 = vmul.f32 %v3655, %v3655
        %v3886 = vmul.f32 %v3660, %v3660
        %v3887 = vmul.f32 %v3663, %v3663
        %v3888 = vmul.f32 %v3668, %v3668
        %v3889 = vmul.f32 %v3671, %v3671
        %v3890 = vmul.f32 %v3676, %v3676
        %v3891 = vmul.f32 %v3679, %v3679
        %v3892 = vmul.f32 %v3684, %v3684
        %v3893 = vmul.f32 %v3687, %v3687
        %v3894 = vmul.f32 %v3692, %v3692
        %v3895 = vmul.f32 %v3695, %v3695
        %v3896 = vsel %vm1915, %v3832, 0.0
        %v3897 = vsel %vm1915, %v3833, 0.0
        %v3898 = vadd.f32 %v3896, %v3897
        %v3899 = vsel %vm1915, %v3834, 0.0
        %v3900 = vadd.f32 %v3898, %v3899
        %v3901 = vsel %vm1915, %v3835, 0.0
        %v3902 = vadd.f32 %v3900, %v3901
        %v3903 = vsel %vm1915, %v3836, 0.0
        %v3904 = vadd.f32 %v3902, %v3903
        %v3905 = vsel %vm1915, %v3837, 0.0
        %v3906 = vadd.f32 %v3904, %v3905
        %v3907 = vsel %vm1915, %v3838, 0.0
        %v3908 = vadd.f32 %v3906, %v3907
        %v3909 = vsel %vm1915, %v3839, 0.0
        %v3910 = vadd.f32 %v3908, %v3909
        %v3911 = vsel %vm1915, %v3840, 0.0
        %v3912 = vadd.f32 %v3910, %v3911
        %v3913 = vsel %vm1915, %v3841, 0.0
        %v3914 = vadd.f32 %v3912, %v3913
        %v3915 = vsel %vm1915, %v3842, 0.0
        %v3916 = vadd.f32 %v3914, %v3915
        %v3917 = vsel %vm1915, %v3843, 0.0
        %v3918 = vadd.f32 %v3916, %v3917
        %v3919 = vsel %vm1915, %v3844, 0.0
        %v3920 = vadd.f32 %v3918, %v3919
        %v3921 = vsel %vm1915, %v3845, 0.0
        %v3922 = vadd.f32 %v3920, %v3921
        %v3923 = vsel %vm1915, %v3846, 0.0
        %v3924 = vadd.f32 %v3922, %v3923
        %v3925 = vsel %vm1915, %v3847, 0.0
        %v3926 = vadd.f32 %v3924, %v3925
        %v3927 = vsel %vm1915, %v3848, 0.0
        %v3928 = vadd.f32 %v3926, %v3927
        %v3929 = vsel %vm1915, %v3849, 0.0
        %v3930 = vadd.f32 %v3928, %v3929
        %v3931 = vsel %vm1915, %v3850, 0.0
        %v3932 = vadd.f32 %v3930, %v3931
        %v3933 = vsel %vm1915, %v3851, 0.0
        %v3934 = vadd.f32 %v3932, %v3933
        %v3935 = vsel %vm1915, %v3852, 0.0
        %v3936 = vadd.f32 %v3934, %v3935
        %v3937 = vsel %vm1915, %v3853, 0.0
        %v3938 = vadd.f32 %v3936, %v3937
        %v3939 = vsel %vm1915, %v3854, 0.0
        %v3940 = vadd.f32 %v3938, %v3939
        %v3941 = vsel %vm1915, %v3855, 0.0
        %v3942 = vadd.f32 %v3940, %v3941
        %v3943 = vsel %vm1915, %v3856, 0.0
        %v3944 = vadd.f32 %v3942, %v3943
        %v3945 = vsel %vm1915, %v3857, 0.0
        %v3946 = vadd.f32 %v3944, %v3945
        %v3947 = vsel %vm1915, %v3858, 0.0
        %v3948 = vadd.f32 %v3946, %v3947
        %v3949 = vsel %vm1915, %v3859, 0.0
        %v3950 = vadd.f32 %v3948, %v3949
        %v3951 = vsel %vm1915, %v3860, 0.0
        %v3952 = vadd.f32 %v3950, %v3951
        %v3953 = vsel %vm1915, %v3861, 0.0
        %v3954 = vadd.f32 %v3952, %v3953
        %v3955 = vsel %vm1915, %v3862, 0.0
        %v3956 = vadd.f32 %v3954, %v3955
        %v3957 = vsel %vm1915, %v3863, 0.0
        %v3958 = vadd.f32 %v3956, %v3957
        %v3959 = vsel %vm1915, %v3864, 0.0
        %v3960 = vadd.f32 %v3958, %v3959
        %v3961 = vsel %vm1915, %v3865, 0.0
        %v3962 = vadd.f32 %v3960, %v3961
        %v3963 = vsel %vm1915, %v3866, 0.0
        %v3964 = vadd.f32 %v3962, %v3963
        %v3965 = vsel %vm1915, %v3867, 0.0
        %v3966 = vadd.f32 %v3964, %v3965
        %v3967 = vsel %vm1915, %v3868, 0.0
        %v3968 = vadd.f32 %v3966, %v3967
        %v3969 = vsel %vm1915, %v3869, 0.0
        %v3970 = vadd.f32 %v3968, %v3969
        %v3971 = vsel %vm1915, %v3870, 0.0
        %v3972 = vadd.f32 %v3970, %v3971
        %v3973 = vsel %vm1915, %v3871, 0.0
        %v3974 = vadd.f32 %v3972, %v3973
        %v3975 = vsel %vm1915, %v3872, 0.0
        %v3976 = vadd.f32 %v3974, %v3975
        %v3977 = vsel %vm1915, %v3873, 0.0
        %v3978 = vadd.f32 %v3976, %v3977
        %v3979 = vsel %vm1915, %v3874, 0.0
        %v3980 = vadd.f32 %v3978, %v3979
        %v3981 = vsel %vm1915, %v3875, 0.0
        %v3982 = vadd.f32 %v3980, %v3981
        %v3983 = vsel %vm1915, %v3876, 0.0
        %v3984 = vadd.f32 %v3982, %v3983
        %v3985 = vsel %vm1915, %v3877, 0.0
        %v3986 = vadd.f32 %v3984, %v3985
        %v3987 = vsel %vm1915, %v3878, 0.0
        %v3988 = vadd.f32 %v3986, %v3987
        %v3989 = vsel %vm1915, %v3879, 0.0
        %v3990 = vadd.f32 %v3988, %v3989
        %v3991 = vsel %vm1915, %v3880, 0.0
        %v3992 = vadd.f32 %v3990, %v3991
        %v3993 = vsel %vm1915, %v3881, 0.0
        %v3994 = vadd.f32 %v3992, %v3993
        %v3995 = vsel %vm1915, %v3882, 0.0
        %v3996 = vadd.f32 %v3994, %v3995
        %v3997 = vsel %vm1915, %v3883, 0.0
        %v3998 = vadd.f32 %v3996, %v3997
        %v3999 = vsel %vm1915, %v3884, 0.0
        %v4000 = vadd.f32 %v3998, %v3999
        %v4001 = vsel %vm1915, %v3885, 0.0
        %v4002 = vadd.f32 %v4000, %v4001
        %v4003 = vsel %vm1915, %v3886, 0.0
        %v4004 = vadd.f32 %v4002, %v4003
        %v4005 = vsel %vm1915, %v3887, 0.0
        %v4006 = vadd.f32 %v4004, %v4005
        %v4007 = vsel %vm1915, %v3888, 0.0
        %v4008 = vadd.f32 %v4006, %v4007
        %v4009 = vsel %vm1915, %v3889, 0.0
        %v4010 = vadd.f32 %v4008, %v4009
        %v4011 = vsel %vm1915, %v3890, 0.0
        %v4012 = vadd.f32 %v4010, %v4011
        %v4013 = vsel %vm1915, %v3891, 0.0
        %v4014 = vadd.f32 %v4012, %v4013
        %v4015 = vsel %vm1915, %v3892, 0.0
        %v4016 = vadd.f32 %v4014, %v4015
        %v4017 = vsel %vm1915, %v3893, 0.0
        %v4018 = vadd.f32 %v4016, %v4017
        %v4019 = vsel %vm1915, %v3894, 0.0
        %v4020 = vadd.f32 %v4018, %v4019
        %v4021 = vsel %vm1915, %v3895, 0.0
        %v4022 = vadd.f32 %v4020, %v4021
        %v4023 = vrot.slane %v4022, 4
        %v4024 = vadd.f32 %v4022, %v4023
        %v4025 = vrot.slane %v4024, 2
        %v4026 = vadd.f32 %v4024, %v4025
        %v4027 = vrot.slane %v4026, 1
        %v4028 = vadd.f32 %v4026, %v4027
        %v4029 = vadd.f32 %v2247, %v4028
        %s4030 = scalar_lea.vmem %s0, 48
        %v4031 = vld [vmem:[%s4030] sm:$0xff]
        %v4032 = vld [vmem:[%s4030 + $0x8] sm:$0xff]
        %v4033 = vld [vmem:[%s4030 + $0x18] sm:$0xff]
        %v4034 = vld [vmem:[%s4030 + $0x20] sm:$0xff]
        %v4035 = vld [vmem:[%s4030 + $0x30] sm:$0xff]
        %v4036 = vld [vmem:[%s4030 + $0x38] sm:$0xff]
        %v4037 = vld [vmem:[%s4030 + $0x48] sm:$0xff]
        %v4038 = vld [vmem:[%s4030 + $0x50] sm:$0xff]
        %v4039 = vld [vmem:[%s4030 + $0x60] sm:$0xff]
        %v4040 = vld [vmem:[%s4030 + $0x68] sm:$0xff]
        %v4041 = vld [vmem:[%s4030 + $0x78] sm:$0xff]
        %v4042 = vld [vmem:[%s4030 + $0x80] sm:$0xff]
        %v4043 = vld [vmem:[%s4030 + $0x90] sm:$0xff]
        %v4044 = vld [vmem:[%s4030 + $0x98] sm:$0xff]
        %v4045 = vld [vmem:[%s4030 + $0xa8] sm:$0xff]
        %v4046 = vld [vmem:[%s4030 + $0xb0] sm:$0xff]
        %v4047 = vld [vmem:[%s4030 + $0xc0] sm:$0xff]
        %v4048 = vld [vmem:[%s4030 + $0xc8] sm:$0xff]
        %v4049 = vld [vmem:[%s4030 + $0xd8] sm:$0xff]
        %v4050 = vld [vmem:[%s4030 + $0xe0] sm:$0xff]
        %v4051 = vld [vmem:[%s4030 + $0xf0] sm:$0xff]
        %v4052 = vld [vmem:[%s4030 + $0xf8] sm:$0xff]
        %v4053 = vld [vmem:[%s4030 + $0x108] sm:$0xff]
        %v4054 = vld [vmem:[%s4030 + $0x110] sm:$0xff]
        %v4055 = vld [vmem:[%s4030 + $0x120] sm:$0xff]
        %v4056 = vld [vmem:[%s4030 + $0x128] sm:$0xff]
        %v4057 = vld [vmem:[%s4030 + $0x138] sm:$0xff]
        %v4058 = vld [vmem:[%s4030 + $0x140] sm:$0xff]
        %v4059 = vld [vmem:[%s4030 + $0x150] sm:$0xff]
        %v4060 = vld [vmem:[%s4030 + $0x158] sm:$0xff]
        %v4061 = vld [vmem:[%s4030 + $0x168] sm:$0xff]
        %v4062 = vld [vmem:[%s4030 + $0x170] sm:$0xff]
        %v4063 = vld [vmem:[%s4030 + $0x1b0] sm:$0xff]
        %v4064 = vld [vmem:[%s4030 + $0x1b8] sm:$0xff]
        %v4065 = vld [vmem:[%s4030 + $0x1c8] sm:$0xff]
        %v4066 = vld [vmem:[%s4030 + $0x1d0] sm:$0xff]
        %v4067 = vld [vmem:[%s4030 + $0x1e0] sm:$0xff]
        %v4068 = vld [vmem:[%s4030 + $0x1e8] sm:$0xff]
        %v4069 = vld [vmem:[%s4030 + $0x1f8] sm:$0xff]
        %v4070 = vld [vmem:[%s4030 + $0x200] sm:$0xff]
        %v4071 = vld [vmem:[%s4030 + $0x210] sm:$0xff]
        %v4072 = vld [vmem:[%s4030 + $0x218] sm:$0xff]
        %v4073 = vld [vmem:[%s4030 + $0x228] sm:$0xff]
        %v4074 = vld [vmem:[%s4030 + $0x230] sm:$0xff]
        %v4075 = vld [vmem:[%s4030 + $0x240] sm:$0xff]
        %v4076 = vld [vmem:[%s4030 + $0x248] sm:$0xff]
        %v4077 = vld [vmem:[%s4030 + $0x258] sm:$0xff]
        %v4078 = vld [vmem:[%s4030 + $0x260] sm:$0xff]
        %v4079 = vld [vmem:[%s4030 + $0x270] sm:$0xff]
        %v4080 = vld [vmem:[%s4030 + $0x278] sm:$0xff]
        %v4081 = vld [vmem:[%s4030 + $0x288] sm:$0xff]
        %v4082 = vld [vmem:[%s4030 + $0x290] sm:$0xff]
        %v4083 = vld [vmem:[%s4030 + $0x2a0] sm:$0xff]
        %v4084 = vld [vmem:[%s4030 + $0x2a8] sm:$0xff]
        %v4085 = vld [vmem:[%s4030 + $0x2b8] sm:$0xff]
        %v4086 = vld [vmem:[%s4030 + $0x2c0] sm:$0xff]
        %v4087 = vld [vmem:[%s4030 + $0x2d0] sm:$0xff]
        %v4088 = vld [vmem:[%s4030 + $0x2d8] sm:$0xff]
        %v4089 = vld [vmem:[%s4030 + $0x2e8] sm:$0xff]
        %v4090 = vld [vmem:[%s4030 + $0x2f0] sm:$0xff]
        %v4091 = vld [vmem:[%s4030 + $0x300] sm:$0xff]
        %v4092 = vld [vmem:[%s4030 + $0x308] sm:$0xff]
        %v4093 = vld [vmem:[%s4030 + $0x318] sm:$0xff]
        %v4094 = vld [vmem:[%s4030 + $0x320] sm:$0xff]
        %v4095 = vld [vmem:[%s4030 + $0x1] sm:$0xff]
        %v4096 = vld [vmem:[%s4030 + $0x9] sm:$0xff]
        %v4097 = vld [vmem:[%s4030 + $0x19] sm:$0xff]
        %v4098 = vld [vmem:[%s4030 + $0x21] sm:$0xff]
        %v4099 = vld [vmem:[%s4030 + $0x31] sm:$0xff]
        %v4100 = vld [vmem:[%s4030 + $0x39] sm:$0xff]
        %v4101 = vld [vmem:[%s4030 + $0x49] sm:$0xff]
        %v4102 = vld [vmem:[%s4030 + $0x51] sm:$0xff]
        %v4103 = vld [vmem:[%s4030 + $0x61] sm:$0xff]
        %v4104 = vld [vmem:[%s4030 + $0x69] sm:$0xff]
        %v4105 = vld [vmem:[%s4030 + $0x79] sm:$0xff]
        %v4106 = vld [vmem:[%s4030 + $0x81] sm:$0xff]
        %v4107 = vld [vmem:[%s4030 + $0x91] sm:$0xff]
        %v4108 = vld [vmem:[%s4030 + $0x99] sm:$0xff]
        %v4109 = vld [vmem:[%s4030 + $0xa9] sm:$0xff]
        %v4110 = vld [vmem:[%s4030 + $0xb1] sm:$0xff]
        %v4111 = vld [vmem:[%s4030 + $0xc1] sm:$0xff]
        %v4112 = vld [vmem:[%s4030 + $0xc9] sm:$0xff]
        %v4113 = vld [vmem:[%s4030 + $0xd9] sm:$0xff]
        %v4114 = vld [vmem:[%s4030 + $0xe1] sm:$0xff]
        %v4115 = vld [vmem:[%s4030 + $0xf1] sm:$0xff]
        %v4116 = vld [vmem:[%s4030 + $0xf9] sm:$0xff]
        %v4117 = vld [vmem:[%s4030 + $0x109] sm:$0xff]
        %v4118 = vld [vmem:[%s4030 + $0x111] sm:$0xff]
        %v4119 = vld [vmem:[%s4030 + $0x121] sm:$0xff]
        %v4120 = vld [vmem:[%s4030 + $0x129] sm:$0xff]
        %v4121 = vld [vmem:[%s4030 + $0x139] sm:$0xff]
        %v4122 = vld [vmem:[%s4030 + $0x141] sm:$0xff]
        %v4123 = vld [vmem:[%s4030 + $0x151] sm:$0xff]
        %v4124 = vld [vmem:[%s4030 + $0x159] sm:$0xff]
        %v4125 = vld [vmem:[%s4030 + $0x169] sm:$0xff]
        %v4126 = vld [vmem:[%s4030 + $0x171] sm:$0xff]
        %v4127 = vld [vmem:[%s4030 + $0x1b1] sm:$0xff]
        %v4128 = vld [vmem:[%s4030 + $0x1b9] sm:$0xff]
        %v4129 = vld [vmem:[%s4030 + $0x1c9] sm:$0xff]
        %v4130 = vld [vmem:[%s4030 + $0x1d1] sm:$0xff]
        %v4131 = vld [vmem:[%s4030 + $0x1e1] sm:$0xff]
        %v4132 = vld [vmem:[%s4030 + $0x1e9] sm:$0xff]
        %v4133 = vld [vmem:[%s4030 + $0x1f9] sm:$0xff]
        %v4134 = vld [vmem:[%s4030 + $0x201] sm:$0xff]
        %v4135 = vld [vmem:[%s4030 + $0x211] sm:$0xff]
        %v4136 = vld [vmem:[%s4030 + $0x219] sm:$0xff]
        %v4137 = vld [vmem:[%s4030 + $0x229] sm:$0xff]
        %v4138 = vld [vmem:[%s4030 + $0x231] sm:$0xff]
        %v4139 = vld [vmem:[%s4030 + $0x241] sm:$0xff]
        %v4140 = vld [vmem:[%s4030 + $0x249] sm:$0xff]
        %v4141 = vld [vmem:[%s4030 + $0x259] sm:$0xff]
        %v4142 = vld [vmem:[%s4030 + $0x261] sm:$0xff]
        %v4143 = vld [vmem:[%s4030 + $0x271] sm:$0xff]
        %v4144 = vld [vmem:[%s4030 + $0x279] sm:$0xff]
        %v4145 = vld [vmem:[%s4030 + $0x289] sm:$0xff]
        %v4146 = vld [vmem:[%s4030 + $0x291] sm:$0xff]
        %v4147 = vld [vmem:[%s4030 + $0x2a1] sm:$0xff]
        %v4148 = vld [vmem:[%s4030 + $0x2a9] sm:$0xff]
        %v4149 = vld [vmem:[%s4030 + $0x2b9] sm:$0xff]
        %v4150 = vld [vmem:[%s4030 + $0x2c1] sm:$0xff]
        %v4151 = vld [vmem:[%s4030 + $0x2d1] sm:$0xff]
        %v4152 = vld [vmem:[%s4030 + $0x2d9] sm:$0xff]
        %v4153 = vld [vmem:[%s4030 + $0x2e9] sm:$0xff]
        %v4154 = vld [vmem:[%s4030 + $0x2f1] sm:$0xff]
        %v4155 = vld [vmem:[%s4030 + $0x301] sm:$0xff]
        %v4156 = vld [vmem:[%s4030 + $0x309] sm:$0xff]
        %v4157 = vld [vmem:[%s4030 + $0x319] sm:$0xff]
        %v4158 = vld [vmem:[%s4030 + $0x321] sm:$0xff]
        %4159 = vrot.lane.b32.xlu0 %v456, 4
        %v4160 = vpop.permute.xlu0 %4159
        %4161 = vrot.lane.b32.xlu0 %v457, 4
        %v4162 = vpop.permute.xlu0 %4161
        %4163 = vrot.lane.b32.xlu0 %v458, 4
        %v4164 = vpop.permute.xlu0 %4163
        %4165 = vrot.lane.b32.xlu0 %v459, 4
        %v4166 = vpop.permute.xlu0 %4165
        %4167 = vrot.lane.b32.xlu0 %v460, 4
        %v4168 = vpop.permute.xlu0 %4167
        %4169 = vrot.lane.b32.xlu0 %v461, 4
        %v4170 = vpop.permute.xlu0 %4169
        %4171 = vrot.lane.b32.xlu0 %v462, 4
        %v4172 = vpop.permute.xlu0 %4171
        %4173 = vrot.lane.b32.xlu0 %v463, 4
        %v4174 = vpop.permute.xlu0 %4173
        %4175 = vrot.lane.b32.xlu0 %v464, 4
        %v4176 = vpop.permute.xlu0 %4175
        %4177 = vrot.lane.b32.xlu0 %v465, 4
        %v4178 = vpop.permute.xlu0 %4177
        %4179 = vrot.lane.b32.xlu0 %v466, 4
        %v4180 = vpop.permute.xlu0 %4179
        %4181 = vrot.lane.b32.xlu0 %v467, 4
        %v4182 = vpop.permute.xlu0 %4181
        %4183 = vrot.lane.b32.xlu0 %v468, 4
        %v4184 = vpop.permute.xlu0 %4183
        %4185 = vrot.lane.b32.xlu0 %v469, 4
        %v4186 = vpop.permute.xlu0 %4185
        %4187 = vrot.lane.b32.xlu0 %v470, 4
        %v4188 = vpop.permute.xlu0 %4187
        %4189 = vrot.lane.b32.xlu0 %v471, 4
        %v4190 = vpop.permute.xlu0 %4189
        %4191 = vrot.lane.b32.xlu0 %v472, 4
        %v4192 = vpop.permute.xlu0 %4191
        %4193 = vrot.lane.b32.xlu0 %v473, 4
        %v4194 = vpop.permute.xlu0 %4193
        %4195 = vrot.lane.b32.xlu0 %v474, 4
        %v4196 = vpop.permute.xlu0 %4195
        %4197 = vrot.lane.b32.xlu0 %v475, 4
        %v4198 = vpop.permute.xlu0 %4197
        %4199 = vrot.lane.b32.xlu0 %v476, 4
        %v4200 = vpop.permute.xlu0 %4199
        %4201 = vrot.lane.b32.xlu0 %v477, 4
        %v4202 = vpop.permute.xlu0 %4201
        %4203 = vrot.lane.b32.xlu0 %v478, 4
        %v4204 = vpop.permute.xlu0 %4203
        %4205 = vrot.lane.b32.xlu0 %v479, 4
        %v4206 = vpop.permute.xlu0 %4205
        %4207 = vrot.lane.b32.xlu0 %v480, 4
        %v4208 = vpop.permute.xlu0 %4207
        %4209 = vrot.lane.b32.xlu0 %v481, 4
        %v4210 = vpop.permute.xlu0 %4209
        %4211 = vrot.lane.b32.xlu0 %v482, 4
        %v4212 = vpop.permute.xlu0 %4211
        %4213 = vrot.lane.b32.xlu0 %v483, 4
        %v4214 = vpop.permute.xlu0 %4213
        %4215 = vrot.lane.b32.xlu0 %v484, 4
        %v4216 = vpop.permute.xlu0 %4215
        %4217 = vrot.lane.b32.xlu0 %v485, 4
        %v4218 = vpop.permute.xlu0 %4217
        %4219 = vrot.lane.b32.xlu0 %v486, 4
        %v4220 = vpop.permute.xlu0 %4219
        %4221 = vrot.lane.b32.xlu0 %v487, 4
        %v4222 = vpop.permute.xlu0 %4221
        %4223 = vrot.lane.b32.xlu0 %v488, 4
        %v4224 = vpop.permute.xlu0 %4223
        %4225 = vrot.lane.b32.xlu0 %v489, 4
        %v4226 = vpop.permute.xlu0 %4225
        %4227 = vrot.lane.b32.xlu0 %v490, 4
        %v4228 = vpop.permute.xlu0 %4227
        %4229 = vrot.lane.b32.xlu0 %v491, 4
        %v4230 = vpop.permute.xlu0 %4229
        %4231 = vrot.lane.b32.xlu0 %v492, 4
        %v4232 = vpop.permute.xlu0 %4231
        %4233 = vrot.lane.b32.xlu0 %v493, 4
        %v4234 = vpop.permute.xlu0 %4233
        %4235 = vrot.lane.b32.xlu0 %v494, 4
        %v4236 = vpop.permute.xlu0 %4235
        %4237 = vrot.lane.b32.xlu0 %v495, 4
        %v4238 = vpop.permute.xlu0 %4237
        %4239 = vrot.lane.b32.xlu0 %v496, 4
        %v4240 = vpop.permute.xlu0 %4239
        %4241 = vrot.lane.b32.xlu0 %v497, 4
        %v4242 = vpop.permute.xlu0 %4241
        %4243 = vrot.lane.b32.xlu0 %v498, 4
        %v4244 = vpop.permute.xlu0 %4243
        %4245 = vrot.lane.b32.xlu0 %v499, 4
        %v4246 = vpop.permute.xlu0 %4245
        %4247 = vrot.lane.b32.xlu0 %v500, 4
        %v4248 = vpop.permute.xlu0 %4247
        %4249 = vrot.lane.b32.xlu0 %v501, 4
        %v4250 = vpop.permute.xlu0 %4249
        %4251 = vrot.lane.b32.xlu0 %v502, 4
        %v4252 = vpop.permute.xlu0 %4251
        %4253 = vrot.lane.b32.xlu0 %v503, 4
        %v4254 = vpop.permute.xlu0 %4253
        %4255 = vrot.lane.b32.xlu0 %v504, 4
        %v4256 = vpop.permute.xlu0 %4255
        %4257 = vrot.lane.b32.xlu0 %v505, 4
        %v4258 = vpop.permute.xlu0 %4257
        %4259 = vrot.lane.b32.xlu0 %v506, 4
        %v4260 = vpop.permute.xlu0 %4259
        %4261 = vrot.lane.b32.xlu0 %v507, 4
        %v4262 = vpop.permute.xlu0 %4261
        %4263 = vrot.lane.b32.xlu0 %v508, 4
        %v4264 = vpop.permute.xlu0 %4263
        %4265 = vrot.lane.b32.xlu0 %v509, 4
        %v4266 = vpop.permute.xlu0 %4265
        %4267 = vrot.lane.b32.xlu0 %v510, 4
        %v4268 = vpop.permute.xlu0 %4267
        %4269 = vrot.lane.b32.xlu0 %v511, 4
        %v4270 = vpop.permute.xlu0 %4269
        %4271 = vrot.lane.b32.xlu0 %v512, 4
        %v4272 = vpop.permute.xlu0 %4271
        %4273 = vrot.lane.b32.xlu0 %v513, 4
        %v4274 = vpop.permute.xlu0 %4273
        %4275 = vrot.lane.b32.xlu0 %v514, 4
        %v4276 = vpop.permute.xlu0 %4275
        %4277 = vrot.lane.b32.xlu0 %v515, 4
        %v4278 = vpop.permute.xlu0 %4277
        %4279 = vrot.lane.b32.xlu0 %v516, 4
        %v4280 = vpop.permute.xlu0 %4279
        %4281 = vrot.lane.b32.xlu0 %v517, 4
        %v4282 = vpop.permute.xlu0 %4281
        %4283 = vrot.lane.b32.xlu0 %v518, 4
        %v4284 = vpop.permute.xlu0 %4283
        %4285 = vrot.lane.b32.xlu0 %v519, 4
        %v4286 = vpop.permute.xlu0 %4285
        %4415 = vrot.lane.b32.xlu0 %v4031, 8
        %v4416 = vpop.permute.xlu0 %4415
        %4417 = vrot.lane.b32.xlu0 %v4032, 8
        %v4418 = vpop.permute.xlu0 %4417
        %4419 = vrot.lane.b32.xlu0 %v4033, 8
        %v4420 = vpop.permute.xlu0 %4419
        %4421 = vrot.lane.b32.xlu0 %v4034, 8
        %v4422 = vpop.permute.xlu0 %4421
        %4423 = vrot.lane.b32.xlu0 %v4035, 8
        %v4424 = vpop.permute.xlu0 %4423
        %4425 = vrot.lane.b32.xlu0 %v4036, 8
        %v4426 = vpop.permute.xlu0 %4425
        %4427 = vrot.lane.b32.xlu0 %v4037, 8
        %v4428 = vpop.permute.xlu0 %4427
        %4429 = vrot.lane.b32.xlu0 %v4038, 8
        %v4430 = vpop.permute.xlu0 %4429
        %4431 = vrot.lane.b32.xlu0 %v4039, 8
        %v4432 = vpop.permute.xlu0 %4431
        %4433 = vrot.lane.b32.xlu0 %v4040, 8
        %v4434 = vpop.permute.xlu0 %4433
        %4435 = vrot.lane.b32.xlu0 %v4041, 8
        %v4436 = vpop.permute.xlu0 %4435
        %4437 = vrot.lane.b32.xlu0 %v4042, 8
        %v4438 = vpop.permute.xlu0 %4437
        %4439 = vrot.lane.b32.xlu0 %v4043, 8
        %v4440 = vpop.permute.xlu0 %4439
        %4441 = vrot.lane.b32.xlu0 %v4044, 8
        %v4442 = vpop.permute.xlu0 %4441
        %4443 = vrot.lane.b32.xlu0 %v4045, 8
        %v4444 = vpop.permute.xlu0 %4443
        %4445 = vrot.lane.b32.xlu0 %v4046, 8
        %v4446 = vpop.permute.xlu0 %4445
        %4447 = vrot.lane.b32.xlu0 %v4047, 8
        %v4448 = vpop.permute.xlu0 %4447
        %4449 = vrot.lane.b32.xlu0 %v4048, 8
        %v4450 = vpop.permute.xlu0 %4449
        %4451 = vrot.lane.b32.xlu0 %v4049, 8
        %v4452 = vpop.permute.xlu0 %4451
        %4453 = vrot.lane.b32.xlu0 %v4050, 8
        %v4454 = vpop.permute.xlu0 %4453
        %4455 = vrot.lane.b32.xlu0 %v4051, 8
        %v4456 = vpop.permute.xlu0 %4455
        %4457 = vrot.lane.b32.xlu0 %v4052, 8
        %v4458 = vpop.permute.xlu0 %4457
        %4459 = vrot.lane.b32.xlu0 %v4053, 8
        %v4460 = vpop.permute.xlu0 %4459
        %4461 = vrot.lane.b32.xlu0 %v4054, 8
        %v4462 = vpop.permute.xlu0 %4461
        %4463 = vrot.lane.b32.xlu0 %v4055, 8
        %v4464 = vpop.permute.xlu0 %4463
        %4465 = vrot.lane.b32.xlu0 %v4056, 8
        %v4466 = vpop.permute.xlu0 %4465
        %4467 = vrot.lane.b32.xlu0 %v4057, 8
        %v4468 = vpop.permute.xlu0 %4467
        %4469 = vrot.lane.b32.xlu0 %v4058, 8
        %v4470 = vpop.permute.xlu0 %4469
        %4471 = vrot.lane.b32.xlu0 %v4059, 8
        %v4472 = vpop.permute.xlu0 %4471
        %4473 = vrot.lane.b32.xlu0 %v4060, 8
        %v4474 = vpop.permute.xlu0 %4473
        %4475 = vrot.lane.b32.xlu0 %v4061, 8
        %v4476 = vpop.permute.xlu0 %4475
        %4477 = vrot.lane.b32.xlu0 %v4062, 8
        %v4478 = vpop.permute.xlu0 %4477
        %4479 = vrot.lane.b32.xlu0 %v4063, 8
        %v4480 = vpop.permute.xlu0 %4479
        %4481 = vrot.lane.b32.xlu0 %v4064, 8
        %v4482 = vpop.permute.xlu0 %4481
        %4483 = vrot.lane.b32.xlu0 %v4065, 8
        %v4484 = vpop.permute.xlu0 %4483
        %4485 = vrot.lane.b32.xlu0 %v4066, 8
        %v4486 = vpop.permute.xlu0 %4485
        %4487 = vrot.lane.b32.xlu0 %v4067, 8
        %v4488 = vpop.permute.xlu0 %4487
        %4489 = vrot.lane.b32.xlu0 %v4068, 8
        %v4490 = vpop.permute.xlu0 %4489
        %4491 = vrot.lane.b32.xlu0 %v4069, 8
        %v4492 = vpop.permute.xlu0 %4491
        %4493 = vrot.lane.b32.xlu0 %v4070, 8
        %v4494 = vpop.permute.xlu0 %4493
        %4495 = vrot.lane.b32.xlu0 %v4071, 8
        %v4496 = vpop.permute.xlu0 %4495
        %4497 = vrot.lane.b32.xlu0 %v4072, 8
        %v4498 = vpop.permute.xlu0 %4497
        %4499 = vrot.lane.b32.xlu0 %v4073, 8
        %v4500 = vpop.permute.xlu0 %4499
        %4501 = vrot.lane.b32.xlu0 %v4074, 8
        %v4502 = vpop.permute.xlu0 %4501
        %4503 = vrot.lane.b32.xlu0 %v4075, 8
        %v4504 = vpop.permute.xlu0 %4503
        %4505 = vrot.lane.b32.xlu0 %v4076, 8
        %v4506 = vpop.permute.xlu0 %4505
        %4507 = vrot.lane.b32.xlu0 %v4077, 8
        %v4508 = vpop.permute.xlu0 %4507
        %4509 = vrot.lane.b32.xlu0 %v4078, 8
        %v4510 = vpop.permute.xlu0 %4509
        %4511 = vrot.lane.b32.xlu0 %v4079, 8
        %v4512 = vpop.permute.xlu0 %4511
        %4513 = vrot.lane.b32.xlu0 %v4080, 8
        %v4514 = vpop.permute.xlu0 %4513
        %4515 = vrot.lane.b32.xlu0 %v4081, 8
        %v4516 = vpop.permute.xlu0 %4515
        %4517 = vrot.lane.b32.xlu0 %v4082, 8
        %v4518 = vpop.permute.xlu0 %4517
        %4519 = vrot.lane.b32.xlu0 %v4083, 8
        %v4520 = vpop.permute.xlu0 %4519
        %4521 = vrot.lane.b32.xlu0 %v4084, 8
        %v4522 = vpop.permute.xlu0 %4521
        %4523 = vrot.lane.b32.xlu0 %v4085, 8
        %v4524 = vpop.permute.xlu0 %4523
        %4525 = vrot.lane.b32.xlu0 %v4086, 8
        %v4526 = vpop.permute.xlu0 %4525
        %4527 = vrot.lane.b32.xlu0 %v4087, 8
        %v4528 = vpop.permute.xlu0 %4527
        %4529 = vrot.lane.b32.xlu0 %v4088, 8
        %v4530 = vpop.permute.xlu0 %4529
        %4531 = vrot.lane.b32.xlu0 %v4089, 8
        %v4532 = vpop.permute.xlu0 %4531
        %4533 = vrot.lane.b32.xlu0 %v4090, 8
        %v4534 = vpop.permute.xlu0 %4533
        %4535 = vrot.lane.b32.xlu0 %v4091, 8
        %v4536 = vpop.permute.xlu0 %4535
        %4537 = vrot.lane.b32.xlu0 %v4092, 8
        %v4538 = vpop.permute.xlu0 %4537
        %4539 = vrot.lane.b32.xlu0 %v4093, 8
        %v4540 = vpop.permute.xlu0 %4539
        %4541 = vrot.lane.b32.xlu0 %v4094, 8
        %v4542 = vpop.permute.xlu0 %4541
        %4671 = vrot.lane.b32.xlu0 %v4095, 12
        %v4672 = vpop.permute.xlu0 %4671
        %4673 = vrot.lane.b32.xlu0 %v4096, 12
        %v4674 = vpop.permute.xlu0 %4673
        %4675 = vrot.lane.b32.xlu0 %v4097, 12
        %v4676 = vpop.permute.xlu0 %4675
        %4677 = vrot.lane.b32.xlu0 %v4098, 12
        %v4678 = vpop.permute.xlu0 %4677
        %4679 = vrot.lane.b32.xlu0 %v4099, 12
        %v4680 = vpop.permute.xlu0 %4679
        %4681 = vrot.lane.b32.xlu0 %v4100, 12
        %v4682 = vpop.permute.xlu0 %4681
        %4683 = vrot.lane.b32.xlu0 %v4101, 12
        %v4684 = vpop.permute.xlu0 %4683
        %4685 = vrot.lane.b32.xlu0 %v4102, 12
        %v4686 = vpop.permute.xlu0 %4685
        %4687 = vrot.lane.b32.xlu0 %v4103, 12
        %v4688 = vpop.permute.xlu0 %4687
        %4689 = vrot.lane.b32.xlu0 %v4104, 12
        %v4690 = vpop.permute.xlu0 %4689
        %4691 = vrot.lane.b32.xlu0 %v4105, 12
        %v4692 = vpop.permute.xlu0 %4691
        %4693 = vrot.lane.b32.xlu0 %v4106, 12
        %v4694 = vpop.permute.xlu0 %4693
        %4695 = vrot.lane.b32.xlu0 %v4107, 12
        %v4696 = vpop.permute.xlu0 %4695
        %4697 = vrot.lane.b32.xlu0 %v4108, 12
        %v4698 = vpop.permute.xlu0 %4697
        %4699 = vrot.lane.b32.xlu0 %v4109, 12
        %v4700 = vpop.permute.xlu0 %4699
        %4701 = vrot.lane.b32.xlu0 %v4110, 12
        %v4702 = vpop.permute.xlu0 %4701
        %4703 = vrot.lane.b32.xlu0 %v4111, 12
        %v4704 = vpop.permute.xlu0 %4703
        %4705 = vrot.lane.b32.xlu0 %v4112, 12
        %v4706 = vpop.permute.xlu0 %4705
        %4707 = vrot.lane.b32.xlu0 %v4113, 12
        %v4708 = vpop.permute.xlu0 %4707
        %4709 = vrot.lane.b32.xlu0 %v4114, 12
        %v4710 = vpop.permute.xlu0 %4709
        %4711 = vrot.lane.b32.xlu0 %v4115, 12
        %v4712 = vpop.permute.xlu0 %4711
        %4713 = vrot.lane.b32.xlu0 %v4116, 12
        %v4714 = vpop.permute.xlu0 %4713
        %4715 = vrot.lane.b32.xlu0 %v4117, 12
        %v4716 = vpop.permute.xlu0 %4715
        %4717 = vrot.lane.b32.xlu0 %v4118, 12
        %v4718 = vpop.permute.xlu0 %4717
        %4719 = vrot.lane.b32.xlu0 %v4119, 12
        %v4720 = vpop.permute.xlu0 %4719
        %4721 = vrot.lane.b32.xlu0 %v4120, 12
        %v4722 = vpop.permute.xlu0 %4721
        %4723 = vrot.lane.b32.xlu0 %v4121, 12
        %v4724 = vpop.permute.xlu0 %4723
        %4725 = vrot.lane.b32.xlu0 %v4122, 12
        %v4726 = vpop.permute.xlu0 %4725
        %4727 = vrot.lane.b32.xlu0 %v4123, 12
        %v4728 = vpop.permute.xlu0 %4727
        %4729 = vrot.lane.b32.xlu0 %v4124, 12
        %v4730 = vpop.permute.xlu0 %4729
        %4731 = vrot.lane.b32.xlu0 %v4125, 12
        %v4732 = vpop.permute.xlu0 %4731
        %4733 = vrot.lane.b32.xlu0 %v4126, 12
        %v4734 = vpop.permute.xlu0 %4733
        %4735 = vrot.lane.b32.xlu0 %v4127, 12
        %v4736 = vpop.permute.xlu0 %4735
        %4737 = vrot.lane.b32.xlu0 %v4128, 12
        %v4738 = vpop.permute.xlu0 %4737
        %4739 = vrot.lane.b32.xlu0 %v4129, 12
        %v4740 = vpop.permute.xlu0 %4739
        %4741 = vrot.lane.b32.xlu0 %v4130, 12
        %v4742 = vpop.permute.xlu0 %4741
        %4743 = vrot.lane.b32.xlu0 %v4131, 12
        %v4744 = vpop.permute.xlu0 %4743
        %4745 = vrot.lane.b32.xlu0 %v4132, 12
        %v4746 = vpop.permute.xlu0 %4745
        %4747 = vrot.lane.b32.xlu0 %v4133, 12
        %v4748 = vpop.permute.xlu0 %4747
        %4749 = vrot.lane.b32.xlu0 %v4134, 12
        %v4750 = vpop.permute.xlu0 %4749
        %4751 = vrot.lane.b32.xlu0 %v4135, 12
        %v4752 = vpop.permute.xlu0 %4751
        %4753 = vrot.lane.b32.xlu0 %v4136, 12
        %v4754 = vpop.permute.xlu0 %4753
        %4755 = vrot.lane.b32.xlu0 %v4137, 12
        %v4756 = vpop.permute.xlu0 %4755
        %4757 = vrot.lane.b32.xlu0 %v4138, 12
        %v4758 = vpop.permute.xlu0 %4757
        %4759 = vrot.lane.b32.xlu0 %v4139, 12
        %v4760 = vpop.permute.xlu0 %4759
        %4761 = vrot.lane.b32.xlu0 %v4140, 12
        %v4762 = vpop.permute.xlu0 %4761
        %4763 = vrot.lane.b32.xlu0 %v4141, 12
        %v4764 = vpop.permute.xlu0 %4763
        %4765 = vrot.lane.b32.xlu0 %v4142, 12
        %v4766 = vpop.permute.xlu0 %4765
        %4767 = vrot.lane.b32.xlu0 %v4143, 12
        %v4768 = vpop.permute.xlu0 %4767
        %4769 = vrot.lane.b32.xlu0 %v4144, 12
        %v4770 = vpop.permute.xlu0 %4769
        %4771 = vrot.lane.b32.xlu0 %v4145, 12
        %v4772 = vpop.permute.xlu0 %4771
        %4773 = vrot.lane.b32.xlu0 %v4146, 12
        %v4774 = vpop.permute.xlu0 %4773
        %4775 = vrot.lane.b32.xlu0 %v4147, 12
        %v4776 = vpop.permute.xlu0 %4775
        %4777 = vrot.lane.b32.xlu0 %v4148, 12
        %v4778 = vpop.permute.xlu0 %4777
        %4779 = vrot.lane.b32.xlu0 %v4149, 12
        %v4780 = vpop.permute.xlu0 %4779
        %4781 = vrot.lane.b32.xlu0 %v4150, 12
        %v4782 = vpop.permute.xlu0 %4781
        %4783 = vrot.lane.b32.xlu0 %v4151, 12
        %v4784 = vpop.permute.xlu0 %4783
        %4785 = vrot.lane.b32.xlu0 %v4152, 12
        %v4786 = vpop.permute.xlu0 %4785
        %4787 = vrot.lane.b32.xlu0 %v4153, 12
        %v4788 = vpop.permute.xlu0 %4787
        %4789 = vrot.lane.b32.xlu0 %v4154, 12
        %v4790 = vpop.permute.xlu0 %4789
        %4791 = vrot.lane.b32.xlu0 %v4155, 12
        %v4792 = vpop.permute.xlu0 %4791
        %4793 = vrot.lane.b32.xlu0 %v4156, 12
        %v4794 = vpop.permute.xlu0 %4793
        %4795 = vrot.lane.b32.xlu0 %v4157, 12
        %v4796 = vpop.permute.xlu0 %4795
        %4797 = vrot.lane.b32.xlu0 %v4158, 12
        %v4798 = vpop.permute.xlu0 %4797
        %v4863 = vsel %vm1288, %v392, %v4160
        %v4864 = vsel %vm1288, %v393, %v4162
        %v4865 = vsel %vm1288, %v394, %v4164
        %v4866 = vsel %vm1288, %v395, %v4166
        %v4867 = vsel %vm1288, %v396, %v4168
        %v4868 = vsel %vm1288, %v397, %v4170
        %v4869 = vsel %vm1288, %v398, %v4172
        %v4870 = vsel %vm1288, %v399, %v4174
        %v4871 = vsel %vm1288, %v400, %v4176
        %v4872 = vsel %vm1288, %v401, %v4178
        %v4873 = vsel %vm1288, %v402, %v4180
        %v4874 = vsel %vm1288, %v403, %v4182
        %v4875 = vsel %vm1288, %v404, %v4184
        %v4876 = vsel %vm1288, %v405, %v4186
        %v4877 = vsel %vm1288, %v406, %v4188
        %v4878 = vsel %vm1288, %v407, %v4190
        %v4879 = vsel %vm1288, %v408, %v4192
        %v4880 = vsel %vm1288, %v409, %v4194
        %v4881 = vsel %vm1288, %v410, %v4196
        %v4882 = vsel %vm1288, %v411, %v4198
        %v4883 = vsel %vm1288, %v412, %v4200
        %v4884 = vsel %vm1288, %v413, %v4202
        %v4885 = vsel %vm1288, %v414, %v4204
        %v4886 = vsel %vm1288, %v415, %v4206
        %v4887 = vsel %vm1288, %v416, %v4208
        %v4888 = vsel %vm1288, %v417, %v4210
        %v4889 = vsel %vm1288, %v418, %v4212
        %v4890 = vsel %vm1288, %v419, %v4214
        %v4891 = vsel %vm1288, %v420, %v4216
        %v4892 = vsel %vm1288, %v421, %v4218
        %v4893 = vsel %vm1288, %v422, %v4220
        %v4894 = vsel %vm1288, %v423, %v4222
        %v4895 = vsel %vm1288, %v424, %v4224
        %v4896 = vsel %vm1288, %v425, %v4226
        %v4897 = vsel %vm1288, %v426, %v4228
        %v4898 = vsel %vm1288, %v427, %v4230
        %v4899 = vsel %vm1288, %v428, %v4232
        %v4900 = vsel %vm1288, %v429, %v4234
        %v4901 = vsel %vm1288, %v430, %v4236
        %v4902 = vsel %vm1288, %v431, %v4238
        %v4903 = vsel %vm1288, %v432, %v4240
        %v4904 = vsel %vm1288, %v433, %v4242
        %v4905 = vsel %vm1288, %v434, %v4244
        %v4906 = vsel %vm1288, %v435, %v4246
        %v4907 = vsel %vm1288, %v436, %v4248
        %v4908 = vsel %vm1288, %v437, %v4250
        %v4909 = vsel %vm1288, %v438, %v4252
        %v4910 = vsel %vm1288, %v439, %v4254
        %v4911 = vsel %vm1288, %v440, %v4256
        %v4912 = vsel %vm1288, %v441, %v4258
        %v4913 = vsel %vm1288, %v442, %v4260
        %v4914 = vsel %vm1288, %v443, %v4262
        %v4915 = vsel %vm1288, %v444, %v4264
        %v4916 = vsel %vm1288, %v445, %v4266
        %v4917 = vsel %vm1288, %v446, %v4268
        %v4918 = vsel %vm1288, %v447, %v4270
        %v4919 = vsel %vm1288, %v448, %v4272
        %v4920 = vsel %vm1288, %v449, %v4274
        %v4921 = vsel %vm1288, %v450, %v4276
        %v4922 = vsel %vm1288, %v451, %v4278
        %v4923 = vsel %vm1288, %v452, %v4280
        %v4924 = vsel %vm1288, %v453, %v4282
        %v4925 = vsel %vm1288, %v454, %v4284
        %v4926 = vsel %vm1288, %v455, %v4286
        %v4927 = vsel %vm1353, %v4863, %v4416
        %v4928 = vsel %vm1353, %v4864, %v4418
        %v4929 = vsel %vm1353, %v4865, %v4420
        %v4930 = vsel %vm1353, %v4866, %v4422
        %v4931 = vsel %vm1353, %v4867, %v4424
        %v4932 = vsel %vm1353, %v4868, %v4426
        %v4933 = vsel %vm1353, %v4869, %v4428
        %v4934 = vsel %vm1353, %v4870, %v4430
        %v4935 = vsel %vm1353, %v4871, %v4432
        %v4936 = vsel %vm1353, %v4872, %v4434
        %v4937 = vsel %vm1353, %v4873, %v4436
        %v4938 = vsel %vm1353, %v4874, %v4438
        %v4939 = vsel %vm1353, %v4875, %v4440
        %v4940 = vsel %vm1353, %v4876, %v4442
        %v4941 = vsel %vm1353, %v4877, %v4444
        %v4942 = vsel %vm1353, %v4878, %v4446
        %v4943 = vsel %vm1353, %v4879, %v4448
        %v4944 = vsel %vm1353, %v4880, %v4450
        %v4945 = vsel %vm1353, %v4881, %v4452
        %v4946 = vsel %vm1353, %v4882, %v4454
        %v4947 = vsel %vm1353, %v4883, %v4456
        %v4948 = vsel %vm1353, %v4884, %v4458
        %v4949 = vsel %vm1353, %v4885, %v4460
        %v4950 = vsel %vm1353, %v4886, %v4462
        %v4951 = vsel %vm1353, %v4887, %v4464
        %v4952 = vsel %vm1353, %v4888, %v4466
        %v4953 = vsel %vm1353, %v4889, %v4468
        %v4954 = vsel %vm1353, %v4890, %v4470
        %v4955 = vsel %vm1353, %v4891, %v4472
        %v4956 = vsel %vm1353, %v4892, %v4474
        %v4957 = vsel %vm1353, %v4893, %v4476
        %v4958 = vsel %vm1353, %v4894, %v4478
        %v4959 = vsel %vm1353, %v4895, %v4480
        %v4960 = vsel %vm1353, %v4896, %v4482
        %v4961 = vsel %vm1353, %v4897, %v4484
        %v4962 = vsel %vm1353, %v4898, %v4486
        %v4963 = vsel %vm1353, %v4899, %v4488
        %v4964 = vsel %vm1353, %v4900, %v4490
        %v4965 = vsel %vm1353, %v4901, %v4492
        %v4966 = vsel %vm1353, %v4902, %v4494
        %v4967 = vsel %vm1353, %v4903, %v4496
        %v4968 = vsel %vm1353, %v4904, %v4498
        %v4969 = vsel %vm1353, %v4905, %v4500
        %v4970 = vsel %vm1353, %v4906, %v4502
        %v4971 = vsel %vm1353, %v4907, %v4504
        %v4972 = vsel %vm1353, %v4908, %v4506
        %v4973 = vsel %vm1353, %v4909, %v4508
        %v4974 = vsel %vm1353, %v4910, %v4510
        %v4975 = vsel %vm1353, %v4911, %v4512
        %v4976 = vsel %vm1353, %v4912, %v4514
        %v4977 = vsel %vm1353, %v4913, %v4516
        %v4978 = vsel %vm1353, %v4914, %v4518
        %v4979 = vsel %vm1353, %v4915, %v4520
        %v4980 = vsel %vm1353, %v4916, %v4522
        %v4981 = vsel %vm1353, %v4917, %v4524
        %v4982 = vsel %vm1353, %v4918, %v4526
        %v4983 = vsel %vm1353, %v4919, %v4528
        %v4984 = vsel %vm1353, %v4920, %v4530
        %v4985 = vsel %vm1353, %v4921, %v4532
        %v4986 = vsel %vm1353, %v4922, %v4534
        %v4987 = vsel %vm1353, %v4923, %v4536
        %v4988 = vsel %vm1353, %v4924, %v4538
        %v4989 = vsel %vm1353, %v4925, %v4540
        %v4990 = vsel %vm1353, %v4926, %v4542
        %v4991 = vsel %vm1418, %v4927, %v4672
        %v4992 = vsel %vm1418, %v4928, %v4674
        %v4993 = vsel %vm1418, %v4929, %v4676
        %v4994 = vsel %vm1418, %v4930, %v4678
        %v4995 = vsel %vm1418, %v4931, %v4680
        %v4996 = vsel %vm1418, %v4932, %v4682
        %v4997 = vsel %vm1418, %v4933, %v4684
        %v4998 = vsel %vm1418, %v4934, %v4686
        %v4999 = vsel %vm1418, %v4935, %v4688
        %v5000 = vsel %vm1418, %v4936, %v4690
        %v5001 = vsel %vm1418, %v4937, %v4692
        %v5002 = vsel %vm1418, %v4938, %v4694
        %v5003 = vsel %vm1418, %v4939, %v4696
        %v5004 = vsel %vm1418, %v4940, %v4698
        %v5005 = vsel %vm1418, %v4941, %v4700
        %v5006 = vsel %vm1418, %v4942, %v4702
        %v5007 = vsel %vm1418, %v4943, %v4704
        %v5008 = vsel %vm1418, %v4944, %v4706
        %v5009 = vsel %vm1418, %v4945, %v4708
        %v5010 = vsel %vm1418, %v4946, %v4710
        %v5011 = vsel %vm1418, %v4947, %v4712
        %v5012 = vsel %vm1418, %v4948, %v4714
        %v5013 = vsel %vm1418, %v4949, %v4716
        %v5014 = vsel %vm1418, %v4950, %v4718
        %v5015 = vsel %vm1418, %v4951, %v4720
        %v5016 = vsel %vm1418, %v4952, %v4722
        %v5017 = vsel %vm1418, %v4953, %v4724
        %v5018 = vsel %vm1418, %v4954, %v4726
        %v5019 = vsel %vm1418, %v4955, %v4728
        %v5020 = vsel %vm1418, %v4956, %v4730
        %v5021 = vsel %vm1418, %v4957, %v4732
        %v5022 = vsel %vm1418, %v4958, %v4734
        %v5023 = vsel %vm1418, %v4959, %v4736
        %v5024 = vsel %vm1418, %v4960, %v4738
        %v5025 = vsel %vm1418, %v4961, %v4740
        %v5026 = vsel %vm1418, %v4962, %v4742
        %v5027 = vsel %vm1418, %v4963, %v4744
        %v5028 = vsel %vm1418, %v4964, %v4746
        %v5029 = vsel %vm1418, %v4965, %v4748
        %v5030 = vsel %vm1418, %v4966, %v4750
        %v5031 = vsel %vm1418, %v4967, %v4752
        %v5032 = vsel %vm1418, %v4968, %v4754
        %v5033 = vsel %vm1418, %v4969, %v4756
        %v5034 = vsel %vm1418, %v4970, %v4758
        %v5035 = vsel %vm1418, %v4971, %v4760
        %v5036 = vsel %vm1418, %v4972, %v4762
        %v5037 = vsel %vm1418, %v4973, %v4764
        %v5038 = vsel %vm1418, %v4974, %v4766
        %v5039 = vsel %vm1418, %v4975, %v4768
        %v5040 = vsel %vm1418, %v4976, %v4770
        %v5041 = vsel %vm1418, %v4977, %v4772
        %v5042 = vsel %vm1418, %v4978, %v4774
        %v5043 = vsel %vm1418, %v4979, %v4776
        %v5044 = vsel %vm1418, %v4980, %v4778
        %v5045 = vsel %vm1418, %v4981, %v4780
        %v5046 = vsel %vm1418, %v4982, %v4782
        %v5047 = vsel %vm1418, %v4983, %v4784
        %v5048 = vsel %vm1418, %v4984, %v4786
        %v5049 = vsel %vm1418, %v4985, %v4788
        %v5050 = vsel %vm1418, %v4986, %v4790
        %v5051 = vsel %vm1418, %v4987, %v4792
        %v5052 = vsel %vm1418, %v4988, %v4794
        %v5053 = vsel %vm1418, %v4989, %v4796
        %v5054 = vsel %vm1418, %v4990, %v4798
        %v5055 = vpack.c.bf16 %v4992, %v4991
        %v5056 = vpack.c.bf16 %v4994, %v4993
        %v5057 = vpack.c.bf16 %v4996, %v4995
        %v5058 = vpack.c.bf16 %v4998, %v4997
        %v5059 = vpack.c.bf16 %v5000, %v4999
        %v5060 = vpack.c.bf16 %v5002, %v5001
        %v5061 = vpack.c.bf16 %v5004, %v5003
        %v5062 = vpack.c.bf16 %v5006, %v5005
        %v5063 = vpack.c.bf16 %v5008, %v5007
        %v5064 = vpack.c.bf16 %v5010, %v5009
        %v5065 = vpack.c.bf16 %v5012, %v5011
        %v5066 = vpack.c.bf16 %v5014, %v5013
        %v5067 = vpack.c.bf16 %v5016, %v5015
        %v5068 = vpack.c.bf16 %v5018, %v5017
        %v5069 = vpack.c.bf16 %v5020, %v5019
        %v5070 = vpack.c.bf16 %v5022, %v5021
        %v5071 = vpack.c.bf16 %v5024, %v5023
        %v5072 = vpack.c.bf16 %v5026, %v5025
        %v5073 = vpack.c.bf16 %v5028, %v5027
        %v5074 = vpack.c.bf16 %v5030, %v5029
        %v5075 = vpack.c.bf16 %v5032, %v5031
        %v5076 = vpack.c.bf16 %v5034, %v5033
        %v5077 = vpack.c.bf16 %v5036, %v5035
        %v5078 = vpack.c.bf16 %v5038, %v5037
        %v5079 = vpack.c.bf16 %v5040, %v5039
        %v5080 = vpack.c.bf16 %v5042, %v5041
        %v5081 = vpack.c.bf16 %v5044, %v5043
        %v5082 = vpack.c.bf16 %v5046, %v5045
        %v5083 = vpack.c.bf16 %v5048, %v5047
        %v5084 = vpack.c.bf16 %v5050, %v5049
        %v5085 = vpack.c.bf16 %v5052, %v5051
        %v5086 = vpack.c.bf16 %v5054, %v5053
        %s5087 = scalar_lea.vmem %s251, 16
        %v5088 = vld [vmem:[%s5087] sm:$0xf]
        %v5089 = vld [vmem:[%s5087 + $0x4] sm:$0xf]
        %v5092 = vunpack.c.l.b16 %v5088
        %v5093 = vunpack.c.l.b16 %v5089
        %v5094 = vpack.c.b16 %v5093, %v5092
        %v5097 = vsel %vm1529, %v5055, 0
        %v5100 = vsel %vm1529, %v5056, 0
        %v5103 = vsel %vm1529, %v5057, 0
        %v5106 = vsel %vm1529, %v5058, 0
        %v5109 = vsel %vm1529, %v5059, 0
        %v5112 = vsel %vm1529, %v5060, 0
        %v5115 = vsel %vm1529, %v5061, 0
        %v5118 = vsel %vm1529, %v5062, 0
        %v5121 = vsel %vm1529, %v5063, 0
        %v5124 = vsel %vm1529, %v5064, 0
        %v5127 = vsel %vm1529, %v5065, 0
        %v5130 = vsel %vm1529, %v5066, 0
        %v5133 = vsel %vm1529, %v5067, 0
        %v5136 = vsel %vm1529, %v5068, 0
        %v5139 = vsel %vm1529, %v5069, 0
        %v5142 = vsel %vm1529, %v5070, 0
        %v5145 = vsel %vm1529, %v5071, 0
        %v5148 = vsel %vm1529, %v5072, 0
        %v5151 = vsel %vm1529, %v5073, 0
        %v5154 = vsel %vm1529, %v5074, 0
        %v5157 = vsel %vm1529, %v5075, 0
        %v5160 = vsel %vm1529, %v5076, 0
        %v5163 = vsel %vm1529, %v5077, 0
        %v5166 = vsel %vm1529, %v5078, 0
        %v5169 = vsel %vm1529, %v5079, 0
        %v5172 = vsel %vm1529, %v5080, 0
        %v5175 = vsel %vm1529, %v5081, 0
        %v5178 = vsel %vm1529, %v5082, 0
        %v5181 = vsel %vm1529, %v5083, 0
        %v5184 = vsel %vm1529, %v5084, 0
        %v5187 = vsel %vm1529, %v5085, 0
        %v5190 = vsel %vm1529, %v5086, 0
        %5192 = vmatprep.subr.bf16.mxu0 0
        %5193 = vmatpush1.bf16.msra.mxu0 %v5094
        %5194 = vmatprep.subr.bf16.mxu0 0
        %5195 = vmatpush1.bf16.msra.mxu0 0
        %5196 = vmatprep.subr.bf16.mxu0 0
        %5197 = vmatpush1.bf16.msra.mxu0 0
        %5198 = vmatprep.subr.bf16.mxu0 0
        %5199 = vmatpush1.bf16.msra.mxu0 0
        %5200 = vmatprep.subr.bf16.mxu0 0
        %5201 = vmatpush1.bf16.msra.mxu0 0
        %5202 = vmatprep.subr.bf16.mxu0 0
        %5203 = vmatpush1.bf16.msra.mxu0 0
        %5204 = vmatprep.subr.bf16.mxu0 0
        %5205 = vmatpush1.bf16.msra.mxu0 0
        %5206 = vmatprep.subr.bf16.mxu0 0
        %5207 = vmatpush1.bf16.msra.mxu0 0
        %5208 = vmatprep.subr.bf16.mxu0 0
        %5209 = vmatpush1.bf16.msra.mxu0 0
        %5210 = vmatprep.subr.bf16.mxu0 0
        %5211 = vmatpush1.bf16.msra.mxu0 0
        %5212 = vmatprep.subr.bf16.mxu0 0
        %5213 = vmatpush1.bf16.msra.mxu0 0
        %5214 = vmatprep.subr.bf16.mxu0 0
        %5215 = vmatpush1.bf16.msra.mxu0 0
        %5216 = vmatprep.subr.bf16.mxu0 0
        %5217 = vmatpush1.bf16.msra.mxu0 0
        %5218 = vmatprep.subr.bf16.mxu0 0
        %5219 = vmatpush1.bf16.msra.mxu0 0
        %5220 = vmatprep.subr.bf16.mxu0 0
        %5221 = vmatpush1.bf16.msra.mxu0 0
        %5222 = vmatprep.subr.bf16.mxu0 0
        %5223 = vmatpush1.bf16.msra.mxu0 0
        %5224 = vmatprep.mubr.bf16.mxu0 0
        %5225 = vmatmul.mubr.bf16.gmra.mrb[0].mxu0 %v5097
        %v5226 = vpop.f32.mrb[0].mxu0
        %v5227 = vadd.f32 %v1521, %v5226
        %v5228 = vpop.f32.mrb[0].mxu0
        %v5229 = vpop.f32.mrb[0].mxu0
        %v5230 = vadd.f32 %v1521, %v5229
        %v5231 = vpop.f32.mrb[0].mxu0
        %5232 = vmatprep.mubr.bf16.mxu0 0
        %5233 = vmatmul.mubr.bf16.gmra.mrb[0].mxu0 %v5100
        %v5234 = vpop.f32.mrb[0].mxu0
        %v5235 = vadd.f32 %v1521, %v5234
        %v5236 = vpop.f32.mrb[0].mxu0
        %v5237 = vpop.f32.mrb[0].mxu0
        %v5238 = vadd.f32 %v1521, %v5237
        %v5239 = vpop.f32.mrb[0].mxu0
        %5240 = vmatprep.mubr.bf16.mxu0 0
        %5241 = vmatmul.mubr.bf16.gmra.mrb[0].mxu0 %v5103
        %v5242 = vpop.f32.mrb[0].mxu0
        %v5243 = vadd.f32 %v1521, %v5242
        %v5244 = vpop.f32.mrb[0].mxu0
        %v5245 = vpop.f32.mrb[0].mxu0
        %v5246 = vadd.f32 %v1521, %v5245
        %v5247 = vpop.f32.mrb[0].mxu0
        %5248 = vmatprep.mubr.bf16.mxu0 0
        %5249 = vmatmul.mubr.bf16.gmra.mrb[0].mxu0 %v5106
        %v5250 = vpop.f32.mrb[0].mxu0
        %v5251 = vadd.f32 %v1521, %v5250
        %v5252 = vpop.f32.mrb[0].mxu0
        %v5253 = vpop.f32.mrb[0].mxu0
        %v5254 = vadd.f32 %v1521, %v5253
        %v5255 = vpop.f32.mrb[0].mxu0
        %5256 = vmatprep.mubr.bf16.mxu0 0
        %5257 = vmatmul.mubr.bf16.gmra.mrb[0].mxu0 %v5109
        %v5258 = vpop.f32.mrb[0].mxu0
        %v5259 = vadd.f32 %v1521, %v5258
        %v5260 = vpop.f32.mrb[0].mxu0
        %v5261 = vpop.f32.mrb[0].mxu0
        %v5262 = vadd.f32 %v1521, %v5261
        %v5263 = vpop.f32.mrb[0].mxu0
        %5264 = vmatprep.mubr.bf16.mxu0 0
        %5265 = vmatmul.mubr.bf16.gmra.mrb[0].mxu0 %v5112
        %v5266 = vpop.f32.mrb[0].mxu0
        %v5267 = vadd.f32 %v1521, %v5266
        %v5268 = vpop.f32.mrb[0].mxu0
        %v5269 = vpop.f32.mrb[0].mxu0
        %v5270 = vadd.f32 %v1521, %v5269
        %v5271 = vpop.f32.mrb[0].mxu0
        %5272 = vmatprep.mubr.bf16.mxu0 0
        %5273 = vmatmul.mubr.bf16.gmra.mrb[0].mxu0 %v5115
        %v5274 = vpop.f32.mrb[0].mxu0
        %v5275 = vadd.f32 %v1521, %v5274
        %v5276 = vpop.f32.mrb[0].mxu0
        %v5277 = vpop.f32.mrb[0].mxu0
        %v5278 = vadd.f32 %v1521, %v5277
        %v5279 = vpop.f32.mrb[0].mxu0
        %5280 = vmatprep.mubr.bf16.mxu0 0
        %5281 = vmatmul.mubr.bf16.gmra.mrb[0].mxu0 %v5118
        %v5282 = vpop.f32.mrb[0].mxu0
        %v5283 = vadd.f32 %v1521, %v5282
        %v5284 = vpop.f32.mrb[0].mxu0
        %v5285 = vpop.f32.mrb[0].mxu0
        %v5286 = vadd.f32 %v1521, %v5285
        %v5287 = vpop.f32.mrb[0].mxu0
        %5288 = vmatprep.mubr.bf16.mxu0 0
        %5289 = vmatmul.mubr.bf16.gmra.mrb[0].mxu0 %v5121
        %v5290 = vpop.f32.mrb[0].mxu0
        %v5291 = vadd.f32 %v1521, %v5290
        %v5292 = vpop.f32.mrb[0].mxu0
        %v5293 = vpop.f32.mrb[0].mxu0
        %v5294 = vadd.f32 %v1521, %v5293
        %v5295 = vpop.f32.mrb[0].mxu0
        %5296 = vmatprep.mubr.bf16.mxu0 0
        %5297 = vmatmul.mubr.bf16.gmra.mrb[0].mxu0 %v5124
        %v5298 = vpop.f32.mrb[0].mxu0
        %v5299 = vadd.f32 %v1521, %v5298
        %v5300 = vpop.f32.mrb[0].mxu0
        %v5301 = vpop.f32.mrb[0].mxu0
        %v5302 = vadd.f32 %v1521, %v5301
        %v5303 = vpop.f32.mrb[0].mxu0
        %5304 = vmatprep.mubr.bf16.mxu0 0
        %5305 = vmatmul.mubr.bf16.gmra.mrb[0].mxu0 %v5127
        %v5306 = vpop.f32.mrb[0].mxu0
        %v5307 = vadd.f32 %v1521, %v5306
        %v5308 = vpop.f32.mrb[0].mxu0
        %v5309 = vpop.f32.mrb[0].mxu0
        %v5310 = vadd.f32 %v1521, %v5309
        %v5311 = vpop.f32.mrb[0].mxu0
        %5312 = vmatprep.mubr.bf16.mxu0 0
        %5313 = vmatmul.mubr.bf16.gmra.mrb[0].mxu0 %v5130
        %v5314 = vpop.f32.mrb[0].mxu0
        %v5315 = vadd.f32 %v1521, %v5314
        %v5316 = vpop.f32.mrb[0].mxu0
        %v5317 = vpop.f32.mrb[0].mxu0
        %v5318 = vadd.f32 %v1521, %v5317
        %v5319 = vpop.f32.mrb[0].mxu0
        %5320 = vmatprep.mubr.bf16.mxu0 0
        %5321 = vmatmul.mubr.bf16.gmra.mrb[0].mxu0 %v5133
        %v5322 = vpop.f32.mrb[0].mxu0
        %v5323 = vadd.f32 %v1521, %v5322
        %v5324 = vpop.f32.mrb[0].mxu0
        %v5325 = vpop.f32.mrb[0].mxu0
        %v5326 = vadd.f32 %v1521, %v5325
        %v5327 = vpop.f32.mrb[0].mxu0
        %5328 = vmatprep.mubr.bf16.mxu0 0
        %5329 = vmatmul.mubr.bf16.gmra.mrb[0].mxu0 %v5136
        %v5330 = vpop.f32.mrb[0].mxu0
        %v5331 = vadd.f32 %v1521, %v5330
        %v5332 = vpop.f32.mrb[0].mxu0
        %v5333 = vpop.f32.mrb[0].mxu0
        %v5334 = vadd.f32 %v1521, %v5333
        %v5335 = vpop.f32.mrb[0].mxu0
        %5336 = vmatprep.mubr.bf16.mxu0 0
        %5337 = vmatmul.mubr.bf16.gmra.mrb[0].mxu0 %v5139
        %v5338 = vpop.f32.mrb[0].mxu0
        %v5339 = vadd.f32 %v1521, %v5338
        %v5340 = vpop.f32.mrb[0].mxu0
        %v5341 = vpop.f32.mrb[0].mxu0
        %v5342 = vadd.f32 %v1521, %v5341
        %v5343 = vpop.f32.mrb[0].mxu0
        %5344 = vmatprep.mubr.bf16.mxu0 0
        %5345 = vmatmul.mubr.bf16.gmra.mrb[0].mxu0 %v5142
        %v5346 = vpop.f32.mrb[0].mxu0
        %v5347 = vadd.f32 %v1521, %v5346
        %v5348 = vpop.f32.mrb[0].mxu0
        %v5349 = vpop.f32.mrb[0].mxu0
        %v5350 = vadd.f32 %v1521, %v5349
        %v5351 = vpop.f32.mrb[0].mxu0
        %5352 = vmatprep.mubr.bf16.mxu0 0
        %5353 = vmatmul.mubr.bf16.gmra.mrb[0].mxu0 %v5145
        %v5354 = vpop.f32.mrb[0].mxu0
        %v5355 = vadd.f32 %v1521, %v5354
        %v5356 = vpop.f32.mrb[0].mxu0
        %v5357 = vpop.f32.mrb[0].mxu0
        %v5358 = vadd.f32 %v1521, %v5357
        %v5359 = vpop.f32.mrb[0].mxu0
        %5360 = vmatprep.mubr.bf16.mxu0 0
        %5361 = vmatmul.mubr.bf16.gmra.mrb[0].mxu0 %v5148
        %v5362 = vpop.f32.mrb[0].mxu0
        %v5363 = vadd.f32 %v1521, %v5362
        %v5364 = vpop.f32.mrb[0].mxu0
        %v5365 = vpop.f32.mrb[0].mxu0
        %v5366 = vadd.f32 %v1521, %v5365
        %v5367 = vpop.f32.mrb[0].mxu0
        %5368 = vmatprep.mubr.bf16.mxu0 0
        %5369 = vmatmul.mubr.bf16.gmra.mrb[0].mxu0 %v5151
        %v5370 = vpop.f32.mrb[0].mxu0
        %v5371 = vadd.f32 %v1521, %v5370
        %v5372 = vpop.f32.mrb[0].mxu0
        %v5373 = vpop.f32.mrb[0].mxu0
        %v5374 = vadd.f32 %v1521, %v5373
        %v5375 = vpop.f32.mrb[0].mxu0
        %5376 = vmatprep.mubr.bf16.mxu0 0
        %5377 = vmatmul.mubr.bf16.gmra.mrb[0].mxu0 %v5154
        %v5378 = vpop.f32.mrb[0].mxu0
        %v5379 = vadd.f32 %v1521, %v5378
        %v5380 = vpop.f32.mrb[0].mxu0
        %v5381 = vpop.f32.mrb[0].mxu0
        %v5382 = vadd.f32 %v1521, %v5381
        %v5383 = vpop.f32.mrb[0].mxu0
        %5384 = vmatprep.mubr.bf16.mxu0 0
        %5385 = vmatmul.mubr.bf16.gmra.mrb[0].mxu0 %v5157
        %v5386 = vpop.f32.mrb[0].mxu0
        %v5387 = vadd.f32 %v1521, %v5386
        %v5388 = vpop.f32.mrb[0].mxu0
        %v5389 = vpop.f32.mrb[0].mxu0
        %v5390 = vadd.f32 %v1521, %v5389
        %v5391 = vpop.f32.mrb[0].mxu0
        %5392 = vmatprep.mubr.bf16.mxu0 0
        %5393 = vmatmul.mubr.bf16.gmra.mrb[0].mxu0 %v5160
        %v5394 = vpop.f32.mrb[0].mxu0
        %v5395 = vadd.f32 %v1521, %v5394
        %v5396 = vpop.f32.mrb[0].mxu0
        %v5397 = vpop.f32.mrb[0].mxu0
        %v5398 = vadd.f32 %v1521, %v5397
        %v5399 = vpop.f32.mrb[0].mxu0
        %5400 = vmatprep.mubr.bf16.mxu0 0
        %5401 = vmatmul.mubr.bf16.gmra.mrb[0].mxu0 %v5163
        %v5402 = vpop.f32.mrb[0].mxu0
        %v5403 = vadd.f32 %v1521, %v5402
        %v5404 = vpop.f32.mrb[0].mxu0
        %v5405 = vpop.f32.mrb[0].mxu0
        %v5406 = vadd.f32 %v1521, %v5405
        %v5407 = vpop.f32.mrb[0].mxu0
        %5408 = vmatprep.mubr.bf16.mxu0 0
        %5409 = vmatmul.mubr.bf16.gmra.mrb[0].mxu0 %v5166
        %v5410 = vpop.f32.mrb[0].mxu0
        %v5411 = vadd.f32 %v1521, %v5410
        %v5412 = vpop.f32.mrb[0].mxu0
        %v5413 = vpop.f32.mrb[0].mxu0
        %v5414 = vadd.f32 %v1521, %v5413
        %v5415 = vpop.f32.mrb[0].mxu0
        %5416 = vmatprep.mubr.bf16.mxu0 0
        %5417 = vmatmul.mubr.bf16.gmra.mrb[0].mxu0 %v5169
        %v5418 = vpop.f32.mrb[0].mxu0
        %v5419 = vadd.f32 %v1521, %v5418
        %v5420 = vpop.f32.mrb[0].mxu0
        %v5421 = vpop.f32.mrb[0].mxu0
        %v5422 = vadd.f32 %v1521, %v5421
        %v5423 = vpop.f32.mrb[0].mxu0
        %5424 = vmatprep.mubr.bf16.mxu0 0
        %5425 = vmatmul.mubr.bf16.gmra.mrb[0].mxu0 %v5172
        %v5426 = vpop.f32.mrb[0].mxu0
        %v5427 = vadd.f32 %v1521, %v5426
        %v5428 = vpop.f32.mrb[0].mxu0
        %v5429 = vpop.f32.mrb[0].mxu0
        %v5430 = vadd.f32 %v1521, %v5429
        %v5431 = vpop.f32.mrb[0].mxu0
        %5432 = vmatprep.mubr.bf16.mxu0 0
        %5433 = vmatmul.mubr.bf16.gmra.mrb[0].mxu0 %v5175
        %v5434 = vpop.f32.mrb[0].mxu0
        %v5435 = vadd.f32 %v1521, %v5434
        %v5436 = vpop.f32.mrb[0].mxu0
        %v5437 = vpop.f32.mrb[0].mxu0
        %v5438 = vadd.f32 %v1521, %v5437
        %v5439 = vpop.f32.mrb[0].mxu0
        %5440 = vmatprep.mubr.bf16.mxu0 0
        %5441 = vmatmul.mubr.bf16.gmra.mrb[0].mxu0 %v5178
        %v5442 = vpop.f32.mrb[0].mxu0
        %v5443 = vadd.f32 %v1521, %v5442
        %v5444 = vpop.f32.mrb[0].mxu0
        %v5445 = vpop.f32.mrb[0].mxu0
        %v5446 = vadd.f32 %v1521, %v5445
        %v5447 = vpop.f32.mrb[0].mxu0
        %5448 = vmatprep.mubr.bf16.mxu0 0
        %5449 = vmatmul.mubr.bf16.gmra.mrb[0].mxu0 %v5181
        %v5450 = vpop.f32.mrb[0].mxu0
        %v5451 = vadd.f32 %v1521, %v5450
        %v5452 = vpop.f32.mrb[0].mxu0
        %v5453 = vpop.f32.mrb[0].mxu0
        %v5454 = vadd.f32 %v1521, %v5453
        %v5455 = vpop.f32.mrb[0].mxu0
        %5456 = vmatprep.mubr.bf16.mxu0 0
        %5457 = vmatmul.mubr.bf16.gmra.mrb[0].mxu0 %v5184
        %v5458 = vpop.f32.mrb[0].mxu0
        %v5459 = vadd.f32 %v1521, %v5458
        %v5460 = vpop.f32.mrb[0].mxu0
        %v5461 = vpop.f32.mrb[0].mxu0
        %v5462 = vadd.f32 %v1521, %v5461
        %v5463 = vpop.f32.mrb[0].mxu0
        %5464 = vmatprep.mubr.bf16.mxu0 0
        %5465 = vmatmul.mubr.bf16.gmra.mrb[0].mxu0 %v5187
        %v5466 = vpop.f32.mrb[0].mxu0
        %v5467 = vadd.f32 %v1521, %v5466
        %v5468 = vpop.f32.mrb[0].mxu0
        %v5469 = vpop.f32.mrb[0].mxu0
        %v5470 = vadd.f32 %v1521, %v5469
        %v5471 = vpop.f32.mrb[0].mxu0
        %5472 = vmatprep.mubr.bf16.mxu0 0
        %5473 = vmatmul.mubr.bf16.gmra.mrb[0].mxu0 %v5190
        %v5474 = vpop.f32.mrb[0].mxu0
        %v5475 = vadd.f32 %v1521, %v5474
        %v5476 = vpop.f32.mrb[0].mxu0
        %v5477 = vpop.f32.mrb[0].mxu0
        %v5478 = vadd.f32 %v1521, %v5477
        %v5479 = vpop.f32.mrb[0].mxu0
        %5480 = vdwg.mxu0
        %v5481 = vsel %vm1915, %v5227, 0.0
        %v5482 = vsel %vm1915, %v5230, 0.0
        %v5483 = vadd.f32 %v5481, %v5482
        %v5484 = vsel %vm1915, %v5235, 0.0
        %v5485 = vadd.f32 %v5483, %v5484
        %v5486 = vsel %vm1915, %v5238, 0.0
        %v5487 = vadd.f32 %v5485, %v5486
        %v5488 = vsel %vm1915, %v5243, 0.0
        %v5489 = vadd.f32 %v5487, %v5488
        %v5490 = vsel %vm1915, %v5246, 0.0
        %v5491 = vadd.f32 %v5489, %v5490
        %v5492 = vsel %vm1915, %v5251, 0.0
        %v5493 = vadd.f32 %v5491, %v5492
        %v5494 = vsel %vm1915, %v5254, 0.0
        %v5495 = vadd.f32 %v5493, %v5494
        %v5496 = vsel %vm1915, %v5259, 0.0
        %v5497 = vadd.f32 %v5495, %v5496
        %v5498 = vsel %vm1915, %v5262, 0.0
        %v5499 = vadd.f32 %v5497, %v5498
        %v5500 = vsel %vm1915, %v5267, 0.0
        %v5501 = vadd.f32 %v5499, %v5500
        %v5502 = vsel %vm1915, %v5270, 0.0
        %v5503 = vadd.f32 %v5501, %v5502
        %v5504 = vsel %vm1915, %v5275, 0.0
        %v5505 = vadd.f32 %v5503, %v5504
        %v5506 = vsel %vm1915, %v5278, 0.0
        %v5507 = vadd.f32 %v5505, %v5506
        %v5508 = vsel %vm1915, %v5283, 0.0
        %v5509 = vadd.f32 %v5507, %v5508
        %v5510 = vsel %vm1915, %v5286, 0.0
        %v5511 = vadd.f32 %v5509, %v5510
        %v5512 = vsel %vm1915, %v5291, 0.0
        %v5513 = vadd.f32 %v5511, %v5512
        %v5514 = vsel %vm1915, %v5294, 0.0
        %v5515 = vadd.f32 %v5513, %v5514
        %v5516 = vsel %vm1915, %v5299, 0.0
        %v5517 = vadd.f32 %v5515, %v5516
        %v5518 = vsel %vm1915, %v5302, 0.0
        %v5519 = vadd.f32 %v5517, %v5518
        %v5520 = vsel %vm1915, %v5307, 0.0
        %v5521 = vadd.f32 %v5519, %v5520
        %v5522 = vsel %vm1915, %v5310, 0.0
        %v5523 = vadd.f32 %v5521, %v5522
        %v5524 = vsel %vm1915, %v5315, 0.0
        %v5525 = vadd.f32 %v5523, %v5524
        %v5526 = vsel %vm1915, %v5318, 0.0
        %v5527 = vadd.f32 %v5525, %v5526
        %v5528 = vsel %vm1915, %v5323, 0.0
        %v5529 = vadd.f32 %v5527, %v5528
        %v5530 = vsel %vm1915, %v5326, 0.0
        %v5531 = vadd.f32 %v5529, %v5530
        %v5532 = vsel %vm1915, %v5331, 0.0
        %v5533 = vadd.f32 %v5531, %v5532
        %v5534 = vsel %vm1915, %v5334, 0.0
        %v5535 = vadd.f32 %v5533, %v5534
        %v5536 = vsel %vm1915, %v5339, 0.0
        %v5537 = vadd.f32 %v5535, %v5536
        %v5538 = vsel %vm1915, %v5342, 0.0
        %v5539 = vadd.f32 %v5537, %v5538
        %v5540 = vsel %vm1915, %v5347, 0.0
        %v5541 = vadd.f32 %v5539, %v5540
        %v5542 = vsel %vm1915, %v5350, 0.0
        %v5543 = vadd.f32 %v5541, %v5542
        %v5544 = vsel %vm1915, %v5355, 0.0
        %v5545 = vadd.f32 %v5543, %v5544
        %v5546 = vsel %vm1915, %v5358, 0.0
        %v5547 = vadd.f32 %v5545, %v5546
        %v5548 = vsel %vm1915, %v5363, 0.0
        %v5549 = vadd.f32 %v5547, %v5548
        %v5550 = vsel %vm1915, %v5366, 0.0
        %v5551 = vadd.f32 %v5549, %v5550
        %v5552 = vsel %vm1915, %v5371, 0.0
        %v5553 = vadd.f32 %v5551, %v5552
        %v5554 = vsel %vm1915, %v5374, 0.0
        %v5555 = vadd.f32 %v5553, %v5554
        %v5556 = vsel %vm1915, %v5379, 0.0
        %v5557 = vadd.f32 %v5555, %v5556
        %v5558 = vsel %vm1915, %v5382, 0.0
        %v5559 = vadd.f32 %v5557, %v5558
        %v5560 = vsel %vm1915, %v5387, 0.0
        %v5561 = vadd.f32 %v5559, %v5560
        %v5562 = vsel %vm1915, %v5390, 0.0
        %v5563 = vadd.f32 %v5561, %v5562
        %v5564 = vsel %vm1915, %v5395, 0.0
        %v5565 = vadd.f32 %v5563, %v5564
        %v5566 = vsel %vm1915, %v5398, 0.0
        %v5567 = vadd.f32 %v5565, %v5566
        %v5568 = vsel %vm1915, %v5403, 0.0
        %v5569 = vadd.f32 %v5567, %v5568
        %v5570 = vsel %vm1915, %v5406, 0.0
        %v5571 = vadd.f32 %v5569, %v5570
        %v5572 = vsel %vm1915, %v5411, 0.0
        %v5573 = vadd.f32 %v5571, %v5572
        %v5574 = vsel %vm1915, %v5414, 0.0
        %v5575 = vadd.f32 %v5573, %v5574
        %v5576 = vsel %vm1915, %v5419, 0.0
        %v5577 = vadd.f32 %v5575, %v5576
        %v5578 = vsel %vm1915, %v5422, 0.0
        %v5579 = vadd.f32 %v5577, %v5578
        %v5580 = vsel %vm1915, %v5427, 0.0
        %v5581 = vadd.f32 %v5579, %v5580
        %v5582 = vsel %vm1915, %v5430, 0.0
        %v5583 = vadd.f32 %v5581, %v5582
        %v5584 = vsel %vm1915, %v5435, 0.0
        %v5585 = vadd.f32 %v5583, %v5584
        %v5586 = vsel %vm1915, %v5438, 0.0
        %v5587 = vadd.f32 %v5585, %v5586
        %v5588 = vsel %vm1915, %v5443, 0.0
        %v5589 = vadd.f32 %v5587, %v5588
        %v5590 = vsel %vm1915, %v5446, 0.0
        %v5591 = vadd.f32 %v5589, %v5590
        %v5592 = vsel %vm1915, %v5451, 0.0
        %v5593 = vadd.f32 %v5591, %v5592
        %v5594 = vsel %vm1915, %v5454, 0.0
        %v5595 = vadd.f32 %v5593, %v5594
        %v5596 = vsel %vm1915, %v5459, 0.0
        %v5597 = vadd.f32 %v5595, %v5596
        %v5598 = vsel %vm1915, %v5462, 0.0
        %v5599 = vadd.f32 %v5597, %v5598
        %v5600 = vsel %vm1915, %v5467, 0.0
        %v5601 = vadd.f32 %v5599, %v5600
        %v5602 = vsel %vm1915, %v5470, 0.0
        %v5603 = vadd.f32 %v5601, %v5602
        %v5604 = vsel %vm1915, %v5475, 0.0
        %v5605 = vadd.f32 %v5603, %v5604
        %v5606 = vsel %vm1915, %v5478, 0.0
        %v5607 = vadd.f32 %v5605, %v5606
        %v5608 = vrot.slane %v5607, 4
        %v5609 = vadd.f32 %v5607, %v5608
        %v5610 = vrot.slane %v5609, 2
        %v5611 = vadd.f32 %v5609, %v5610
        %v5612 = vrot.slane %v5611, 1
        %v5613 = vadd.f32 %v5611, %v5612
        %v5614 = vadd.f32 %v3831, %v5613
        %v5615 = vmul.f32 %v5227, %v5227
        %v5616 = vmul.f32 %v5230, %v5230
        %v5617 = vmul.f32 %v5235, %v5235
        %v5618 = vmul.f32 %v5238, %v5238
        %v5619 = vmul.f32 %v5243, %v5243
        %v5620 = vmul.f32 %v5246, %v5246
        %v5621 = vmul.f32 %v5251, %v5251
        %v5622 = vmul.f32 %v5254, %v5254
        %v5623 = vmul.f32 %v5259, %v5259
        %v5624 = vmul.f32 %v5262, %v5262
        %v5625 = vmul.f32 %v5267, %v5267
        %v5626 = vmul.f32 %v5270, %v5270
        %v5627 = vmul.f32 %v5275, %v5275
        %v5628 = vmul.f32 %v5278, %v5278
        %v5629 = vmul.f32 %v5283, %v5283
        %v5630 = vmul.f32 %v5286, %v5286
        %v5631 = vmul.f32 %v5291, %v5291
        %v5632 = vmul.f32 %v5294, %v5294
        %v5633 = vmul.f32 %v5299, %v5299
        %v5634 = vmul.f32 %v5302, %v5302
        %v5635 = vmul.f32 %v5307, %v5307
        %v5636 = vmul.f32 %v5310, %v5310
        %v5637 = vmul.f32 %v5315, %v5315
        %v5638 = vmul.f32 %v5318, %v5318
        %v5639 = vmul.f32 %v5323, %v5323
        %v5640 = vmul.f32 %v5326, %v5326
        %v5641 = vmul.f32 %v5331, %v5331
        %v5642 = vmul.f32 %v5334, %v5334
        %v5643 = vmul.f32 %v5339, %v5339
        %v5644 = vmul.f32 %v5342, %v5342
        %v5645 = vmul.f32 %v5347, %v5347
        %v5646 = vmul.f32 %v5350, %v5350
        %v5647 = vmul.f32 %v5355, %v5355
        %v5648 = vmul.f32 %v5358, %v5358
        %v5649 = vmul.f32 %v5363, %v5363
        %v5650 = vmul.f32 %v5366, %v5366
        %v5651 = vmul.f32 %v5371, %v5371
        %v5652 = vmul.f32 %v5374, %v5374
        %v5653 = vmul.f32 %v5379, %v5379
        %v5654 = vmul.f32 %v5382, %v5382
        %v5655 = vmul.f32 %v5387, %v5387
        %v5656 = vmul.f32 %v5390, %v5390
        %v5657 = vmul.f32 %v5395, %v5395
        %v5658 = vmul.f32 %v5398, %v5398
        %v5659 = vmul.f32 %v5403, %v5403
        %v5660 = vmul.f32 %v5406, %v5406
        %v5661 = vmul.f32 %v5411, %v5411
        %v5662 = vmul.f32 %v5414, %v5414
        %v5663 = vmul.f32 %v5419, %v5419
        %v5664 = vmul.f32 %v5422, %v5422
        %v5665 = vmul.f32 %v5427, %v5427
        %v5666 = vmul.f32 %v5430, %v5430
        %v5667 = vmul.f32 %v5435, %v5435
        %v5668 = vmul.f32 %v5438, %v5438
        %v5669 = vmul.f32 %v5443, %v5443
        %v5670 = vmul.f32 %v5446, %v5446
        %v5671 = vmul.f32 %v5451, %v5451
        %v5672 = vmul.f32 %v5454, %v5454
        %v5673 = vmul.f32 %v5459, %v5459
        %v5674 = vmul.f32 %v5462, %v5462
        %v5675 = vmul.f32 %v5467, %v5467
        %v5676 = vmul.f32 %v5470, %v5470
        %v5677 = vmul.f32 %v5475, %v5475
        %v5678 = vmul.f32 %v5478, %v5478
        %v5679 = vsel %vm1915, %v5615, 0.0
        %v5680 = vsel %vm1915, %v5616, 0.0
        %v5681 = vadd.f32 %v5679, %v5680
        %v5682 = vsel %vm1915, %v5617, 0.0
        %v5683 = vadd.f32 %v5681, %v5682
        %v5684 = vsel %vm1915, %v5618, 0.0
        %v5685 = vadd.f32 %v5683, %v5684
        %v5686 = vsel %vm1915, %v5619, 0.0
        %v5687 = vadd.f32 %v5685, %v5686
        %v5688 = vsel %vm1915, %v5620, 0.0
        %v5689 = vadd.f32 %v5687, %v5688
        %v5690 = vsel %vm1915, %v5621, 0.0
        %v5691 = vadd.f32 %v5689, %v5690
        %v5692 = vsel %vm1915, %v5622, 0.0
        %v5693 = vadd.f32 %v5691, %v5692
        %v5694 = vsel %vm1915, %v5623, 0.0
        %v5695 = vadd.f32 %v5693, %v5694
        %v5696 = vsel %vm1915, %v5624, 0.0
        %v5697 = vadd.f32 %v5695, %v5696
        %v5698 = vsel %vm1915, %v5625, 0.0
        %v5699 = vadd.f32 %v5697, %v5698
        %v5700 = vsel %vm1915, %v5626, 0.0
        %v5701 = vadd.f32 %v5699, %v5700
        %v5702 = vsel %vm1915, %v5627, 0.0
        %v5703 = vadd.f32 %v5701, %v5702
        %v5704 = vsel %vm1915, %v5628, 0.0
        %v5705 = vadd.f32 %v5703, %v5704
        %v5706 = vsel %vm1915, %v5629, 0.0
        %v5707 = vadd.f32 %v5705, %v5706
        %v5708 = vsel %vm1915, %v5630, 0.0
        %v5709 = vadd.f32 %v5707, %v5708
        %v5710 = vsel %vm1915, %v5631, 0.0
        %v5711 = vadd.f32 %v5709, %v5710
        %v5712 = vsel %vm1915, %v5632, 0.0
        %v5713 = vadd.f32 %v5711, %v5712
        %v5714 = vsel %vm1915, %v5633, 0.0
        %v5715 = vadd.f32 %v5713, %v5714
        %v5716 = vsel %vm1915, %v5634, 0.0
        %v5717 = vadd.f32 %v5715, %v5716
        %v5718 = vsel %vm1915, %v5635, 0.0
        %v5719 = vadd.f32 %v5717, %v5718
        %v5720 = vsel %vm1915, %v5636, 0.0
        %v5721 = vadd.f32 %v5719, %v5720
        %v5722 = vsel %vm1915, %v5637, 0.0
        %v5723 = vadd.f32 %v5721, %v5722
        %v5724 = vsel %vm1915, %v5638, 0.0
        %v5725 = vadd.f32 %v5723, %v5724
        %v5726 = vsel %vm1915, %v5639, 0.0
        %v5727 = vadd.f32 %v5725, %v5726
        %v5728 = vsel %vm1915, %v5640, 0.0
        %v5729 = vadd.f32 %v5727, %v5728
        %v5730 = vsel %vm1915, %v5641, 0.0
        %v5731 = vadd.f32 %v5729, %v5730
        %v5732 = vsel %vm1915, %v5642, 0.0
        %v5733 = vadd.f32 %v5731, %v5732
        %v5734 = vsel %vm1915, %v5643, 0.0
        %v5735 = vadd.f32 %v5733, %v5734
        %v5736 = vsel %vm1915, %v5644, 0.0
        %v5737 = vadd.f32 %v5735, %v5736
        %v5738 = vsel %vm1915, %v5645, 0.0
        %v5739 = vadd.f32 %v5737, %v5738
        %v5740 = vsel %vm1915, %v5646, 0.0
        %v5741 = vadd.f32 %v5739, %v5740
        %v5742 = vsel %vm1915, %v5647, 0.0
        %v5743 = vadd.f32 %v5741, %v5742
        %v5744 = vsel %vm1915, %v5648, 0.0
        %v5745 = vadd.f32 %v5743, %v5744
        %v5746 = vsel %vm1915, %v5649, 0.0
        %v5747 = vadd.f32 %v5745, %v5746
        %v5748 = vsel %vm1915, %v5650, 0.0
        %v5749 = vadd.f32 %v5747, %v5748
        %v5750 = vsel %vm1915, %v5651, 0.0
        %v5751 = vadd.f32 %v5749, %v5750
        %v5752 = vsel %vm1915, %v5652, 0.0
        %v5753 = vadd.f32 %v5751, %v5752
        %v5754 = vsel %vm1915, %v5653, 0.0
        %v5755 = vadd.f32 %v5753, %v5754
        %v5756 = vsel %vm1915, %v5654, 0.0
        %v5757 = vadd.f32 %v5755, %v5756
        %v5758 = vsel %vm1915, %v5655, 0.0
        %v5759 = vadd.f32 %v5757, %v5758
        %v5760 = vsel %vm1915, %v5656, 0.0
        %v5761 = vadd.f32 %v5759, %v5760
        %v5762 = vsel %vm1915, %v5657, 0.0
        %v5763 = vadd.f32 %v5761, %v5762
        %v5764 = vsel %vm1915, %v5658, 0.0
        %v5765 = vadd.f32 %v5763, %v5764
        %v5766 = vsel %vm1915, %v5659, 0.0
        %v5767 = vadd.f32 %v5765, %v5766
        %v5768 = vsel %vm1915, %v5660, 0.0
        %v5769 = vadd.f32 %v5767, %v5768
        %v5770 = vsel %vm1915, %v5661, 0.0
        %v5771 = vadd.f32 %v5769, %v5770
        %v5772 = vsel %vm1915, %v5662, 0.0
        %v5773 = vadd.f32 %v5771, %v5772
        %v5774 = vsel %vm1915, %v5663, 0.0
        %v5775 = vadd.f32 %v5773, %v5774
        %v5776 = vsel %vm1915, %v5664, 0.0
        %v5777 = vadd.f32 %v5775, %v5776
        %v5778 = vsel %vm1915, %v5665, 0.0
        %v5779 = vadd.f32 %v5777, %v5778
        %v5780 = vsel %vm1915, %v5666, 0.0
        %v5781 = vadd.f32 %v5779, %v5780
        %v5782 = vsel %vm1915, %v5667, 0.0
        %v5783 = vadd.f32 %v5781, %v5782
        %v5784 = vsel %vm1915, %v5668, 0.0
        %v5785 = vadd.f32 %v5783, %v5784
        %v5786 = vsel %vm1915, %v5669, 0.0
        %v5787 = vadd.f32 %v5785, %v5786
        %v5788 = vsel %vm1915, %v5670, 0.0
        %v5789 = vadd.f32 %v5787, %v5788
        %v5790 = vsel %vm1915, %v5671, 0.0
        %v5791 = vadd.f32 %v5789, %v5790
        %v5792 = vsel %vm1915, %v5672, 0.0
        %v5793 = vadd.f32 %v5791, %v5792
        %v5794 = vsel %vm1915, %v5673, 0.0
        %v5795 = vadd.f32 %v5793, %v5794
        %v5796 = vsel %vm1915, %v5674, 0.0
        %v5797 = vadd.f32 %v5795, %v5796
        %v5798 = vsel %vm1915, %v5675, 0.0
        %v5799 = vadd.f32 %v5797, %v5798
        %v5800 = vsel %vm1915, %v5676, 0.0
        %v5801 = vadd.f32 %v5799, %v5800
        %v5802 = vsel %vm1915, %v5677, 0.0
        %v5803 = vadd.f32 %v5801, %v5802
        %v5804 = vsel %vm1915, %v5678, 0.0
        %v5805 = vadd.f32 %v5803, %v5804
        %v5806 = vrot.slane %v5805, 4
        %v5807 = vadd.f32 %v5805, %v5806
        %v5808 = vrot.slane %v5807, 2
        %v5809 = vadd.f32 %v5807, %v5808
        %v5810 = vrot.slane %v5809, 1
        %v5811 = vadd.f32 %v5809, %v5810
        %v5812 = vadd.f32 %v4029, %v5811
        %v5813 = vld [vmem:[%s4030 + $0x2] sm:$0xff]
        %v5814 = vld [vmem:[%s4030 + $0xa] sm:$0xff]
        %v5815 = vld [vmem:[%s4030 + $0x1a] sm:$0xff]
        %v5816 = vld [vmem:[%s4030 + $0x22] sm:$0xff]
        %v5817 = vld [vmem:[%s4030 + $0x32] sm:$0xff]
        %v5818 = vld [vmem:[%s4030 + $0x3a] sm:$0xff]
        %v5819 = vld [vmem:[%s4030 + $0x4a] sm:$0xff]
        %v5820 = vld [vmem:[%s4030 + $0x52] sm:$0xff]
        %v5821 = vld [vmem:[%s4030 + $0x62] sm:$0xff]
        %v5822 = vld [vmem:[%s4030 + $0x6a] sm:$0xff]
        %v5823 = vld [vmem:[%s4030 + $0x7a] sm:$0xff]
        %v5824 = vld [vmem:[%s4030 + $0x82] sm:$0xff]
        %v5825 = vld [vmem:[%s4030 + $0x92] sm:$0xff]
        %v5826 = vld [vmem:[%s4030 + $0x9a] sm:$0xff]
        %v5827 = vld [vmem:[%s4030 + $0xaa] sm:$0xff]
        %v5828 = vld [vmem:[%s4030 + $0xb2] sm:$0xff]
        %v5829 = vld [vmem:[%s4030 + $0xc2] sm:$0xff]
        %v5830 = vld [vmem:[%s4030 + $0xca] sm:$0xff]
        %v5831 = vld [vmem:[%s4030 + $0xda] sm:$0xff]
        %v5832 = vld [vmem:[%s4030 + $0xe2] sm:$0xff]
        %v5833 = vld [vmem:[%s4030 + $0xf2] sm:$0xff]
        %v5834 = vld [vmem:[%s4030 + $0xfa] sm:$0xff]
        %v5835 = vld [vmem:[%s4030 + $0x10a] sm:$0xff]
        %v5836 = vld [vmem:[%s4030 + $0x112] sm:$0xff]
        %v5837 = vld [vmem:[%s4030 + $0x122] sm:$0xff]
        %v5838 = vld [vmem:[%s4030 + $0x12a] sm:$0xff]
        %v5839 = vld [vmem:[%s4030 + $0x13a] sm:$0xff]
        %v5840 = vld [vmem:[%s4030 + $0x142] sm:$0xff]
        %v5841 = vld [vmem:[%s4030 + $0x152] sm:$0xff]
        %v5842 = vld [vmem:[%s4030 + $0x15a] sm:$0xff]
        %v5843 = vld [vmem:[%s4030 + $0x16a] sm:$0xff]
        %v5844 = vld [vmem:[%s4030 + $0x172] sm:$0xff]
        %v5845 = vld [vmem:[%s4030 + $0x1b2] sm:$0xff]
        %v5846 = vld [vmem:[%s4030 + $0x1ba] sm:$0xff]
        %v5847 = vld [vmem:[%s4030 + $0x1ca] sm:$0xff]
        %v5848 = vld [vmem:[%s4030 + $0x1d2] sm:$0xff]
        %v5849 = vld [vmem:[%s4030 + $0x1e2] sm:$0xff]
        %v5850 = vld [vmem:[%s4030 + $0x1ea] sm:$0xff]
        %v5851 = vld [vmem:[%s4030 + $0x1fa] sm:$0xff]
        %v5852 = vld [vmem:[%s4030 + $0x202] sm:$0xff]
        %v5853 = vld [vmem:[%s4030 + $0x212] sm:$0xff]
        %v5854 = vld [vmem:[%s4030 + $0x21a] sm:$0xff]
        %v5855 = vld [vmem:[%s4030 + $0x22a] sm:$0xff]
        %v5856 = vld [vmem:[%s4030 + $0x232] sm:$0xff]
        %v5857 = vld [vmem:[%s4030 + $0x242] sm:$0xff]
        %v5858 = vld [vmem:[%s4030 + $0x24a] sm:$0xff]
        %v5859 = vld [vmem:[%s4030 + $0x25a] sm:$0xff]
        %v5860 = vld [vmem:[%s4030 + $0x262] sm:$0xff]
        %v5861 = vld [vmem:[%s4030 + $0x272] sm:$0xff]
        %v5862 = vld [vmem:[%s4030 + $0x27a] sm:$0xff]
        %v5863 = vld [vmem:[%s4030 + $0x28a] sm:$0xff]
        %v5864 = vld [vmem:[%s4030 + $0x292] sm:$0xff]
        %v5865 = vld [vmem:[%s4030 + $0x2a2] sm:$0xff]
        %v5866 = vld [vmem:[%s4030 + $0x2aa] sm:$0xff]
        %v5867 = vld [vmem:[%s4030 + $0x2ba] sm:$0xff]
        %v5868 = vld [vmem:[%s4030 + $0x2c2] sm:$0xff]
        %v5869 = vld [vmem:[%s4030 + $0x2d2] sm:$0xff]
        %v5870 = vld [vmem:[%s4030 + $0x2da] sm:$0xff]
        %v5871 = vld [vmem:[%s4030 + $0x2ea] sm:$0xff]
        %v5872 = vld [vmem:[%s4030 + $0x2f2] sm:$0xff]
        %v5873 = vld [vmem:[%s4030 + $0x302] sm:$0xff]
        %v5874 = vld [vmem:[%s4030 + $0x30a] sm:$0xff]
        %v5875 = vld [vmem:[%s4030 + $0x31a] sm:$0xff]
        %v5876 = vld [vmem:[%s4030 + $0x322] sm:$0xff]
        %5877 = vrot.lane.b32.xlu0 %v2312, 4
        %v5878 = vpop.permute.xlu0 %5877
        %5879 = vrot.lane.b32.xlu0 %v2313, 4
        %v5880 = vpop.permute.xlu0 %5879
        %5881 = vrot.lane.b32.xlu0 %v2314, 4
        %v5882 = vpop.permute.xlu0 %5881
        %5883 = vrot.lane.b32.xlu0 %v2315, 4
        %v5884 = vpop.permute.xlu0 %5883
        %5885 = vrot.lane.b32.xlu0 %v2316, 4
        %v5886 = vpop.permute.xlu0 %5885
        %5887 = vrot.lane.b32.xlu0 %v2317, 4
        %v5888 = vpop.permute.xlu0 %5887
        %5889 = vrot.lane.b32.xlu0 %v2318, 4
        %v5890 = vpop.permute.xlu0 %5889
        %5891 = vrot.lane.b32.xlu0 %v2319, 4
        %v5892 = vpop.permute.xlu0 %5891
        %5893 = vrot.lane.b32.xlu0 %v2320, 4
        %v5894 = vpop.permute.xlu0 %5893
        %5895 = vrot.lane.b32.xlu0 %v2321, 4
        %v5896 = vpop.permute.xlu0 %5895
        %5897 = vrot.lane.b32.xlu0 %v2322, 4
        %v5898 = vpop.permute.xlu0 %5897
        %5899 = vrot.lane.b32.xlu0 %v2323, 4
        %v5900 = vpop.permute.xlu0 %5899
        %5901 = vrot.lane.b32.xlu0 %v2324, 4
        %v5902 = vpop.permute.xlu0 %5901
        %5903 = vrot.lane.b32.xlu0 %v2325, 4
        %v5904 = vpop.permute.xlu0 %5903
        %5905 = vrot.lane.b32.xlu0 %v2326, 4
        %v5906 = vpop.permute.xlu0 %5905
        %5907 = vrot.lane.b32.xlu0 %v2327, 4
        %v5908 = vpop.permute.xlu0 %5907
        %5909 = vrot.lane.b32.xlu0 %v2328, 4
        %v5910 = vpop.permute.xlu0 %5909
        %5911 = vrot.lane.b32.xlu0 %v2329, 4
        %v5912 = vpop.permute.xlu0 %5911
        %5913 = vrot.lane.b32.xlu0 %v2330, 4
        %v5914 = vpop.permute.xlu0 %5913
        %5915 = vrot.lane.b32.xlu0 %v2331, 4
        %v5916 = vpop.permute.xlu0 %5915
        %5917 = vrot.lane.b32.xlu0 %v2332, 4
        %v5918 = vpop.permute.xlu0 %5917
        %5919 = vrot.lane.b32.xlu0 %v2333, 4
        %v5920 = vpop.permute.xlu0 %5919
        %5921 = vrot.lane.b32.xlu0 %v2334, 4
        %v5922 = vpop.permute.xlu0 %5921
        %5923 = vrot.lane.b32.xlu0 %v2335, 4
        %v5924 = vpop.permute.xlu0 %5923
        %5925 = vrot.lane.b32.xlu0 %v2336, 4
        %v5926 = vpop.permute.xlu0 %5925
        %5927 = vrot.lane.b32.xlu0 %v2337, 4
        %v5928 = vpop.permute.xlu0 %5927
        %5929 = vrot.lane.b32.xlu0 %v2338, 4
        %v5930 = vpop.permute.xlu0 %5929
        %5931 = vrot.lane.b32.xlu0 %v2339, 4
        %v5932 = vpop.permute.xlu0 %5931
        %5933 = vrot.lane.b32.xlu0 %v2340, 4
        %v5934 = vpop.permute.xlu0 %5933
        %5935 = vrot.lane.b32.xlu0 %v2341, 4
        %v5936 = vpop.permute.xlu0 %5935
        %5937 = vrot.lane.b32.xlu0 %v2342, 4
        %v5938 = vpop.permute.xlu0 %5937
        %5939 = vrot.lane.b32.xlu0 %v2343, 4
        %v5940 = vpop.permute.xlu0 %5939
        %5941 = vrot.lane.b32.xlu0 %v2344, 4
        %v5942 = vpop.permute.xlu0 %5941
        %5943 = vrot.lane.b32.xlu0 %v2345, 4
        %v5944 = vpop.permute.xlu0 %5943
        %5945 = vrot.lane.b32.xlu0 %v2346, 4
        %v5946 = vpop.permute.xlu0 %5945
        %5947 = vrot.lane.b32.xlu0 %v2347, 4
        %v5948 = vpop.permute.xlu0 %5947
        %5949 = vrot.lane.b32.xlu0 %v2348, 4
        %v5950 = vpop.permute.xlu0 %5949
        %5951 = vrot.lane.b32.xlu0 %v2349, 4
        %v5952 = vpop.permute.xlu0 %5951
        %5953 = vrot.lane.b32.xlu0 %v2350, 4
        %v5954 = vpop.permute.xlu0 %5953
        %5955 = vrot.lane.b32.xlu0 %v2351, 4
        %v5956 = vpop.permute.xlu0 %5955
        %5957 = vrot.lane.b32.xlu0 %v2352, 4
        %v5958 = vpop.permute.xlu0 %5957
        %5959 = vrot.lane.b32.xlu0 %v2353, 4
        %v5960 = vpop.permute.xlu0 %5959
        %5961 = vrot.lane.b32.xlu0 %v2354, 4
        %v5962 = vpop.permute.xlu0 %5961
        %5963 = vrot.lane.b32.xlu0 %v2355, 4
        %v5964 = vpop.permute.xlu0 %5963
        %5965 = vrot.lane.b32.xlu0 %v2356, 4
        %v5966 = vpop.permute.xlu0 %5965
        %5967 = vrot.lane.b32.xlu0 %v2357, 4
        %v5968 = vpop.permute.xlu0 %5967
        %5969 = vrot.lane.b32.xlu0 %v2358, 4
        %v5970 = vpop.permute.xlu0 %5969
        %5971 = vrot.lane.b32.xlu0 %v2359, 4
        %v5972 = vpop.permute.xlu0 %5971
        %5973 = vrot.lane.b32.xlu0 %v2360, 4
        %v5974 = vpop.permute.xlu0 %5973
        %5975 = vrot.lane.b32.xlu0 %v2361, 4
        %v5976 = vpop.permute.xlu0 %5975
        %5977 = vrot.lane.b32.xlu0 %v2362, 4
        %v5978 = vpop.permute.xlu0 %5977
        %5979 = vrot.lane.b32.xlu0 %v2363, 4
        %v5980 = vpop.permute.xlu0 %5979
        %5981 = vrot.lane.b32.xlu0 %v2364, 4
        %v5982 = vpop.permute.xlu0 %5981
        %5983 = vrot.lane.b32.xlu0 %v2365, 4
        %v5984 = vpop.permute.xlu0 %5983
        %5985 = vrot.lane.b32.xlu0 %v2366, 4
        %v5986 = vpop.permute.xlu0 %5985
        %5987 = vrot.lane.b32.xlu0 %v2367, 4
        %v5988 = vpop.permute.xlu0 %5987
        %5989 = vrot.lane.b32.xlu0 %v2368, 4
        %v5990 = vpop.permute.xlu0 %5989
        %5991 = vrot.lane.b32.xlu0 %v2369, 4
        %v5992 = vpop.permute.xlu0 %5991
        %5993 = vrot.lane.b32.xlu0 %v2370, 4
        %v5994 = vpop.permute.xlu0 %5993
        %5995 = vrot.lane.b32.xlu0 %v2371, 4
        %v5996 = vpop.permute.xlu0 %5995
        %5997 = vrot.lane.b32.xlu0 %v2372, 4
        %v5998 = vpop.permute.xlu0 %5997
        %5999 = vrot.lane.b32.xlu0 %v2373, 4
        %v6000 = vpop.permute.xlu0 %5999
        %6001 = vrot.lane.b32.xlu0 %v2374, 4
        %v6002 = vpop.permute.xlu0 %6001
        %6003 = vrot.lane.b32.xlu0 %v2375, 4
        %v6004 = vpop.permute.xlu0 %6003
        %6069 = vrot.lane.b32.xlu0 %v4095, 8
        %v6070 = vpop.permute.xlu0 %6069
        %6071 = vrot.lane.b32.xlu0 %v4096, 8
        %v6072 = vpop.permute.xlu0 %6071
        %6073 = vrot.lane.b32.xlu0 %v4097, 8
        %v6074 = vpop.permute.xlu0 %6073
        %6075 = vrot.lane.b32.xlu0 %v4098, 8
        %v6076 = vpop.permute.xlu0 %6075
        %6077 = vrot.lane.b32.xlu0 %v4099, 8
        %v6078 = vpop.permute.xlu0 %6077
        %6079 = vrot.lane.b32.xlu0 %v4100, 8
        %v6080 = vpop.permute.xlu0 %6079
        %6081 = vrot.lane.b32.xlu0 %v4101, 8
        %v6082 = vpop.permute.xlu0 %6081
        %6083 = vrot.lane.b32.xlu0 %v4102, 8
        %v6084 = vpop.permute.xlu0 %6083
        %6085 = vrot.lane.b32.xlu0 %v4103, 8
        %v6086 = vpop.permute.xlu0 %6085
        %6087 = vrot.lane.b32.xlu0 %v4104, 8
        %v6088 = vpop.permute.xlu0 %6087
        %6089 = vrot.lane.b32.xlu0 %v4105, 8
        %v6090 = vpop.permute.xlu0 %6089
        %6091 = vrot.lane.b32.xlu0 %v4106, 8
        %v6092 = vpop.permute.xlu0 %6091
        %6093 = vrot.lane.b32.xlu0 %v4107, 8
        %v6094 = vpop.permute.xlu0 %6093
        %6095 = vrot.lane.b32.xlu0 %v4108, 8
        %v6096 = vpop.permute.xlu0 %6095
        %6097 = vrot.lane.b32.xlu0 %v4109, 8
        %v6098 = vpop.permute.xlu0 %6097
        %6099 = vrot.lane.b32.xlu0 %v4110, 8
        %v6100 = vpop.permute.xlu0 %6099
        %6101 = vrot.lane.b32.xlu0 %v4111, 8
        %v6102 = vpop.permute.xlu0 %6101
        %6103 = vrot.lane.b32.xlu0 %v4112, 8
        %v6104 = vpop.permute.xlu0 %6103
        %6105 = vrot.lane.b32.xlu0 %v4113, 8
        %v6106 = vpop.permute.xlu0 %6105
        %6107 = vrot.lane.b32.xlu0 %v4114, 8
        %v6108 = vpop.permute.xlu0 %6107
        %6109 = vrot.lane.b32.xlu0 %v4115, 8
        %v6110 = vpop.permute.xlu0 %6109
        %6111 = vrot.lane.b32.xlu0 %v4116, 8
        %v6112 = vpop.permute.xlu0 %6111
        %6113 = vrot.lane.b32.xlu0 %v4117, 8
        %v6114 = vpop.permute.xlu0 %6113
        %6115 = vrot.lane.b32.xlu0 %v4118, 8
        %v6116 = vpop.permute.xlu0 %6115
        %6117 = vrot.lane.b32.xlu0 %v4119, 8
        %v6118 = vpop.permute.xlu0 %6117
        %6119 = vrot.lane.b32.xlu0 %v4120, 8
        %v6120 = vpop.permute.xlu0 %6119
        %6121 = vrot.lane.b32.xlu0 %v4121, 8
        %v6122 = vpop.permute.xlu0 %6121
        %6123 = vrot.lane.b32.xlu0 %v4122, 8
        %v6124 = vpop.permute.xlu0 %6123
        %6125 = vrot.lane.b32.xlu0 %v4123, 8
        %v6126 = vpop.permute.xlu0 %6125
        %6127 = vrot.lane.b32.xlu0 %v4124, 8
        %v6128 = vpop.permute.xlu0 %6127
        %6129 = vrot.lane.b32.xlu0 %v4125, 8
        %v6130 = vpop.permute.xlu0 %6129
        %6131 = vrot.lane.b32.xlu0 %v4126, 8
        %v6132 = vpop.permute.xlu0 %6131
        %6133 = vrot.lane.b32.xlu0 %v4127, 8
        %v6134 = vpop.permute.xlu0 %6133
        %6135 = vrot.lane.b32.xlu0 %v4128, 8
        %v6136 = vpop.permute.xlu0 %6135
        %6137 = vrot.lane.b32.xlu0 %v4129, 8
        %v6138 = vpop.permute.xlu0 %6137
        %6139 = vrot.lane.b32.xlu0 %v4130, 8
        %v6140 = vpop.permute.xlu0 %6139
        %6141 = vrot.lane.b32.xlu0 %v4131, 8
        %v6142 = vpop.permute.xlu0 %6141
        %6143 = vrot.lane.b32.xlu0 %v4132, 8
        %v6144 = vpop.permute.xlu0 %6143
        %6145 = vrot.lane.b32.xlu0 %v4133, 8
        %v6146 = vpop.permute.xlu0 %6145
        %6147 = vrot.lane.b32.xlu0 %v4134, 8
        %v6148 = vpop.permute.xlu0 %6147
        %6149 = vrot.lane.b32.xlu0 %v4135, 8
        %v6150 = vpop.permute.xlu0 %6149
        %6151 = vrot.lane.b32.xlu0 %v4136, 8
        %v6152 = vpop.permute.xlu0 %6151
        %6153 = vrot.lane.b32.xlu0 %v4137, 8
        %v6154 = vpop.permute.xlu0 %6153
        %6155 = vrot.lane.b32.xlu0 %v4138, 8
        %v6156 = vpop.permute.xlu0 %6155
        %6157 = vrot.lane.b32.xlu0 %v4139, 8
        %v6158 = vpop.permute.xlu0 %6157
        %6159 = vrot.lane.b32.xlu0 %v4140, 8
        %v6160 = vpop.permute.xlu0 %6159
        %6161 = vrot.lane.b32.xlu0 %v4141, 8
        %v6162 = vpop.permute.xlu0 %6161
        %6163 = vrot.lane.b32.xlu0 %v4142, 8
        %v6164 = vpop.permute.xlu0 %6163
        %6165 = vrot.lane.b32.xlu0 %v4143, 8
        %v6166 = vpop.permute.xlu0 %6165
        %6167 = vrot.lane.b32.xlu0 %v4144, 8
        %v6168 = vpop.permute.xlu0 %6167
        %6169 = vrot.lane.b32.xlu0 %v4145, 8
        %v6170 = vpop.permute.xlu0 %6169
        %6171 = vrot.lane.b32.xlu0 %v4146, 8
        %v6172 = vpop.permute.xlu0 %6171
        %6173 = vrot.lane.b32.xlu0 %v4147, 8
        %v6174 = vpop.permute.xlu0 %6173
        %6175 = vrot.lane.b32.xlu0 %v4148, 8
        %v6176 = vpop.permute.xlu0 %6175
        %6177 = vrot.lane.b32.xlu0 %v4149, 8
        %v6178 = vpop.permute.xlu0 %6177
        %6179 = vrot.lane.b32.xlu0 %v4150, 8
        %v6180 = vpop.permute.xlu0 %6179
        %6181 = vrot.lane.b32.xlu0 %v4151, 8
        %v6182 = vpop.permute.xlu0 %6181
        %6183 = vrot.lane.b32.xlu0 %v4152, 8
        %v6184 = vpop.permute.xlu0 %6183
        %6185 = vrot.lane.b32.xlu0 %v4153, 8
        %v6186 = vpop.permute.xlu0 %6185
        %6187 = vrot.lane.b32.xlu0 %v4154, 8
        %v6188 = vpop.permute.xlu0 %6187
        %6189 = vrot.lane.b32.xlu0 %v4155, 8
        %v6190 = vpop.permute.xlu0 %6189
        %6191 = vrot.lane.b32.xlu0 %v4156, 8
        %v6192 = vpop.permute.xlu0 %6191
        %6193 = vrot.lane.b32.xlu0 %v4157, 8
        %v6194 = vpop.permute.xlu0 %6193
        %6195 = vrot.lane.b32.xlu0 %v4158, 8
        %v6196 = vpop.permute.xlu0 %6195
        %6325 = vrot.lane.b32.xlu0 %v5813, 12
        %v6326 = vpop.permute.xlu0 %6325
        %6327 = vrot.lane.b32.xlu0 %v5814, 12
        %v6328 = vpop.permute.xlu0 %6327
        %6329 = vrot.lane.b32.xlu0 %v5815, 12
        %v6330 = vpop.permute.xlu0 %6329
        %6331 = vrot.lane.b32.xlu0 %v5816, 12
        %v6332 = vpop.permute.xlu0 %6331
        %6333 = vrot.lane.b32.xlu0 %v5817, 12
        %v6334 = vpop.permute.xlu0 %6333
        %6335 = vrot.lane.b32.xlu0 %v5818, 12
        %v6336 = vpop.permute.xlu0 %6335
        %6337 = vrot.lane.b32.xlu0 %v5819, 12
        %v6338 = vpop.permute.xlu0 %6337
        %6339 = vrot.lane.b32.xlu0 %v5820, 12
        %v6340 = vpop.permute.xlu0 %6339
        %6341 = vrot.lane.b32.xlu0 %v5821, 12
        %v6342 = vpop.permute.xlu0 %6341
        %6343 = vrot.lane.b32.xlu0 %v5822, 12
        %v6344 = vpop.permute.xlu0 %6343
        %6345 = vrot.lane.b32.xlu0 %v5823, 12
        %v6346 = vpop.permute.xlu0 %6345
        %6347 = vrot.lane.b32.xlu0 %v5824, 12
        %v6348 = vpop.permute.xlu0 %6347
        %6349 = vrot.lane.b32.xlu0 %v5825, 12
        %v6350 = vpop.permute.xlu0 %6349
        %6351 = vrot.lane.b32.xlu0 %v5826, 12
        %v6352 = vpop.permute.xlu0 %6351
        %6353 = vrot.lane.b32.xlu0 %v5827, 12
        %v6354 = vpop.permute.xlu0 %6353
        %6355 = vrot.lane.b32.xlu0 %v5828, 12
        %v6356 = vpop.permute.xlu0 %6355
        %6357 = vrot.lane.b32.xlu0 %v5829, 12
        %v6358 = vpop.permute.xlu0 %6357
        %6359 = vrot.lane.b32.xlu0 %v5830, 12
        %v6360 = vpop.permute.xlu0 %6359
        %6361 = vrot.lane.b32.xlu0 %v5831, 12
        %v6362 = vpop.permute.xlu0 %6361
        %6363 = vrot.lane.b32.xlu0 %v5832, 12
        %v6364 = vpop.permute.xlu0 %6363
        %6365 = vrot.lane.b32.xlu0 %v5833, 12
        %v6366 = vpop.permute.xlu0 %6365
        %6367 = vrot.lane.b32.xlu0 %v5834, 12
        %v6368 = vpop.permute.xlu0 %6367
        %6369 = vrot.lane.b32.xlu0 %v5835, 12
        %v6370 = vpop.permute.xlu0 %6369
        %6371 = vrot.lane.b32.xlu0 %v5836, 12
        %v6372 = vpop.permute.xlu0 %6371
        %6373 = vrot.lane.b32.xlu0 %v5837, 12
        %v6374 = vpop.permute.xlu0 %6373
        %6375 = vrot.lane.b32.xlu0 %v5838, 12
        %v6376 = vpop.permute.xlu0 %6375
        %6377 = vrot.lane.b32.xlu0 %v5839, 12
        %v6378 = vpop.permute.xlu0 %6377
        %6379 = vrot.lane.b32.xlu0 %v5840, 12
        %v6380 = vpop.permute.xlu0 %6379
        %6381 = vrot.lane.b32.xlu0 %v5841, 12
        %v6382 = vpop.permute.xlu0 %6381
        %6383 = vrot.lane.b32.xlu0 %v5842, 12
        %v6384 = vpop.permute.xlu0 %6383
        %6385 = vrot.lane.b32.xlu0 %v5843, 12
        %v6386 = vpop.permute.xlu0 %6385
        %6387 = vrot.lane.b32.xlu0 %v5844, 12
        %v6388 = vpop.permute.xlu0 %6387
        %6389 = vrot.lane.b32.xlu0 %v5845, 12
        %v6390 = vpop.permute.xlu0 %6389
        %6391 = vrot.lane.b32.xlu0 %v5846, 12
        %v6392 = vpop.permute.xlu0 %6391
        %6393 = vrot.lane.b32.xlu0 %v5847, 12
        %v6394 = vpop.permute.xlu0 %6393
        %6395 = vrot.lane.b32.xlu0 %v5848, 12
        %v6396 = vpop.permute.xlu0 %6395
        %6397 = vrot.lane.b32.xlu0 %v5849, 12
        %v6398 = vpop.permute.xlu0 %6397
        %6399 = vrot.lane.b32.xlu0 %v5850, 12
        %v6400 = vpop.permute.xlu0 %6399
        %6401 = vrot.lane.b32.xlu0 %v5851, 12
        %v6402 = vpop.permute.xlu0 %6401
        %6403 = vrot.lane.b32.xlu0 %v5852, 12
        %v6404 = vpop.permute.xlu0 %6403
        %6405 = vrot.lane.b32.xlu0 %v5853, 12
        %v6406 = vpop.permute.xlu0 %6405
        %6407 = vrot.lane.b32.xlu0 %v5854, 12
        %v6408 = vpop.permute.xlu0 %6407
        %6409 = vrot.lane.b32.xlu0 %v5855, 12
        %v6410 = vpop.permute.xlu0 %6409
        %6411 = vrot.lane.b32.xlu0 %v5856, 12
        %v6412 = vpop.permute.xlu0 %6411
        %6413 = vrot.lane.b32.xlu0 %v5857, 12
        %v6414 = vpop.permute.xlu0 %6413
        %6415 = vrot.lane.b32.xlu0 %v5858, 12
        %v6416 = vpop.permute.xlu0 %6415
        %6417 = vrot.lane.b32.xlu0 %v5859, 12
        %v6418 = vpop.permute.xlu0 %6417
        %6419 = vrot.lane.b32.xlu0 %v5860, 12
        %v6420 = vpop.permute.xlu0 %6419
        %6421 = vrot.lane.b32.xlu0 %v5861, 12
        %v6422 = vpop.permute.xlu0 %6421
        %6423 = vrot.lane.b32.xlu0 %v5862, 12
        %v6424 = vpop.permute.xlu0 %6423
        %6425 = vrot.lane.b32.xlu0 %v5863, 12
        %v6426 = vpop.permute.xlu0 %6425
        %6427 = vrot.lane.b32.xlu0 %v5864, 12
        %v6428 = vpop.permute.xlu0 %6427
        %6429 = vrot.lane.b32.xlu0 %v5865, 12
        %v6430 = vpop.permute.xlu0 %6429
        %6431 = vrot.lane.b32.xlu0 %v5866, 12
        %v6432 = vpop.permute.xlu0 %6431
        %6433 = vrot.lane.b32.xlu0 %v5867, 12
        %v6434 = vpop.permute.xlu0 %6433
        %6435 = vrot.lane.b32.xlu0 %v5868, 12
        %v6436 = vpop.permute.xlu0 %6435
        %6437 = vrot.lane.b32.xlu0 %v5869, 12
        %v6438 = vpop.permute.xlu0 %6437
        %6439 = vrot.lane.b32.xlu0 %v5870, 12
        %v6440 = vpop.permute.xlu0 %6439
        %6441 = vrot.lane.b32.xlu0 %v5871, 12
        %v6442 = vpop.permute.xlu0 %6441
        %6443 = vrot.lane.b32.xlu0 %v5872, 12
        %v6444 = vpop.permute.xlu0 %6443
        %6445 = vrot.lane.b32.xlu0 %v5873, 12
        %v6446 = vpop.permute.xlu0 %6445
        %6447 = vrot.lane.b32.xlu0 %v5874, 12
        %v6448 = vpop.permute.xlu0 %6447
        %6449 = vrot.lane.b32.xlu0 %v5875, 12
        %v6450 = vpop.permute.xlu0 %6449
        %6451 = vrot.lane.b32.xlu0 %v5876, 12
        %v6452 = vpop.permute.xlu0 %6451
        %v6517 = vsel %vm1288, %v456, %v5878
        %v6518 = vsel %vm1288, %v457, %v5880
        %v6519 = vsel %vm1288, %v458, %v5882
        %v6520 = vsel %vm1288, %v459, %v5884
        %v6521 = vsel %vm1288, %v460, %v5886
        %v6522 = vsel %vm1288, %v461, %v5888
        %v6523 = vsel %vm1288, %v462, %v5890
        %v6524 = vsel %vm1288, %v463, %v5892
        %v6525 = vsel %vm1288, %v464, %v5894
        %v6526 = vsel %vm1288, %v465, %v5896
        %v6527 = vsel %vm1288, %v466, %v5898
        %v6528 = vsel %vm1288, %v467, %v5900
        %v6529 = vsel %vm1288, %v468, %v5902
        %v6530 = vsel %vm1288, %v469, %v5904
        %v6531 = vsel %vm1288, %v470, %v5906
        %v6532 = vsel %vm1288, %v471, %v5908
        %v6533 = vsel %vm1288, %v472, %v5910
        %v6534 = vsel %vm1288, %v473, %v5912
        %v6535 = vsel %vm1288, %v474, %v5914
        %v6536 = vsel %vm1288, %v475, %v5916
        %v6537 = vsel %vm1288, %v476, %v5918
        %v6538 = vsel %vm1288, %v477, %v5920
        %v6539 = vsel %vm1288, %v478, %v5922
        %v6540 = vsel %vm1288, %v479, %v5924
        %v6541 = vsel %vm1288, %v480, %v5926
        %v6542 = vsel %vm1288, %v481, %v5928
        %v6543 = vsel %vm1288, %v482, %v5930
        %v6544 = vsel %vm1288, %v483, %v5932
        %v6545 = vsel %vm1288, %v484, %v5934
        %v6546 = vsel %vm1288, %v485, %v5936
        %v6547 = vsel %vm1288, %v486, %v5938
        %v6548 = vsel %vm1288, %v487, %v5940
        %v6549 = vsel %vm1288, %v488, %v5942
        %v6550 = vsel %vm1288, %v489, %v5944
        %v6551 = vsel %vm1288, %v490, %v5946
        %v6552 = vsel %vm1288, %v491, %v5948
        %v6553 = vsel %vm1288, %v492, %v5950
        %v6554 = vsel %vm1288, %v493, %v5952
        %v6555 = vsel %vm1288, %v494, %v5954
        %v6556 = vsel %vm1288, %v495, %v5956
        %v6557 = vsel %vm1288, %v496, %v5958
        %v6558 = vsel %vm1288, %v497, %v5960
        %v6559 = vsel %vm1288, %v498, %v5962
        %v6560 = vsel %vm1288, %v499, %v5964
        %v6561 = vsel %vm1288, %v500, %v5966
        %v6562 = vsel %vm1288, %v501, %v5968
        %v6563 = vsel %vm1288, %v502, %v5970
        %v6564 = vsel %vm1288, %v503, %v5972
        %v6565 = vsel %vm1288, %v504, %v5974
        %v6566 = vsel %vm1288, %v505, %v5976
        %v6567 = vsel %vm1288, %v506, %v5978
        %v6568 = vsel %vm1288, %v507, %v5980
        %v6569 = vsel %vm1288, %v508, %v5982
        %v6570 = vsel %vm1288, %v509, %v5984
        %v6571 = vsel %vm1288, %v510, %v5986
        %v6572 = vsel %vm1288, %v511, %v5988
        %v6573 = vsel %vm1288, %v512, %v5990
        %v6574 = vsel %vm1288, %v513, %v5992
        %v6575 = vsel %vm1288, %v514, %v5994
        %v6576 = vsel %vm1288, %v515, %v5996
        %v6577 = vsel %vm1288, %v516, %v5998
        %v6578 = vsel %vm1288, %v517, %v6000
        %v6579 = vsel %vm1288, %v518, %v6002
        %v6580 = vsel %vm1288, %v519, %v6004
        %v6581 = vsel %vm1353, %v6517, %v6070
        %v6582 = vsel %vm1353, %v6518, %v6072
        %v6583 = vsel %vm1353, %v6519, %v6074
        %v6584 = vsel %vm1353, %v6520, %v6076
        %v6585 = vsel %vm1353, %v6521, %v6078
        %v6586 = vsel %vm1353, %v6522, %v6080
        %v6587 = vsel %vm1353, %v6523, %v6082
        %v6588 = vsel %vm1353, %v6524, %v6084
        %v6589 = vsel %vm1353, %v6525, %v6086
        %v6590 = vsel %vm1353, %v6526, %v6088
        %v6591 = vsel %vm1353, %v6527, %v6090
        %v6592 = vsel %vm1353, %v6528, %v6092
        %v6593 = vsel %vm1353, %v6529, %v6094
        %v6594 = vsel %vm1353, %v6530, %v6096
        %v6595 = vsel %vm1353, %v6531, %v6098
        %v6596 = vsel %vm1353, %v6532, %v6100
        %v6597 = vsel %vm1353, %v6533, %v6102
        %v6598 = vsel %vm1353, %v6534, %v6104
        %v6599 = vsel %vm1353, %v6535, %v6106
        %v6600 = vsel %vm1353, %v6536, %v6108
        %v6601 = vsel %vm1353, %v6537, %v6110
        %v6602 = vsel %vm1353, %v6538, %v6112
        %v6603 = vsel %vm1353, %v6539, %v6114
        %v6604 = vsel %vm1353, %v6540, %v6116
        %v6605 = vsel %vm1353, %v6541, %v6118
        %v6606 = vsel %vm1353, %v6542, %v6120
        %v6607 = vsel %vm1353, %v6543, %v6122
        %v6608 = vsel %vm1353, %v6544, %v6124
        %v6609 = vsel %vm1353, %v6545, %v6126
        %v6610 = vsel %vm1353, %v6546, %v6128
        %v6611 = vsel %vm1353, %v6547, %v6130
        %v6612 = vsel %vm1353, %v6548, %v6132
        %v6613 = vsel %vm1353, %v6549, %v6134
        %v6614 = vsel %vm1353, %v6550, %v6136
        %v6615 = vsel %vm1353, %v6551, %v6138
        %v6616 = vsel %vm1353, %v6552, %v6140
        %v6617 = vsel %vm1353, %v6553, %v6142
        %v6618 = vsel %vm1353, %v6554, %v6144
        %v6619 = vsel %vm1353, %v6555, %v6146
        %v6620 = vsel %vm1353, %v6556, %v6148
        %v6621 = vsel %vm1353, %v6557, %v6150
        %v6622 = vsel %vm1353, %v6558, %v6152
        %v6623 = vsel %vm1353, %v6559, %v6154
        %v6624 = vsel %vm1353, %v6560, %v6156
        %v6625 = vsel %vm1353, %v6561, %v6158
        %v6626 = vsel %vm1353, %v6562, %v6160
        %v6627 = vsel %vm1353, %v6563, %v6162
        %v6628 = vsel %vm1353, %v6564, %v6164
        %v6629 = vsel %vm1353, %v6565, %v6166
        %v6630 = vsel %vm1353, %v6566, %v6168
        %v6631 = vsel %vm1353, %v6567, %v6170
        %v6632 = vsel %vm1353, %v6568, %v6172
        %v6633 = vsel %vm1353, %v6569, %v6174
        %v6634 = vsel %vm1353, %v6570, %v6176
        %v6635 = vsel %vm1353, %v6571, %v6178
        %v6636 = vsel %vm1353, %v6572, %v6180
        %v6637 = vsel %vm1353, %v6573, %v6182
        %v6638 = vsel %vm1353, %v6574, %v6184
        %v6639 = vsel %vm1353, %v6575, %v6186
        %v6640 = vsel %vm1353, %v6576, %v6188
        %v6641 = vsel %vm1353, %v6577, %v6190
        %v6642 = vsel %vm1353, %v6578, %v6192
        %v6643 = vsel %vm1353, %v6579, %v6194
        %v6644 = vsel %vm1353, %v6580, %v6196
        %v6645 = vsel %vm1418, %v6581, %v6326
        %v6646 = vsel %vm1418, %v6582, %v6328
        %v6647 = vsel %vm1418, %v6583, %v6330
        %v6648 = vsel %vm1418, %v6584, %v6332
        %v6649 = vsel %vm1418, %v6585, %v6334
        %v6650 = vsel %vm1418, %v6586, %v6336
        %v6651 = vsel %vm1418, %v6587, %v6338
        %v6652 = vsel %vm1418, %v6588, %v6340
        %v6653 = vsel %vm1418, %v6589, %v6342
        %v6654 = vsel %vm1418, %v6590, %v6344
        %v6655 = vsel %vm1418, %v6591, %v6346
        %v6656 = vsel %vm1418, %v6592, %v6348
        %v6657 = vsel %vm1418, %v6593, %v6350
        %v6658 = vsel %vm1418, %v6594, %v6352
        %v6659 = vsel %vm1418, %v6595, %v6354
        %v6660 = vsel %vm1418, %v6596, %v6356
        %v6661 = vsel %vm1418, %v6597, %v6358
        %v6662 = vsel %vm1418, %v6598, %v6360
        %v6663 = vsel %vm1418, %v6599, %v6362
        %v6664 = vsel %vm1418, %v6600, %v6364
        %v6665 = vsel %vm1418, %v6601, %v6366
        %v6666 = vsel %vm1418, %v6602, %v6368
        %v6667 = vsel %vm1418, %v6603, %v6370
        %v6668 = vsel %vm1418, %v6604, %v6372
        %v6669 = vsel %vm1418, %v6605, %v6374
        %v6670 = vsel %vm1418, %v6606, %v6376
        %v6671 = vsel %vm1418, %v6607, %v6378
        %v6672 = vsel %vm1418, %v6608, %v6380
        %v6673 = vsel %vm1418, %v6609, %v6382
        %v6674 = vsel %vm1418, %v6610, %v6384
        %v6675 = vsel %vm1418, %v6611, %v6386
        %v6676 = vsel %vm1418, %v6612, %v6388
        %v6677 = vsel %vm1418, %v6613, %v6390
        %v6678 = vsel %vm1418, %v6614, %v6392
        %v6679 = vsel %vm1418, %v6615, %v6394
        %v6680 = vsel %vm1418, %v6616, %v6396
        %v6681 = vsel %vm1418, %v6617, %v6398
        %v6682 = vsel %vm1418, %v6618, %v6400
        %v6683 = vsel %vm1418, %v6619, %v6402
        %v6684 = vsel %vm1418, %v6620, %v6404
        %v6685 = vsel %vm1418, %v6621, %v6406
        %v6686 = vsel %vm1418, %v6622, %v6408
        %v6687 = vsel %vm1418, %v6623, %v6410
        %v6688 = vsel %vm1418, %v6624, %v6412
        %v6689 = vsel %vm1418, %v6625, %v6414
        %v6690 = vsel %vm1418, %v6626, %v6416
        %v6691 = vsel %vm1418, %v6627, %v6418
        %v6692 = vsel %vm1418, %v6628, %v6420
        %v6693 = vsel %vm1418, %v6629, %v6422
        %v6694 = vsel %vm1418, %v6630, %v6424
        %v6695 = vsel %vm1418, %v6631, %v6426
        %v6696 = vsel %vm1418, %v6632, %v6428
        %v6697 = vsel %vm1418, %v6633, %v6430
        %v6698 = vsel %vm1418, %v6634, %v6432
        %v6699 = vsel %vm1418, %v6635, %v6434
        %v6700 = vsel %vm1418, %v6636, %v6436
        %v6701 = vsel %vm1418, %v6637, %v6438
        %v6702 = vsel %vm1418, %v6638, %v6440
        %v6703 = vsel %vm1418, %v6639, %v6442
        %v6704 = vsel %vm1418, %v6640, %v6444
        %v6705 = vsel %vm1418, %v6641, %v6446
        %v6706 = vsel %vm1418, %v6642, %v6448
        %v6707 = vsel %vm1418, %v6643, %v6450
        %v6708 = vsel %vm1418, %v6644, %v6452
        %v6709 = vpack.c.bf16 %v6646, %v6645
        %v6710 = vpack.c.bf16 %v6648, %v6647
        %v6711 = vpack.c.bf16 %v6650, %v6649
        %v6712 = vpack.c.bf16 %v6652, %v6651
        %v6713 = vpack.c.bf16 %v6654, %v6653
        %v6714 = vpack.c.bf16 %v6656, %v6655
        %v6715 = vpack.c.bf16 %v6658, %v6657
        %v6716 = vpack.c.bf16 %v6660, %v6659
        %v6717 = vpack.c.bf16 %v6662, %v6661
        %v6718 = vpack.c.bf16 %v6664, %v6663
        %v6719 = vpack.c.bf16 %v6666, %v6665
        %v6720 = vpack.c.bf16 %v6668, %v6667
        %v6721 = vpack.c.bf16 %v6670, %v6669
        %v6722 = vpack.c.bf16 %v6672, %v6671
        %v6723 = vpack.c.bf16 %v6674, %v6673
        %v6724 = vpack.c.bf16 %v6676, %v6675
        %v6725 = vpack.c.bf16 %v6678, %v6677
        %v6726 = vpack.c.bf16 %v6680, %v6679
        %v6727 = vpack.c.bf16 %v6682, %v6681
        %v6728 = vpack.c.bf16 %v6684, %v6683
        %v6729 = vpack.c.bf16 %v6686, %v6685
        %v6730 = vpack.c.bf16 %v6688, %v6687
        %v6731 = vpack.c.bf16 %v6690, %v6689
        %v6732 = vpack.c.bf16 %v6692, %v6691
        %v6733 = vpack.c.bf16 %v6694, %v6693
        %v6734 = vpack.c.bf16 %v6696, %v6695
        %v6735 = vpack.c.bf16 %v6698, %v6697
        %v6736 = vpack.c.bf16 %v6700, %v6699
        %v6737 = vpack.c.bf16 %v6702, %v6701
        %v6738 = vpack.c.bf16 %v6704, %v6703
        %v6739 = vpack.c.bf16 %v6706, %v6705
        %v6740 = vpack.c.bf16 %v6708, %v6707
        %s6741 = scalar_lea.vmem %s251, 24
        %v6742 = vld [vmem:[%s6741] sm:$0xf]
        %v6743 = vld [vmem:[%s6741 + $0x4] sm:$0xf]
        %v6746 = vunpack.c.l.b16 %v6742
        %v6747 = vunpack.c.l.b16 %v6743
        %v6748 = vpack.c.b16 %v6747, %v6746
        %v6751 = vsel %vm1529, %v6709, 0
        %v6754 = vsel %vm1529, %v6710, 0
        %v6757 = vsel %vm1529, %v6711, 0
        %v6760 = vsel %vm1529, %v6712, 0
        %v6763 = vsel %vm1529, %v6713, 0
        %v6766 = vsel %vm1529, %v6714, 0
        %v6769 = vsel %vm1529, %v6715, 0
        %v6772 = vsel %vm1529, %v6716, 0
        %v6775 = vsel %vm1529, %v6717, 0
        %v6778 = vsel %vm1529, %v6718, 0
        %v6781 = vsel %vm1529, %v6719, 0
        %v6784 = vsel %vm1529, %v6720, 0
        %v6787 = vsel %vm1529, %v6721, 0
        %v6790 = vsel %vm1529, %v6722, 0
        %v6793 = vsel %vm1529, %v6723, 0
        %v6796 = vsel %vm1529, %v6724, 0
        %v6799 = vsel %vm1529, %v6725, 0
        %v6802 = vsel %vm1529, %v6726, 0
        %v6805 = vsel %vm1529, %v6727, 0
        %v6808 = vsel %vm1529, %v6728, 0
        %v6811 = vsel %vm1529, %v6729, 0
        %v6814 = vsel %vm1529, %v6730, 0
        %v6817 = vsel %vm1529, %v6731, 0
        %v6820 = vsel %vm1529, %v6732, 0
        %v6823 = vsel %vm1529, %v6733, 0
        %v6826 = vsel %vm1529, %v6734, 0
        %v6829 = vsel %vm1529, %v6735, 0
        %v6832 = vsel %vm1529, %v6736, 0
        %v6835 = vsel %vm1529, %v6737, 0
        %v6838 = vsel %vm1529, %v6738, 0
        %v6841 = vsel %vm1529, %v6739, 0
        %v6844 = vsel %vm1529, %v6740, 0
        %6846 = vmatprep.subr.bf16.mxu0 0
        %6847 = vmatpush1.bf16.msra.mxu0 %v6748
        %6848 = vmatprep.subr.bf16.mxu0 0
        %6849 = vmatpush1.bf16.msra.mxu0 0
        %6850 = vmatprep.subr.bf16.mxu0 0
        %6851 = vmatpush1.bf16.msra.mxu0 0
        %6852 = vmatprep.subr.bf16.mxu0 0
        %6853 = vmatpush1.bf16.msra.mxu0 0
        %6854 = vmatprep.subr.bf16.mxu0 0
        %6855 = vmatpush1.bf16.msra.mxu0 0
        %6856 = vmatprep.subr.bf16.mxu0 0
        %6857 = vmatpush1.bf16.msra.mxu0 0
        %6858 = vmatprep.subr.bf16.mxu0 0
        %6859 = vmatpush1.bf16.msra.mxu0 0
        %6860 = vmatprep.subr.bf16.mxu0 0
        %6861 = vmatpush1.bf16.msra.mxu0 0
        %6862 = vmatprep.subr.bf16.mxu0 0
        %6863 = vmatpush1.bf16.msra.mxu0 0
        %6864 = vmatprep.subr.bf16.mxu0 0
        %6865 = vmatpush1.bf16.msra.mxu0 0
        %6866 = vmatprep.subr.bf16.mxu0 0
        %6867 = vmatpush1.bf16.msra.mxu0 0
        %6868 = vmatprep.subr.bf16.mxu0 0
        %6869 = vmatpush1.bf16.msra.mxu0 0
        %6870 = vmatprep.subr.bf16.mxu0 0
        %6871 = vmatpush1.bf16.msra.mxu0 0
        %6872 = vmatprep.subr.bf16.mxu0 0
        %6873 = vmatpush1.bf16.msra.mxu0 0
        %6874 = vmatprep.subr.bf16.mxu0 0
        %6875 = vmatpush1.bf16.msra.mxu0 0
        %6876 = vmatprep.subr.bf16.mxu0 0
        %6877 = vmatpush1.bf16.msra.mxu0 0
        %6878 = vmatprep.mubr.bf16.mxu0 0
        %6879 = vmatmul.mubr.bf16.gmra.mrb[0].mxu0 %v6751
        %v6880 = vpop.f32.mrb[0].mxu0
        %v6881 = vadd.f32 %v1521, %v6880
        %v6882 = vpop.f32.mrb[0].mxu0
        %v6883 = vpop.f32.mrb[0].mxu0
        %v6884 = vadd.f32 %v1521, %v6883
        %v6885 = vpop.f32.mrb[0].mxu0
        %6886 = vmatprep.mubr.bf16.mxu0 0
        %6887 = vmatmul.mubr.bf16.gmra.mrb[0].mxu0 %v6754
        %v6888 = vpop.f32.mrb[0].mxu0
        %v6889 = vadd.f32 %v1521, %v6888
        %v6890 = vpop.f32.mrb[0].mxu0
        %v6891 = vpop.f32.mrb[0].mxu0
        %v6892 = vadd.f32 %v1521, %v6891
        %v6893 = vpop.f32.mrb[0].mxu0
        %6894 = vmatprep.mubr.bf16.mxu0 0
        %6895 = vmatmul.mubr.bf16.gmra.mrb[0].mxu0 %v6757
        %v6896 = vpop.f32.mrb[0].mxu0
        %v6897 = vadd.f32 %v1521, %v6896
        %v6898 = vpop.f32.mrb[0].mxu0
        %v6899 = vpop.f32.mrb[0].mxu0
        %v6900 = vadd.f32 %v1521, %v6899
        %v6901 = vpop.f32.mrb[0].mxu0
        %6902 = vmatprep.mubr.bf16.mxu0 0
        %6903 = vmatmul.mubr.bf16.gmra.mrb[0].mxu0 %v6760
        %v6904 = vpop.f32.mrb[0].mxu0
        %v6905 = vadd.f32 %v1521, %v6904
        %v6906 = vpop.f32.mrb[0].mxu0
        %v6907 = vpop.f32.mrb[0].mxu0
        %v6908 = vadd.f32 %v1521, %v6907
        %v6909 = vpop.f32.mrb[0].mxu0
        %6910 = vmatprep.mubr.bf16.mxu0 0
        %6911 = vmatmul.mubr.bf16.gmra.mrb[0].mxu0 %v6763
        %v6912 = vpop.f32.mrb[0].mxu0
        %v6913 = vadd.f32 %v1521, %v6912
        %v6914 = vpop.f32.mrb[0].mxu0
        %v6915 = vpop.f32.mrb[0].mxu0
        %v6916 = vadd.f32 %v1521, %v6915
        %v6917 = vpop.f32.mrb[0].mxu0
        %6918 = vmatprep.mubr.bf16.mxu0 0
        %6919 = vmatmul.mubr.bf16.gmra.mrb[0].mxu0 %v6766
        %v6920 = vpop.f32.mrb[0].mxu0
        %v6921 = vadd.f32 %v1521, %v6920
        %v6922 = vpop.f32.mrb[0].mxu0
        %v6923 = vpop.f32.mrb[0].mxu0
        %v6924 = vadd.f32 %v1521, %v6923
        %v6925 = vpop.f32.mrb[0].mxu0
        %6926 = vmatprep.mubr.bf16.mxu0 0
        %6927 = vmatmul.mubr.bf16.gmra.mrb[0].mxu0 %v6769
        %v6928 = vpop.f32.mrb[0].mxu0
        %v6929 = vadd.f32 %v1521, %v6928
        %v6930 = vpop.f32.mrb[0].mxu0
        %v6931 = vpop.f32.mrb[0].mxu0
        %v6932 = vadd.f32 %v1521, %v6931
        %v6933 = vpop.f32.mrb[0].mxu0
        %6934 = vmatprep.mubr.bf16.mxu0 0
        %6935 = vmatmul.mubr.bf16.gmra.mrb[0].mxu0 %v6772
        %v6936 = vpop.f32.mrb[0].mxu0
        %v6937 = vadd.f32 %v1521, %v6936
        %v6938 = vpop.f32.mrb[0].mxu0
        %v6939 = vpop.f32.mrb[0].mxu0
        %v6940 = vadd.f32 %v1521, %v6939
        %v6941 = vpop.f32.mrb[0].mxu0
        %6942 = vmatprep.mubr.bf16.mxu0 0
        %6943 = vmatmul.mubr.bf16.gmra.mrb[0].mxu0 %v6775
        %v6944 = vpop.f32.mrb[0].mxu0
        %v6945 = vadd.f32 %v1521, %v6944
        %v6946 = vpop.f32.mrb[0].mxu0
        %v6947 = vpop.f32.mrb[0].mxu0
        %v6948 = vadd.f32 %v1521, %v6947
        %v6949 = vpop.f32.mrb[0].mxu0
        %6950 = vmatprep.mubr.bf16.mxu0 0
        %6951 = vmatmul.mubr.bf16.gmra.mrb[0].mxu0 %v6778
        %v6952 = vpop.f32.mrb[0].mxu0
        %v6953 = vadd.f32 %v1521, %v6952
        %v6954 = vpop.f32.mrb[0].mxu0
        %v6955 = vpop.f32.mrb[0].mxu0
        %v6956 = vadd.f32 %v1521, %v6955
        %v6957 = vpop.f32.mrb[0].mxu0
        %6958 = vmatprep.mubr.bf16.mxu0 0
        %6959 = vmatmul.mubr.bf16.gmra.mrb[0].mxu0 %v6781
        %v6960 = vpop.f32.mrb[0].mxu0
        %v6961 = vadd.f32 %v1521, %v6960
        %v6962 = vpop.f32.mrb[0].mxu0
        %v6963 = vpop.f32.mrb[0].mxu0
        %v6964 = vadd.f32 %v1521, %v6963
        %v6965 = vpop.f32.mrb[0].mxu0
        %6966 = vmatprep.mubr.bf16.mxu0 0
        %6967 = vmatmul.mubr.bf16.gmra.mrb[0].mxu0 %v6784
        %v6968 = vpop.f32.mrb[0].mxu0
        %v6969 = vadd.f32 %v1521, %v6968
        %v6970 = vpop.f32.mrb[0].mxu0
        %v6971 = vpop.f32.mrb[0].mxu0
        %v6972 = vadd.f32 %v1521, %v6971
        %v6973 = vpop.f32.mrb[0].mxu0
        %6974 = vmatprep.mubr.bf16.mxu0 0
        %6975 = vmatmul.mubr.bf16.gmra.mrb[0].mxu0 %v6787
        %v6976 = vpop.f32.mrb[0].mxu0
        %v6977 = vadd.f32 %v1521, %v6976
        %v6978 = vpop.f32.mrb[0].mxu0
        %v6979 = vpop.f32.mrb[0].mxu0
        %v6980 = vadd.f32 %v1521, %v6979
        %v6981 = vpop.f32.mrb[0].mxu0
        %6982 = vmatprep.mubr.bf16.mxu0 0
        %6983 = vmatmul.mubr.bf16.gmra.mrb[0].mxu0 %v6790
        %v6984 = vpop.f32.mrb[0].mxu0
        %v6985 = vadd.f32 %v1521, %v6984
        %v6986 = vpop.f32.mrb[0].mxu0
        %v6987 = vpop.f32.mrb[0].mxu0
        %v6988 = vadd.f32 %v1521, %v6987
        %v6989 = vpop.f32.mrb[0].mxu0
        %6990 = vmatprep.mubr.bf16.mxu0 0
        %6991 = vmatmul.mubr.bf16.gmra.mrb[0].mxu0 %v6793
        %v6992 = vpop.f32.mrb[0].mxu0
        %v6993 = vadd.f32 %v1521, %v6992
        %v6994 = vpop.f32.mrb[0].mxu0
        %v6995 = vpop.f32.mrb[0].mxu0
        %v6996 = vadd.f32 %v1521, %v6995
        %v6997 = vpop.f32.mrb[0].mxu0
        %6998 = vmatprep.mubr.bf16.mxu0 0
        %6999 = vmatmul.mubr.bf16.gmra.mrb[0].mxu0 %v6796
        %v7000 = vpop.f32.mrb[0].mxu0
        %v7001 = vadd.f32 %v1521, %v7000
        %v7002 = vpop.f32.mrb[0].mxu0
        %v7003 = vpop.f32.mrb[0].mxu0
        %v7004 = vadd.f32 %v1521, %v7003
        %v7005 = vpop.f32.mrb[0].mxu0
        %7006 = vmatprep.mubr.bf16.mxu0 0
        %7007 = vmatmul.mubr.bf16.gmra.mrb[0].mxu0 %v6799
        %v7008 = vpop.f32.mrb[0].mxu0
        %v7009 = vadd.f32 %v1521, %v7008
        %v7010 = vpop.f32.mrb[0].mxu0
        %v7011 = vpop.f32.mrb[0].mxu0
        %v7012 = vadd.f32 %v1521, %v7011
        %v7013 = vpop.f32.mrb[0].mxu0
        %7014 = vmatprep.mubr.bf16.mxu0 0
        %7015 = vmatmul.mubr.bf16.gmra.mrb[0].mxu0 %v6802
        %v7016 = vpop.f32.mrb[0].mxu0
        %v7017 = vadd.f32 %v1521, %v7016
        %v7018 = vpop.f32.mrb[0].mxu0
        %v7019 = vpop.f32.mrb[0].mxu0
        %v7020 = vadd.f32 %v1521, %v7019
        %v7021 = vpop.f32.mrb[0].mxu0
        %7022 = vmatprep.mubr.bf16.mxu0 0
        %7023 = vmatmul.mubr.bf16.gmra.mrb[0].mxu0 %v6805
        %v7024 = vpop.f32.mrb[0].mxu0
        %v7025 = vadd.f32 %v1521, %v7024
        %v7026 = vpop.f32.mrb[0].mxu0
        %v7027 = vpop.f32.mrb[0].mxu0
        %v7028 = vadd.f32 %v1521, %v7027
        %v7029 = vpop.f32.mrb[0].mxu0
        %7030 = vmatprep.mubr.bf16.mxu0 0
        %7031 = vmatmul.mubr.bf16.gmra.mrb[0].mxu0 %v6808
        %v7032 = vpop.f32.mrb[0].mxu0
        %v7033 = vadd.f32 %v1521, %v7032
        %v7034 = vpop.f32.mrb[0].mxu0
        %v7035 = vpop.f32.mrb[0].mxu0
        %v7036 = vadd.f32 %v1521, %v7035
        %v7037 = vpop.f32.mrb[0].mxu0
        %7038 = vmatprep.mubr.bf16.mxu0 0
        %7039 = vmatmul.mubr.bf16.gmra.mrb[0].mxu0 %v6811
        %v7040 = vpop.f32.mrb[0].mxu0
        %v7041 = vadd.f32 %v1521, %v7040
        %v7042 = vpop.f32.mrb[0].mxu0
        %v7043 = vpop.f32.mrb[0].mxu0
        %v7044 = vadd.f32 %v1521, %v7043
        %v7045 = vpop.f32.mrb[0].mxu0
        %7046 = vmatprep.mubr.bf16.mxu0 0
        %7047 = vmatmul.mubr.bf16.gmra.mrb[0].mxu0 %v6814
        %v7048 = vpop.f32.mrb[0].mxu0
        %v7049 = vadd.f32 %v1521, %v7048
        %v7050 = vpop.f32.mrb[0].mxu0
        %v7051 = vpop.f32.mrb[0].mxu0
        %v7052 = vadd.f32 %v1521, %v7051
        %v7053 = vpop.f32.mrb[0].mxu0
        %7054 = vmatprep.mubr.bf16.mxu0 0
        %7055 = vmatmul.mubr.bf16.gmra.mrb[0].mxu0 %v6817
        %v7056 = vpop.f32.mrb[0].mxu0
        %v7057 = vadd.f32 %v1521, %v7056
        %v7058 = vpop.f32.mrb[0].mxu0
        %v7059 = vpop.f32.mrb[0].mxu0
        %v7060 = vadd.f32 %v1521, %v7059
        %v7061 = vpop.f32.mrb[0].mxu0
        %7062 = vmatprep.mubr.bf16.mxu0 0
        %7063 = vmatmul.mubr.bf16.gmra.mrb[0].mxu0 %v6820
        %v7064 = vpop.f32.mrb[0].mxu0
        %v7065 = vadd.f32 %v1521, %v7064
        %v7066 = vpop.f32.mrb[0].mxu0
        %v7067 = vpop.f32.mrb[0].mxu0
        %v7068 = vadd.f32 %v1521, %v7067
        %v7069 = vpop.f32.mrb[0].mxu0
        %7070 = vmatprep.mubr.bf16.mxu0 0
        %7071 = vmatmul.mubr.bf16.gmra.mrb[0].mxu0 %v6823
        %v7072 = vpop.f32.mrb[0].mxu0
        %v7073 = vadd.f32 %v1521, %v7072
        %v7074 = vpop.f32.mrb[0].mxu0
        %v7075 = vpop.f32.mrb[0].mxu0
        %v7076 = vadd.f32 %v1521, %v7075
        %v7077 = vpop.f32.mrb[0].mxu0
        %7078 = vmatprep.mubr.bf16.mxu0 0
        %7079 = vmatmul.mubr.bf16.gmra.mrb[0].mxu0 %v6826
        %v7080 = vpop.f32.mrb[0].mxu0
        %v7081 = vadd.f32 %v1521, %v7080
        %v7082 = vpop.f32.mrb[0].mxu0
        %v7083 = vpop.f32.mrb[0].mxu0
        %v7084 = vadd.f32 %v1521, %v7083
        %v7085 = vpop.f32.mrb[0].mxu0
        %7086 = vmatprep.mubr.bf16.mxu0 0
        %7087 = vmatmul.mubr.bf16.gmra.mrb[0].mxu0 %v6829
        %v7088 = vpop.f32.mrb[0].mxu0
        %v7089 = vadd.f32 %v1521, %v7088
        %v7090 = vpop.f32.mrb[0].mxu0
        %v7091 = vpop.f32.mrb[0].mxu0
        %v7092 = vadd.f32 %v1521, %v7091
        %v7093 = vpop.f32.mrb[0].mxu0
        %7094 = vmatprep.mubr.bf16.mxu0 0
        %7095 = vmatmul.mubr.bf16.gmra.mrb[0].mxu0 %v6832
        %v7096 = vpop.f32.mrb[0].mxu0
        %v7097 = vadd.f32 %v1521, %v7096
        %v7098 = vpop.f32.mrb[0].mxu0
        %v7099 = vpop.f32.mrb[0].mxu0
        %v7100 = vadd.f32 %v1521, %v7099
        %v7101 = vpop.f32.mrb[0].mxu0
        %7102 = vmatprep.mubr.bf16.mxu0 0
        %7103 = vmatmul.mubr.bf16.gmra.mrb[0].mxu0 %v6835
        %v7104 = vpop.f32.mrb[0].mxu0
        %v7105 = vadd.f32 %v1521, %v7104
        %v7106 = vpop.f32.mrb[0].mxu0
        %v7107 = vpop.f32.mrb[0].mxu0
        %v7108 = vadd.f32 %v1521, %v7107
        %v7109 = vpop.f32.mrb[0].mxu0
        %7110 = vmatprep.mubr.bf16.mxu0 0
        %7111 = vmatmul.mubr.bf16.gmra.mrb[0].mxu0 %v6838
        %v7112 = vpop.f32.mrb[0].mxu0
        %v7113 = vadd.f32 %v1521, %v7112
        %v7114 = vpop.f32.mrb[0].mxu0
        %v7115 = vpop.f32.mrb[0].mxu0
        %v7116 = vadd.f32 %v1521, %v7115
        %v7117 = vpop.f32.mrb[0].mxu0
        %7118 = vmatprep.mubr.bf16.mxu0 0
        %7119 = vmatmul.mubr.bf16.gmra.mrb[0].mxu0 %v6841
        %v7120 = vpop.f32.mrb[0].mxu0
        %v7121 = vadd.f32 %v1521, %v7120
        %v7122 = vpop.f32.mrb[0].mxu0
        %v7123 = vpop.f32.mrb[0].mxu0
        %v7124 = vadd.f32 %v1521, %v7123
        %v7125 = vpop.f32.mrb[0].mxu0
        %7126 = vmatprep.mubr.bf16.mxu0 0
        %7127 = vmatmul.mubr.bf16.gmra.mrb[0].mxu0 %v6844
        %v7128 = vpop.f32.mrb[0].mxu0
        %v7129 = vadd.f32 %v1521, %v7128
        %v7130 = vpop.f32.mrb[0].mxu0
        %v7131 = vpop.f32.mrb[0].mxu0
        %v7132 = vadd.f32 %v1521, %v7131
        %v7133 = vpop.f32.mrb[0].mxu0
        %7134 = vdwg.mxu0
        %v7135 = vsel %vm1915, %v6881, 0.0
        %v7136 = vsel %vm1915, %v6884, 0.0
        %v7137 = vadd.f32 %v7135, %v7136
        %v7138 = vsel %vm1915, %v6889, 0.0
        %v7139 = vadd.f32 %v7137, %v7138
        %v7140 = vsel %vm1915, %v6892, 0.0
        %v7141 = vadd.f32 %v7139, %v7140
        %v7142 = vsel %vm1915, %v6897, 0.0
        %v7143 = vadd.f32 %v7141, %v7142
        %v7144 = vsel %vm1915, %v6900, 0.0
        %v7145 = vadd.f32 %v7143, %v7144
        %v7146 = vsel %vm1915, %v6905, 0.0
        %v7147 = vadd.f32 %v7145, %v7146
        %v7148 = vsel %vm1915, %v6908, 0.0
        %v7149 = vadd.f32 %v7147, %v7148
        %v7150 = vsel %vm1915, %v6913, 0.0
        %v7151 = vadd.f32 %v7149, %v7150
        %v7152 = vsel %vm1915, %v6916, 0.0
        %v7153 = vadd.f32 %v7151, %v7152
        %v7154 = vsel %vm1915, %v6921, 0.0
        %v7155 = vadd.f32 %v7153, %v7154
        %v7156 = vsel %vm1915, %v6924, 0.0
        %v7157 = vadd.f32 %v7155, %v7156
        %v7158 = vsel %vm1915, %v6929, 0.0
        %v7159 = vadd.f32 %v7157, %v7158
        %v7160 = vsel %vm1915, %v6932, 0.0
        %v7161 = vadd.f32 %v7159, %v7160
        %v7162 = vsel %vm1915, %v6937, 0.0
        %v7163 = vadd.f32 %v7161, %v7162
        %v7164 = vsel %vm1915, %v6940, 0.0
        %v7165 = vadd.f32 %v7163, %v7164
        %v7166 = vsel %vm1915, %v6945, 0.0
        %v7167 = vadd.f32 %v7165, %v7166
        %v7168 = vsel %vm1915, %v6948, 0.0
        %v7169 = vadd.f32 %v7167, %v7168
        %v7170 = vsel %vm1915, %v6953, 0.0
        %v7171 = vadd.f32 %v7169, %v7170
        %v7172 = vsel %vm1915, %v6956, 0.0
        %v7173 = vadd.f32 %v7171, %v7172
        %v7174 = vsel %vm1915, %v6961, 0.0
        %v7175 = vadd.f32 %v7173, %v7174
        %v7176 = vsel %vm1915, %v6964, 0.0
        %v7177 = vadd.f32 %v7175, %v7176
        %v7178 = vsel %vm1915, %v6969, 0.0
        %v7179 = vadd.f32 %v7177, %v7178
        %v7180 = vsel %vm1915, %v6972, 0.0
        %v7181 = vadd.f32 %v7179, %v7180
        %v7182 = vsel %vm1915, %v6977, 0.0
        %v7183 = vadd.f32 %v7181, %v7182
        %v7184 = vsel %vm1915, %v6980, 0.0
        %v7185 = vadd.f32 %v7183, %v7184
        %v7186 = vsel %vm1915, %v6985, 0.0
        %v7187 = vadd.f32 %v7185, %v7186
        %v7188 = vsel %vm1915, %v6988, 0.0
        %v7189 = vadd.f32 %v7187, %v7188
        %v7190 = vsel %vm1915, %v6993, 0.0
        %v7191 = vadd.f32 %v7189, %v7190
        %v7192 = vsel %vm1915, %v6996, 0.0
        %v7193 = vadd.f32 %v7191, %v7192
        %v7194 = vsel %vm1915, %v7001, 0.0
        %v7195 = vadd.f32 %v7193, %v7194
        %v7196 = vsel %vm1915, %v7004, 0.0
        %v7197 = vadd.f32 %v7195, %v7196
        %v7198 = vsel %vm1915, %v7009, 0.0
        %v7199 = vadd.f32 %v7197, %v7198
        %v7200 = vsel %vm1915, %v7012, 0.0
        %v7201 = vadd.f32 %v7199, %v7200
        %v7202 = vsel %vm1915, %v7017, 0.0
        %v7203 = vadd.f32 %v7201, %v7202
        %v7204 = vsel %vm1915, %v7020, 0.0
        %v7205 = vadd.f32 %v7203, %v7204
        %v7206 = vsel %vm1915, %v7025, 0.0
        %v7207 = vadd.f32 %v7205, %v7206
        %v7208 = vsel %vm1915, %v7028, 0.0
        %v7209 = vadd.f32 %v7207, %v7208
        %v7210 = vsel %vm1915, %v7033, 0.0
        %v7211 = vadd.f32 %v7209, %v7210
        %v7212 = vsel %vm1915, %v7036, 0.0
        %v7213 = vadd.f32 %v7211, %v7212
        %v7214 = vsel %vm1915, %v7041, 0.0
        %v7215 = vadd.f32 %v7213, %v7214
        %v7216 = vsel %vm1915, %v7044, 0.0
        %v7217 = vadd.f32 %v7215, %v7216
        %v7218 = vsel %vm1915, %v7049, 0.0
        %v7219 = vadd.f32 %v7217, %v7218
        %v7220 = vsel %vm1915, %v7052, 0.0
        %v7221 = vadd.f32 %v7219, %v7220
        %v7222 = vsel %vm1915, %v7057, 0.0
        %v7223 = vadd.f32 %v7221, %v7222
        %v7224 = vsel %vm1915, %v7060, 0.0
        %v7225 = vadd.f32 %v7223, %v7224
        %v7226 = vsel %vm1915, %v7065, 0.0
        %v7227 = vadd.f32 %v7225, %v7226
        %v7228 = vsel %vm1915, %v7068, 0.0
        %v7229 = vadd.f32 %v7227, %v7228
        %v7230 = vsel %vm1915, %v7073, 0.0
        %v7231 = vadd.f32 %v7229, %v7230
        %v7232 = vsel %vm1915, %v7076, 0.0
        %v7233 = vadd.f32 %v7231, %v7232
        %v7234 = vsel %vm1915, %v7081, 0.0
        %v7235 = vadd.f32 %v7233, %v7234
        %v7236 = vsel %vm1915, %v7084, 0.0
        %v7237 = vadd.f32 %v7235, %v7236
        %v7238 = vsel %vm1915, %v7089, 0.0
        %v7239 = vadd.f32 %v7237, %v7238
        %v7240 = vsel %vm1915, %v7092, 0.0
        %v7241 = vadd.f32 %v7239, %v7240
        %v7242 = vsel %vm1915, %v7097, 0.0
        %v7243 = vadd.f32 %v7241, %v7242
        %v7244 = vsel %vm1915, %v7100, 0.0
        %v7245 = vadd.f32 %v7243, %v7244
        %v7246 = vsel %vm1915, %v7105, 0.0
        %v7247 = vadd.f32 %v7245, %v7246
        %v7248 = vsel %vm1915, %v7108, 0.0
        %v7249 = vadd.f32 %v7247, %v7248
        %v7250 = vsel %vm1915, %v7113, 0.0
        %v7251 = vadd.f32 %v7249, %v7250
        %v7252 = vsel %vm1915, %v7116, 0.0
        %v7253 = vadd.f32 %v7251, %v7252
        %v7254 = vsel %vm1915, %v7121, 0.0
        %v7255 = vadd.f32 %v7253, %v7254
        %v7256 = vsel %vm1915, %v7124, 0.0
        %v7257 = vadd.f32 %v7255, %v7256
        %v7258 = vsel %vm1915, %v7129, 0.0
        %v7259 = vadd.f32 %v7257, %v7258
        %v7260 = vsel %vm1915, %v7132, 0.0
        %v7261 = vadd.f32 %v7259, %v7260
        %v7262 = vrot.slane %v7261, 4
        %v7263 = vadd.f32 %v7261, %v7262
        %v7264 = vrot.slane %v7263, 2
        %v7265 = vadd.f32 %v7263, %v7264
        %v7266 = vrot.slane %v7265, 1
        %v7267 = vadd.f32 %v7265, %v7266
        %v7268 = vadd.f32 %v5614, %v7267
        %v7269 = vmul.f32 %v6881, %v6881
        %v7270 = vmul.f32 %v6884, %v6884
        %v7271 = vmul.f32 %v6889, %v6889
        %v7272 = vmul.f32 %v6892, %v6892
        %v7273 = vmul.f32 %v6897, %v6897
        %v7274 = vmul.f32 %v6900, %v6900
        %v7275 = vmul.f32 %v6905, %v6905
        %v7276 = vmul.f32 %v6908, %v6908
        %v7277 = vmul.f32 %v6913, %v6913
        %v7278 = vmul.f32 %v6916, %v6916
        %v7279 = vmul.f32 %v6921, %v6921
        %v7280 = vmul.f32 %v6924, %v6924
        %v7281 = vmul.f32 %v6929, %v6929
        %v7282 = vmul.f32 %v6932, %v6932
        %v7283 = vmul.f32 %v6937, %v6937
        %v7284 = vmul.f32 %v6940, %v6940
        %v7285 = vmul.f32 %v6945, %v6945
        %v7286 = vmul.f32 %v6948, %v6948
        %v7287 = vmul.f32 %v6953, %v6953
        %v7288 = vmul.f32 %v6956, %v6956
        %v7289 = vmul.f32 %v6961, %v6961
        %v7290 = vmul.f32 %v6964, %v6964
        %v7291 = vmul.f32 %v6969, %v6969
        %v7292 = vmul.f32 %v6972, %v6972
        %v7293 = vmul.f32 %v6977, %v6977
        %v7294 = vmul.f32 %v6980, %v6980
        %v7295 = vmul.f32 %v6985, %v6985
        %v7296 = vmul.f32 %v6988, %v6988
        %v7297 = vmul.f32 %v6993, %v6993
        %v7298 = vmul.f32 %v6996, %v6996
        %v7299 = vmul.f32 %v7001, %v7001
        %v7300 = vmul.f32 %v7004, %v7004
        %v7301 = vmul.f32 %v7009, %v7009
        %v7302 = vmul.f32 %v7012, %v7012
        %v7303 = vmul.f32 %v7017, %v7017
        %v7304 = vmul.f32 %v7020, %v7020
        %v7305 = vmul.f32 %v7025, %v7025
        %v7306 = vmul.f32 %v7028, %v7028
        %v7307 = vmul.f32 %v7033, %v7033
        %v7308 = vmul.f32 %v7036, %v7036
        %v7309 = vmul.f32 %v7041, %v7041
        %v7310 = vmul.f32 %v7044, %v7044
        %v7311 = vmul.f32 %v7049, %v7049
        %v7312 = vmul.f32 %v7052, %v7052
        %v7313 = vmul.f32 %v7057, %v7057
        %v7314 = vmul.f32 %v7060, %v7060
        %v7315 = vmul.f32 %v7065, %v7065
        %v7316 = vmul.f32 %v7068, %v7068
        %v7317 = vmul.f32 %v7073, %v7073
        %v7318 = vmul.f32 %v7076, %v7076
        %v7319 = vmul.f32 %v7081, %v7081
        %v7320 = vmul.f32 %v7084, %v7084
        %v7321 = vmul.f32 %v7089, %v7089
        %v7322 = vmul.f32 %v7092, %v7092
        %v7323 = vmul.f32 %v7097, %v7097
        %v7324 = vmul.f32 %v7100, %v7100
        %v7325 = vmul.f32 %v7105, %v7105
        %v7326 = vmul.f32 %v7108, %v7108
        %v7327 = vmul.f32 %v7113, %v7113
        %v7328 = vmul.f32 %v7116, %v7116
        %v7329 = vmul.f32 %v7121, %v7121
        %v7330 = vmul.f32 %v7124, %v7124
        %v7331 = vmul.f32 %v7129, %v7129
        %v7332 = vmul.f32 %v7132, %v7132
        %v7333 = vsel %vm1915, %v7269, 0.0
        %v7334 = vsel %vm1915, %v7270, 0.0
        %v7335 = vadd.f32 %v7333, %v7334
        %v7336 = vsel %vm1915, %v7271, 0.0
        %v7337 = vadd.f32 %v7335, %v7336
        %v7338 = vsel %vm1915, %v7272, 0.0
        %v7339 = vadd.f32 %v7337, %v7338
        %v7340 = vsel %vm1915, %v7273, 0.0
        %v7341 = vadd.f32 %v7339, %v7340
        %v7342 = vsel %vm1915, %v7274, 0.0
        %v7343 = vadd.f32 %v7341, %v7342
        %v7344 = vsel %vm1915, %v7275, 0.0
        %v7345 = vadd.f32 %v7343, %v7344
        %v7346 = vsel %vm1915, %v7276, 0.0
        %v7347 = vadd.f32 %v7345, %v7346
        %v7348 = vsel %vm1915, %v7277, 0.0
        %v7349 = vadd.f32 %v7347, %v7348
        %v7350 = vsel %vm1915, %v7278, 0.0
        %v7351 = vadd.f32 %v7349, %v7350
        %v7352 = vsel %vm1915, %v7279, 0.0
        %v7353 = vadd.f32 %v7351, %v7352
        %v7354 = vsel %vm1915, %v7280, 0.0
        %v7355 = vadd.f32 %v7353, %v7354
        %v7356 = vsel %vm1915, %v7281, 0.0
        %v7357 = vadd.f32 %v7355, %v7356
        %v7358 = vsel %vm1915, %v7282, 0.0
        %v7359 = vadd.f32 %v7357, %v7358
        %v7360 = vsel %vm1915, %v7283, 0.0
        %v7361 = vadd.f32 %v7359, %v7360
        %v7362 = vsel %vm1915, %v7284, 0.0
        %v7363 = vadd.f32 %v7361, %v7362
        %v7364 = vsel %vm1915, %v7285, 0.0
        %v7365 = vadd.f32 %v7363, %v7364
        %v7366 = vsel %vm1915, %v7286, 0.0
        %v7367 = vadd.f32 %v7365, %v7366
        %v7368 = vsel %vm1915, %v7287, 0.0
        %v7369 = vadd.f32 %v7367, %v7368
        %v7370 = vsel %vm1915, %v7288, 0.0
        %v7371 = vadd.f32 %v7369, %v7370
        %v7372 = vsel %vm1915, %v7289, 0.0
        %v7373 = vadd.f32 %v7371, %v7372
        %v7374 = vsel %vm1915, %v7290, 0.0
        %v7375 = vadd.f32 %v7373, %v7374
        %v7376 = vsel %vm1915, %v7291, 0.0
        %v7377 = vadd.f32 %v7375, %v7376
        %v7378 = vsel %vm1915, %v7292, 0.0
        %v7379 = vadd.f32 %v7377, %v7378
        %v7380 = vsel %vm1915, %v7293, 0.0
        %v7381 = vadd.f32 %v7379, %v7380
        %v7382 = vsel %vm1915, %v7294, 0.0
        %v7383 = vadd.f32 %v7381, %v7382
        %v7384 = vsel %vm1915, %v7295, 0.0
        %v7385 = vadd.f32 %v7383, %v7384
        %v7386 = vsel %vm1915, %v7296, 0.0
        %v7387 = vadd.f32 %v7385, %v7386
        %v7388 = vsel %vm1915, %v7297, 0.0
        %v7389 = vadd.f32 %v7387, %v7388
        %v7390 = vsel %vm1915, %v7298, 0.0
        %v7391 = vadd.f32 %v7389, %v7390
        %v7392 = vsel %vm1915, %v7299, 0.0
        %v7393 = vadd.f32 %v7391, %v7392
        %v7394 = vsel %vm1915, %v7300, 0.0
        %v7395 = vadd.f32 %v7393, %v7394
        %v7396 = vsel %vm1915, %v7301, 0.0
        %v7397 = vadd.f32 %v7395, %v7396
        %v7398 = vsel %vm1915, %v7302, 0.0
        %v7399 = vadd.f32 %v7397, %v7398
        %v7400 = vsel %vm1915, %v7303, 0.0
        %v7401 = vadd.f32 %v7399, %v7400
        %v7402 = vsel %vm1915, %v7304, 0.0
        %v7403 = vadd.f32 %v7401, %v7402
        %v7404 = vsel %vm1915, %v7305, 0.0
        %v7405 = vadd.f32 %v7403, %v7404
        %v7406 = vsel %vm1915, %v7306, 0.0
        %v7407 = vadd.f32 %v7405, %v7406
        %v7408 = vsel %vm1915, %v7307, 0.0
        %v7409 = vadd.f32 %v7407, %v7408
        %v7410 = vsel %vm1915, %v7308, 0.0
        %v7411 = vadd.f32 %v7409, %v7410
        %v7412 = vsel %vm1915, %v7309, 0.0
        %v7413 = vadd.f32 %v7411, %v7412
        %v7414 = vsel %vm1915, %v7310, 0.0
        %v7415 = vadd.f32 %v7413, %v7414
        %v7416 = vsel %vm1915, %v7311, 0.0
        %v7417 = vadd.f32 %v7415, %v7416
        %v7418 = vsel %vm1915, %v7312, 0.0
        %v7419 = vadd.f32 %v7417, %v7418
        %v7420 = vsel %vm1915, %v7313, 0.0
        %v7421 = vadd.f32 %v7419, %v7420
        %v7422 = vsel %vm1915, %v7314, 0.0
        %v7423 = vadd.f32 %v7421, %v7422
        %v7424 = vsel %vm1915, %v7315, 0.0
        %v7425 = vadd.f32 %v7423, %v7424
        %v7426 = vsel %vm1915, %v7316, 0.0
        %v7427 = vadd.f32 %v7425, %v7426
        %v7428 = vsel %vm1915, %v7317, 0.0
        %v7429 = vadd.f32 %v7427, %v7428
        %v7430 = vsel %vm1915, %v7318, 0.0
        %v7431 = vadd.f32 %v7429, %v7430
        %v7432 = vsel %vm1915, %v7319, 0.0
        %v7433 = vadd.f32 %v7431, %v7432
        %v7434 = vsel %vm1915, %v7320, 0.0
        %v7435 = vadd.f32 %v7433, %v7434
        %v7436 = vsel %vm1915, %v7321, 0.0
        %v7437 = vadd.f32 %v7435, %v7436
        %v7438 = vsel %vm1915, %v7322, 0.0
        %v7439 = vadd.f32 %v7437, %v7438
        %v7440 = vsel %vm1915, %v7323, 0.0
        %v7441 = vadd.f32 %v7439, %v7440
        %v7442 = vsel %vm1915, %v7324, 0.0
        %v7443 = vadd.f32 %v7441, %v7442
        %v7444 = vsel %vm1915, %v7325, 0.0
        %v7445 = vadd.f32 %v7443, %v7444
        %v7446 = vsel %vm1915, %v7326, 0.0
        %v7447 = vadd.f32 %v7445, %v7446
        %v7448 = vsel %vm1915, %v7327, 0.0
        %v7449 = vadd.f32 %v7447, %v7448
        %v7450 = vsel %vm1915, %v7328, 0.0
        %v7451 = vadd.f32 %v7449, %v7450
        %v7452 = vsel %vm1915, %v7329, 0.0
        %v7453 = vadd.f32 %v7451, %v7452
        %v7454 = vsel %vm1915, %v7330, 0.0
        %v7455 = vadd.f32 %v7453, %v7454
        %v7456 = vsel %vm1915, %v7331, 0.0
        %v7457 = vadd.f32 %v7455, %v7456
        %v7458 = vsel %vm1915, %v7332, 0.0
        %v7459 = vadd.f32 %v7457, %v7458
        %v7460 = vrot.slane %v7459, 4
        %v7461 = vadd.f32 %v7459, %v7460
        %v7462 = vrot.slane %v7461, 2
        %v7463 = vadd.f32 %v7461, %v7462
        %v7464 = vrot.slane %v7463, 1
        %v7465 = vadd.f32 %v7463, %v7464
        %v7466 = vadd.f32 %v5812, %v7465
        %7531 = vrot.lane.b32.xlu0 %v3444, 32
        %v7532 = vpop.permute.xlu0 %7531
        %7533 = vrot.lane.b32.xlu0 %v3447, 32
        %v7534 = vpop.permute.xlu0 %7533
        %7535 = vrot.lane.b32.xlu0 %v3452, 32
        %v7536 = vpop.permute.xlu0 %7535
        %7537 = vrot.lane.b32.xlu0 %v3455, 32
        %v7538 = vpop.permute.xlu0 %7537
        %7539 = vrot.lane.b32.xlu0 %v3460, 32
        %v7540 = vpop.permute.xlu0 %7539
        %7541 = vrot.lane.b32.xlu0 %v3463, 32
        %v7542 = vpop.permute.xlu0 %7541
        %7543 = vrot.lane.b32.xlu0 %v3468, 32
        %v7544 = vpop.permute.xlu0 %7543
        %7545 = vrot.lane.b32.xlu0 %v3471, 32
        %v7546 = vpop.permute.xlu0 %7545
        %7547 = vrot.lane.b32.xlu0 %v3476, 32
        %v7548 = vpop.permute.xlu0 %7547
        %7549 = vrot.lane.b32.xlu0 %v3479, 32
        %v7550 = vpop.permute.xlu0 %7549
        %7551 = vrot.lane.b32.xlu0 %v3484, 32
        %v7552 = vpop.permute.xlu0 %7551
        %7553 = vrot.lane.b32.xlu0 %v3487, 32
        %v7554 = vpop.permute.xlu0 %7553
        %7555 = vrot.lane.b32.xlu0 %v3492, 32
        %v7556 = vpop.permute.xlu0 %7555
        %7557 = vrot.lane.b32.xlu0 %v3495, 32
        %v7558 = vpop.permute.xlu0 %7557
        %7559 = vrot.lane.b32.xlu0 %v3500, 32
        %v7560 = vpop.permute.xlu0 %7559
        %7561 = vrot.lane.b32.xlu0 %v3503, 32
        %v7562 = vpop.permute.xlu0 %7561
        %7563 = vrot.lane.b32.xlu0 %v3508, 32
        %v7564 = vpop.permute.xlu0 %7563
        %7565 = vrot.lane.b32.xlu0 %v3511, 32
        %v7566 = vpop.permute.xlu0 %7565
        %7567 = vrot.lane.b32.xlu0 %v3516, 32
        %v7568 = vpop.permute.xlu0 %7567
        %7569 = vrot.lane.b32.xlu0 %v3519, 32
        %v7570 = vpop.permute.xlu0 %7569
        %7571 = vrot.lane.b32.xlu0 %v3524, 32
        %v7572 = vpop.permute.xlu0 %7571
        %7573 = vrot.lane.b32.xlu0 %v3527, 32
        %v7574 = vpop.permute.xlu0 %7573
        %7575 = vrot.lane.b32.xlu0 %v3532, 32
        %v7576 = vpop.permute.xlu0 %7575
        %7577 = vrot.lane.b32.xlu0 %v3535, 32
        %v7578 = vpop.permute.xlu0 %7577
        %7579 = vrot.lane.b32.xlu0 %v3540, 32
        %v7580 = vpop.permute.xlu0 %7579
        %7581 = vrot.lane.b32.xlu0 %v3543, 32
        %v7582 = vpop.permute.xlu0 %7581
        %7583 = vrot.lane.b32.xlu0 %v3548, 32
        %v7584 = vpop.permute.xlu0 %7583
        %7585 = vrot.lane.b32.xlu0 %v3551, 32
        %v7586 = vpop.permute.xlu0 %7585
        %7587 = vrot.lane.b32.xlu0 %v3556, 32
        %v7588 = vpop.permute.xlu0 %7587
        %7589 = vrot.lane.b32.xlu0 %v3559, 32
        %v7590 = vpop.permute.xlu0 %7589
        %7591 = vrot.lane.b32.xlu0 %v3564, 32
        %v7592 = vpop.permute.xlu0 %7591
        %7593 = vrot.lane.b32.xlu0 %v3567, 32
        %v7594 = vpop.permute.xlu0 %7593
        %7595 = vrot.lane.b32.xlu0 %v3572, 32
        %v7596 = vpop.permute.xlu0 %7595
        %7597 = vrot.lane.b32.xlu0 %v3575, 32
        %v7598 = vpop.permute.xlu0 %7597
        %7599 = vrot.lane.b32.xlu0 %v3580, 32
        %v7600 = vpop.permute.xlu0 %7599
        %7601 = vrot.lane.b32.xlu0 %v3583, 32
        %v7602 = vpop.permute.xlu0 %7601
        %7603 = vrot.lane.b32.xlu0 %v3588, 32
        %v7604 = vpop.permute.xlu0 %7603
        %7605 = vrot.lane.b32.xlu0 %v3591, 32
        %v7606 = vpop.permute.xlu0 %7605
        %7607 = vrot.lane.b32.xlu0 %v3596, 32
        %v7608 = vpop.permute.xlu0 %7607
        %7609 = vrot.lane.b32.xlu0 %v3599, 32
        %v7610 = vpop.permute.xlu0 %7609
        %7611 = vrot.lane.b32.xlu0 %v3604, 32
        %v7612 = vpop.permute.xlu0 %7611
        %7613 = vrot.lane.b32.xlu0 %v3607, 32
        %v7614 = vpop.permute.xlu0 %7613
        %7615 = vrot.lane.b32.xlu0 %v3612, 32
        %v7616 = vpop.permute.xlu0 %7615
        %7617 = vrot.lane.b32.xlu0 %v3615, 32
        %v7618 = vpop.permute.xlu0 %7617
        %7619 = vrot.lane.b32.xlu0 %v3620, 32
        %v7620 = vpop.permute.xlu0 %7619
        %7621 = vrot.lane.b32.xlu0 %v3623, 32
        %v7622 = vpop.permute.xlu0 %7621
        %7623 = vrot.lane.b32.xlu0 %v3628, 32
        %v7624 = vpop.permute.xlu0 %7623
        %7625 = vrot.lane.b32.xlu0 %v3631, 32
        %v7626 = vpop.permute.xlu0 %7625
        %7627 = vrot.lane.b32.xlu0 %v3636, 32
        %v7628 = vpop.permute.xlu0 %7627
        %7629 = vrot.lane.b32.xlu0 %v3639, 32
        %v7630 = vpop.permute.xlu0 %7629
        %7631 = vrot.lane.b32.xlu0 %v3644, 32
        %v7632 = vpop.permute.xlu0 %7631
        %7633 = vrot.lane.b32.xlu0 %v3647, 32
        %v7634 = vpop.permute.xlu0 %7633
        %7635 = vrot.lane.b32.xlu0 %v3652, 32
        %v7636 = vpop.permute.xlu0 %7635
        %7637 = vrot.lane.b32.xlu0 %v3655, 32
        %v7638 = vpop.permute.xlu0 %7637
        %7639 = vrot.lane.b32.xlu0 %v3660, 32
        %v7640 = vpop.permute.xlu0 %7639
        %7641 = vrot.lane.b32.xlu0 %v3663, 32
        %v7642 = vpop.permute.xlu0 %7641
        %7643 = vrot.lane.b32.xlu0 %v3668, 32
        %v7644 = vpop.permute.xlu0 %7643
        %7645 = vrot.lane.b32.xlu0 %v3671, 32
        %v7646 = vpop.permute.xlu0 %7645
        %7647 = vrot.lane.b32.xlu0 %v3676, 32
        %v7648 = vpop.permute.xlu0 %7647
        %7649 = vrot.lane.b32.xlu0 %v3679, 32
        %v7650 = vpop.permute.xlu0 %7649
        %7651 = vrot.lane.b32.xlu0 %v3684, 32
        %v7652 = vpop.permute.xlu0 %7651
        %7653 = vrot.lane.b32.xlu0 %v3687, 32
        %v7654 = vpop.permute.xlu0 %7653
        %7655 = vrot.lane.b32.xlu0 %v3692, 32
        %v7656 = vpop.permute.xlu0 %7655
        %7657 = vrot.lane.b32.xlu0 %v3695, 32
        %v7658 = vpop.permute.xlu0 %7657
        %7787 = vrot.lane.b32.xlu0 %v5227, 64
        %v7788 = vpop.permute.xlu0 %7787
        %7789 = vrot.lane.b32.xlu0 %v5230, 64
        %v7790 = vpop.permute.xlu0 %7789
        %7791 = vrot.lane.b32.xlu0 %v5235, 64
        %v7792 = vpop.permute.xlu0 %7791
        %7793 = vrot.lane.b32.xlu0 %v5238, 64
        %v7794 = vpop.permute.xlu0 %7793
        %7795 = vrot.lane.b32.xlu0 %v5243, 64
        %v7796 = vpop.permute.xlu0 %7795
        %7797 = vrot.lane.b32.xlu0 %v5246, 64
        %v7798 = vpop.permute.xlu0 %7797
        %7799 = vrot.lane.b32.xlu0 %v5251, 64
        %v7800 = vpop.permute.xlu0 %7799
        %7801 = vrot.lane.b32.xlu0 %v5254, 64
        %v7802 = vpop.permute.xlu0 %7801
        %7803 = vrot.lane.b32.xlu0 %v5259, 64
        %v7804 = vpop.permute.xlu0 %7803
        %7805 = vrot.lane.b32.xlu0 %v5262, 64
        %v7806 = vpop.permute.xlu0 %7805
        %7807 = vrot.lane.b32.xlu0 %v5267, 64
        %v7808 = vpop.permute.xlu0 %7807
        %7809 = vrot.lane.b32.xlu0 %v5270, 64
        %v7810 = vpop.permute.xlu0 %7809
        %7811 = vrot.lane.b32.xlu0 %v5275, 64
        %v7812 = vpop.permute.xlu0 %7811
        %7813 = vrot.lane.b32.xlu0 %v5278, 64
        %v7814 = vpop.permute.xlu0 %7813
        %7815 = vrot.lane.b32.xlu0 %v5283, 64
        %v7816 = vpop.permute.xlu0 %7815
        %7817 = vrot.lane.b32.xlu0 %v5286, 64
        %v7818 = vpop.permute.xlu0 %7817
        %7819 = vrot.lane.b32.xlu0 %v5291, 64
        %v7820 = vpop.permute.xlu0 %7819
        %7821 = vrot.lane.b32.xlu0 %v5294, 64
        %v7822 = vpop.permute.xlu0 %7821
        %7823 = vrot.lane.b32.xlu0 %v5299, 64
        %v7824 = vpop.permute.xlu0 %7823
        %7825 = vrot.lane.b32.xlu0 %v5302, 64
        %v7826 = vpop.permute.xlu0 %7825
        %7827 = vrot.lane.b32.xlu0 %v5307, 64
        %v7828 = vpop.permute.xlu0 %7827
        %7829 = vrot.lane.b32.xlu0 %v5310, 64
        %v7830 = vpop.permute.xlu0 %7829
        %7831 = vrot.lane.b32.xlu0 %v5315, 64
        %v7832 = vpop.permute.xlu0 %7831
        %7833 = vrot.lane.b32.xlu0 %v5318, 64
        %v7834 = vpop.permute.xlu0 %7833
        %7835 = vrot.lane.b32.xlu0 %v5323, 64
        %v7836 = vpop.permute.xlu0 %7835
        %7837 = vrot.lane.b32.xlu0 %v5326, 64
        %v7838 = vpop.permute.xlu0 %7837
        %7839 = vrot.lane.b32.xlu0 %v5331, 64
        %v7840 = vpop.permute.xlu0 %7839
        %7841 = vrot.lane.b32.xlu0 %v5334, 64
        %v7842 = vpop.permute.xlu0 %7841
        %7843 = vrot.lane.b32.xlu0 %v5339, 64
        %v7844 = vpop.permute.xlu0 %7843
        %7845 = vrot.lane.b32.xlu0 %v5342, 64
        %v7846 = vpop.permute.xlu0 %7845
        %7847 = vrot.lane.b32.xlu0 %v5347, 64
        %v7848 = vpop.permute.xlu0 %7847
        %7849 = vrot.lane.b32.xlu0 %v5350, 64
        %v7850 = vpop.permute.xlu0 %7849
        %7851 = vrot.lane.b32.xlu0 %v5355, 64
        %v7852 = vpop.permute.xlu0 %7851
        %7853 = vrot.lane.b32.xlu0 %v5358, 64
        %v7854 = vpop.permute.xlu0 %7853
        %7855 = vrot.lane.b32.xlu0 %v5363, 64
        %v7856 = vpop.permute.xlu0 %7855
        %7857 = vrot.lane.b32.xlu0 %v5366, 64
        %v7858 = vpop.permute.xlu0 %7857
        %7859 = vrot.lane.b32.xlu0 %v5371, 64
        %v7860 = vpop.permute.xlu0 %7859
        %7861 = vrot.lane.b32.xlu0 %v5374, 64
        %v7862 = vpop.permute.xlu0 %7861
        %7863 = vrot.lane.b32.xlu0 %v5379, 64
        %v7864 = vpop.permute.xlu0 %7863
        %7865 = vrot.lane.b32.xlu0 %v5382, 64
        %v7866 = vpop.permute.xlu0 %7865
        %7867 = vrot.lane.b32.xlu0 %v5387, 64
        %v7868 = vpop.permute.xlu0 %7867
        %7869 = vrot.lane.b32.xlu0 %v5390, 64
        %v7870 = vpop.permute.xlu0 %7869
        %7871 = vrot.lane.b32.xlu0 %v5395, 64
        %v7872 = vpop.permute.xlu0 %7871
        %7873 = vrot.lane.b32.xlu0 %v5398, 64
        %v7874 = vpop.permute.xlu0 %7873
        %7875 = vrot.lane.b32.xlu0 %v5403, 64
        %v7876 = vpop.permute.xlu0 %7875
        %7877 = vrot.lane.b32.xlu0 %v5406, 64
        %v7878 = vpop.permute.xlu0 %7877
        %7879 = vrot.lane.b32.xlu0 %v5411, 64
        %v7880 = vpop.permute.xlu0 %7879
        %7881 = vrot.lane.b32.xlu0 %v5414, 64
        %v7882 = vpop.permute.xlu0 %7881
        %7883 = vrot.lane.b32.xlu0 %v5419, 64
        %v7884 = vpop.permute.xlu0 %7883
        %7885 = vrot.lane.b32.xlu0 %v5422, 64
        %v7886 = vpop.permute.xlu0 %7885
        %7887 = vrot.lane.b32.xlu0 %v5427, 64
        %v7888 = vpop.permute.xlu0 %7887
        %7889 = vrot.lane.b32.xlu0 %v5430, 64
        %v7890 = vpop.permute.xlu0 %7889
        %7891 = vrot.lane.b32.xlu0 %v5435, 64
        %v7892 = vpop.permute.xlu0 %7891
        %7893 = vrot.lane.b32.xlu0 %v5438, 64
        %v7894 = vpop.permute.xlu0 %7893
        %7895 = vrot.lane.b32.xlu0 %v5443, 64
        %v7896 = vpop.permute.xlu0 %7895
        %7897 = vrot.lane.b32.xlu0 %v5446, 64
        %v7898 = vpop.permute.xlu0 %7897
        %7899 = vrot.lane.b32.xlu0 %v5451, 64
        %v7900 = vpop.permute.xlu0 %7899
        %7901 = vrot.lane.b32.xlu0 %v5454, 64
        %v7902 = vpop.permute.xlu0 %7901
        %7903 = vrot.lane.b32.xlu0 %v5459, 64
        %v7904 = vpop.permute.xlu0 %7903
        %7905 = vrot.lane.b32.xlu0 %v5462, 64
        %v7906 = vpop.permute.xlu0 %7905
        %7907 = vrot.lane.b32.xlu0 %v5467, 64
        %v7908 = vpop.permute.xlu0 %7907
        %7909 = vrot.lane.b32.xlu0 %v5470, 64
        %v7910 = vpop.permute.xlu0 %7909
        %7911 = vrot.lane.b32.xlu0 %v5475, 64
        %v7912 = vpop.permute.xlu0 %7911
        %7913 = vrot.lane.b32.xlu0 %v5478, 64
        %v7914 = vpop.permute.xlu0 %7913
        %8043 = vrot.lane.b32.xlu0 %v6881, 96
        %v8044 = vpop.permute.xlu0 %8043
        %8045 = vrot.lane.b32.xlu0 %v6884, 96
        %v8046 = vpop.permute.xlu0 %8045
        %8047 = vrot.lane.b32.xlu0 %v6889, 96
        %v8048 = vpop.permute.xlu0 %8047
        %8049 = vrot.lane.b32.xlu0 %v6892, 96
        %v8050 = vpop.permute.xlu0 %8049
        %8051 = vrot.lane.b32.xlu0 %v6897, 96
        %v8052 = vpop.permute.xlu0 %8051
        %8053 = vrot.lane.b32.xlu0 %v6900, 96
        %v8054 = vpop.permute.xlu0 %8053
        %8055 = vrot.lane.b32.xlu0 %v6905, 96
        %v8056 = vpop.permute.xlu0 %8055
        %8057 = vrot.lane.b32.xlu0 %v6908, 96
        %v8058 = vpop.permute.xlu0 %8057
        %8059 = vrot.lane.b32.xlu0 %v6913, 96
        %v8060 = vpop.permute.xlu0 %8059
        %8061 = vrot.lane.b32.xlu0 %v6916, 96
        %v8062 = vpop.permute.xlu0 %8061
        %8063 = vrot.lane.b32.xlu0 %v6921, 96
        %v8064 = vpop.permute.xlu0 %8063
        %8065 = vrot.lane.b32.xlu0 %v6924, 96
        %v8066 = vpop.permute.xlu0 %8065
        %8067 = vrot.lane.b32.xlu0 %v6929, 96
        %v8068 = vpop.permute.xlu0 %8067
        %8069 = vrot.lane.b32.xlu0 %v6932, 96
        %v8070 = vpop.permute.xlu0 %8069
        %8071 = vrot.lane.b32.xlu0 %v6937, 96
        %v8072 = vpop.permute.xlu0 %8071
        %8073 = vrot.lane.b32.xlu0 %v6940, 96
        %v8074 = vpop.permute.xlu0 %8073
        %8075 = vrot.lane.b32.xlu0 %v6945, 96
        %v8076 = vpop.permute.xlu0 %8075
        %8077 = vrot.lane.b32.xlu0 %v6948, 96
        %v8078 = vpop.permute.xlu0 %8077
        %8079 = vrot.lane.b32.xlu0 %v6953, 96
        %v8080 = vpop.permute.xlu0 %8079
        %8081 = vrot.lane.b32.xlu0 %v6956, 96
        %v8082 = vpop.permute.xlu0 %8081
        %8083 = vrot.lane.b32.xlu0 %v6961, 96
        %v8084 = vpop.permute.xlu0 %8083
        %8085 = vrot.lane.b32.xlu0 %v6964, 96
        %v8086 = vpop.permute.xlu0 %8085
        %8087 = vrot.lane.b32.xlu0 %v6969, 96
        %v8088 = vpop.permute.xlu0 %8087
        %8089 = vrot.lane.b32.xlu0 %v6972, 96
        %v8090 = vpop.permute.xlu0 %8089
        %8091 = vrot.lane.b32.xlu0 %v6977, 96
        %v8092 = vpop.permute.xlu0 %8091
        %8093 = vrot.lane.b32.xlu0 %v6980, 96
        %v8094 = vpop.permute.xlu0 %8093
        %8095 = vrot.lane.b32.xlu0 %v6985, 96
        %v8096 = vpop.permute.xlu0 %8095
        %8097 = vrot.lane.b32.xlu0 %v6988, 96
        %v8098 = vpop.permute.xlu0 %8097
        %8099 = vrot.lane.b32.xlu0 %v6993, 96
        %v8100 = vpop.permute.xlu0 %8099
        %8101 = vrot.lane.b32.xlu0 %v6996, 96
        %v8102 = vpop.permute.xlu0 %8101
        %8103 = vrot.lane.b32.xlu0 %v7001, 96
        %v8104 = vpop.permute.xlu0 %8103
        %8105 = vrot.lane.b32.xlu0 %v7004, 96
        %v8106 = vpop.permute.xlu0 %8105
        %8107 = vrot.lane.b32.xlu0 %v7009, 96
        %v8108 = vpop.permute.xlu0 %8107
        %8109 = vrot.lane.b32.xlu0 %v7012, 96
        %v8110 = vpop.permute.xlu0 %8109
        %8111 = vrot.lane.b32.xlu0 %v7017, 96
        %v8112 = vpop.permute.xlu0 %8111
        %8113 = vrot.lane.b32.xlu0 %v7020, 96
        %v8114 = vpop.permute.xlu0 %8113
        %8115 = vrot.lane.b32.xlu0 %v7025, 96
        %v8116 = vpop.permute.xlu0 %8115
        %8117 = vrot.lane.b32.xlu0 %v7028, 96
        %v8118 = vpop.permute.xlu0 %8117
        %8119 = vrot.lane.b32.xlu0 %v7033, 96
        %v8120 = vpop.permute.xlu0 %8119
        %8121 = vrot.lane.b32.xlu0 %v7036, 96
        %v8122 = vpop.permute.xlu0 %8121
        %8123 = vrot.lane.b32.xlu0 %v7041, 96
        %v8124 = vpop.permute.xlu0 %8123
        %8125 = vrot.lane.b32.xlu0 %v7044, 96
        %v8126 = vpop.permute.xlu0 %8125
        %8127 = vrot.lane.b32.xlu0 %v7049, 96
        %v8128 = vpop.permute.xlu0 %8127
        %8129 = vrot.lane.b32.xlu0 %v7052, 96
        %v8130 = vpop.permute.xlu0 %8129
        %8131 = vrot.lane.b32.xlu0 %v7057, 96
        %v8132 = vpop.permute.xlu0 %8131
        %8133 = vrot.lane.b32.xlu0 %v7060, 96
        %v8134 = vpop.permute.xlu0 %8133
        %8135 = vrot.lane.b32.xlu0 %v7065, 96
        %v8136 = vpop.permute.xlu0 %8135
        %8137 = vrot.lane.b32.xlu0 %v7068, 96
        %v8138 = vpop.permute.xlu0 %8137
        %8139 = vrot.lane.b32.xlu0 %v7073, 96
        %v8140 = vpop.permute.xlu0 %8139
        %8141 = vrot.lane.b32.xlu0 %v7076, 96
        %v8142 = vpop.permute.xlu0 %8141
        %8143 = vrot.lane.b32.xlu0 %v7081, 96
        %v8144 = vpop.permute.xlu0 %8143
        %8145 = vrot.lane.b32.xlu0 %v7084, 96
        %v8146 = vpop.permute.xlu0 %8145
        %8147 = vrot.lane.b32.xlu0 %v7089, 96
        %v8148 = vpop.permute.xlu0 %8147
        %8149 = vrot.lane.b32.xlu0 %v7092, 96
        %v8150 = vpop.permute.xlu0 %8149
        %8151 = vrot.lane.b32.xlu0 %v7097, 96
        %v8152 = vpop.permute.xlu0 %8151
        %8153 = vrot.lane.b32.xlu0 %v7100, 96
        %v8154 = vpop.permute.xlu0 %8153
        %8155 = vrot.lane.b32.xlu0 %v7105, 96
        %v8156 = vpop.permute.xlu0 %8155
        %8157 = vrot.lane.b32.xlu0 %v7108, 96
        %v8158 = vpop.permute.xlu0 %8157
        %8159 = vrot.lane.b32.xlu0 %v7113, 96
        %v8160 = vpop.permute.xlu0 %8159
        %8161 = vrot.lane.b32.xlu0 %v7116, 96
        %v8162 = vpop.permute.xlu0 %8161
        %8163 = vrot.lane.b32.xlu0 %v7121, 96
        %v8164 = vpop.permute.xlu0 %8163
        %8165 = vrot.lane.b32.xlu0 %v7124, 96
        %v8166 = vpop.permute.xlu0 %8165
        %8167 = vrot.lane.b32.xlu0 %v7129, 96
        %v8168 = vpop.permute.xlu0 %8167
        %8169 = vrot.lane.b32.xlu0 %v7132, 96
        %v8170 = vpop.permute.xlu0 %8169
        %v8235 = vsel %vm1915, %v1661, %v7532
        %v8236 = vsel %vm1915, %v1664, %v7534
        %v8237 = vsel %vm1915, %v1669, %v7536
        %v8238 = vsel %vm1915, %v1672, %v7538
        %v8239 = vsel %vm1915, %v1677, %v7540
        %v8240 = vsel %vm1915, %v1680, %v7542
        %v8241 = vsel %vm1915, %v1685, %v7544
        %v8242 = vsel %vm1915, %v1688, %v7546
        %v8243 = vsel %vm1915, %v1693, %v7548
        %v8244 = vsel %vm1915, %v1696, %v7550
        %v8245 = vsel %vm1915, %v1701, %v7552
        %v8246 = vsel %vm1915, %v1704, %v7554
        %v8247 = vsel %vm1915, %v1709, %v7556
        %v8248 = vsel %vm1915, %v1712, %v7558
        %v8249 = vsel %vm1915, %v1717, %v7560
        %v8250 = vsel %vm1915, %v1720, %v7562
        %v8251 = vsel %vm1915, %v1725, %v7564
        %v8252 = vsel %vm1915, %v1728, %v7566
        %v8253 = vsel %vm1915, %v1733, %v7568
        %v8254 = vsel %vm1915, %v1736, %v7570
        %v8255 = vsel %vm1915, %v1741, %v7572
        %v8256 = vsel %vm1915, %v1744, %v7574
        %v8257 = vsel %vm1915, %v1749, %v7576
        %v8258 = vsel %vm1915, %v1752, %v7578
        %v8259 = vsel %vm1915, %v1757, %v7580
        %v8260 = vsel %vm1915, %v1760, %v7582
        %v8261 = vsel %vm1915, %v1765, %v7584
        %v8262 = vsel %vm1915, %v1768, %v7586
        %v8263 = vsel %vm1915, %v1773, %v7588
        %v8264 = vsel %vm1915, %v1776, %v7590
        %v8265 = vsel %vm1915, %v1781, %v7592
        %v8266 = vsel %vm1915, %v1784, %v7594
        %v8267 = vsel %vm1915, %v1789, %v7596
        %v8268 = vsel %vm1915, %v1792, %v7598
        %v8269 = vsel %vm1915, %v1797, %v7600
        %v8270 = vsel %vm1915, %v1800, %v7602
        %v8271 = vsel %vm1915, %v1805, %v7604
        %v8272 = vsel %vm1915, %v1808, %v7606
        %v8273 = vsel %vm1915, %v1813, %v7608
        %v8274 = vsel %vm1915, %v1816, %v7610
        %v8275 = vsel %vm1915, %v1821, %v7612
        %v8276 = vsel %vm1915, %v1824, %v7614
        %v8277 = vsel %vm1915, %v1829, %v7616
        %v8278 = vsel %vm1915, %v1832, %v7618
        %v8279 = vsel %vm1915, %v1837, %v7620
        %v8280 = vsel %vm1915, %v1840, %v7622
        %v8281 = vsel %vm1915, %v1845, %v7624
        %v8282 = vsel %vm1915, %v1848, %v7626
        %v8283 = vsel %vm1915, %v1853, %v7628
        %v8284 = vsel %vm1915, %v1856, %v7630
        %v8285 = vsel %vm1915, %v1861, %v7632
        %v8286 = vsel %vm1915, %v1864, %v7634
        %v8287 = vsel %vm1915, %v1869, %v7636
        %v8288 = vsel %vm1915, %v1872, %v7638
        %v8289 = vsel %vm1915, %v1877, %v7640
        %v8290 = vsel %vm1915, %v1880, %v7642
        %v8291 = vsel %vm1915, %v1885, %v7644
        %v8292 = vsel %vm1915, %v1888, %v7646
        %v8293 = vsel %vm1915, %v1893, %v7648
        %v8294 = vsel %vm1915, %v1896, %v7650
        %v8295 = vsel %vm1915, %v1901, %v7652
        %v8296 = vsel %vm1915, %v1904, %v7654
        %v8297 = vsel %vm1915, %v1909, %v7656
        %v8298 = vsel %vm1915, %v1912, %v7658
        %vm8299 = vcmask 523264
        %v8300 = vsel %vm8299, %v8235, %v7788
        %v8301 = vsel %vm8299, %v8236, %v7790
        %v8302 = vsel %vm8299, %v8237, %v7792
        %v8303 = vsel %vm8299, %v8238, %v7794
        %v8304 = vsel %vm8299, %v8239, %v7796
        %v8305 = vsel %vm8299, %v8240, %v7798
        %v8306 = vsel %vm8299, %v8241, %v7800
        %v8307 = vsel %vm8299, %v8242, %v7802
        %v8308 = vsel %vm8299, %v8243, %v7804
        %v8309 = vsel %vm8299, %v8244, %v7806
        %v8310 = vsel %vm8299, %v8245, %v7808
        %v8311 = vsel %vm8299, %v8246, %v7810
        %v8312 = vsel %vm8299, %v8247, %v7812
        %v8313 = vsel %vm8299, %v8248, %v7814
        %v8314 = vsel %vm8299, %v8249, %v7816
        %v8315 = vsel %vm8299, %v8250, %v7818
        %v8316 = vsel %vm8299, %v8251, %v7820
        %v8317 = vsel %vm8299, %v8252, %v7822
        %v8318 = vsel %vm8299, %v8253, %v7824
        %v8319 = vsel %vm8299, %v8254, %v7826
        %v8320 = vsel %vm8299, %v8255, %v7828
        %v8321 = vsel %vm8299, %v8256, %v7830
        %v8322 = vsel %vm8299, %v8257, %v7832
        %v8323 = vsel %vm8299, %v8258, %v7834
        %v8324 = vsel %vm8299, %v8259, %v7836
        %v8325 = vsel %vm8299, %v8260, %v7838
        %v8326 = vsel %vm8299, %v8261, %v7840
        %v8327 = vsel %vm8299, %v8262, %v7842
        %v8328 = vsel %vm8299, %v8263, %v7844
        %v8329 = vsel %vm8299, %v8264, %v7846
        %v8330 = vsel %vm8299, %v8265, %v7848
        %v8331 = vsel %vm8299, %v8266, %v7850
        %v8332 = vsel %vm8299, %v8267, %v7852
        %v8333 = vsel %vm8299, %v8268, %v7854
        %v8334 = vsel %vm8299, %v8269, %v7856
        %v8335 = vsel %vm8299, %v8270, %v7858
        %v8336 = vsel %vm8299, %v8271, %v7860
        %v8337 = vsel %vm8299, %v8272, %v7862
        %v8338 = vsel %vm8299, %v8273, %v7864
        %v8339 = vsel %vm8299, %v8274, %v7866
        %v8340 = vsel %vm8299, %v8275, %v7868
        %v8341 = vsel %vm8299, %v8276, %v7870
        %v8342 = vsel %vm8299, %v8277, %v7872
        %v8343 = vsel %vm8299, %v8278, %v7874
        %v8344 = vsel %vm8299, %v8279, %v7876
        %v8345 = vsel %vm8299, %v8280, %v7878
        %v8346 = vsel %vm8299, %v8281, %v7880
        %v8347 = vsel %vm8299, %v8282, %v7882
        %v8348 = vsel %vm8299, %v8283, %v7884
        %v8349 = vsel %vm8299, %v8284, %v7886
        %v8350 = vsel %vm8299, %v8285, %v7888
        %v8351 = vsel %vm8299, %v8286, %v7890
        %v8352 = vsel %vm8299, %v8287, %v7892
        %v8353 = vsel %vm8299, %v8288, %v7894
        %v8354 = vsel %vm8299, %v8289, %v7896
        %v8355 = vsel %vm8299, %v8290, %v7898
        %v8356 = vsel %vm8299, %v8291, %v7900
        %v8357 = vsel %vm8299, %v8292, %v7902
        %v8358 = vsel %vm8299, %v8293, %v7904
        %v8359 = vsel %vm8299, %v8294, %v7906
        %v8360 = vsel %vm8299, %v8295, %v7908
        %v8361 = vsel %vm8299, %v8296, %v7910
        %v8362 = vsel %vm8299, %v8297, %v7912
        %v8363 = vsel %vm8299, %v8298, %v7914
        %vm8364 = vcmask 785408
        %v8365 = vsel %vm8364, %v8300, %v8044
        %v8366 = vsel %vm8364, %v8301, %v8046
        %v8367 = vsel %vm8364, %v8302, %v8048
        %v8368 = vsel %vm8364, %v8303, %v8050
        %v8369 = vsel %vm8364, %v8304, %v8052
        %v8370 = vsel %vm8364, %v8305, %v8054
        %v8371 = vsel %vm8364, %v8306, %v8056
        %v8372 = vsel %vm8364, %v8307, %v8058
        %v8373 = vsel %vm8364, %v8308, %v8060
        %v8374 = vsel %vm8364, %v8309, %v8062
        %v8375 = vsel %vm8364, %v8310, %v8064
        %v8376 = vsel %vm8364, %v8311, %v8066
        %v8377 = vsel %vm8364, %v8312, %v8068
        %v8378 = vsel %vm8364, %v8313, %v8070
        %v8379 = vsel %vm8364, %v8314, %v8072
        %v8380 = vsel %vm8364, %v8315, %v8074
        %v8381 = vsel %vm8364, %v8316, %v8076
        %v8382 = vsel %vm8364, %v8317, %v8078
        %v8383 = vsel %vm8364, %v8318, %v8080
        %v8384 = vsel %vm8364, %v8319, %v8082
        %v8385 = vsel %vm8364, %v8320, %v8084
        %v8386 = vsel %vm8364, %v8321, %v8086
        %v8387 = vsel %vm8364, %v8322, %v8088
        %v8388 = vsel %vm8364, %v8323, %v8090
        %v8389 = vsel %vm8364, %v8324, %v8092
        %v8390 = vsel %vm8364, %v8325, %v8094
        %v8391 = vsel %vm8364, %v8326, %v8096
        %v8392 = vsel %vm8364, %v8327, %v8098
        %v8393 = vsel %vm8364, %v8328, %v8100
        %v8394 = vsel %vm8364, %v8329, %v8102
        %v8395 = vsel %vm8364, %v8330, %v8104
        %v8396 = vsel %vm8364, %v8331, %v8106
        %v8397 = vsel %vm8364, %v8332, %v8108
        %v8398 = vsel %vm8364, %v8333, %v8110
        %v8399 = vsel %vm8364, %v8334, %v8112
        %v8400 = vsel %vm8364, %v8335, %v8114
        %v8401 = vsel %vm8364, %v8336, %v8116
        %v8402 = vsel %vm8364, %v8337, %v8118
        %v8403 = vsel %vm8364, %v8338, %v8120
        %v8404 = vsel %vm8364, %v8339, %v8122
        %v8405 = vsel %vm8364, %v8340, %v8124
        %v8406 = vsel %vm8364, %v8341, %v8126
        %v8407 = vsel %vm8364, %v8342, %v8128
        %v8408 = vsel %vm8364, %v8343, %v8130
        %v8409 = vsel %vm8364, %v8344, %v8132
        %v8410 = vsel %vm8364, %v8345, %v8134
        %v8411 = vsel %vm8364, %v8346, %v8136
        %v8412 = vsel %vm8364, %v8347, %v8138
        %v8413 = vsel %vm8364, %v8348, %v8140
        %v8414 = vsel %vm8364, %v8349, %v8142
        %v8415 = vsel %vm8364, %v8350, %v8144
        %v8416 = vsel %vm8364, %v8351, %v8146
        %v8417 = vsel %vm8364, %v8352, %v8148
        %v8418 = vsel %vm8364, %v8353, %v8150
        %v8419 = vsel %vm8364, %v8354, %v8152
        %v8420 = vsel %vm8364, %v8355, %v8154
        %v8421 = vsel %vm8364, %v8356, %v8156
        %v8422 = vsel %vm8364, %v8357, %v8158
        %v8423 = vsel %vm8364, %v8358, %v8160
        %v8424 = vsel %vm8364, %v8359, %v8162
        %v8425 = vsel %vm8364, %v8360, %v8164
        %v8426 = vsel %vm8364, %v8361, %v8166
        %v8427 = vsel %vm8364, %v8362, %v8168
        %v8428 = vsel %vm8364, %v8363, %v8170
        %v8429 = vmul.f32 %v7268, 0.00048828125
        %v8430 = vmul.f32 %v7466, 0.00048828125
        %v8431 = vmul.f32 %v8429, %v8429
        %v8432 = vsub.f32 %v8430, %v8431
        %v8433 = vld [vmem:[%s257] sm:$0x1]
        %v8434 = vadd.f32 %v8432, 1e-05
        %v8435 = vrsqrt.pop %v8434
        %v8436 = vmul.f32 %v8433, %v8435
        %v8437 = vld [vmem:[%s260] sm:$0x1]
        %v8438 = vmul.f32 %v8429, %v8436
        %v8439 = vsub.f32 %v8437, %v8438
        %v8441 = vlaneseq
        %v8442 = vshrl.u32 %v8441, 7
        %v8443 = vsub.s32 0, %v8442
        %v8444 = vrot.slane %v8436, %v8443
        %8445 = vrot.lane.b32.xlu0 %v8444, 32
        %v8446 = vpop.permute.xlu0 %8445
        %8448 = vrot.lane.b32.xlu0 %v8444, 64
        %v8449 = vpop.permute.xlu0 %8448
        %8451 = vrot.lane.b32.xlu0 %v8444, 96
        %v8452 = vpop.permute.xlu0 %8451
        %v8454 = vsel %vm1915, %v8436, %v8446
        %v8455 = vsel %vm8299, %v8454, %v8449
        %v8456 = vsel %vm8364, %v8455, %v8452
        %v8457 = vlaneseq
        %v8458 = vshrl.u32 %v8457, 7
        %v8459 = vsub.s32 0, %v8458
        %v8460 = vrot.slane %v8456, %v8459
        %v8461 = vmul.f32 %v8365, %v8460
        %v8462 = vmul.f32 %v8366, %v8460
        %v8463 = vmul.f32 %v8367, %v8460
        %v8464 = vmul.f32 %v8368, %v8460
        %v8465 = vmul.f32 %v8369, %v8460
        %v8466 = vmul.f32 %v8370, %v8460
        %v8467 = vmul.f32 %v8371, %v8460
        %v8468 = vmul.f32 %v8372, %v8460
        %v8469 = vmul.f32 %v8373, %v8460
        %v8470 = vmul.f32 %v8374, %v8460
        %v8471 = vmul.f32 %v8375, %v8460
        %v8472 = vmul.f32 %v8376, %v8460
        %v8473 = vmul.f32 %v8377, %v8460
        %v8474 = vmul.f32 %v8378, %v8460
        %v8475 = vmul.f32 %v8379, %v8460
        %v8476 = vmul.f32 %v8380, %v8460
        %v8477 = vmul.f32 %v8381, %v8460
        %v8478 = vmul.f32 %v8382, %v8460
        %v8479 = vmul.f32 %v8383, %v8460
        %v8480 = vmul.f32 %v8384, %v8460
        %v8481 = vmul.f32 %v8385, %v8460
        %v8482 = vmul.f32 %v8386, %v8460
        %v8483 = vmul.f32 %v8387, %v8460
        %v8484 = vmul.f32 %v8388, %v8460
        %v8485 = vmul.f32 %v8389, %v8460
        %v8486 = vmul.f32 %v8390, %v8460
        %v8487 = vmul.f32 %v8391, %v8460
        %v8488 = vmul.f32 %v8392, %v8460
        %v8489 = vmul.f32 %v8393, %v8460
        %v8490 = vmul.f32 %v8394, %v8460
        %v8491 = vmul.f32 %v8395, %v8460
        %v8492 = vmul.f32 %v8396, %v8460
        %v8493 = vmul.f32 %v8397, %v8460
        %v8494 = vmul.f32 %v8398, %v8460
        %v8495 = vmul.f32 %v8399, %v8460
        %v8496 = vmul.f32 %v8400, %v8460
        %v8497 = vmul.f32 %v8401, %v8460
        %v8498 = vmul.f32 %v8402, %v8460
        %v8499 = vmul.f32 %v8403, %v8460
        %v8500 = vmul.f32 %v8404, %v8460
        %v8501 = vmul.f32 %v8405, %v8460
        %v8502 = vmul.f32 %v8406, %v8460
        %v8503 = vmul.f32 %v8407, %v8460
        %v8504 = vmul.f32 %v8408, %v8460
        %v8505 = vmul.f32 %v8409, %v8460
        %v8506 = vmul.f32 %v8410, %v8460
        %v8507 = vmul.f32 %v8411, %v8460
        %v8508 = vmul.f32 %v8412, %v8460
        %v8509 = vmul.f32 %v8413, %v8460
        %v8510 = vmul.f32 %v8414, %v8460
        %v8511 = vmul.f32 %v8415, %v8460
        %v8512 = vmul.f32 %v8416, %v8460
        %v8513 = vmul.f32 %v8417, %v8460
        %v8514 = vmul.f32 %v8418, %v8460
        %v8515 = vmul.f32 %v8419, %v8460
        %v8516 = vmul.f32 %v8420, %v8460
        %v8517 = vmul.f32 %v8421, %v8460
        %v8518 = vmul.f32 %v8422, %v8460
        %v8519 = vmul.f32 %v8423, %v8460
        %v8520 = vmul.f32 %v8424, %v8460
        %v8521 = vmul.f32 %v8425, %v8460
        %v8522 = vmul.f32 %v8426, %v8460
        %v8523 = vmul.f32 %v8427, %v8460
        %v8524 = vmul.f32 %v8428, %v8460
        %v8526 = vlaneseq
        %v8527 = vshrl.u32 %v8526, 7
        %v8528 = vsub.s32 0, %v8527
        %v8529 = vrot.slane %v8439, %v8528
        %8530 = vrot.lane.b32.xlu0 %v8529, 32
        %v8531 = vpop.permute.xlu0 %8530
        %8533 = vrot.lane.b32.xlu0 %v8529, 64
        %v8534 = vpop.permute.xlu0 %8533
        %8536 = vrot.lane.b32.xlu0 %v8529, 96
        %v8537 = vpop.permute.xlu0 %8536
        %v8539 = vsel %vm1915, %v8439, %v8531
        %v8540 = vsel %vm8299, %v8539, %v8534
        %v8541 = vsel %vm8364, %v8540, %v8537
        %v8542 = vlaneseq
        %v8543 = vshrl.u32 %v8542, 7
        %v8544 = vsub.s32 0, %v8543
        %v8545 = vrot.slane %v8541, %v8544
        %v8546 = vadd.f32 %v8461, %v8545
        %v8547 = vadd.f32 %v8462, %v8545
        %v8548 = vadd.f32 %v8463, %v8545
        %v8549 = vadd.f32 %v8464, %v8545
        %v8550 = vadd.f32 %v8465, %v8545
        %v8551 = vadd.f32 %v8466, %v8545
        %v8552 = vadd.f32 %v8467, %v8545
        %v8553 = vadd.f32 %v8468, %v8545
        %v8554 = vadd.f32 %v8469, %v8545
        %v8555 = vadd.f32 %v8470, %v8545
        %v8556 = vadd.f32 %v8471, %v8545
        %v8557 = vadd.f32 %v8472, %v8545
        %v8558 = vadd.f32 %v8473, %v8545
        %v8559 = vadd.f32 %v8474, %v8545
        %v8560 = vadd.f32 %v8475, %v8545
        %v8561 = vadd.f32 %v8476, %v8545
        %v8562 = vadd.f32 %v8477, %v8545
        %v8563 = vadd.f32 %v8478, %v8545
        %v8564 = vadd.f32 %v8479, %v8545
        %v8565 = vadd.f32 %v8480, %v8545
        %v8566 = vadd.f32 %v8481, %v8545
        %v8567 = vadd.f32 %v8482, %v8545
        %v8568 = vadd.f32 %v8483, %v8545
        %v8569 = vadd.f32 %v8484, %v8545
        %v8570 = vadd.f32 %v8485, %v8545
        %v8571 = vadd.f32 %v8486, %v8545
        %v8572 = vadd.f32 %v8487, %v8545
        %v8573 = vadd.f32 %v8488, %v8545
        %v8574 = vadd.f32 %v8489, %v8545
        %v8575 = vadd.f32 %v8490, %v8545
        %v8576 = vadd.f32 %v8491, %v8545
        %v8577 = vadd.f32 %v8492, %v8545
        %v8578 = vadd.f32 %v8493, %v8545
        %v8579 = vadd.f32 %v8494, %v8545
        %v8580 = vadd.f32 %v8495, %v8545
        %v8581 = vadd.f32 %v8496, %v8545
        %v8582 = vadd.f32 %v8497, %v8545
        %v8583 = vadd.f32 %v8498, %v8545
        %v8584 = vadd.f32 %v8499, %v8545
        %v8585 = vadd.f32 %v8500, %v8545
        %v8586 = vadd.f32 %v8501, %v8545
        %v8587 = vadd.f32 %v8502, %v8545
        %v8588 = vadd.f32 %v8503, %v8545
        %v8589 = vadd.f32 %v8504, %v8545
        %v8590 = vadd.f32 %v8505, %v8545
        %v8591 = vadd.f32 %v8506, %v8545
        %v8592 = vadd.f32 %v8507, %v8545
        %v8593 = vadd.f32 %v8508, %v8545
        %v8594 = vadd.f32 %v8509, %v8545
        %v8595 = vadd.f32 %v8510, %v8545
        %v8596 = vadd.f32 %v8511, %v8545
        %v8597 = vadd.f32 %v8512, %v8545
        %v8598 = vadd.f32 %v8513, %v8545
        %v8599 = vadd.f32 %v8514, %v8545
        %v8600 = vadd.f32 %v8515, %v8545
        %v8601 = vadd.f32 %v8516, %v8545
        %v8602 = vadd.f32 %v8517, %v8545
        %v8603 = vadd.f32 %v8518, %v8545
        %v8604 = vadd.f32 %v8519, %v8545
        %v8605 = vadd.f32 %v8520, %v8545
        %v8606 = vadd.f32 %v8521, %v8545
        %v8607 = vadd.f32 %v8522, %v8545
        %v8608 = vadd.f32 %v8523, %v8545
        %v8609 = vadd.f32 %v8524, %v8545
        %8610 = vst [vmem:[%s246] sm:$0xff] %v8546
        %8611 = vst [vmem:[%s246 + $0x8] sm:$0xff] %v8547
        %8612 = vst [vmem:[%s246 + $0x10] sm:$0xff] %v8548
        %8613 = vst [vmem:[%s246 + $0x18] sm:$0xff] %v8549
        %8614 = vst [vmem:[%s246 + $0x20] sm:$0xff] %v8550
        %8615 = vst [vmem:[%s246 + $0x28] sm:$0xff] %v8551
        %8616 = vst [vmem:[%s246 + $0x30] sm:$0xff] %v8552
        %8617 = vst [vmem:[%s246 + $0x38] sm:$0xff] %v8553
        %8618 = vst [vmem:[%s246 + $0x40] sm:$0xff] %v8554
        %8619 = vst [vmem:[%s246 + $0x48] sm:$0xff] %v8555
        %8620 = vst [vmem:[%s246 + $0x50] sm:$0xff] %v8556
        %8621 = vst [vmem:[%s246 + $0x58] sm:$0xff] %v8557
        %8622 = vst [vmem:[%s246 + $0x60] sm:$0xff] %v8558
        %8623 = vst [vmem:[%s246 + $0x68] sm:$0xff] %v8559
        %8624 = vst [vmem:[%s246 + $0x70] sm:$0xff] %v8560
        %8625 = vst [vmem:[%s246 + $0x78] sm:$0xff] %v8561
        %8626 = vst [vmem:[%s246 + $0x80] sm:$0xff] %v8562
        %8627 = vst [vmem:[%s246 + $0x88] sm:$0xff] %v8563
        %8628 = vst [vmem:[%s246 + $0x90] sm:$0xff] %v8564
        %8629 = vst [vmem:[%s246 + $0x98] sm:$0xff] %v8565
        %8630 = vst [vmem:[%s246 + $0xa0] sm:$0xff] %v8566
        %8631 = vst [vmem:[%s246 + $0xa8] sm:$0xff] %v8567
        %8632 = vst [vmem:[%s246 + $0xb0] sm:$0xff] %v8568
        %8633 = vst [vmem:[%s246 + $0xb8] sm:$0xff] %v8569
        %8634 = vst [vmem:[%s246 + $0xc0] sm:$0xff] %v8570
        %8635 = vst [vmem:[%s246 + $0xc8] sm:$0xff] %v8571
        %8636 = vst [vmem:[%s246 + $0xd0] sm:$0xff] %v8572
        %8637 = vst [vmem:[%s246 + $0xd8] sm:$0xff] %v8573
        %8638 = vst [vmem:[%s246 + $0xe0] sm:$0xff] %v8574
        %8639 = vst [vmem:[%s246 + $0xe8] sm:$0xff] %v8575
        %8640 = vst [vmem:[%s246 + $0xf0] sm:$0xff] %v8576
        %8641 = vst [vmem:[%s246 + $0xf8] sm:$0xff] %v8577
        %8642 = vst [vmem:[%s246 + $0x100] sm:$0xff] %v8578
        %8643 = vst [vmem:[%s246 + $0x108] sm:$0xff] %v8579
        %8644 = vst [vmem:[%s246 + $0x110] sm:$0xff] %v8580
        %8645 = vst [vmem:[%s246 + $0x118] sm:$0xff] %v8581
        %8646 = vst [vmem:[%s246 + $0x120] sm:$0xff] %v8582
        %8647 = vst [vmem:[%s246 + $0x128] sm:$0xff] %v8583
        %8648 = vst [vmem:[%s246 + $0x130] sm:$0xff] %v8584
        %8649 = vst [vmem:[%s246 + $0x138] sm:$0xff] %v8585
        %8650 = vst [vmem:[%s246 + $0x140] sm:$0xff] %v8586
        %8651 = vst [vmem:[%s246 + $0x148] sm:$0xff] %v8587
        %8652 = vst [vmem:[%s246 + $0x150] sm:$0xff] %v8588
        %8653 = vst [vmem:[%s246 + $0x158] sm:$0xff] %v8589
        %8654 = vst [vmem:[%s246 + $0x160] sm:$0xff] %v8590
        %8655 = vst [vmem:[%s246 + $0x168] sm:$0xff] %v8591
        %8656 = vst [vmem:[%s246 + $0x170] sm:$0xff] %v8592
        %8657 = vst [vmem:[%s246 + $0x178] sm:$0xff] %v8593
        %8658 = vst [vmem:[%s246 + $0x180] sm:$0xff] %v8594
        %8659 = vst [vmem:[%s246 + $0x188] sm:$0xff] %v8595
        %8660 = vst [vmem:[%s246 + $0x190] sm:$0xff] %v8596
        %8661 = vst [vmem:[%s246 + $0x198] sm:$0xff] %v8597
        %8662 = vst [vmem:[%s246 + $0x1a0] sm:$0xff] %v8598
        %8663 = vst [vmem:[%s246 + $0x1a8] sm:$0xff] %v8599
        %8664 = vst [vmem:[%s246 + $0x1b0] sm:$0xff] %v8600
        %8665 = vst [vmem:[%s246 + $0x1b8] sm:$0xff] %v8601
        %8666 = vst [vmem:[%s246 + $0x1c0] sm:$0xff] %v8602
        %8667 = vst [vmem:[%s246 + $0x1c8] sm:$0xff] %v8603
        %8668 = vst [vmem:[%s246 + $0x1d0] sm:$0xff] %v8604
        %8669 = vst [vmem:[%s246 + $0x1d8] sm:$0xff] %v8605
        %8670 = vst [vmem:[%s246 + $0x1e0] sm:$0xff] %v8606
        %8671 = vst [vmem:[%s246 + $0x1e8] sm:$0xff] %v8607
        %8672 = vst [vmem:[%s246 + $0x1f0] sm:$0xff] %v8608
        %8673 = vst [vmem:[%s246 + $0x1f8] sm:$0xff] %v8609
        %s8674 = sand.u32 %s149, 1
        %s8675 = sand.u32 %s149, 1
        %s8676 = smul.addr %s8675, 512
        %s8677 = scalar_lea.vmem [#allocation2], %s8676
        // Predicated region
        $region41: #{upsample_conv_forward.1} parent=39 // pred_check
          %p8678 = pneg %p159
        $region42: #{upsample_conv_forward.1} parent=39 // pred_check_branch
          %8680 = sbr.rel (%p8678) target = $region44
        $region43: #{upsample_conv_forward.1} parent=39 // pred_region
          %s8681 = smul.addr %s16, 8
          %s8682 = scalar_lea.vmem %s5, %s8681
          // Predicated region
          $region45: #{upsample_conv_forward.1} parent=43 // pred_check
            _
          $region46: #{upsample_conv_forward.1} parent=43 // pred_check_branch
            %8684 = sbr.rel (0) target = $region48
          $region47: #{upsample_conv_forward.1} parent=43 // pred_region
            // Predicated region
            $region49: #{upsample_conv_forward.1} parent=47 // pred_check
              _
            $region50: #{upsample_conv_forward.1} parent=47 // pred_check_branch
              %8686 = sbr.rel (0) target = $region52
            $region51: #{upsample_conv_forward.1} parent=47 // pred_region
              // Predicated region
              $region64: #{upsample_conv_forward.1} parent=51 // pred_check
                _
              $region65: #{upsample_conv_forward.1} parent=51 // pred_check_branch
                %8827 = sbr.rel (0) target = $region67
              $region66: #{upsample_conv_forward.1} parent=51 // pred_region
                loop: start=0, step=1, limit=1
                $region68: #{upsample_conv_forward.1} parent=66 // loop_pre_header
                  _
                $region69: #{upsample_conv_forward.1} parent=66 // loop_header
                  %s8829 = sphi 0, %s8833
                  %p8830 = scmp.ge.s32.totalorder %s8829, 1
                  %s8834 = sphi %s8677, %s8677
                  %s8835 = sphi %s8682, %s8682
                $region70: #{upsample_conv_forward.1} parent=66 // loop_header_branch
                  %8832 = sbr.rel (%p8830) target = $region74
                $region71: #{upsample_conv_forward.1} parent=66 // loop_body
                  %v8836 = vld [vmem:[%s8834] sm:$0xff]
                  %8837 = vst [vmem:[%s8835] sm:$0xff] %v8836
                  %v8838 = vld [vmem:[%s8834 + $0x8] sm:$0xff]
                  %8839 = vst [vmem:[%s8835 + $0x10] sm:$0xff] %v8838
                  %v8840 = vld [vmem:[%s8834 + $0x10] sm:$0xff]
                  %8841 = vst [vmem:[%s8835 + $0x20] sm:$0xff] %v8840
                  %v8842 = vld [vmem:[%s8834 + $0x18] sm:$0xff]
                  %8843 = vst [vmem:[%s8835 + $0x30] sm:$0xff] %v8842
                  %v8844 = vld [vmem:[%s8834 + $0x20] sm:$0xff]
                  %8845 = vst [vmem:[%s8835 + $0x40] sm:$0xff] %v8844
                  %v8846 = vld [vmem:[%s8834 + $0x28] sm:$0xff]
                  %8847 = vst [vmem:[%s8835 + $0x50] sm:$0xff] %v8846
                  %v8848 = vld [vmem:[%s8834 + $0x30] sm:$0xff]
                  %8849 = vst [vmem:[%s8835 + $0x60] sm:$0xff] %v8848
                  %v8850 = vld [vmem:[%s8834 + $0x38] sm:$0xff]
                  %8851 = vst [vmem:[%s8835 + $0x70] sm:$0xff] %v8850
                  %v8852 = vld [vmem:[%s8834 + $0x40] sm:$0xff]
                  %8853 = vst [vmem:[%s8835 + $0x80] sm:$0xff] %v8852
                  %v8854 = vld [vmem:[%s8834 + $0x48] sm:$0xff]
                  %8855 = vst [vmem:[%s8835 + $0x90] sm:$0xff] %v8854
                  %v8856 = vld [vmem:[%s8834 + $0x50] sm:$0xff]
                  %8857 = vst [vmem:[%s8835 + $0xa0] sm:$0xff] %v8856
                  %v8858 = vld [vmem:[%s8834 + $0x58] sm:$0xff]
                  %8859 = vst [vmem:[%s8835 + $0xb0] sm:$0xff] %v8858
                  %v8860 = vld [vmem:[%s8834 + $0x60] sm:$0xff]
                  %8861 = vst [vmem:[%s8835 + $0xc0] sm:$0xff] %v8860
                  %v8862 = vld [vmem:[%s8834 + $0x68] sm:$0xff]
                  %8863 = vst [vmem:[%s8835 + $0xd0] sm:$0xff] %v8862
                  %v8864 = vld [vmem:[%s8834 + $0x70] sm:$0xff]
                  %8865 = vst [vmem:[%s8835 + $0xe0] sm:$0xff] %v8864
                  %v8866 = vld [vmem:[%s8834 + $0x78] sm:$0xff]
                  %8867 = vst [vmem:[%s8835 + $0xf0] sm:$0xff] %v8866
                  %v8868 = vld [vmem:[%s8834 + $0x80] sm:$0xff]
                  %8869 = vst [vmem:[%s8835 + $0x100] sm:$0xff] %v8868
                  %v8870 = vld [vmem:[%s8834 + $0x88] sm:$0xff]
                  %8871 = vst [vmem:[%s8835 + $0x110] sm:$0xff] %v8870
                  %v8872 = vld [vmem:[%s8834 + $0x90] sm:$0xff]
                  %8873 = vst [vmem:[%s8835 + $0x120] sm:$0xff] %v8872
                  %v8874 = vld [vmem:[%s8834 + $0x98] sm:$0xff]
                  %8875 = vst [vmem:[%s8835 + $0x130] sm:$0xff] %v8874
                  %v8876 = vld [vmem:[%s8834 + $0xa0] sm:$0xff]
                  %8877 = vst [vmem:[%s8835 + $0x140] sm:$0xff] %v8876
                  %v8878 = vld [vmem:[%s8834 + $0xa8] sm:$0xff]
                  %8879 = vst [vmem:[%s8835 + $0x150] sm:$0xff] %v8878
                  %v8880 = vld [vmem:[%s8834 + $0xb0] sm:$0xff]
                  %8881 = vst [vmem:[%s8835 + $0x160] sm:$0xff] %v8880
                  %v8882 = vld [vmem:[%s8834 + $0xb8] sm:$0xff]
                  %8883 = vst [vmem:[%s8835 + $0x170] sm:$0xff] %v8882
                  %v8884 = vld [vmem:[%s8834 + $0xc0] sm:$0xff]
                  %8885 = vst [vmem:[%s8835 + $0x180] sm:$0xff] %v8884
                  %v8886 = vld [vmem:[%s8834 + $0xc8] sm:$0xff]
                  %8887 = vst [vmem:[%s8835 + $0x190] sm:$0xff] %v8886
                  %v8888 = vld [vmem:[%s8834 + $0xd0] sm:$0xff]
                  %8889 = vst [vmem:[%s8835 + $0x1a0] sm:$0xff] %v8888
                  %v8890 = vld [vmem:[%s8834 + $0xd8] sm:$0xff]
                  %8891 = vst [vmem:[%s8835 + $0x1b0] sm:$0xff] %v8890
                  %v8892 = vld [vmem:[%s8834 + $0xe0] sm:$0xff]
                  %8893 = vst [vmem:[%s8835 + $0x1c0] sm:$0xff] %v8892
                  %v8894 = vld [vmem:[%s8834 + $0xe8] sm:$0xff]
                  %8895 = vst [vmem:[%s8835 + $0x1d0] sm:$0xff] %v8894
                  %v8896 = vld [vmem:[%s8834 + $0xf0] sm:$0xff]
                  %8897 = vst [vmem:[%s8835 + $0x1e0] sm:$0xff] %v8896
                  %v8898 = vld [vmem:[%s8834 + $0xf8] sm:$0xff]
                  %8899 = vst [vmem:[%s8835 + $0x1f0] sm:$0xff] %v8898
                  %v8900 = vld [vmem:[%s8834 + $0x100] sm:$0xff]
                  %8901 = vst [vmem:[%s8835 + $0x200] sm:$0xff] %v8900
                  %v8902 = vld [vmem:[%s8834 + $0x108] sm:$0xff]
                  %8903 = vst [vmem:[%s8835 + $0x210] sm:$0xff] %v8902
                  %v8904 = vld [vmem:[%s8834 + $0x110] sm:$0xff]
                  %8905 = vst [vmem:[%s8835 + $0x220] sm:$0xff] %v8904
                  %v8906 = vld [vmem:[%s8834 + $0x118] sm:$0xff]
                  %8907 = vst [vmem:[%s8835 + $0x230] sm:$0xff] %v8906
                  %v8908 = vld [vmem:[%s8834 + $0x120] sm:$0xff]
                  %8909 = vst [vmem:[%s8835 + $0x240] sm:$0xff] %v8908
                  %v8910 = vld [vmem:[%s8834 + $0x128] sm:$0xff]
                  %8911 = vst [vmem:[%s8835 + $0x250] sm:$0xff] %v8910
                  %v8912 = vld [vmem:[%s8834 + $0x130] sm:$0xff]
                  %8913 = vst [vmem:[%s8835 + $0x260] sm:$0xff] %v8912
                  %v8914 = vld [vmem:[%s8834 + $0x138] sm:$0xff]
                  %8915 = vst [vmem:[%s8835 + $0x270] sm:$0xff] %v8914
                  %v8916 = vld [vmem:[%s8834 + $0x140] sm:$0xff]
                  %8917 = vst [vmem:[%s8835 + $0x280] sm:$0xff] %v8916
                  %v8918 = vld [vmem:[%s8834 + $0x148] sm:$0xff]
                  %8919 = vst [vmem:[%s8835 + $0x290] sm:$0xff] %v8918
                  %v8920 = vld [vmem:[%s8834 + $0x150] sm:$0xff]
                  %8921 = vst [vmem:[%s8835 + $0x2a0] sm:$0xff] %v8920
                  %v8922 = vld [vmem:[%s8834 + $0x158] sm:$0xff]
                  %8923 = vst [vmem:[%s8835 + $0x2b0] sm:$0xff] %v8922
                  %v8924 = vld [vmem:[%s8834 + $0x160] sm:$0xff]
                  %8925 = vst [vmem:[%s8835 + $0x2c0] sm:$0xff] %v8924
                  %v8926 = vld [vmem:[%s8834 + $0x168] sm:$0xff]
                  %8927 = vst [vmem:[%s8835 + $0x2d0] sm:$0xff] %v8926
                  %v8928 = vld [vmem:[%s8834 + $0x170] sm:$0xff]
                  %8929 = vst [vmem:[%s8835 + $0x2e0] sm:$0xff] %v8928
                  %v8930 = vld [vmem:[%s8834 + $0x178] sm:$0xff]
                  %8931 = vst [vmem:[%s8835 + $0x2f0] sm:$0xff] %v8930
                  %v8932 = vld [vmem:[%s8834 + $0x180] sm:$0xff]
                  %8933 = vst [vmem:[%s8835 + $0x300] sm:$0xff] %v8932
                  %v8934 = vld [vmem:[%s8834 + $0x188] sm:$0xff]
                  %8935 = vst [vmem:[%s8835 + $0x310] sm:$0xff] %v8934
                  %v8936 = vld [vmem:[%s8834 + $0x190] sm:$0xff]
                  %8937 = vst [vmem:[%s8835 + $0x320] sm:$0xff] %v8936
                  %v8938 = vld [vmem:[%s8834 + $0x198] sm:$0xff]
                  %8939 = vst [vmem:[%s8835 + $0x330] sm:$0xff] %v8938
                  %v8940 = vld [vmem:[%s8834 + $0x1a0] sm:$0xff]
                  %8941 = vst [vmem:[%s8835 + $0x340] sm:$0xff] %v8940
                  %v8942 = vld [vmem:[%s8834 + $0x1a8] sm:$0xff]
                  %8943 = vst [vmem:[%s8835 + $0x350] sm:$0xff] %v8942
                  %v8944 = vld [vmem:[%s8834 + $0x1b0] sm:$0xff]
                  %8945 = vst [vmem:[%s8835 + $0x360] sm:$0xff] %v8944
                  %v8946 = vld [vmem:[%s8834 + $0x1b8] sm:$0xff]
                  %8947 = vst [vmem:[%s8835 + $0x370] sm:$0xff] %v8946
                  %v8948 = vld [vmem:[%s8834 + $0x1c0] sm:$0xff]
                  %8949 = vst [vmem:[%s8835 + $0x380] sm:$0xff] %v8948
                  %v8950 = vld [vmem:[%s8834 + $0x1c8] sm:$0xff]
                  %8951 = vst [vmem:[%s8835 + $0x390] sm:$0xff] %v8950
                  %v8952 = vld [vmem:[%s8834 + $0x1d0] sm:$0xff]
                  %8953 = vst [vmem:[%s8835 + $0x3a0] sm:$0xff] %v8952
                  %v8954 = vld [vmem:[%s8834 + $0x1d8] sm:$0xff]
                  %8955 = vst [vmem:[%s8835 + $0x3b0] sm:$0xff] %v8954
                  %v8956 = vld [vmem:[%s8834 + $0x1e0] sm:$0xff]
                  %8957 = vst [vmem:[%s8835 + $0x3c0] sm:$0xff] %v8956
                  %v8958 = vld [vmem:[%s8834 + $0x1e8] sm:$0xff]
                  %8959 = vst [vmem:[%s8835 + $0x3d0] sm:$0xff] %v8958
                  %v8960 = vld [vmem:[%s8834 + $0x1f0] sm:$0xff]
                  %8961 = vst [vmem:[%s8835 + $0x3e0] sm:$0xff] %v8960
                  %v8962 = vld [vmem:[%s8834 + $0x1f8] sm:$0xff]
                  %8963 = vst [vmem:[%s8835 + $0x3f0] sm:$0xff] %v8962
                $region72: #{upsample_conv_forward.1} parent=66 // loop_footer
                  %s8833 = sadd.s32 1, %s8829
                $region73: #{upsample_conv_forward.1} parent=66 // loop_footer_branch
                  %8828 = sbr.rel target = $region69
                $region74: #{upsample_conv_forward.1} parent=66 // loop_exit
                  _
              $region67: #{upsample_conv_forward.1} parent=51 // pred_fallthru
                _
              // Predicated region
              $region75: #{upsample_conv_forward.1} parent=51 // pred_check
                _
              $region76: #{upsample_conv_forward.1} parent=51 // pred_check_branch
                %8965 = sbr.rel target = $region78
              $region77: #{upsample_conv_forward.1} parent=51 // pred_region
                _
              $region78: #{upsample_conv_forward.1} parent=51 // pred_fallthru
                _
            $region52: #{upsample_conv_forward.1} parent=47 // pred_fallthru
              _
            // Predicated region
            $region53: #{upsample_conv_forward.1} parent=47 // pred_check
              _
            $region54: #{upsample_conv_forward.1} parent=47 // pred_check_branch
              %8688 = sbr.rel target = $region56
            $region55: #{upsample_conv_forward.1} parent=47 // pred_region
              loop: start=0, step=1, limit=1
              $region57: #{upsample_conv_forward.1} parent=55 // loop_pre_header
                _
              $region58: #{upsample_conv_forward.1} parent=55 // loop_header
                %s8691 = sphi 0, %s8695
                %p8692 = scmp.ge.s32.totalorder %s8691, 1
                %s8696 = sphi %s8677, %s8677
                %s8697 = sphi %s8682, %s8682
              $region59: #{upsample_conv_forward.1} parent=55 // loop_header_branch
                %8694 = sbr.rel (%p8692) target = $region63
              $region60: #{upsample_conv_forward.1} parent=55 // loop_body
                %v8698 = vld [vmem:[%s8696] sm:$0xff]
                %8699 = vst [vmem:[%s8697] sm:$0xff] %v8698
                %v8700 = vld [vmem:[%s8696 + $0x8] sm:$0xff]
                %8701 = vst [vmem:[%s8697 + $0x10] sm:$0xff] %v8700
                %v8702 = vld [vmem:[%s8696 + $0x10] sm:$0xff]
                %8703 = vst [vmem:[%s8697 + $0x20] sm:$0xff] %v8702
                %v8704 = vld [vmem:[%s8696 + $0x18] sm:$0xff]
                %8705 = vst [vmem:[%s8697 + $0x30] sm:$0xff] %v8704
                %v8706 = vld [vmem:[%s8696 + $0x20] sm:$0xff]
                %8707 = vst [vmem:[%s8697 + $0x40] sm:$0xff] %v8706
                %v8708 = vld [vmem:[%s8696 + $0x28] sm:$0xff]
                %8709 = vst [vmem:[%s8697 + $0x50] sm:$0xff] %v8708
                %v8710 = vld [vmem:[%s8696 + $0x30] sm:$0xff]
                %8711 = vst [vmem:[%s8697 + $0x60] sm:$0xff] %v8710
                %v8712 = vld [vmem:[%s8696 + $0x38] sm:$0xff]
                %8713 = vst [vmem:[%s8697 + $0x70] sm:$0xff] %v8712
                %v8714 = vld [vmem:[%s8696 + $0x40] sm:$0xff]
                %8715 = vst [vmem:[%s8697 + $0x80] sm:$0xff] %v8714
                %v8716 = vld [vmem:[%s8696 + $0x48] sm:$0xff]
                %8717 = vst [vmem:[%s8697 + $0x90] sm:$0xff] %v8716
                %v8718 = vld [vmem:[%s8696 + $0x50] sm:$0xff]
                %8719 = vst [vmem:[%s8697 + $0xa0] sm:$0xff] %v8718
                %v8720 = vld [vmem:[%s8696 + $0x58] sm:$0xff]
                %8721 = vst [vmem:[%s8697 + $0xb0] sm:$0xff] %v8720
                %v8722 = vld [vmem:[%s8696 + $0x60] sm:$0xff]
                %8723 = vst [vmem:[%s8697 + $0xc0] sm:$0xff] %v8722
                %v8724 = vld [vmem:[%s8696 + $0x68] sm:$0xff]
                %8725 = vst [vmem:[%s8697 + $0xd0] sm:$0xff] %v8724
                %v8726 = vld [vmem:[%s8696 + $0x70] sm:$0xff]
                %8727 = vst [vmem:[%s8697 + $0xe0] sm:$0xff] %v8726
                %v8728 = vld [vmem:[%s8696 + $0x78] sm:$0xff]
                %8729 = vst [vmem:[%s8697 + $0xf0] sm:$0xff] %v8728
                %v8730 = vld [vmem:[%s8696 + $0x80] sm:$0xff]
                %8731 = vst [vmem:[%s8697 + $0x100] sm:$0xff] %v8730
                %v8732 = vld [vmem:[%s8696 + $0x88] sm:$0xff]
                %8733 = vst [vmem:[%s8697 + $0x110] sm:$0xff] %v8732
                %v8734 = vld [vmem:[%s8696 + $0x90] sm:$0xff]
                %8735 = vst [vmem:[%s8697 + $0x120] sm:$0xff] %v8734
                %v8736 = vld [vmem:[%s8696 + $0x98] sm:$0xff]
                %8737 = vst [vmem:[%s8697 + $0x130] sm:$0xff] %v8736
                %v8738 = vld [vmem:[%s8696 + $0xa0] sm:$0xff]
                %8739 = vst [vmem:[%s8697 + $0x140] sm:$0xff] %v8738
                %v8740 = vld [vmem:[%s8696 + $0xa8] sm:$0xff]
                %8741 = vst [vmem:[%s8697 + $0x150] sm:$0xff] %v8740
                %v8742 = vld [vmem:[%s8696 + $0xb0] sm:$0xff]
                %8743 = vst [vmem:[%s8697 + $0x160] sm:$0xff] %v8742
                %v8744 = vld [vmem:[%s8696 + $0xb8] sm:$0xff]
                %8745 = vst [vmem:[%s8697 + $0x170] sm:$0xff] %v8744
                %v8746 = vld [vmem:[%s8696 + $0xc0] sm:$0xff]
                %8747 = vst [vmem:[%s8697 + $0x180] sm:$0xff] %v8746
                %v8748 = vld [vmem:[%s8696 + $0xc8] sm:$0xff]
                %8749 = vst [vmem:[%s8697 + $0x190] sm:$0xff] %v8748
                %v8750 = vld [vmem:[%s8696 + $0xd0] sm:$0xff]
                %8751 = vst [vmem:[%s8697 + $0x1a0] sm:$0xff] %v8750
                %v8752 = vld [vmem:[%s8696 + $0xd8] sm:$0xff]
                %8753 = vst [vmem:[%s8697 + $0x1b0] sm:$0xff] %v8752
                %v8754 = vld [vmem:[%s8696 + $0xe0] sm:$0xff]
                %8755 = vst [vmem:[%s8697 + $0x1c0] sm:$0xff] %v8754
                %v8756 = vld [vmem:[%s8696 + $0xe8] sm:$0xff]
                %8757 = vst [vmem:[%s8697 + $0x1d0] sm:$0xff] %v8756
                %v8758 = vld [vmem:[%s8696 + $0xf0] sm:$0xff]
                %8759 = vst [vmem:[%s8697 + $0x1e0] sm:$0xff] %v8758
                %v8760 = vld [vmem:[%s8696 + $0xf8] sm:$0xff]
                %8761 = vst [vmem:[%s8697 + $0x1f0] sm:$0xff] %v8760
                %v8762 = vld [vmem:[%s8696 + $0x100] sm:$0xff]
                %8763 = vst [vmem:[%s8697 + $0x200] sm:$0xff] %v8762
                %v8764 = vld [vmem:[%s8696 + $0x108] sm:$0xff]
                %8765 = vst [vmem:[%s8697 + $0x210] sm:$0xff] %v8764
                %v8766 = vld [vmem:[%s8696 + $0x110] sm:$0xff]
                %8767 = vst [vmem:[%s8697 + $0x220] sm:$0xff] %v8766
                %v8768 = vld [vmem:[%s8696 + $0x118] sm:$0xff]
                %8769 = vst [vmem:[%s8697 + $0x230] sm:$0xff] %v8768
                %v8770 = vld [vmem:[%s8696 + $0x120] sm:$0xff]
                %8771 = vst [vmem:[%s8697 + $0x240] sm:$0xff] %v8770
                %v8772 = vld [vmem:[%s8696 + $0x128] sm:$0xff]
                %8773 = vst [vmem:[%s8697 + $0x250] sm:$0xff] %v8772
                %v8774 = vld [vmem:[%s8696 + $0x130] sm:$0xff]
                %8775 = vst [vmem:[%s8697 + $0x260] sm:$0xff] %v8774
                %v8776 = vld [vmem:[%s8696 + $0x138] sm:$0xff]
                %8777 = vst [vmem:[%s8697 + $0x270] sm:$0xff] %v8776
                %v8778 = vld [vmem:[%s8696 + $0x140] sm:$0xff]
                %8779 = vst [vmem:[%s8697 + $0x280] sm:$0xff] %v8778
                %v8780 = vld [vmem:[%s8696 + $0x148] sm:$0xff]
                %8781 = vst [vmem:[%s8697 + $0x290] sm:$0xff] %v8780
                %v8782 = vld [vmem:[%s8696 + $0x150] sm:$0xff]
                %8783 = vst [vmem:[%s8697 + $0x2a0] sm:$0xff] %v8782
                %v8784 = vld [vmem:[%s8696 + $0x158] sm:$0xff]
                %8785 = vst [vmem:[%s8697 + $0x2b0] sm:$0xff] %v8784
                %v8786 = vld [vmem:[%s8696 + $0x160] sm:$0xff]
                %8787 = vst [vmem:[%s8697 + $0x2c0] sm:$0xff] %v8786
                %v8788 = vld [vmem:[%s8696 + $0x168] sm:$0xff]
                %8789 = vst [vmem:[%s8697 + $0x2d0] sm:$0xff] %v8788
                %v8790 = vld [vmem:[%s8696 + $0x170] sm:$0xff]
                %8791 = vst [vmem:[%s8697 + $0x2e0] sm:$0xff] %v8790
                %v8792 = vld [vmem:[%s8696 + $0x178] sm:$0xff]
                %8793 = vst [vmem:[%s8697 + $0x2f0] sm:$0xff] %v8792
                %v8794 = vld [vmem:[%s8696 + $0x180] sm:$0xff]
                %8795 = vst [vmem:[%s8697 + $0x300] sm:$0xff] %v8794
                %v8796 = vld [vmem:[%s8696 + $0x188] sm:$0xff]
                %8797 = vst [vmem:[%s8697 + $0x310] sm:$0xff] %v8796
                %v8798 = vld [vmem:[%s8696 + $0x190] sm:$0xff]
                %8799 = vst [vmem:[%s8697 + $0x320] sm:$0xff] %v8798
                %v8800 = vld [vmem:[%s8696 + $0x198] sm:$0xff]
                %8801 = vst [vmem:[%s8697 + $0x330] sm:$0xff] %v8800
                %v8802 = vld [vmem:[%s8696 + $0x1a0] sm:$0xff]
                %8803 = vst [vmem:[%s8697 + $0x340] sm:$0xff] %v8802
                %v8804 = vld [vmem:[%s8696 + $0x1a8] sm:$0xff]
                %8805 = vst [vmem:[%s8697 + $0x350] sm:$0xff] %v8804
                %v8806 = vld [vmem:[%s8696 + $0x1b0] sm:$0xff]
                %8807 = vst [vmem:[%s8697 + $0x360] sm:$0xff] %v8806
                %v8808 = vld [vmem:[%s8696 + $0x1b8] sm:$0xff]
                %8809 = vst [vmem:[%s8697 + $0x370] sm:$0xff] %v8808
                %v8810 = vld [vmem:[%s8696 + $0x1c0] sm:$0xff]
                %8811 = vst [vmem:[%s8697 + $0x380] sm:$0xff] %v8810
                %v8812 = vld [vmem:[%s8696 + $0x1c8] sm:$0xff]
                %8813 = vst [vmem:[%s8697 + $0x390] sm:$0xff] %v8812
                %v8814 = vld [vmem:[%s8696 + $0x1d0] sm:$0xff]
                %8815 = vst [vmem:[%s8697 + $0x3a0] sm:$0xff] %v8814
                %v8816 = vld [vmem:[%s8696 + $0x1d8] sm:$0xff]
                %8817 = vst [vmem:[%s8697 + $0x3b0] sm:$0xff] %v8816
                %v8818 = vld [vmem:[%s8696 + $0x1e0] sm:$0xff]
                %8819 = vst [vmem:[%s8697 + $0x3c0] sm:$0xff] %v8818
                %v8820 = vld [vmem:[%s8696 + $0x1e8] sm:$0xff]
                %8821 = vst [vmem:[%s8697 + $0x3d0] sm:$0xff] %v8820
                %v8822 = vld [vmem:[%s8696 + $0x1f0] sm:$0xff]
                %8823 = vst [vmem:[%s8697 + $0x3e0] sm:$0xff] %v8822
                %v8824 = vld [vmem:[%s8696 + $0x1f8] sm:$0xff]
                %8825 = vst [vmem:[%s8697 + $0x3f0] sm:$0xff] %v8824
              $region61: #{upsample_conv_forward.1} parent=55 // loop_footer
                %s8695 = sadd.s32 1, %s8691
              $region62: #{upsample_conv_forward.1} parent=55 // loop_footer_branch
                %8690 = sbr.rel target = $region58
              $region63: #{upsample_conv_forward.1} parent=55 // loop_exit
                _
            $region56: #{upsample_conv_forward.1} parent=47 // pred_fallthru
              _
          $region48: #{upsample_conv_forward.1} parent=43 // pred_fallthru
            _
          %8966 = vnop
        $region44: #{upsample_conv_forward.1} parent=39 // pred_fallthru
          _
      $region40: #{upsample_conv_forward.1} parent=5 // pred_fallthru
        _
      %p8967 = scmp.le.s32.totalorder 2, %s11
      // Predicated region
      $region79: #{upsample_conv_forward.1} parent=5 // pred_check
        %p8968 = pneg %p8967
      $region80: #{upsample_conv_forward.1} parent=5 // pred_check_branch
        %8970 = sbr.rel (%p8968) target = $region82
      $region81: #{upsample_conv_forward.1} parent=5 // pred_region
        %s8971 = ssub.s32 %s11, 2
        // Predicated region
        $region83: #{upsample_conv_forward.1} parent=81 // pred_check
          %p8972 = pneg %p165
        $region84: #{upsample_conv_forward.1} parent=81 // pred_check_branch
          %8974 = sbr.rel (%p8972) target = $region86
        $region85: #{upsample_conv_forward.1} parent=81 // pred_region
          %s8975 = sand.u32 %s150, 1
          %s8976 = sand.u32 %s150, 1
          %s8977 = smul.addr %s8976, 512
          %s8978 = scalar_lea.vmem [#allocation2], %s8977
        $region86: #{upsample_conv_forward.1} parent=81 // pred_fallthru
          _
      $region82: #{upsample_conv_forward.1} parent=5 // pred_fallthru
        _
    $region6: #{upsample_conv_forward.1} parent=1 // loop_footer
      %s15 = sadd.s32 1, %s11
    $region7: #{upsample_conv_forward.1} parent=1 // loop_footer_branch
      %10 = sbr.rel target = $region3
    $region8: #{upsample_conv_forward.1} parent=1 // loop_exit
      _

</llo_original>
